<compile_context>
chip_gen: v5e
topology: v5e:2x2
jax: 0.10.0
libtpu: 0.0.40
codegen_flags: <defaults>
</compile_context>

<pallas_src>
import functools

import jax
import jax.numpy as jnp
from jax.experimental import pallas as pl
from jax.experimental.pallas import tpu as pltpu


def _round_up(x, m):
    return (x + m - 1) // m * m


# ------------------------------- Pallas kernel ------------------------------ #

def _wide_basic_kernel(x_ref, w1_ref, w2_ref, aff_ref, *rest, H, W, has_projection):
    """Bblk images per grid step. Everything stays in VMEM.

    x_ref    : (Bblk, H+2, W+2, Cpi) bf16   input, spatial halo=1, channels padded
    w1_ref   : (9*Cpi, Cpo)          bf16   conv1 weights, K-packed (tap-major)
    w2_ref   : (9*Cpo, Cpo)          bf16   conv2 weights, K-packed
    aff_ref  : (8, Cpo)              f32    rows: s1,b1,s2,b2,ssc,bsc,(pad,pad)
    wsc_ref  : (Cpi, Cpo)            bf16   1x1 projection weights (only if needed)
    o_ref    : (Bblk, H, W, Cpo)     f32    block output (stride-1 resolution)
    h1_ref   : (Bblk, H+2, W+2, Cpo) bf16   scratch: conv1 activation + zero halo
    slab_ref : (Bblk, H, W, 9*Cmax)  bf16   scratch: im2col slab (reused by both convs)
    """
    if has_projection:
        wsc_ref, o_ref, h1_ref, slab_ref = rest
    else:
        o_ref, h1_ref, slab_ref = rest

    Bblk = x_ref.shape[0]
    Cpi = x_ref.shape[-1]
    Cpo = o_ref.shape[-1]
    M = Bblk * H * W

    # Zero only the 1-wide halo strips of h1 (interior is fully overwritten
    # below).  Done every step so it is correct even when the batch grid axis
    # is split across TensorCores (per-core scratch never saw program_id 0).
    zrow = jnp.zeros((Bblk, 1, W + 2, Cpo), jnp.bfloat16)
    h1_ref[:, 0:1, :, :] = zrow
    h1_ref[:, H + 1:H + 2, :, :] = zrow
    zcol = jnp.zeros((Bblk, H, 1, Cpo), jnp.bfloat16)
    h1_ref[:, 1:1 + H, 0:1, :] = zcol
    h1_ref[:, 1:1 + H, W + 1:W + 2, :] = zcol

    def slab_lhs(k):
        if k == slab_ref.shape[-1]:
            v = slab_ref[...]
        else:
            v = slab_ref[:, :, :, :k]
        return v.reshape(M, k)

    # ---- conv1 (3x3, stride 1, pad 1): im2col slab -> one K-packed MXU matmul
    for kh in range(3):
        for kw in range(3):
            t = kh * 3 + kw
            slab_ref[:, :, :, t * Cpi:(t + 1) * Cpi] = x_ref[:, kh:kh + H, kw:kw + W, :]
    acc1 = jnp.dot(slab_lhs(9 * Cpi), w1_ref[...],
                   preferred_element_type=jnp.float32)
    o1 = jnp.maximum(acc1 * aff_ref[0:1, :] + aff_ref[1:2, :], 0.0)      # bn1 + relu
    # Stage conv1 activation (bf16, single cast) inside h1's zero halo.
    h1_ref[:, 1:1 + H, 1:1 + W, :] = o1.astype(jnp.bfloat16).reshape(Bblk, H, W, Cpo)

    # ---- conv2 (3x3, pad 1; stride handled by exact decimation outside) ----
    for kh in range(3):
        for kw in range(3):
            t = kh * 3 + kw
            slab_ref[:, :, :, t * Cpo:(t + 1) * Cpo] = h1_ref[:, kh:kh + H, kw:kw + W, :]
    acc2 = jnp.dot(slab_lhs(9 * Cpo), w2_ref[...],
                   preferred_element_type=jnp.float32)
    o2 = jnp.maximum(acc2 * aff_ref[2:3, :] + aff_ref[3:4, :], 0.0)      # bn2 + relu

    # ---- shortcut (computed in-kernel, no residual DMA) ----
    x_in = x_ref[:, 1:1 + H, 1:1 + W, :].reshape(M, Cpi)                 # bf16
    if has_projection:
        sc = jnp.dot(x_in, wsc_ref[...], preferred_element_type=jnp.float32)
        sc = sc * aff_ref[4:5, :] + aff_ref[5:6, :]                      # conv bias + bn folded
    else:
        sc = x_in.astype(jnp.float32)                                    # identity

    # wide_basic: relu happens *before* the residual add, none after.
    o_ref[...] = (o2 + sc).reshape(Bblk, H, W, Cpo)


# --------------------------------- wrapper ---------------------------------- #

def wide_basic_apply(x_nchw, params, *, stride=1):
    """Forward pass of wide_basic. x: NCHW f32. Returns NCHW f32."""
    B, cin, H, W = x_nchw.shape
    planes = params["w1"].shape[0]
    has_projection = "wsc" in params
    assert has_projection == (stride != 1 or cin != planes)

    Cpi = _round_up(cin, 128)        # lane-dense channel padding
    Cpo = _round_up(planes, 128)
    Cpmax = max(Cpi, Cpo)
    Hp, Wp = H + 2, W + 2

    # ---- choose images per grid step from a VMEM budget ----
    def ceil8(n):
        return _round_up(n, 8)

    bytes_per_image = (
        2 * Hp * ceil8(Wp) * Cpi * 2          # x block (bf16, double-buffered)
        + 2 * H * ceil8(W) * Cpo * 4          # out block (f32, double-buffered)
        + Hp * ceil8(Wp) * Cpo * 2            # h1 scratch (bf16)
        + H * ceil8(W) * 9 * Cpmax * 2        # im2col slab (bf16)
        + 4 * H * ceil8(W) * Cpo * 4          # f32 matmul/epilogue temporaries (margin)
    )
    weight_bytes = 2 * ((9 * Cpi + 9 * Cpo + Cpi) * Cpo * 2 + 8 * Cpo * 4)
    budget = 40 * 1024 * 1024                 # keeps v7x (64 MiB VMEM) comfortable
    bblk = int(max(1, min(8, (budget - weight_bytes) // max(bytes_per_image, 1))))
    bblk = min(bblk, B)
    if B >= 2:
        bblk = max(1, min(bblk, B // 2))      # grid >= 2 so both v7x cores get work
    Bpad = _round_up(B, bblk)
    grid_len = Bpad // bblk

    est = weight_bytes + bblk * bytes_per_image
    vmem_limit = int(min(64 * 1024 * 1024, max(32 * 1024 * 1024, est + 8 * 1024 * 1024)))

    # NCHW -> NHWC, bf16 staging BEFORE padding, spatial halo of 1, channel pad.
    x = jnp.transpose(x_nchw, (0, 2, 3, 1)).astype(jnp.bfloat16)
    x_pad = jnp.pad(x, ((0, Bpad - B), (1, 1), (1, 1), (0, Cpi - cin)))

    def pack_w3(w, cin_p, cout_p):
        # torch (cout, cin, 3, 3) -> K-packed (9*cin_p, cout_p) bf16, zero padded.
        w = jnp.transpose(w, (2, 3, 1, 0))                       # (3,3,cin,cout)
        w = jnp.pad(w, ((0, 0), (0, 0),
                        (0, cin_p - w.shape[2]), (0, cout_p - w.shape[3])))
        return w.reshape(9 * cin_p, cout_p).astype(jnp.bfloat16)

    w1p = pack_w3(params["w1"], Cpi, Cpo)
    w2p = pack_w3(params["w2"], Cpo, Cpo)

    def pad_vec(v, fill):
        return jnp.pad(v.astype(jnp.float32), (0, Cpo - v.shape[0]),
                       constant_values=fill)

    ones = jnp.ones((planes,), jnp.float32)
    zeros = jnp.zeros((planes,), jnp.float32)
    aff = jnp.stack([
        pad_vec(params["s1"], 1.0), pad_vec(params["b1"], 0.0),
        pad_vec(params["s2"], 1.0), pad_vec(params["b2"], 0.0),
        pad_vec(params.get("ssc", ones), 1.0), pad_vec(params.get("bsc", zeros), 0.0),
        jnp.zeros((Cpo,), jnp.float32), jnp.zeros((Cpo,), jnp.float32),
    ])

    operands = [x_pad, w1p, w2p, aff]
    in_specs = [
        pl.BlockSpec((bblk, Hp, Wp, Cpi), lambda b: (b, 0, 0, 0)),
        pl.BlockSpec((9 * Cpi, Cpo), lambda b: (0, 0)),
        pl.BlockSpec((9 * Cpo, Cpo), lambda b: (0, 0)),
        pl.BlockSpec((8, Cpo), lambda b: (0, 0)),
    ]
    if has_projection:
        wsc = params["wsc"].reshape(planes, cin)                 # torch (cout, cin, 1, 1)
        wscp = jnp.pad(jnp.transpose(wsc, (1, 0)),
                       ((0, Cpi - cin), (0, Cpo - planes))).astype(jnp.bfloat16)
        operands.append(wscp)
        in_specs.append(pl.BlockSpec((Cpi, Cpo), lambda b: (0, 0)))

    kernel = functools.partial(_wide_basic_kernel, H=H, W=W,
                               has_projection=has_projection)

    out_full = pl.pallas_call(
        kernel,
        grid=(grid_len,),
        in_specs=in_specs,
        out_specs=pl.BlockSpec((bblk, H, W, Cpo), lambda b: (b, 0, 0, 0)),
        out_shape=jax.ShapeDtypeStruct((Bpad, H, W, Cpo), jnp.float32),
        scratch_shapes=[pltpu.VMEM((bblk, Hp, Wp, Cpo), jnp.bfloat16),
                        pltpu.VMEM((bblk, H, W, 9 * Cpmax), jnp.bfloat16)],
        compiler_params=pltpu.CompilerParams(
            dimension_semantics=("parallel",),          # v7x megacore over batch
            vmem_limit_bytes=vmem_limit),
    )(*operands)

    # Exact stride handling + strip batch/channel padding (cheap XLA slice).
    out = out_full[:B, ::stride, ::stride, :planes]
    return jnp.transpose(out, (0, 3, 1, 2))             # back to NCHW


# ----------------------- parameters (eval-mode BN folded) ------------------- #

def bn_fold(gamma, beta, mean, var, eps=1e-5):
    s = gamma * jax.lax.rsqrt(var + eps)
    return s, beta - mean * s


def init_wide_basic_params(key, in_planes, planes, *, stride=1, bn=True):
    ks = iter(jax.random.split(key, 20))

    def conv_w(cout, cin, k):
        fan = cin * k * k
        return jax.random.normal(next(ks), (cout, cin, k, k), jnp.float32) / jnp.sqrt(1.0 * fan)

    def folded_bn(c):
        g = 1.0 + 0.1 * jax.random.normal(next(ks), (c,), jnp.float32)
        b = 0.1 * jax.random.normal(next(ks), (c,), jnp.float32)
        m = 0.1 * jax.random.normal(next(ks), (c,), jnp.float32)
        v = 1.0 + 0.1 * jax.random.uniform(next(ks), (c,), jnp.float32)
        return bn_fold(g, b, m, v)

    def conv_bias(c):
        return 0.1 * jax.random.normal(next(ks), (c,), jnp.float32)

    p = {"w1": conv_w(planes, in_planes, 3), "w2": conv_w(planes, planes, 3)}
    if bn:
        p["s1"], p["b1"] = folded_bn(planes)
        p["s2"], p["b2"] = folded_bn(planes)
    else:  # bn=False: convs carry a bias, scale is identity
        p["s1"], p["b1"] = jnp.ones((planes,), jnp.float32), conv_bias(planes)
        p["s2"], p["b2"] = jnp.ones((planes,), jnp.float32), conv_bias(planes)
    if stride != 1 or in_planes != planes:
        p["wsc"] = conv_w(planes, in_planes, 1)
        b_conv = conv_bias(planes)            # shortcut conv always has bias=True
        if bn:
            s, t = folded_bn(planes)
            p["ssc"], p["bsc"] = s, s * b_conv + t
        else:
            p["ssc"], p["bsc"] = jnp.ones((planes,), jnp.float32), b_conv
    return p


# ------------------------------ pure-JAX reference -------------------------- #

def wide_basic_reference(x_nchw, params, *, stride=1):
    x = jnp.transpose(x_nchw, (0, 2, 3, 1)).astype(jnp.float32)   # NHWC

    def conv(h, w_torch, s, pad):
        w = jnp.transpose(w_torch, (2, 3, 1, 0))                  # HWIO
        return jax.lax.conv_general_dilated(
            h, w, window_strides=(s, s), padding=[(pad, pad), (pad, pad)],
            dimension_numbers=("NHWC", "HWIO", "NHWC"))

    o = jnp.maximum(conv(x, params["w1"], 1, 1) * params["s1"] + params["b1"], 0.0)
    o = jnp.maximum(conv(o, params["w2"], stride, 1) * params["s2"] + params["b2"], 0.0)
    if "wsc" in params:
        sc = conv(x, params["wsc"], stride, 0) * params["ssc"] + params["bsc"]
    else:
        sc = x
    return jnp.transpose(o + sc, (0, 3, 1, 2))


# ------------------------------------ main ----------------------------------- #

if __name__ == "__main__":
    key = jax.random.PRNGKey(0)
    kx, kp = jax.random.split(key)

    B, H, W = 2, 16, 16
    fwd = jax.jit(wide_basic_apply, static_argnames=("stride",))

    configs = [
        # (in_planes, planes, stride, bn)
        (16, 32, 1, True),     # projection shortcut (channel change)
        (16, 32, 2, True),     # projection shortcut, stride 2
        (32, 32, 1, True),     # identity shortcut
        (16, 32, 1, False),    # bn=False (conv biases, shortcut without bn)
    ]
    for i, (cin, planes, stride, bn) in enumerate(configs):
        params = init_wide_basic_params(jax.random.fold_in(kp, i), cin, planes,
                                        stride=stride, bn=bn)
        x = jax.random.normal(jax.random.fold_in(kx, i), (B, cin, H, W), jnp.float32)

        out = jax.block_until_ready(fwd(x, params, stride=stride))
        ref = wide_basic_reference(x, params, stride=stride)

        ho = (H - 1) // stride + 1
        assert out.shape == (B, planes, ho, ho), out.shape
        assert bool(jnp.all(jnp.isfinite(out)))
        rel = float(jnp.linalg.norm(out - ref) / (jnp.linalg.norm(ref) + 1e-6))
        assert rel < 3e-2, (i, rel)

    print("KERNEL_OK")
</pallas_src>

<mosaic_0001>
module attributes {stable_mosaic.version = 11 : i64} {
  func.func @_wide_basic_kernel(%arg0: i32, %arg1: memref<1x18x18x128xbf16, #tpu.memory_space<vmem>>, %arg2: memref<1152x128xbf16, #tpu.memory_space<vmem>>, %arg3: memref<1152x128xbf16, #tpu.memory_space<vmem>>, %arg4: memref<8x128xf32, #tpu.memory_space<vmem>>, %arg5: memref<128x128xbf16, #tpu.memory_space<vmem>>, %arg6: memref<1x16x16x128xf32, #tpu.memory_space<vmem>>, %arg7: memref<1x18x18x128xbf16, #tpu.memory_space<vmem>>, %arg8: memref<1x16x16x1152xbf16, #tpu.memory_space<vmem>>) attributes {dimension_semantics = [#tpu.dimension_semantics<parallel>], iteration_bounds = array<i64: 2>, scalar_prefetch = 0 : i64, scratch_operands = 2 : i64, tpu.core_type = #tpu.core_type<tc>, window_params = [{transform_indices = @transform_0, window_bounds = array<i64: 1, 18, 18, 128>}, {pipeline_mode = #tpu.pipeline_mode<synchronous>, transform_indices = @transform_1, window_bounds = array<i64: 1152, 128>}, {pipeline_mode = #tpu.pipeline_mode<synchronous>, transform_indices = @transform_2, window_bounds = array<i64: 1152, 128>}, {pipeline_mode = #tpu.pipeline_mode<synchronous>, transform_indices = @transform_3, window_bounds = array<i64: 8, 128>}, {pipeline_mode = #tpu.pipeline_mode<synchronous>, transform_indices = @transform_4, window_bounds = array<i64: 128, 128>}, {transform_indices = @transform_5, window_bounds = array<i64: 1, 16, 16, 128>}]} {
    %cst = arith.constant 0.000000e+00 : bf16
    %0 = vector.broadcast %cst : bf16 to vector<1x1x18x128xbf16>
    %c0 = arith.constant 0 : index
    %c0_0 = arith.constant 0 : index
    %c0_1 = arith.constant 0 : index
    %c0_2 = arith.constant 0 : index
    %1 = vector.load %arg7[%c0, %c0_0, %c0_1, %c0_2] : memref<1x18x18x128xbf16, #tpu.memory_space<vmem>>, vector<1x1x18x128xbf16>
    tpu.vector_store %arg7[%c0, %c0_0, %c0_1, %c0_2], %0 {strides = array<i32>} : memref<1x18x18x128xbf16, #tpu.memory_space<vmem>>, vector<1x1x18x128xbf16>,
    %c0_3 = arith.constant 0 : index
    %c17 = arith.constant 17 : index
    %c0_4 = arith.constant 0 : index
    %c0_5 = arith.constant 0 : index
    %2 = vector.load %arg7[%c0_3, %c17, %c0_4, %c0_5] : memref<1x18x18x128xbf16, #tpu.memory_space<vmem>>, vector<1x1x18x128xbf16>
    tpu.vector_store %arg7[%c0_3, %c17, %c0_4, %c0_5], %0 {strides = array<i32>} : memref<1x18x18x128xbf16, #tpu.memory_space<vmem>>, vector<1x1x18x128xbf16>,
    %cst_6 = arith.constant 0.000000e+00 : bf16
    %3 = vector.broadcast %cst_6 : bf16 to vector<1x16x1x128xbf16>
    %c0_7 = arith.constant 0 : index
    %c1 = arith.constant 1 : index
    %c0_8 = arith.constant 0 : index
    %c0_9 = arith.constant 0 : index
    %4 = vector.load %arg7[%c0_7, %c1, %c0_8, %c0_9] : memref<1x18x18x128xbf16, #tpu.memory_space<vmem>>, vector<1x16x1x128xbf16>
    tpu.vector_store %arg7[%c0_7, %c1, %c0_8, %c0_9], %3 {strides = array<i32>} : memref<1x18x18x128xbf16, #tpu.memory_space<vmem>>, vector<1x16x1x128xbf16>,
    %c0_10 = arith.constant 0 : index
    %c1_11 = arith.constant 1 : index
    %c17_12 = arith.constant 17 : index
    %c0_13 = arith.constant 0 : index
    %5 = vector.load %arg7[%c0_10, %c1_11, %c17_12, %c0_13] : memref<1x18x18x128xbf16, #tpu.memory_space<vmem>>, vector<1x16x1x128xbf16>
    tpu.vector_store %arg7[%c0_10, %c1_11, %c17_12, %c0_13], %3 {strides = array<i32>} : memref<1x18x18x128xbf16, #tpu.memory_space<vmem>>, vector<1x16x1x128xbf16>,
    %c0_14 = arith.constant 0 : index
    %c0_15 = arith.constant 0 : index
    %c0_16 = arith.constant 0 : index
    %c0_17 = arith.constant 0 : index
    %6 = vector.load %arg1[%c0_14, %c0_15, %c0_16, %c0_17] : memref<1x18x18x128xbf16, #tpu.memory_space<vmem>>, vector<1x16x16x128xbf16>
    %c0_18 = arith.constant 0 : index
    %c0_19 = arith.constant 0 : index
    %c0_20 = arith.constant 0 : index
    %c0_21 = arith.constant 0 : index
    %7 = vector.load %arg8[%c0_18, %c0_19, %c0_20, %c0_21] : memref<1x16x16x1152xbf16, #tpu.memory_space<vmem>>, vector<1x16x16x128xbf16>
    tpu.vector_store %arg8[%c0_18, %c0_19, %c0_20, %c0_21], %6 {strides = array<i32>} : memref<1x16x16x1152xbf16, #tpu.memory_space<vmem>>, vector<1x16x16x128xbf16>,
    %c0_22 = arith.constant 0 : index
    %c0_23 = arith.constant 0 : index
    %c1_24 = arith.constant 1 : index
    %c0_25 = arith.constant 0 : index
    %8 = vector.load %arg1[%c0_22, %c0_23, %c1_24, %c0_25] : memref<1x18x18x128xbf16, #tpu.memory_space<vmem>>, vector<1x16x16x128xbf16>
    %c0_26 = arith.constant 0 : index
    %c0_27 = arith.constant 0 : index
    %c0_28 = arith.constant 0 : index
    %c128 = arith.constant 128 : index
    %9 = vector.load %arg8[%c0_26, %c0_27, %c0_28, %c128] : memref<1x16x16x1152xbf16, #tpu.memory_space<vmem>>, vector<1x16x16x128xbf16>
    tpu.vector_store %arg8[%c0_26, %c0_27, %c0_28, %c128], %8 {strides = array<i32>} : memref<1x16x16x1152xbf16, #tpu.memory_space<vmem>>, vector<1x16x16x128xbf16>,
    %c0_29 = arith.constant 0 : index
    %c0_30 = arith.constant 0 : index
    %c2 = arith.constant 2 : index
    %c0_31 = arith.constant 0 : index
    %10 = vector.load %arg1[%c0_29, %c0_30, %c2, %c0_31] : memref<1x18x18x128xbf16, #tpu.memory_space<vmem>>, vector<1x16x16x128xbf16>
    %c0_32 = arith.constant 0 : index
    %c0_33 = arith.constant 0 : index
    %c0_34 = arith.constant 0 : index
    %c256 = arith.constant 256 : index
    %11 = vector.load %arg8[%c0_32, %c0_33, %c0_34, %c256] : memref<1x16x16x1152xbf16, #tpu.memory_space<vmem>>, vector<1x16x16x128xbf16>
    tpu.vector_store %arg8[%c0_32, %c0_33, %c0_34, %c256], %10 {strides = array<i32>} : memref<1x16x16x1152xbf16, #tpu.memory_space<vmem>>, vector<1x16x16x128xbf16>,
    %c0_35 = arith.constant 0 : index
    %c1_36 = arith.constant 1 : index
    %c0_37 = arith.constant 0 : index
    %c0_38 = arith.constant 0 : index
    %12 = vector.load %arg1[%c0_35, %c1_36, %c0_37, %c0_38] : memref<1x18x18x128xbf16, #tpu.memory_space<vmem>>, vector<1x16x16x128xbf16>
    %c0_39 = arith.constant 0 : index
    %c0_40 = arith.constant 0 : index
    %c0_41 = arith.constant 0 : index
    %c384 = arith.constant 384 : index
    %13 = vector.load %arg8[%c0_39, %c0_40, %c0_41, %c384] : memref<1x16x16x1152xbf16, #tpu.memory_space<vmem>>, vector<1x16x16x128xbf16>
    tpu.vector_store %arg8[%c0_39, %c0_40, %c0_41, %c384], %12 {strides = array<i32>} : memref<1x16x16x1152xbf16, #tpu.memory_space<vmem>>, vector<1x16x16x128xbf16>,
    %c0_42 = arith.constant 0 : index
    %c1_43 = arith.constant 1 : index
    %c1_44 = arith.constant 1 : index
    %c0_45 = arith.constant 0 : index
    %14 = vector.load %arg1[%c0_42, %c1_43, %c1_44, %c0_45] : memref<1x18x18x128xbf16, #tpu.memory_space<vmem>>, vector<1x16x16x128xbf16>
    %c0_46 = arith.constant 0 : index
    %c0_47 = arith.constant 0 : index
    %c0_48 = arith.constant 0 : index
    %c512 = arith.constant 512 : index
    %15 = vector.load %arg8[%c0_46, %c0_47, %c0_48, %c512] : memref<1x16x16x1152xbf16, #tpu.memory_space<vmem>>, vector<1x16x16x128xbf16>
    tpu.vector_store %arg8[%c0_46, %c0_47, %c0_48, %c512], %14 {strides = array<i32>} : memref<1x16x16x1152xbf16, #tpu.memory_space<vmem>>, vector<1x16x16x128xbf16>,
    %c0_49 = arith.constant 0 : index
    %c1_50 = arith.constant 1 : index
    %c2_51 = arith.constant 2 : index
    %c0_52 = arith.constant 0 : index
    %16 = vector.load %arg1[%c0_49, %c1_50, %c2_51, %c0_52] : memref<1x18x18x128xbf16, #tpu.memory_space<vmem>>, vector<1x16x16x128xbf16>
    %c0_53 = arith.constant 0 : index
    %c0_54 = arith.constant 0 : index
    %c0_55 = arith.constant 0 : index
    %c640 = arith.constant 640 : index
    %17 = vector.load %arg8[%c0_53, %c0_54, %c0_55, %c640] : memref<1x16x16x1152xbf16, #tpu.memory_space<vmem>>, vector<1x16x16x128xbf16>
    tpu.vector_store %arg8[%c0_53, %c0_54, %c0_55, %c640], %16 {strides = array<i32>} : memref<1x16x16x1152xbf16, #tpu.memory_space<vmem>>, vector<1x16x16x128xbf16>,
    %c0_56 = arith.constant 0 : index
    %c2_57 = arith.constant 2 : index
    %c0_58 = arith.constant 0 : index
    %c0_59 = arith.constant 0 : index
    %18 = vector.load %arg1[%c0_56, %c2_57, %c0_58, %c0_59] : memref<1x18x18x128xbf16, #tpu.memory_space<vmem>>, vector<1x16x16x128xbf16>
    %c0_60 = arith.constant 0 : index
    %c0_61 = arith.constant 0 : index
    %c0_62 = arith.constant 0 : index
    %c768 = arith.constant 768 : index
    %19 = vector.load %arg8[%c0_60, %c0_61, %c0_62, %c768] : memref<1x16x16x1152xbf16, #tpu.memory_space<vmem>>, vector<1x16x16x128xbf16>
    tpu.vector_store %arg8[%c0_60, %c0_61, %c0_62, %c768], %18 {strides = array<i32>} : memref<1x16x16x1152xbf16, #tpu.memory_space<vmem>>, vector<1x16x16x128xbf16>,
    %c0_63 = arith.constant 0 : index
    %c2_64 = arith.constant 2 : index
    %c1_65 = arith.constant 1 : index
    %c0_66 = arith.constant 0 : index
    %20 = vector.load %arg1[%c0_63, %c2_64, %c1_65, %c0_66] : memref<1x18x18x128xbf16, #tpu.memory_space<vmem>>, vector<1x16x16x128xbf16>
    %c0_67 = arith.constant 0 : index
    %c0_68 = arith.constant 0 : index
    %c0_69 = arith.constant 0 : index
    %c896 = arith.constant 896 : index
    %21 = vector.load %arg8[%c0_67, %c0_68, %c0_69, %c896] : memref<1x16x16x1152xbf16, #tpu.memory_space<vmem>>, vector<1x16x16x128xbf16>
    tpu.vector_store %arg8[%c0_67, %c0_68, %c0_69, %c896], %20 {strides = array<i32>} : memref<1x16x16x1152xbf16, #tpu.memory_space<vmem>>, vector<1x16x16x128xbf16>,
    %c0_70 = arith.constant 0 : index
    %c2_71 = arith.constant 2 : index
    %c2_72 = arith.constant 2 : index
    %c0_73 = arith.constant 0 : index
    %22 = vector.load %arg1[%c0_70, %c2_71, %c2_72, %c0_73] : memref<1x18x18x128xbf16, #tpu.memory_space<vmem>>, vector<1x16x16x128xbf16>
    %c0_74 = arith.constant 0 : index
    %c0_75 = arith.constant 0 : index
    %c0_76 = arith.constant 0 : index
    %c1024 = arith.constant 1024 : index
    %23 = vector.load %arg8[%c0_74, %c0_75, %c0_76, %c1024] : memref<1x16x16x1152xbf16, #tpu.memory_space<vmem>>, vector<1x16x16x128xbf16>
    tpu.vector_store %arg8[%c0_74, %c0_75, %c0_76, %c1024], %22 {strides = array<i32>} : memref<1x16x16x1152xbf16, #tpu.memory_space<vmem>>, vector<1x16x16x128xbf16>,
    %c0_77 = arith.constant 0 : index
    %c0_78 = arith.constant 0 : index
    %c0_79 = arith.constant 0 : index
    %c0_80 = arith.constant 0 : index
    %24 = vector.load %arg8[%c0_77, %c0_78, %c0_79, %c0_80] : memref<1x16x16x1152xbf16, #tpu.memory_space<vmem>>, vector<1x16x16x1152xbf16>
    %25 = vector.shape_cast %24 : vector<1x16x16x1152xbf16> to vector<256x1152xbf16>
    %c0_81 = arith.constant 0 : index
    %c0_82 = arith.constant 0 : index
    %26 = vector.load %arg2[%c0_81, %c0_82] : memref<1152x128xbf16, #tpu.memory_space<vmem>>, vector<1152x128xbf16>
    %cst_83 = arith.constant dense<0.000000e+00> : vector<256x128xf32>
    %27 = tpu.matmul %25, %26, %cst_83 {dimension_numbers = #tpu.dot_dimension_numbers<[1], [0], [0], [1], [0, 0, 1, 1], [], []>} : vector<256x1152xbf16>, vector<1152x128xbf16>, vector<256x128xf32> -> vector<256x128xf32>
    %c0_84 = arith.constant 0 : index
    %c0_85 = arith.constant 0 : index
    %28 = vector.load %arg4[%c0_84, %c0_85] : memref<8x128xf32, #tpu.memory_space<vmem>>, vector<1x128xf32>
    %29 = vector.broadcast %28 : vector<1x128xf32> to vector<256x128xf32>
    %30 = arith.mulf %27, %29 : vector<256x128xf32>
    %c1_86 = arith.constant 1 : index
    %c0_87 = arith.constant 0 : index
    %31 = vector.load %arg4[%c1_86, %c0_87] : memref<8x128xf32, #tpu.memory_space<vmem>>, vector<1x128xf32>
    %32 = vector.broadcast %31 : vector<1x128xf32> to vector<256x128xf32>
    %33 = arith.addf %30, %32 : vector<256x128xf32>
    %cst_88 = arith.constant 0.000000e+00 : f32
    %34 = vector.broadcast %cst_88 : f32 to vector<256x128xf32>
    %35 = arith.maximumf %33, %34 : vector<256x128xf32>
    %36 = arith.truncf %35 : vector<256x128xf32> to vector<256x128xbf16>
    %37 = vector.shape_cast %36 : vector<256x128xbf16> to vector<1x16x16x128xbf16>
    %c0_89 = arith.constant 0 : index
    %c1_90 = arith.constant 1 : index
    %c1_91 = arith.constant 1 : index
    %c0_92 = arith.constant 0 : index
    %38 = vector.load %arg7[%c0_89, %c1_90, %c1_91, %c0_92] : memref<1x18x18x128xbf16, #tpu.memory_space<vmem>>, vector<1x16x16x128xbf16>
    tpu.vector_store %arg7[%c0_89, %c1_90, %c1_91, %c0_92], %37 {strides = array<i32>} : memref<1x18x18x128xbf16, #tpu.memory_space<vmem>>, vector<1x16x16x128xbf16>,
    %c0_93 = arith.constant 0 : index
    %c0_94 = arith.constant 0 : index
    %c0_95 = arith.constant 0 : index
    %c0_96 = arith.constant 0 : index
    %39 = vector.load %arg7[%c0_93, %c0_94, %c0_95, %c0_96] : memref<1x18x18x128xbf16, #tpu.memory_space<vmem>>, vector<1x16x16x128xbf16>
    %c0_97 = arith.constant 0 : index
    %c0_98 = arith.constant 0 : index
    %c0_99 = arith.constant 0 : index
    %c0_100 = arith.constant 0 : index
    %40 = vector.load %arg8[%c0_97, %c0_98, %c0_99, %c0_100] : memref<1x16x16x1152xbf16, #tpu.memory_space<vmem>>, vector<1x16x16x128xbf16>
    tpu.vector_store %arg8[%c0_97, %c0_98, %c0_99, %c0_100], %39 {strides = array<i32>} : memref<1x16x16x1152xbf16, #tpu.memory_space<vmem>>, vector<1x16x16x128xbf16>,
    %c0_101 = arith.constant 0 : index
    %c0_102 = arith.constant 0 : index
    %c1_103 = arith.constant 1 : index
    %c0_104 = arith.constant 0 : index
    %41 = vector.load %arg7[%c0_101, %c0_102, %c1_103, %c0_104] : memref<1x18x18x128xbf16, #tpu.memory_space<vmem>>, vector<1x16x16x128xbf16>
    %c0_105 = arith.constant 0 : index
    %c0_106 = arith.constant 0 : index
    %c0_107 = arith.constant 0 : index
    %c128_108 = arith.constant 128 : index
    %42 = vector.load %arg8[%c0_105, %c0_106, %c0_107, %c128_108] : memref<1x16x16x1152xbf16, #tpu.memory_space<vmem>>, vector<1x16x16x128xbf16>
    tpu.vector_store %arg8[%c0_105, %c0_106, %c0_107, %c128_108], %41 {strides = array<i32>} : memref<1x16x16x1152xbf16, #tpu.memory_space<vmem>>, vector<1x16x16x128xbf16>,
    %c0_109 = arith.constant 0 : index
    %c0_110 = arith.constant 0 : index
    %c2_111 = arith.constant 2 : index
    %c0_112 = arith.constant 0 : index
    %43 = vector.load %arg7[%c0_109, %c0_110, %c2_111, %c0_112] : memref<1x18x18x128xbf16, #tpu.memory_space<vmem>>, vector<1x16x16x128xbf16>
    %c0_113 = arith.constant 0 : index
    %c0_114 = arith.constant 0 : index
    %c0_115 = arith.constant 0 : index
    %c256_116 = arith.constant 256 : index
    %44 = vector.load %arg8[%c0_113, %c0_114, %c0_115, %c256_116] : memref<1x16x16x1152xbf16, #tpu.memory_space<vmem>>, vector<1x16x16x128xbf16>
    tpu.vector_store %arg8[%c0_113, %c0_114, %c0_115, %c256_116], %43 {strides = array<i32>} : memref<1x16x16x1152xbf16, #tpu.memory_space<vmem>>, vector<1x16x16x128xbf16>,
    %c0_117 = arith.constant 0 : index
    %c1_118 = arith.constant 1 : index
    %c0_119 = arith.constant 0 : index
    %c0_120 = arith.constant 0 : index
    %45 = vector.load %arg7[%c0_117, %c1_118, %c0_119, %c0_120] : memref<1x18x18x128xbf16, #tpu.memory_space<vmem>>, vector<1x16x16x128xbf16>
    %c0_121 = arith.constant 0 : index
    %c0_122 = arith.constant 0 : index
    %c0_123 = arith.constant 0 : index
    %c384_124 = arith.constant 384 : index
    %46 = vector.load %arg8[%c0_121, %c0_122, %c0_123, %c384_124] : memref<1x16x16x1152xbf16, #tpu.memory_space<vmem>>, vector<1x16x16x128xbf16>
    tpu.vector_store %arg8[%c0_121, %c0_122, %c0_123, %c384_124], %45 {strides = array<i32>} : memref<1x16x16x1152xbf16, #tpu.memory_space<vmem>>, vector<1x16x16x128xbf16>,
    %c0_125 = arith.constant 0 : index
    %c1_126 = arith.constant 1 : index
    %c1_127 = arith.constant 1 : index
    %c0_128 = arith.constant 0 : index
    %47 = vector.load %arg7[%c0_125, %c1_126, %c1_127, %c0_128] : memref<1x18x18x128xbf16, #tpu.memory_space<vmem>>, vector<1x16x16x128xbf16>
    %c0_129 = arith.constant 0 : index
    %c0_130 = arith.constant 0 : index
    %c0_131 = arith.constant 0 : index
    %c512_132 = arith.constant 512 : index
    %48 = vector.load %arg8[%c0_129, %c0_130, %c0_131, %c512_132] : memref<1x16x16x1152xbf16, #tpu.memory_space<vmem>>, vector<1x16x16x128xbf16>
    tpu.vector_store %arg8[%c0_129, %c0_130, %c0_131, %c512_132], %47 {strides = array<i32>} : memref<1x16x16x1152xbf16, #tpu.memory_space<vmem>>, vector<1x16x16x128xbf16>,
    %c0_133 = arith.constant 0 : index
    %c1_134 = arith.constant 1 : index
    %c2_135 = arith.constant 2 : index
    %c0_136 = arith.constant 0 : index
    %49 = vector.load %arg7[%c0_133, %c1_134, %c2_135, %c0_136] : memref<1x18x18x128xbf16, #tpu.memory_space<vmem>>, vector<1x16x16x128xbf16>
    %c0_137 = arith.constant 0 : index
    %c0_138 = arith.constant 0 : index
    %c0_139 = arith.constant 0 : index
    %c640_140 = arith.constant 640 : index
    %50 = vector.load %arg8[%c0_137, %c0_138, %c0_139, %c640_140] : memref<1x16x16x1152xbf16, #tpu.memory_space<vmem>>, vector<1x16x16x128xbf16>
    tpu.vector_store %arg8[%c0_137, %c0_138, %c0_139, %c640_140], %49 {strides = array<i32>} : memref<1x16x16x1152xbf16, #tpu.memory_space<vmem>>, vector<1x16x16x128xbf16>,
    %c0_141 = arith.constant 0 : index
    %c2_142 = arith.constant 2 : index
    %c0_143 = arith.constant 0 : index
    %c0_144 = arith.constant 0 : index
    %51 = vector.load %arg7[%c0_141, %c2_142, %c0_143, %c0_144] : memref<1x18x18x128xbf16, #tpu.memory_space<vmem>>, vector<1x16x16x128xbf16>
    %c0_145 = arith.constant 0 : index
    %c0_146 = arith.constant 0 : index
    %c0_147 = arith.constant 0 : index
    %c768_148 = arith.constant 768 : index
    %52 = vector.load %arg8[%c0_145, %c0_146, %c0_147, %c768_148] : memref<1x16x16x1152xbf16, #tpu.memory_space<vmem>>, vector<1x16x16x128xbf16>
    tpu.vector_store %arg8[%c0_145, %c0_146, %c0_147, %c768_148], %51 {strides = array<i32>} : memref<1x16x16x1152xbf16, #tpu.memory_space<vmem>>, vector<1x16x16x128xbf16>,
    %c0_149 = arith.constant 0 : index
    %c2_150 = arith.constant 2 : index
    %c1_151 = arith.constant 1 : index
    %c0_152 = arith.constant 0 : index
    %53 = vector.load %arg7[%c0_149, %c2_150, %c1_151, %c0_152] : memref<1x18x18x128xbf16, #tpu.memory_space<vmem>>, vector<1x16x16x128xbf16>
    %c0_153 = arith.constant 0 : index
    %c0_154 = arith.constant 0 : index
    %c0_155 = arith.constant 0 : index
    %c896_156 = arith.constant 896 : index
    %54 = vector.load %arg8[%c0_153, %c0_154, %c0_155, %c896_156] : memref<1x16x16x1152xbf16, #tpu.memory_space<vmem>>, vector<1x16x16x128xbf16>
    tpu.vector_store %arg8[%c0_153, %c0_154, %c0_155, %c896_156], %53 {strides = array<i32>} : memref<1x16x16x1152xbf16, #tpu.memory_space<vmem>>, vector<1x16x16x128xbf16>,
    %c0_157 = arith.constant 0 : index
    %c2_158 = arith.constant 2 : index
    %c2_159 = arith.constant 2 : index
    %c0_160 = arith.constant 0 : index
    %55 = vector.load %arg7[%c0_157, %c2_158, %c2_159, %c0_160] : memref<1x18x18x128xbf16, #tpu.memory_space<vmem>>, vector<1x16x16x128xbf16>
    %c0_161 = arith.constant 0 : index
    %c0_162 = arith.constant 0 : index
    %c0_163 = arith.constant 0 : index
    %c1024_164 = arith.constant 1024 : index
    %56 = vector.load %arg8[%c0_161, %c0_162, %c0_163, %c1024_164] : memref<1x16x16x1152xbf16, #tpu.memory_space<vmem>>, vector<1x16x16x128xbf16>
    tpu.vector_store %arg8[%c0_161, %c0_162, %c0_163, %c1024_164], %55 {strides = array<i32>} : memref<1x16x16x1152xbf16, #tpu.memory_space<vmem>>, vector<1x16x16x128xbf16>,
    %c0_165 = arith.constant 0 : index
    %c0_166 = arith.constant 0 : index
    %c0_167 = arith.constant 0 : index
    %c0_168 = arith.constant 0 : index
    %57 = vector.load %arg8[%c0_165, %c0_166, %c0_167, %c0_168] : memref<1x16x16x1152xbf16, #tpu.memory_space<vmem>>, vector<1x16x16x1152xbf16>
    %58 = vector.shape_cast %57 : vector<1x16x16x1152xbf16> to vector<256x1152xbf16>
    %c0_169 = arith.constant 0 : index
    %c0_170 = arith.constant 0 : index
    %59 = vector.load %arg3[%c0_169, %c0_170] : memref<1152x128xbf16, #tpu.memory_space<vmem>>, vector<1152x128xbf16>
    %cst_171 = arith.constant dense<0.000000e+00> : vector<256x128xf32>
    %60 = tpu.matmul %58, %59, %cst_171 {dimension_numbers = #tpu.dot_dimension_numbers<[1], [0], [0], [1], [0, 0, 1, 1], [], []>} : vector<256x1152xbf16>, vector<1152x128xbf16>, vector<256x128xf32> -> vector<256x128xf32>
    %c2_172 = arith.constant 2 : index
    %c0_173 = arith.constant 0 : index
    %61 = vector.load %arg4[%c2_172, %c0_173] : memref<8x128xf32, #tpu.memory_space<vmem>>, vector<1x128xf32>
    %62 = vector.broadcast %61 : vector<1x128xf32> to vector<256x128xf32>
    %63 = arith.mulf %60, %62 : vector<256x128xf32>
    %c3 = arith.constant 3 : index
    %c0_174 = arith.constant 0 : index
    %64 = vector.load %arg4[%c3, %c0_174] : memref<8x128xf32, #tpu.memory_space<vmem>>, vector<1x128xf32>
    %65 = vector.broadcast %64 : vector<1x128xf32> to vector<256x128xf32>
    %66 = arith.addf %63, %65 : vector<256x128xf32>
    %cst_175 = arith.constant 0.000000e+00 : f32
    %67 = vector.broadcast %cst_175 : f32 to vector<256x128xf32>
    %68 = arith.maximumf %66, %67 : vector<256x128xf32>
    %c0_176 = arith.constant 0 : index
    %c1_177 = arith.constant 1 : index
    %c1_178 = arith.constant 1 : index
    %c0_179 = arith.constant 0 : index
    %69 = vector.load %arg1[%c0_176, %c1_177, %c1_178, %c0_179] : memref<1x18x18x128xbf16, #tpu.memory_space<vmem>>, vector<1x16x16x128xbf16>
    %70 = vector.shape_cast %69 : vector<1x16x16x128xbf16> to vector<256x128xbf16>
    %c0_180 = arith.constant 0 : index
    %c0_181 = arith.constant 0 : index
    %71 = vector.load %arg5[%c0_180, %c0_181] : memref<128x128xbf16, #tpu.memory_space<vmem>>, vector<128x128xbf16>
    %cst_182 = arith.constant dense<0.000000e+00> : vector<256x128xf32>
    %72 = tpu.matmul %70, %71, %cst_182 {dimension_numbers = #tpu.dot_dimension_numbers<[1], [0], [0], [1], [0, 0, 1, 1], [], []>} : vector<256x128xbf16>, vector<128x128xbf16>, vector<256x128xf32> -> vector<256x128xf32>
    %c4 = arith.constant 4 : index
    %c0_183 = arith.constant 0 : index
    %73 = vector.load %arg4[%c4, %c0_183] : memref<8x128xf32, #tpu.memory_space<vmem>>, vector<1x128xf32>
    %74 = vector.broadcast %73 : vector<1x128xf32> to vector<256x128xf32>
    %75 = arith.mulf %72, %74 : vector<256x128xf32>
    %c5 = arith.constant 5 : index
    %c0_184 = arith.constant 0 : index
    %76 = vector.load %arg4[%c5, %c0_184] : memref<8x128xf32, #tpu.memory_space<vmem>>, vector<1x128xf32>
    %77 = vector.broadcast %76 : vector<1x128xf32> to vector<256x128xf32>
    %78 = arith.addf %75, %77 : vector<256x128xf32>
    %79 = arith.addf %68, %78 : vector<256x128xf32>
    %80 = vector.shape_cast %79 : vector<256x128xf32> to vector<1x16x16x128xf32>
    %c0_185 = arith.constant 0 : index
    %c0_186 = arith.constant 0 : index
    %c0_187 = arith.constant 0 : index
    %c0_188 = arith.constant 0 : index
    %81 = vector.load %arg6[%c0_185, %c0_186, %c0_187, %c0_188] : memref<1x16x16x128xf32, #tpu.memory_space<vmem>>, vector<1x16x16x128xf32>
    tpu.vector_store %arg6[%c0_185, %c0_186, %c0_187, %c0_188], %80 {strides = array<i32>} : memref<1x16x16x128xf32, #tpu.memory_space<vmem>>, vector<1x16x16x128xf32>,
    return
  }
  func.func @transform_0(%arg0: i32) -> (i32, i32, i32, i32) {
    %c0_i32 = arith.constant 0 : i32
    %c0_i32_0 = arith.constant 0 : i32
    %c0_i32_1 = arith.constant 0 : i32
    %c0_i32_2 = arith.constant 0 : i32
    return %arg0, %c0_i32, %c0_i32_0, %c0_i32_1 : i32, i32, i32, i32
  }
  func.func @transform_1(%arg0: i32) -> (i32, i32) {
    %c0_i32 = arith.constant 0 : i32
    %c0_i32_0 = arith.constant 0 : i32
    %c0_i32_1 = arith.constant 0 : i32
    return %c0_i32, %c0_i32_0 : i32, i32
  }
  func.func @transform_2(%arg0: i32) -> (i32, i32) {
    %c0_i32 = arith.constant 0 : i32
    %c0_i32_0 = arith.constant 0 : i32
    %c0_i32_1 = arith.constant 0 : i32
    return %c0_i32, %c0_i32_0 : i32, i32
  }
  func.func @transform_3(%arg0: i32) -> (i32, i32) {
    %c0_i32 = arith.constant 0 : i32
    %c0_i32_0 = arith.constant 0 : i32
    %c0_i32_1 = arith.constant 0 : i32
    return %c0_i32, %c0_i32_0 : i32, i32
  }
  func.func @transform_4(%arg0: i32) -> (i32, i32) {
    %c0_i32 = arith.constant 0 : i32
    %c0_i32_0 = arith.constant 0 : i32
    %c0_i32_1 = arith.constant 0 : i32
    return %c0_i32, %c0_i32_0 : i32, i32
  }
  func.func @transform_5(%arg0: i32) -> (i32, i32, i32, i32) {
    %c0_i32 = arith.constant 0 : i32
    %c0_i32_0 = arith.constant 0 : i32
    %c0_i32_1 = arith.constant 0 : i32
    %c0_i32_2 = arith.constant 0 : i32
    return %arg0, %c0_i32, %c0_i32_0, %c0_i32_1 : i32, i32, i32, i32
  }
}

</mosaic_0001>

<llo_original>
// kernel: wide_basic_apply.1
$region0: #{wide_basic_apply.1}
  #allocation0 [shape = 'u32[]', space=smem, size = 0x4, offset = 0x4, fixed_abs, tag = 'smem constant byte address 0x4 - core index']
  #allocation1 [shape = 'u32[72,128]{1,0:T(1,128)}', space=vmem, size = 0x9000, scoped, tag = 'internal scratch']
  #allocation2 [shape = 'bf16[1,18,18,128]{3,2,1,0:T(8,128)(2,1)}', space=vmem, size = 0x1b000, scoped, tag = 'scratch operand']
  #allocation3 [shape = 'bf16[1,16,16,1152]{3,2,1,0:T(8,128)(2,1)}', space=vmem, size = 0x90000, scoped, tag = 'scratch operand']
  %s0 = inlined_call_operand.vmem [shape: bf16[2,18,18,128], index: 0, kind: input, shape index: {}]
  %s1 = inlined_call_operand.vmem [shape: bf16[1152,128], index: 1, kind: input, shape index: {}]
  %s2 = inlined_call_operand.vmem [shape: bf16[1152,128], index: 2, kind: input, shape index: {}]
  %s3 = inlined_call_operand.vmem [shape: f32[8,128], index: 3, kind: input, shape index: {}]
  %s4 = inlined_call_operand.vmem [shape: bf16[128,128], index: 4, kind: input, shape index: {}]
  %s5 = inlined_call_operand.vmem [shape: f32[2,16,16,128], index: 5, kind: output, shape index: {}]
  %s6 = sld [smem:[#allocation0]]
  $region53: #{wide_basic_apply.1} parent=0
    _
  %s8 = ssub.s32 1, %s6
  %s9 = scalar_select 0, %s8, %s6
  loop: start=0, step=1, limit=4
  $region2: #{wide_basic_apply.1} parent=0 // loop_pre_header
    _
  $region3: #{wide_basic_apply.1} parent=0 // loop_header
    %s11 = sphi 0, %s15
    %p12 = scmp.ge.s32.totalorder %s11, 4
    %s21 = sphi 0, %s23
    %s24 = sphi 0, %s21
    %s25 = sphi 0, %s24
    %s41 = sphi 0, %s25
    %s45 = sphi 0, %s45
    %s47 = sphi 0, %s45
    %s48 = sphi 0, %s47
    %s62 = sphi 0, %s48
    %s66 = sphi 0, %s66
    %s68 = sphi 0, %s66
    %s69 = sphi 0, %s68
    %s83 = sphi 0, %s69
    %s87 = sphi 0, %s87
    %s89 = sphi 0, %s87
    %s90 = sphi 0, %s89
    %s104 = sphi 0, %s90
    %s108 = sphi 0, %s108
    %s110 = sphi 0, %s108
    %s111 = sphi 0, %s110
    %s125 = sphi 0, %s111
    %s131 = sphi 0, %s133
    %s134 = sphi 0, %s131
    %s135 = sphi 0, %s134
    %s151 = sphi 0, %s135
  $region4: #{wide_basic_apply.1} parent=0 // loop_header_branch
    %14 = sbr.rel (%p12) target = $region8
  $region5: #{wide_basic_apply.1} parent=0 // loop_body
    %s16 = ssub.s32 %s11, 1
    %s17 = ssub.s32 %s11, 2
    %s18 = sadd.s32 %s11, 1
    %s19 = ssub.s32 %s11, %s18
    %p20 = scmp.eq.s32.totalorder %s19, 0
    %s22 = sadd.s32 %s21, 1
    %s23 = scalar_select %p20, %s21, %s22
    %p26 = pneg %p20
    %p27 = scmp.eq.s32.totalorder %s11, 1
    %p28 = por %p26, %p27
    %p29 = scmp.ne.s32.totalorder %s21, %s24
    %p30 = scmp.eq.s32.totalorder %s11, 0
    %p31 = por %p29, %p30
    %p32 = scmp.ne.s32.totalorder %s21, %s24
    %p33 = scmp.eq.s32.totalorder %s16, 1
    %p34 = por %p32, %p33
    %p35 = scmp.ne.s32.totalorder %s24, %s25
    %p36 = scmp.eq.s32.totalorder %s16, 0
    %p37 = por %p35, %p36
    %p38 = scmp.ne.s32.totalorder %s24, %s25
    %p39 = scmp.eq.s32.totalorder %s17, 1
    %p40 = por %p38, %p39
    %p42 = scmp.ne.s32.totalorder %s25, %s41
    %p43 = scmp.eq.s32.totalorder %s17, 0
    %p44 = por %p42, %p43
    %s46 = sadd.s32 %s45, 1
    %p49 = scmp.eq.s32.totalorder %s11, 1
    %p50 = scmp.ne.s32.totalorder %s45, %s47
    %p51 = scmp.eq.s32.totalorder %s11, 0
    %p52 = por %p50, %p51
    %p53 = scmp.ne.s32.totalorder %s45, %s47
    %p54 = scmp.eq.s32.totalorder %s16, 1
    %p55 = por %p53, %p54
    %p56 = scmp.ne.s32.totalorder %s47, %s48
    %p57 = scmp.eq.s32.totalorder %s16, 0
    %p58 = por %p56, %p57
    %p59 = scmp.ne.s32.totalorder %s47, %s48
    %p60 = scmp.eq.s32.totalorder %s17, 1
    %p61 = por %p59, %p60
    %p63 = scmp.ne.s32.totalorder %s48, %s62
    %p64 = scmp.eq.s32.totalorder %s17, 0
    %p65 = por %p63, %p64
    %s67 = sadd.s32 %s66, 1
    %p70 = scmp.eq.s32.totalorder %s11, 1
    %p71 = scmp.ne.s32.totalorder %s66, %s68
    %p72 = scmp.eq.s32.totalorder %s11, 0
    %p73 = por %p71, %p72
    %p74 = scmp.ne.s32.totalorder %s66, %s68
    %p75 = scmp.eq.s32.totalorder %s16, 1
    %p76 = por %p74, %p75
    %p77 = scmp.ne.s32.totalorder %s68, %s69
    %p78 = scmp.eq.s32.totalorder %s16, 0
    %p79 = por %p77, %p78
    %p80 = scmp.ne.s32.totalorder %s68, %s69
    %p81 = scmp.eq.s32.totalorder %s17, 1
    %p82 = por %p80, %p81
    %p84 = scmp.ne.s32.totalorder %s69, %s83
    %p85 = scmp.eq.s32.totalorder %s17, 0
    %p86 = por %p84, %p85
    %s88 = sadd.s32 %s87, 1
    %p91 = scmp.eq.s32.totalorder %s11, 1
    %p92 = scmp.ne.s32.totalorder %s87, %s89
    %p93 = scmp.eq.s32.totalorder %s11, 0
    %p94 = por %p92, %p93
    %p95 = scmp.ne.s32.totalorder %s87, %s89
    %p96 = scmp.eq.s32.totalorder %s16, 1
    %p97 = por %p95, %p96
    %p98 = scmp.ne.s32.totalorder %s89, %s90
    %p99 = scmp.eq.s32.totalorder %s16, 0
    %p100 = por %p98, %p99
    %p101 = scmp.ne.s32.totalorder %s89, %s90
    %p102 = scmp.eq.s32.totalorder %s17, 1
    %p103 = por %p101, %p102
    %p105 = scmp.ne.s32.totalorder %s90, %s104
    %p106 = scmp.eq.s32.totalorder %s17, 0
    %p107 = por %p105, %p106
    %s109 = sadd.s32 %s108, 1
    %p112 = scmp.eq.s32.totalorder %s11, 1
    %p113 = scmp.ne.s32.totalorder %s108, %s110
    %p114 = scmp.eq.s32.totalorder %s11, 0
    %p115 = por %p113, %p114
    %p116 = scmp.ne.s32.totalorder %s108, %s110
    %p117 = scmp.eq.s32.totalorder %s16, 1
    %p118 = por %p116, %p117
    %p119 = scmp.ne.s32.totalorder %s110, %s111
    %p120 = scmp.eq.s32.totalorder %s16, 0
    %p121 = por %p119, %p120
    %p122 = scmp.ne.s32.totalorder %s110, %s111
    %p123 = scmp.eq.s32.totalorder %s17, 1
    %p124 = por %p122, %p123
    %p126 = scmp.ne.s32.totalorder %s111, %s125
    %p127 = scmp.eq.s32.totalorder %s17, 0
    %p128 = por %p126, %p127
    %s129 = ssub.s32 %s11, %s18
    %p130 = scmp.eq.s32.totalorder %s129, 0
    %s132 = sadd.s32 %s131, 1
    %s133 = scalar_select %p130, %s131, %s132
    %p136 = pneg %p130
    %p137 = scmp.eq.s32.totalorder %s11, 1
    %p138 = por %p136, %p137
    %p139 = scmp.ne.s32.totalorder %s131, %s134
    %p140 = scmp.eq.s32.totalorder %s11, 0
    %p141 = por %p139, %p140
    %p142 = scmp.ne.s32.totalorder %s131, %s134
    %p143 = scmp.eq.s32.totalorder %s16, 1
    %p144 = por %p142, %p143
    %p145 = scmp.ne.s32.totalorder %s134, %s135
    %p146 = scmp.eq.s32.totalorder %s16, 0
    %p147 = por %p145, %p146
    %p148 = scmp.ne.s32.totalorder %s134, %s135
    %p149 = scmp.eq.s32.totalorder %s17, 1
    %p150 = por %p148, %p149
    %p152 = scmp.ne.s32.totalorder %s135, %s151
    %p153 = scmp.eq.s32.totalorder %s17, 0
    %p154 = por %p152, %p153
    %p155 = scmp.le.s32.totalorder 1, %s11
    %p156 = scmp.lt.s32.totalorder %s11, 3
    %p157 = pnand %p155, %p156
    %p158 = pneg %p157
    // Predicated region
    $region9: #{wide_basic_apply.1} parent=5 // pred_check
      _
    $region10: #{wide_basic_apply.1} parent=5 // pred_check_branch
      %160 = sbr.rel (%p157) target = $region12
    $region11: #{wide_basic_apply.1} parent=5 // pred_region
      %s161 = ssub.s32 %s11, 1
      // Predicated region
      $region13: #{wide_basic_apply.1} parent=11 // pred_check
        %p162 = pneg %p58
      $region14: #{wide_basic_apply.1} parent=11 // pred_check_branch
        %164 = sbr.rel (%p162) target = $region16
      $region15: #{wide_basic_apply.1} parent=11 // pred_region
        _
      $region16: #{wide_basic_apply.1} parent=11 // pred_fallthru
        _
      // Predicated region
      $region17: #{wide_basic_apply.1} parent=11 // pred_check
        %p165 = pneg %p79
      $region18: #{wide_basic_apply.1} parent=11 // pred_check_branch
        %167 = sbr.rel (%p165) target = $region20
      $region19: #{wide_basic_apply.1} parent=11 // pred_region
        _
      $region20: #{wide_basic_apply.1} parent=11 // pred_fallthru
        _
      // Predicated region
      $region21: #{wide_basic_apply.1} parent=11 // pred_check
        %p168 = pneg %p100
      $region22: #{wide_basic_apply.1} parent=11 // pred_check_branch
        %170 = sbr.rel (%p168) target = $region24
      $region23: #{wide_basic_apply.1} parent=11 // pred_region
        _
      $region24: #{wide_basic_apply.1} parent=11 // pred_fallthru
        _
      // Predicated region
      $region25: #{wide_basic_apply.1} parent=11 // pred_check
        %p171 = pneg %p121
      $region26: #{wide_basic_apply.1} parent=11 // pred_check_branch
        %173 = sbr.rel (%p171) target = $region28
      $region27: #{wide_basic_apply.1} parent=11 // pred_region
        _
      $region28: #{wide_basic_apply.1} parent=11 // pred_fallthru
        _
    $region12: #{wide_basic_apply.1} parent=5 // pred_fallthru
      _
    %p174 = scmp.lt.s32.totalorder %s11, 2
    // Predicated region
    $region29: #{wide_basic_apply.1} parent=5 // pred_check
      %p175 = pneg %p174
    $region30: #{wide_basic_apply.1} parent=5 // pred_check_branch
      %177 = sbr.rel (%p175) target = $region32
    $region31: #{wide_basic_apply.1} parent=5 // pred_region
      // Predicated region
      $region33: #{wide_basic_apply.1} parent=31 // pred_check
        %p178 = pneg %p31
      $region34: #{wide_basic_apply.1} parent=31 // pred_check_branch
        %180 = sbr.rel (%p178) target = $region36
      $region35: #{wide_basic_apply.1} parent=31 // pred_region
        %p181 = scmp.lt.s32.totalorder %s11, 1
        %s182 = scalar_select %p181, %s11, 1
        %s183 = smul.addr %s182, 54
        %s184 = smul.addr %s183, 4
        %s185 = scalar_lea.vmem %s0, %s184
      $region36: #{wide_basic_apply.1} parent=31 // pred_fallthru
        _
    $region32: #{wide_basic_apply.1} parent=5 // pred_fallthru
      _
    %p186 = scmp.le.s32.totalorder 1, %s11
    %p187 = scmp.lt.s32.totalorder %s11, 3
    %p188 = pnand %p186, %p187
    %p189 = pneg %p188
    // Predicated region
    $region37: #{wide_basic_apply.1} parent=5 // pred_check
      _
    $region38: #{wide_basic_apply.1} parent=5 // pred_check_branch
      %191 = sbr.rel (%p188) target = $region40
    $region39: #{wide_basic_apply.1} parent=5 // pred_region
      %s192 = ssub.s32 %s11, 1
      %p193 = scmp.lt.s32.totalorder %s16, 1
      %s194 = scalar_select %p193, %s16, 1
      %s195 = smul.addr %s194, 54
      %s196 = smul.addr %s195, 4
      %s197 = scalar_lea.vmem %s0, %s196
      %p198 = pneg %p37
      %p199 = pneg %p34
      %p200 = pneg %p58
      %p201 = pneg %p55
      %p202 = pneg %p79
      %p203 = pneg %p76
      %p204 = pneg %p100
      %p205 = pneg %p97
      %p206 = pneg %p121
      %p207 = pneg %p118
      %p208 = pneg %p147
      %p209 = pneg %p144
      %p210 = scmp.lt.s32.totalorder %s16, 1
      %s211 = scalar_select %p210, %s16, 1
      %s212 = smul.addr %s211, 32
      %s213 = smul.addr %s212, 8
      %s214 = scalar_lea.vmem %s5, %s213
      %p215 = scmp.lt.s32.totalorder %s16, 1
      %s216 = scalar_select %p215, %s16, 1
      %s217 = smul.addr %s216, 54
      %s218 = smul.addr %s217, 4
      %s219 = scalar_lea.vmem %s0, %s218
      %p220 = scmp.lt.s32.totalorder %s16, 1
      %s221 = scalar_select %p220, %s16, 1
      %s222 = smul.addr %s221, 32
      %s223 = smul.addr %s222, 8
      %s224 = scalar_lea.vmem %s5, %s223
      %226 = vst [vmem:[#allocation2] sm:$0xf] 0
      %227 = vst [vmem:[#allocation2 + $0x4] sm:$0xf] 0
      %228 = vst [vmem:[#allocation2 + $0x8] sm:$0x1] 0
      %s229 = scalar_lea.vmem [#allocation2], 204
      %230 = vst [vmem:[%s229] sm:$0xf] 0
      %231 = vst [vmem:[%s229 + $0x4] sm:$0xf] 0
      %232 = vst [vmem:[%s229 + $0x8] sm:$0x1] 0
      %s233 = scalar_lea.vmem [#allocation2], 12
      %vm234 = vcmask 1040384
      %vm235 = vsmask.f32 256
      %vm236 = vmand %vm234, %vm235
      %v237 = vld [vmem:[%s233] sm:$0x1]
      %v238 = vsel %vm236, 0, %v237
      %239 = vst [vmem:[%s233] sm:$0x1] %v238
      %v240 = vld [vmem:[%s233 + $0xc] sm:$0x1]
      %v241 = vsel %vm236, 0, %v240
      %242 = vst [vmem:[%s233 + $0xc] sm:$0x1] %v241
      %v243 = vld [vmem:[%s233 + $0x18] sm:$0x1]
      %v244 = vsel %vm236, 0, %v243
      %245 = vst [vmem:[%s233 + $0x18] sm:$0x1] %v244
      %v246 = vld [vmem:[%s233 + $0x24] sm:$0x1]
      %v247 = vsel %vm236, 0, %v246
      %248 = vst [vmem:[%s233 + $0x24] sm:$0x1] %v247
      %v249 = vld [vmem:[%s233 + $0x30] sm:$0x1]
      %v250 = vsel %vm236, 0, %v249
      %251 = vst [vmem:[%s233 + $0x30] sm:$0x1] %v250
      %v252 = vld [vmem:[%s233 + $0x3c] sm:$0x1]
      %v253 = vsel %vm236, 0, %v252
      %254 = vst [vmem:[%s233 + $0x3c] sm:$0x1] %v253
      %v255 = vld [vmem:[%s233 + $0x48] sm:$0x1]
      %v256 = vsel %vm236, 0, %v255
      %257 = vst [vmem:[%s233 + $0x48] sm:$0x1] %v256
      %v258 = vld [vmem:[%s233 + $0x54] sm:$0x1]
      %v259 = vsel %vm236, 0, %v258
      %260 = vst [vmem:[%s233 + $0x54] sm:$0x1] %v259
      %v261 = vld [vmem:[%s233 + $0x60] sm:$0x1]
      %v262 = vsel %vm236, 0, %v261
      %263 = vst [vmem:[%s233 + $0x60] sm:$0x1] %v262
      %v264 = vld [vmem:[%s233 + $0x6c] sm:$0x1]
      %v265 = vsel %vm236, 0, %v264
      %266 = vst [vmem:[%s233 + $0x6c] sm:$0x1] %v265
      %v267 = vld [vmem:[%s233 + $0x78] sm:$0x1]
      %v268 = vsel %vm236, 0, %v267
      %269 = vst [vmem:[%s233 + $0x78] sm:$0x1] %v268
      %v270 = vld [vmem:[%s233 + $0x84] sm:$0x1]
      %v271 = vsel %vm236, 0, %v270
      %272 = vst [vmem:[%s233 + $0x84] sm:$0x1] %v271
      %v273 = vld [vmem:[%s233 + $0x90] sm:$0x1]
      %v274 = vsel %vm236, 0, %v273
      %275 = vst [vmem:[%s233 + $0x90] sm:$0x1] %v274
      %v276 = vld [vmem:[%s233 + $0x9c] sm:$0x1]
      %v277 = vsel %vm236, 0, %v276
      %278 = vst [vmem:[%s233 + $0x9c] sm:$0x1] %v277
      %v279 = vld [vmem:[%s233 + $0xa8] sm:$0x1]
      %v280 = vsel %vm236, 0, %v279
      %281 = vst [vmem:[%s233 + $0xa8] sm:$0x1] %v280
      %v282 = vld [vmem:[%s233 + $0xb4] sm:$0x1]
      %v283 = vsel %vm236, 0, %v282
      %284 = vst [vmem:[%s233 + $0xb4] sm:$0x1] %v283
      %vm285 = vsmask.f32 7938
      %vm286 = vmand %vm234, %vm285
      %v287 = vld [vmem:[%s233 + $0x8] sm:$0x1]
      %v288 = vsel %vm286, 0, %v287
      %289 = vst [vmem:[%s233 + $0x8] sm:$0x1] %v288
      %v290 = vld [vmem:[%s233 + $0x14] sm:$0x1]
      %v291 = vsel %vm286, 0, %v290
      %292 = vst [vmem:[%s233 + $0x14] sm:$0x1] %v291
      %v293 = vld [vmem:[%s233 + $0x20] sm:$0x1]
      %v294 = vsel %vm286, 0, %v293
      %295 = vst [vmem:[%s233 + $0x20] sm:$0x1] %v294
      %v296 = vld [vmem:[%s233 + $0x2c] sm:$0x1]
      %v297 = vsel %vm286, 0, %v296
      %298 = vst [vmem:[%s233 + $0x2c] sm:$0x1] %v297
      %v299 = vld [vmem:[%s233 + $0x38] sm:$0x1]
      %v300 = vsel %vm286, 0, %v299
      %301 = vst [vmem:[%s233 + $0x38] sm:$0x1] %v300
      %v302 = vld [vmem:[%s233 + $0x44] sm:$0x1]
      %v303 = vsel %vm286, 0, %v302
      %304 = vst [vmem:[%s233 + $0x44] sm:$0x1] %v303
      %v305 = vld [vmem:[%s233 + $0x50] sm:$0x1]
      %v306 = vsel %vm286, 0, %v305
      %307 = vst [vmem:[%s233 + $0x50] sm:$0x1] %v306
      %v308 = vld [vmem:[%s233 + $0x5c] sm:$0x1]
      %v309 = vsel %vm286, 0, %v308
      %310 = vst [vmem:[%s233 + $0x5c] sm:$0x1] %v309
      %v311 = vld [vmem:[%s233 + $0x68] sm:$0x1]
      %v312 = vsel %vm286, 0, %v311
      %313 = vst [vmem:[%s233 + $0x68] sm:$0x1] %v312
      %v314 = vld [vmem:[%s233 + $0x74] sm:$0x1]
      %v315 = vsel %vm286, 0, %v314
      %316 = vst [vmem:[%s233 + $0x74] sm:$0x1] %v315
      %v317 = vld [vmem:[%s233 + $0x80] sm:$0x1]
      %v318 = vsel %vm286, 0, %v317
      %319 = vst [vmem:[%s233 + $0x80] sm:$0x1] %v318
      %v320 = vld [vmem:[%s233 + $0x8c] sm:$0x1]
      %v321 = vsel %vm286, 0, %v320
      %322 = vst [vmem:[%s233 + $0x8c] sm:$0x1] %v321
      %v323 = vld [vmem:[%s233 + $0x98] sm:$0x1]
      %v324 = vsel %vm286, 0, %v323
      %325 = vst [vmem:[%s233 + $0x98] sm:$0x1] %v324
      %v326 = vld [vmem:[%s233 + $0xa4] sm:$0x1]
      %v327 = vsel %vm286, 0, %v326
      %328 = vst [vmem:[%s233 + $0xa4] sm:$0x1] %v327
      %v329 = vld [vmem:[%s233 + $0xb0] sm:$0x1]
      %v330 = vsel %vm286, 0, %v329
      %331 = vst [vmem:[%s233 + $0xb0] sm:$0x1] %v330
      %v332 = vld [vmem:[%s233 + $0xbc] sm:$0x1]
      %v333 = vsel %vm286, 0, %v332
      %334 = vst [vmem:[%s233 + $0xbc] sm:$0x1] %v333
      %v335 = vld [vmem:[%s219] sm:$0xf]
      %v336 = vld [vmem:[%s219 + $0x4] sm:$0xf]
      %v337 = vld [vmem:[%s219 + $0xc] sm:$0xf]
      %v338 = vld [vmem:[%s219 + $0x10] sm:$0xf]
      %v339 = vld [vmem:[%s219 + $0x18] sm:$0xf]
      %v340 = vld [vmem:[%s219 + $0x1c] sm:$0xf]
      %v341 = vld [vmem:[%s219 + $0x24] sm:$0xf]
      %v342 = vld [vmem:[%s219 + $0x28] sm:$0xf]
      %v343 = vld [vmem:[%s219 + $0x30] sm:$0xf]
      %v344 = vld [vmem:[%s219 + $0x34] sm:$0xf]
      %v345 = vld [vmem:[%s219 + $0x3c] sm:$0xf]
      %v346 = vld [vmem:[%s219 + $0x40] sm:$0xf]
      %v347 = vld [vmem:[%s219 + $0x48] sm:$0xf]
      %v348 = vld [vmem:[%s219 + $0x4c] sm:$0xf]
      %v349 = vld [vmem:[%s219 + $0x54] sm:$0xf]
      %v350 = vld [vmem:[%s219 + $0x58] sm:$0xf]
      %v351 = vld [vmem:[%s219 + $0x60] sm:$0xf]
      %v352 = vld [vmem:[%s219 + $0x64] sm:$0xf]
      %v353 = vld [vmem:[%s219 + $0x6c] sm:$0xf]
      %v354 = vld [vmem:[%s219 + $0x70] sm:$0xf]
      %v355 = vld [vmem:[%s219 + $0x78] sm:$0xf]
      %v356 = vld [vmem:[%s219 + $0x7c] sm:$0xf]
      %v357 = vld [vmem:[%s219 + $0x84] sm:$0xf]
      %v358 = vld [vmem:[%s219 + $0x88] sm:$0xf]
      %v359 = vld [vmem:[%s219 + $0x90] sm:$0xf]
      %v360 = vld [vmem:[%s219 + $0x94] sm:$0xf]
      %v361 = vld [vmem:[%s219 + $0x9c] sm:$0xf]
      %v362 = vld [vmem:[%s219 + $0xa0] sm:$0xf]
      %v363 = vld [vmem:[%s219 + $0xa8] sm:$0xf]
      %v364 = vld [vmem:[%s219 + $0xac] sm:$0xf]
      %v365 = vld [vmem:[%s219 + $0xb4] sm:$0xf]
      %v366 = vld [vmem:[%s219 + $0xb8] sm:$0xf]
      %367 = vst [vmem:[#allocation3] sm:$0xf] %v335
      %368 = vst [vmem:[#allocation3 + $0x24] sm:$0xf] %v336
      %369 = vst [vmem:[#allocation3 + $0x48] sm:$0xf] %v337
      %370 = vst [vmem:[#allocation3 + $0x6c] sm:$0xf] %v338
      %371 = vst [vmem:[#allocation3 + $0x90] sm:$0xf] %v339
      %372 = vst [vmem:[#allocation3 + $0xb4] sm:$0xf] %v340
      %373 = vst [vmem:[#allocation3 + $0xd8] sm:$0xf] %v341
      %374 = vst [vmem:[#allocation3 + $0xfc] sm:$0xf] %v342
      %375 = vst [vmem:[#allocation3 + $0x120] sm:$0xf] %v343
      %376 = vst [vmem:[#allocation3 + $0x144] sm:$0xf] %v344
      %377 = vst [vmem:[#allocation3 + $0x168] sm:$0xf] %v345
      %378 = vst [vmem:[#allocation3 + $0x18c] sm:$0xf] %v346
      %379 = vst [vmem:[#allocation3 + $0x1b0] sm:$0xf] %v347
      %380 = vst [vmem:[#allocation3 + $0x1d4] sm:$0xf] %v348
      %381 = vst [vmem:[#allocation3 + $0x1f8] sm:$0xf] %v349
      %382 = vst [vmem:[#allocation3 + $0x21c] sm:$0xf] %v350
      %383 = vst [vmem:[#allocation3 + $0x240] sm:$0xf] %v351
      %384 = vst [vmem:[#allocation3 + $0x264] sm:$0xf] %v352
      %385 = vst [vmem:[#allocation3 + $0x288] sm:$0xf] %v353
      %386 = vst [vmem:[#allocation3 + $0x2ac] sm:$0xf] %v354
      %387 = vst [vmem:[#allocation3 + $0x2d0] sm:$0xf] %v355
      %388 = vst [vmem:[#allocation3 + $0x2f4] sm:$0xf] %v356
      %389 = vst [vmem:[#allocation3 + $0x318] sm:$0xf] %v357
      %390 = vst [vmem:[#allocation3 + $0x33c] sm:$0xf] %v358
      %391 = vst [vmem:[#allocation3 + $0x360] sm:$0xf] %v359
      %392 = vst [vmem:[#allocation3 + $0x384] sm:$0xf] %v360
      %393 = vst [vmem:[#allocation3 + $0x3a8] sm:$0xf] %v361
      %394 = vst [vmem:[#allocation3 + $0x3cc] sm:$0xf] %v362
      %395 = vst [vmem:[#allocation3 + $0x3f0] sm:$0xf] %v363
      %396 = vst [vmem:[#allocation3 + $0x414] sm:$0xf] %v364
      %397 = vst [vmem:[#allocation3 + $0x438] sm:$0xf] %v365
      %398 = vst [vmem:[#allocation3 + $0x45c] sm:$0xf] %v366
      %v399 = vld [vmem:[%s219] sm:$0xf]
      %v400 = vld [vmem:[%s219 + $0x4] sm:$0xf]
      %v401 = vld [vmem:[%s219 + $0x8] sm:$0x1]
      %v402 = vld [vmem:[%s219 + $0xc] sm:$0xf]
      %v403 = vld [vmem:[%s219 + $0x10] sm:$0xf]
      %v404 = vld [vmem:[%s219 + $0x14] sm:$0x1]
      %v405 = vld [vmem:[%s219 + $0x18] sm:$0xf]
      %v406 = vld [vmem:[%s219 + $0x1c] sm:$0xf]
      %v407 = vld [vmem:[%s219 + $0x20] sm:$0x1]
      %v408 = vld [vmem:[%s219 + $0x24] sm:$0xf]
      %v409 = vld [vmem:[%s219 + $0x28] sm:$0xf]
      %v410 = vld [vmem:[%s219 + $0x2c] sm:$0x1]
      %v411 = vld [vmem:[%s219 + $0x30] sm:$0xf]
      %v412 = vld [vmem:[%s219 + $0x34] sm:$0xf]
      %v413 = vld [vmem:[%s219 + $0x38] sm:$0x1]
      %v414 = vld [vmem:[%s219 + $0x3c] sm:$0xf]
      %v415 = vld [vmem:[%s219 + $0x40] sm:$0xf]
      %v416 = vld [vmem:[%s219 + $0x44] sm:$0x1]
      %v417 = vld [vmem:[%s219 + $0x48] sm:$0xf]
      %v418 = vld [vmem:[%s219 + $0x4c] sm:$0xf]
      %v419 = vld [vmem:[%s219 + $0x50] sm:$0x1]
      %v420 = vld [vmem:[%s219 + $0x54] sm:$0xf]
      %v421 = vld [vmem:[%s219 + $0x58] sm:$0xf]
      %v422 = vld [vmem:[%s219 + $0x5c] sm:$0x1]
      %v423 = vld [vmem:[%s219 + $0x60] sm:$0xf]
      %v424 = vld [vmem:[%s219 + $0x64] sm:$0xf]
      %v425 = vld [vmem:[%s219 + $0x68] sm:$0x1]
      %v426 = vld [vmem:[%s219 + $0x6c] sm:$0xf]
      %v427 = vld [vmem:[%s219 + $0x70] sm:$0xf]
      %v428 = vld [vmem:[%s219 + $0x74] sm:$0x1]
      %v429 = vld [vmem:[%s219 + $0x78] sm:$0xf]
      %v430 = vld [vmem:[%s219 + $0x7c] sm:$0xf]
      %v431 = vld [vmem:[%s219 + $0x80] sm:$0x1]
      %v432 = vld [vmem:[%s219 + $0x84] sm:$0xf]
      %v433 = vld [vmem:[%s219 + $0x88] sm:$0xf]
      %v434 = vld [vmem:[%s219 + $0x8c] sm:$0x1]
      %v435 = vld [vmem:[%s219 + $0x90] sm:$0xf]
      %v436 = vld [vmem:[%s219 + $0x94] sm:$0xf]
      %v437 = vld [vmem:[%s219 + $0x98] sm:$0x1]
      %v438 = vld [vmem:[%s219 + $0x9c] sm:$0xf]
      %v439 = vld [vmem:[%s219 + $0xa0] sm:$0xf]
      %v440 = vld [vmem:[%s219 + $0xa4] sm:$0x1]
      %v441 = vld [vmem:[%s219 + $0xa8] sm:$0xf]
      %v442 = vld [vmem:[%s219 + $0xac] sm:$0xf]
      %v443 = vld [vmem:[%s219 + $0xb0] sm:$0x1]
      %v444 = vld [vmem:[%s219 + $0xb4] sm:$0xf]
      %v445 = vld [vmem:[%s219 + $0xb8] sm:$0xf]
      %v446 = vld [vmem:[%s219 + $0xbc] sm:$0x1]
      %vm447 = vsmask.f32 3328
      %vm448 = vsmask.f32 7440
      %vm449 = vmor %vm447, %vm448
      %v451 = vshrl.u32 %v399, 16
      %v453 = vrot.slane %v451, 4
      %v454 = vshll.u32 %v399, 16
      %v456 = vrot.slane %v454, 5
      %v457 = vor.u32 %v453, %v456
      %v458 = vrot.slane %v457, 4
      %v460 = vshll.u32 %v400, 16
      %v462 = vrot.slane %v460, 5
      %v463 = vsel %vm449, %v458, %v462
      %v464 = vshrl.u32 %v400, 16
      %v466 = vrot.slane %v464, 4
      %v467 = vor.u32 %v466, %v462
      %v468 = vrot.slane %v467, 4
      %v470 = vshll.u32 %v401, 16
      %v472 = vrot.slane %v470, 5
      %v473 = vsel %vm449, %v468, %v472
      %v475 = vshrl.u32 %v402, 16
      %v477 = vrot.slane %v475, 4
      %v478 = vshll.u32 %v402, 16
      %v480 = vrot.slane %v478, 5
      %v481 = vor.u32 %v477, %v480
      %v482 = vrot.slane %v481, 4
      %v484 = vshll.u32 %v403, 16
      %v486 = vrot.slane %v484, 5
      %v487 = vsel %vm449, %v482, %v486
      %v488 = vshrl.u32 %v403, 16
      %v490 = vrot.slane %v488, 4
      %v491 = vor.u32 %v490, %v486
      %v492 = vrot.slane %v491, 4
      %v494 = vshll.u32 %v404, 16
      %v496 = vrot.slane %v494, 5
      %v497 = vsel %vm449, %v492, %v496
      %v499 = vshrl.u32 %v405, 16
      %v501 = vrot.slane %v499, 4
      %v502 = vshll.u32 %v405, 16
      %v504 = vrot.slane %v502, 5
      %v505 = vor.u32 %v501, %v504
      %v506 = vrot.slane %v505, 4
      %v508 = vshll.u32 %v406, 16
      %v510 = vrot.slane %v508, 5
      %v511 = vsel %vm449, %v506, %v510
      %v512 = vshrl.u32 %v406, 16
      %v514 = vrot.slane %v512, 4
      %v515 = vor.u32 %v514, %v510
      %v516 = vrot.slane %v515, 4
      %v518 = vshll.u32 %v407, 16
      %v520 = vrot.slane %v518, 5
      %v521 = vsel %vm449, %v516, %v520
      %v523 = vshrl.u32 %v408, 16
      %v525 = vrot.slane %v523, 4
      %v526 = vshll.u32 %v408, 16
      %v528 = vrot.slane %v526, 5
      %v529 = vor.u32 %v525, %v528
      %v530 = vrot.slane %v529, 4
      %v532 = vshll.u32 %v409, 16
      %v534 = vrot.slane %v532, 5
      %v535 = vsel %vm449, %v530, %v534
      %v536 = vshrl.u32 %v409, 16
      %v538 = vrot.slane %v536, 4
      %v539 = vor.u32 %v538, %v534
      %v540 = vrot.slane %v539, 4
      %v542 = vshll.u32 %v410, 16
      %v544 = vrot.slane %v542, 5
      %v545 = vsel %vm449, %v540, %v544
      %v547 = vshrl.u32 %v411, 16
      %v549 = vrot.slane %v547, 4
      %v550 = vshll.u32 %v411, 16
      %v552 = vrot.slane %v550, 5
      %v553 = vor.u32 %v549, %v552
      %v554 = vrot.slane %v553, 4
      %v556 = vshll.u32 %v412, 16
      %v558 = vrot.slane %v556, 5
      %v559 = vsel %vm449, %v554, %v558
      %v560 = vshrl.u32 %v412, 16
      %v562 = vrot.slane %v560, 4
      %v563 = vor.u32 %v562, %v558
      %v564 = vrot.slane %v563, 4
      %v566 = vshll.u32 %v413, 16
      %v568 = vrot.slane %v566, 5
      %v569 = vsel %vm449, %v564, %v568
      %v571 = vshrl.u32 %v414, 16
      %v573 = vrot.slane %v571, 4
      %v574 = vshll.u32 %v414, 16
      %v576 = vrot.slane %v574, 5
      %v577 = vor.u32 %v573, %v576
      %v578 = vrot.slane %v577, 4
      %v580 = vshll.u32 %v415, 16
      %v582 = vrot.slane %v580, 5
      %v583 = vsel %vm449, %v578, %v582
      %v584 = vshrl.u32 %v415, 16
      %v586 = vrot.slane %v584, 4
      %v587 = vor.u32 %v586, %v582
      %v588 = vrot.slane %v587, 4
      %v590 = vshll.u32 %v416, 16
      %v592 = vrot.slane %v590, 5
      %v593 = vsel %vm449, %v588, %v592
      %v595 = vshrl.u32 %v417, 16
      %v597 = vrot.slane %v595, 4
      %v598 = vshll.u32 %v417, 16
      %v600 = vrot.slane %v598, 5
      %v601 = vor.u32 %v597, %v600
      %v602 = vrot.slane %v601, 4
      %v604 = vshll.u32 %v418, 16
      %v606 = vrot.slane %v604, 5
      %v607 = vsel %vm449, %v602, %v606
      %v608 = vshrl.u32 %v418, 16
      %v610 = vrot.slane %v608, 4
      %v611 = vor.u32 %v610, %v606
      %v612 = vrot.slane %v611, 4
      %v614 = vshll.u32 %v419, 16
      %v616 = vrot.slane %v614, 5
      %v617 = vsel %vm449, %v612, %v616
      %v619 = vshrl.u32 %v420, 16
      %v621 = vrot.slane %v619, 4
      %v622 = vshll.u32 %v420, 16
      %v624 = vrot.slane %v622, 5
      %v625 = vor.u32 %v621, %v624
      %v626 = vrot.slane %v625, 4
      %v628 = vshll.u32 %v421, 16
      %v630 = vrot.slane %v628, 5
      %v631 = vsel %vm449, %v626, %v630
      %v632 = vshrl.u32 %v421, 16
      %v634 = vrot.slane %v632, 4
      %v635 = vor.u32 %v634, %v630
      %v636 = vrot.slane %v635, 4
      %v638 = vshll.u32 %v422, 16
      %v640 = vrot.slane %v638, 5
      %v641 = vsel %vm449, %v636, %v640
      %v643 = vshrl.u32 %v423, 16
      %v645 = vrot.slane %v643, 4
      %v646 = vshll.u32 %v423, 16
      %v648 = vrot.slane %v646, 5
      %v649 = vor.u32 %v645, %v648
      %v650 = vrot.slane %v649, 4
      %v652 = vshll.u32 %v424, 16
      %v654 = vrot.slane %v652, 5
      %v655 = vsel %vm449, %v650, %v654
      %v656 = vshrl.u32 %v424, 16
      %v658 = vrot.slane %v656, 4
      %v659 = vor.u32 %v658, %v654
      %v660 = vrot.slane %v659, 4
      %v662 = vshll.u32 %v425, 16
      %v664 = vrot.slane %v662, 5
      %v665 = vsel %vm449, %v660, %v664
      %v667 = vshrl.u32 %v426, 16
      %v669 = vrot.slane %v667, 4
      %v670 = vshll.u32 %v426, 16
      %v672 = vrot.slane %v670, 5
      %v673 = vor.u32 %v669, %v672
      %v674 = vrot.slane %v673, 4
      %v676 = vshll.u32 %v427, 16
      %v678 = vrot.slane %v676, 5
      %v679 = vsel %vm449, %v674, %v678
      %v680 = vshrl.u32 %v427, 16
      %v682 = vrot.slane %v680, 4
      %v683 = vor.u32 %v682, %v678
      %v684 = vrot.slane %v683, 4
      %v686 = vshll.u32 %v428, 16
      %v688 = vrot.slane %v686, 5
      %v689 = vsel %vm449, %v684, %v688
      %v691 = vshrl.u32 %v429, 16
      %v693 = vrot.slane %v691, 4
      %v694 = vshll.u32 %v429, 16
      %v696 = vrot.slane %v694, 5
      %v697 = vor.u32 %v693, %v696
      %v698 = vrot.slane %v697, 4
      %v700 = vshll.u32 %v430, 16
      %v702 = vrot.slane %v700, 5
      %v703 = vsel %vm449, %v698, %v702
      %v704 = vshrl.u32 %v430, 16
      %v706 = vrot.slane %v704, 4
      %v707 = vor.u32 %v706, %v702
      %v708 = vrot.slane %v707, 4
      %v710 = vshll.u32 %v431, 16
      %v712 = vrot.slane %v710, 5
      %v713 = vsel %vm449, %v708, %v712
      %v715 = vshrl.u32 %v432, 16
      %v717 = vrot.slane %v715, 4
      %v718 = vshll.u32 %v432, 16
      %v720 = vrot.slane %v718, 5
      %v721 = vor.u32 %v717, %v720
      %v722 = vrot.slane %v721, 4
      %v724 = vshll.u32 %v433, 16
      %v726 = vrot.slane %v724, 5
      %v727 = vsel %vm449, %v722, %v726
      %v728 = vshrl.u32 %v433, 16
      %v730 = vrot.slane %v728, 4
      %v731 = vor.u32 %v730, %v726
      %v732 = vrot.slane %v731, 4
      %v734 = vshll.u32 %v434, 16
      %v736 = vrot.slane %v734, 5
      %v737 = vsel %vm449, %v732, %v736
      %v739 = vshrl.u32 %v435, 16
      %v741 = vrot.slane %v739, 4
      %v742 = vshll.u32 %v435, 16
      %v744 = vrot.slane %v742, 5
      %v745 = vor.u32 %v741, %v744
      %v746 = vrot.slane %v745, 4
      %v748 = vshll.u32 %v436, 16
      %v750 = vrot.slane %v748, 5
      %v751 = vsel %vm449, %v746, %v750
      %v752 = vshrl.u32 %v436, 16
      %v754 = vrot.slane %v752, 4
      %v755 = vor.u32 %v754, %v750
      %v756 = vrot.slane %v755, 4
      %v758 = vshll.u32 %v437, 16
      %v760 = vrot.slane %v758, 5
      %v761 = vsel %vm449, %v756, %v760
      %v763 = vshrl.u32 %v438, 16
      %v765 = vrot.slane %v763, 4
      %v766 = vshll.u32 %v438, 16
      %v768 = vrot.slane %v766, 5
      %v769 = vor.u32 %v765, %v768
      %v770 = vrot.slane %v769, 4
      %v772 = vshll.u32 %v439, 16
      %v774 = vrot.slane %v772, 5
      %v775 = vsel %vm449, %v770, %v774
      %v776 = vshrl.u32 %v439, 16
      %v778 = vrot.slane %v776, 4
      %v779 = vor.u32 %v778, %v774
      %v780 = vrot.slane %v779, 4
      %v782 = vshll.u32 %v440, 16
      %v784 = vrot.slane %v782, 5
      %v785 = vsel %vm449, %v780, %v784
      %v787 = vshrl.u32 %v441, 16
      %v789 = vrot.slane %v787, 4
      %v790 = vshll.u32 %v441, 16
      %v792 = vrot.slane %v790, 5
      %v793 = vor.u32 %v789, %v792
      %v794 = vrot.slane %v793, 4
      %v796 = vshll.u32 %v442, 16
      %v798 = vrot.slane %v796, 5
      %v799 = vsel %vm449, %v794, %v798
      %v800 = vshrl.u32 %v442, 16
      %v802 = vrot.slane %v800, 4
      %v803 = vor.u32 %v802, %v798
      %v804 = vrot.slane %v803, 4
      %v806 = vshll.u32 %v443, 16
      %v808 = vrot.slane %v806, 5
      %v809 = vsel %vm449, %v804, %v808
      %v811 = vshrl.u32 %v444, 16
      %v813 = vrot.slane %v811, 4
      %v814 = vshll.u32 %v444, 16
      %v816 = vrot.slane %v814, 5
      %v817 = vor.u32 %v813, %v816
      %v818 = vrot.slane %v817, 4
      %v820 = vshll.u32 %v445, 16
      %v822 = vrot.slane %v820, 5
      %v823 = vsel %vm449, %v818, %v822
      %v824 = vshrl.u32 %v445, 16
      %v826 = vrot.slane %v824, 4
      %v827 = vor.u32 %v826, %v822
      %v828 = vrot.slane %v827, 4
      %v830 = vshll.u32 %v446, 16
      %v832 = vrot.slane %v830, 5
      %v833 = vsel %vm449, %v828, %v832
      %866 = vst [vmem:[#allocation3 + $0x4] sm:$0xf] %v463
      %867 = vst [vmem:[#allocation3 + $0x28] sm:$0xf] %v473
      %868 = vst [vmem:[#allocation3 + $0x4c] sm:$0xf] %v487
      %869 = vst [vmem:[#allocation3 + $0x70] sm:$0xf] %v497
      %870 = vst [vmem:[#allocation3 + $0x94] sm:$0xf] %v511
      %871 = vst [vmem:[#allocation3 + $0xb8] sm:$0xf] %v521
      %872 = vst [vmem:[#allocation3 + $0xdc] sm:$0xf] %v535
      %873 = vst [vmem:[#allocation3 + $0x100] sm:$0xf] %v545
      %874 = vst [vmem:[#allocation3 + $0x124] sm:$0xf] %v559
      %875 = vst [vmem:[#allocation3 + $0x148] sm:$0xf] %v569
      %876 = vst [vmem:[#allocation3 + $0x16c] sm:$0xf] %v583
      %877 = vst [vmem:[#allocation3 + $0x190] sm:$0xf] %v593
      %878 = vst [vmem:[#allocation3 + $0x1b4] sm:$0xf] %v607
      %879 = vst [vmem:[#allocation3 + $0x1d8] sm:$0xf] %v617
      %880 = vst [vmem:[#allocation3 + $0x1fc] sm:$0xf] %v631
      %881 = vst [vmem:[#allocation3 + $0x220] sm:$0xf] %v641
      %882 = vst [vmem:[#allocation3 + $0x244] sm:$0xf] %v655
      %883 = vst [vmem:[#allocation3 + $0x268] sm:$0xf] %v665
      %884 = vst [vmem:[#allocation3 + $0x28c] sm:$0xf] %v679
      %885 = vst [vmem:[#allocation3 + $0x2b0] sm:$0xf] %v689
      %886 = vst [vmem:[#allocation3 + $0x2d4] sm:$0xf] %v703
      %887 = vst [vmem:[#allocation3 + $0x2f8] sm:$0xf] %v713
      %888 = vst [vmem:[#allocation3 + $0x31c] sm:$0xf] %v727
      %889 = vst [vmem:[#allocation3 + $0x340] sm:$0xf] %v737
      %890 = vst [vmem:[#allocation3 + $0x364] sm:$0xf] %v751
      %891 = vst [vmem:[#allocation3 + $0x388] sm:$0xf] %v761
      %892 = vst [vmem:[#allocation3 + $0x3ac] sm:$0xf] %v775
      %893 = vst [vmem:[#allocation3 + $0x3d0] sm:$0xf] %v785
      %894 = vst [vmem:[#allocation3 + $0x3f4] sm:$0xf] %v799
      %895 = vst [vmem:[#allocation3 + $0x418] sm:$0xf] %v809
      %896 = vst [vmem:[#allocation3 + $0x43c] sm:$0xf] %v823
      %897 = vst [vmem:[#allocation3 + $0x460] sm:$0xf] %v833
      %v898 = vld [vmem:[%s219] sm:$0xe]
      %v899 = vld [vmem:[%s219 + $0x4] sm:$0xf]
      %v900 = vld [vmem:[%s219 + $0x8] sm:$0x1]
      %v901 = vld [vmem:[%s219 + $0xc] sm:$0xe]
      %v902 = vld [vmem:[%s219 + $0x10] sm:$0xf]
      %v903 = vld [vmem:[%s219 + $0x14] sm:$0x1]
      %v904 = vld [vmem:[%s219 + $0x18] sm:$0xe]
      %v905 = vld [vmem:[%s219 + $0x1c] sm:$0xf]
      %v906 = vld [vmem:[%s219 + $0x20] sm:$0x1]
      %v907 = vld [vmem:[%s219 + $0x24] sm:$0xe]
      %v908 = vld [vmem:[%s219 + $0x28] sm:$0xf]
      %v909 = vld [vmem:[%s219 + $0x2c] sm:$0x1]
      %v910 = vld [vmem:[%s219 + $0x30] sm:$0xe]
      %v911 = vld [vmem:[%s219 + $0x34] sm:$0xf]
      %v912 = vld [vmem:[%s219 + $0x38] sm:$0x1]
      %v913 = vld [vmem:[%s219 + $0x3c] sm:$0xe]
      %v914 = vld [vmem:[%s219 + $0x40] sm:$0xf]
      %v915 = vld [vmem:[%s219 + $0x44] sm:$0x1]
      %v916 = vld [vmem:[%s219 + $0x48] sm:$0xe]
      %v917 = vld [vmem:[%s219 + $0x4c] sm:$0xf]
      %v918 = vld [vmem:[%s219 + $0x50] sm:$0x1]
      %v919 = vld [vmem:[%s219 + $0x54] sm:$0xe]
      %v920 = vld [vmem:[%s219 + $0x58] sm:$0xf]
      %v921 = vld [vmem:[%s219 + $0x5c] sm:$0x1]
      %v922 = vld [vmem:[%s219 + $0x60] sm:$0xe]
      %v923 = vld [vmem:[%s219 + $0x64] sm:$0xf]
      %v924 = vld [vmem:[%s219 + $0x68] sm:$0x1]
      %v925 = vld [vmem:[%s219 + $0x6c] sm:$0xe]
      %v926 = vld [vmem:[%s219 + $0x70] sm:$0xf]
      %v927 = vld [vmem:[%s219 + $0x74] sm:$0x1]
      %v928 = vld [vmem:[%s219 + $0x78] sm:$0xe]
      %v929 = vld [vmem:[%s219 + $0x7c] sm:$0xf]
      %v930 = vld [vmem:[%s219 + $0x80] sm:$0x1]
      %v931 = vld [vmem:[%s219 + $0x84] sm:$0xe]
      %v932 = vld [vmem:[%s219 + $0x88] sm:$0xf]
      %v933 = vld [vmem:[%s219 + $0x8c] sm:$0x1]
      %v934 = vld [vmem:[%s219 + $0x90] sm:$0xe]
      %v935 = vld [vmem:[%s219 + $0x94] sm:$0xf]
      %v936 = vld [vmem:[%s219 + $0x98] sm:$0x1]
      %v937 = vld [vmem:[%s219 + $0x9c] sm:$0xe]
      %v938 = vld [vmem:[%s219 + $0xa0] sm:$0xf]
      %v939 = vld [vmem:[%s219 + $0xa4] sm:$0x1]
      %v940 = vld [vmem:[%s219 + $0xa8] sm:$0xe]
      %v941 = vld [vmem:[%s219 + $0xac] sm:$0xf]
      %v942 = vld [vmem:[%s219 + $0xb0] sm:$0x1]
      %v943 = vld [vmem:[%s219 + $0xb4] sm:$0xe]
      %v944 = vld [vmem:[%s219 + $0xb8] sm:$0xf]
      %v945 = vld [vmem:[%s219 + $0xbc] sm:$0x1]
      %vm994 = vcmask 1042432
      %vm995 = vcmask 1046532
      %vm996 = vmor %vm994, %vm995
      %v997 = vrot.slane %v898, 5
      %v998 = vrot.slane %v997, 4
      %v999 = vrot.slane %v899, 5
      %v1000 = vsel %vm996, %v998, %v999
      %v1001 = vrot.slane %v999, 4
      %v1002 = vrot.slane %v900, 5
      %v1003 = vsel %vm996, %v1001, %v1002
      %v1004 = vrot.slane %v901, 5
      %v1005 = vrot.slane %v1004, 4
      %v1006 = vrot.slane %v902, 5
      %v1007 = vsel %vm996, %v1005, %v1006
      %v1008 = vrot.slane %v1006, 4
      %v1009 = vrot.slane %v903, 5
      %v1010 = vsel %vm996, %v1008, %v1009
      %v1011 = vrot.slane %v904, 5
      %v1012 = vrot.slane %v1011, 4
      %v1013 = vrot.slane %v905, 5
      %v1014 = vsel %vm996, %v1012, %v1013
      %v1015 = vrot.slane %v1013, 4
      %v1016 = vrot.slane %v906, 5
      %v1017 = vsel %vm996, %v1015, %v1016
      %v1018 = vrot.slane %v907, 5
      %v1019 = vrot.slane %v1018, 4
      %v1020 = vrot.slane %v908, 5
      %v1021 = vsel %vm996, %v1019, %v1020
      %v1022 = vrot.slane %v1020, 4
      %v1023 = vrot.slane %v909, 5
      %v1024 = vsel %vm996, %v1022, %v1023
      %v1025 = vrot.slane %v910, 5
      %v1026 = vrot.slane %v1025, 4
      %v1027 = vrot.slane %v911, 5
      %v1028 = vsel %vm996, %v1026, %v1027
      %v1029 = vrot.slane %v1027, 4
      %v1030 = vrot.slane %v912, 5
      %v1031 = vsel %vm996, %v1029, %v1030
      %v1032 = vrot.slane %v913, 5
      %v1033 = vrot.slane %v1032, 4
      %v1034 = vrot.slane %v914, 5
      %v1035 = vsel %vm996, %v1033, %v1034
      %v1036 = vrot.slane %v1034, 4
      %v1037 = vrot.slane %v915, 5
      %v1038 = vsel %vm996, %v1036, %v1037
      %v1039 = vrot.slane %v916, 5
      %v1040 = vrot.slane %v1039, 4
      %v1041 = vrot.slane %v917, 5
      %v1042 = vsel %vm996, %v1040, %v1041
      %v1043 = vrot.slane %v1041, 4
      %v1044 = vrot.slane %v918, 5
      %v1045 = vsel %vm996, %v1043, %v1044
      %v1046 = vrot.slane %v919, 5
      %v1047 = vrot.slane %v1046, 4
      %v1048 = vrot.slane %v920, 5
      %v1049 = vsel %vm996, %v1047, %v1048
      %v1050 = vrot.slane %v1048, 4
      %v1051 = vrot.slane %v921, 5
      %v1052 = vsel %vm996, %v1050, %v1051
      %v1053 = vrot.slane %v922, 5
      %v1054 = vrot.slane %v1053, 4
      %v1055 = vrot.slane %v923, 5
      %v1056 = vsel %vm996, %v1054, %v1055
      %v1057 = vrot.slane %v1055, 4
      %v1058 = vrot.slane %v924, 5
      %v1059 = vsel %vm996, %v1057, %v1058
      %v1060 = vrot.slane %v925, 5
      %v1061 = vrot.slane %v1060, 4
      %v1062 = vrot.slane %v926, 5
      %v1063 = vsel %vm996, %v1061, %v1062
      %v1064 = vrot.slane %v1062, 4
      %v1065 = vrot.slane %v927, 5
      %v1066 = vsel %vm996, %v1064, %v1065
      %v1067 = vrot.slane %v928, 5
      %v1068 = vrot.slane %v1067, 4
      %v1069 = vrot.slane %v929, 5
      %v1070 = vsel %vm996, %v1068, %v1069
      %v1071 = vrot.slane %v1069, 4
      %v1072 = vrot.slane %v930, 5
      %v1073 = vsel %vm996, %v1071, %v1072
      %v1074 = vrot.slane %v931, 5
      %v1075 = vrot.slane %v1074, 4
      %v1076 = vrot.slane %v932, 5
      %v1077 = vsel %vm996, %v1075, %v1076
      %v1078 = vrot.slane %v1076, 4
      %v1079 = vrot.slane %v933, 5
      %v1080 = vsel %vm996, %v1078, %v1079
      %v1081 = vrot.slane %v934, 5
      %v1082 = vrot.slane %v1081, 4
      %v1083 = vrot.slane %v935, 5
      %v1084 = vsel %vm996, %v1082, %v1083
      %v1085 = vrot.slane %v1083, 4
      %v1086 = vrot.slane %v936, 5
      %v1087 = vsel %vm996, %v1085, %v1086
      %v1088 = vrot.slane %v937, 5
      %v1089 = vrot.slane %v1088, 4
      %v1090 = vrot.slane %v938, 5
      %v1091 = vsel %vm996, %v1089, %v1090
      %v1092 = vrot.slane %v1090, 4
      %v1093 = vrot.slane %v939, 5
      %v1094 = vsel %vm996, %v1092, %v1093
      %v1095 = vrot.slane %v940, 5
      %v1096 = vrot.slane %v1095, 4
      %v1097 = vrot.slane %v941, 5
      %v1098 = vsel %vm996, %v1096, %v1097
      %v1099 = vrot.slane %v1097, 4
      %v1100 = vrot.slane %v942, 5
      %v1101 = vsel %vm996, %v1099, %v1100
      %v1102 = vrot.slane %v943, 5
      %v1103 = vrot.slane %v1102, 4
      %v1104 = vrot.slane %v944, 5
      %v1105 = vsel %vm996, %v1103, %v1104
      %v1106 = vrot.slane %v1104, 4
      %v1107 = vrot.slane %v945, 5
      %v1108 = vsel %vm996, %v1106, %v1107
      %1141 = vst [vmem:[#allocation3 + $0x8] sm:$0xf] %v1000
      %1142 = vst [vmem:[#allocation3 + $0x2c] sm:$0xf] %v1003
      %1143 = vst [vmem:[#allocation3 + $0x50] sm:$0xf] %v1007
      %1144 = vst [vmem:[#allocation3 + $0x74] sm:$0xf] %v1010
      %1145 = vst [vmem:[#allocation3 + $0x98] sm:$0xf] %v1014
      %1146 = vst [vmem:[#allocation3 + $0xbc] sm:$0xf] %v1017
      %1147 = vst [vmem:[#allocation3 + $0xe0] sm:$0xf] %v1021
      %1148 = vst [vmem:[#allocation3 + $0x104] sm:$0xf] %v1024
      %1149 = vst [vmem:[#allocation3 + $0x128] sm:$0xf] %v1028
      %1150 = vst [vmem:[#allocation3 + $0x14c] sm:$0xf] %v1031
      %1151 = vst [vmem:[#allocation3 + $0x170] sm:$0xf] %v1035
      %1152 = vst [vmem:[#allocation3 + $0x194] sm:$0xf] %v1038
      %1153 = vst [vmem:[#allocation3 + $0x1b8] sm:$0xf] %v1042
      %1154 = vst [vmem:[#allocation3 + $0x1dc] sm:$0xf] %v1045
      %1155 = vst [vmem:[#allocation3 + $0x200] sm:$0xf] %v1049
      %1156 = vst [vmem:[#allocation3 + $0x224] sm:$0xf] %v1052
      %1157 = vst [vmem:[#allocation3 + $0x248] sm:$0xf] %v1056
      %1158 = vst [vmem:[#allocation3 + $0x26c] sm:$0xf] %v1059
      %1159 = vst [vmem:[#allocation3 + $0x290] sm:$0xf] %v1063
      %1160 = vst [vmem:[#allocation3 + $0x2b4] sm:$0xf] %v1066
      %1161 = vst [vmem:[#allocation3 + $0x2d8] sm:$0xf] %v1070
      %1162 = vst [vmem:[#allocation3 + $0x2fc] sm:$0xf] %v1073
      %1163 = vst [vmem:[#allocation3 + $0x320] sm:$0xf] %v1077
      %1164 = vst [vmem:[#allocation3 + $0x344] sm:$0xf] %v1080
      %1165 = vst [vmem:[#allocation3 + $0x368] sm:$0xf] %v1084
      %1166 = vst [vmem:[#allocation3 + $0x38c] sm:$0xf] %v1087
      %1167 = vst [vmem:[#allocation3 + $0x3b0] sm:$0xf] %v1091
      %1168 = vst [vmem:[#allocation3 + $0x3d4] sm:$0xf] %v1094
      %1169 = vst [vmem:[#allocation3 + $0x3f8] sm:$0xf] %v1098
      %1170 = vst [vmem:[#allocation3 + $0x41c] sm:$0xf] %v1101
      %1171 = vst [vmem:[#allocation3 + $0x440] sm:$0xf] %v1105
      %1172 = vst [vmem:[#allocation3 + $0x464] sm:$0xf] %v1108
      %s1173 = scalar_lea.vmem %s219, 12
      %v1174 = vld [vmem:[%s1173] sm:$0xf]
      %v1175 = vld [vmem:[%s1173 + $0x4] sm:$0xf]
      %v1176 = vld [vmem:[%s1173 + $0xc] sm:$0xf]
      %v1177 = vld [vmem:[%s1173 + $0x10] sm:$0xf]
      %v1178 = vld [vmem:[%s1173 + $0x18] sm:$0xf]
      %v1179 = vld [vmem:[%s1173 + $0x1c] sm:$0xf]
      %v1180 = vld [vmem:[%s1173 + $0x24] sm:$0xf]
      %v1181 = vld [vmem:[%s1173 + $0x28] sm:$0xf]
      %v1182 = vld [vmem:[%s1173 + $0x30] sm:$0xf]
      %v1183 = vld [vmem:[%s1173 + $0x34] sm:$0xf]
      %v1184 = vld [vmem:[%s1173 + $0x3c] sm:$0xf]
      %v1185 = vld [vmem:[%s1173 + $0x40] sm:$0xf]
      %v1186 = vld [vmem:[%s1173 + $0x48] sm:$0xf]
      %v1187 = vld [vmem:[%s1173 + $0x4c] sm:$0xf]
      %v1188 = vld [vmem:[%s1173 + $0x54] sm:$0xf]
      %v1189 = vld [vmem:[%s1173 + $0x58] sm:$0xf]
      %v1190 = vld [vmem:[%s1173 + $0x60] sm:$0xf]
      %v1191 = vld [vmem:[%s1173 + $0x64] sm:$0xf]
      %v1192 = vld [vmem:[%s1173 + $0x6c] sm:$0xf]
      %v1193 = vld [vmem:[%s1173 + $0x70] sm:$0xf]
      %v1194 = vld [vmem:[%s1173 + $0x78] sm:$0xf]
      %v1195 = vld [vmem:[%s1173 + $0x7c] sm:$0xf]
      %v1196 = vld [vmem:[%s1173 + $0x84] sm:$0xf]
      %v1197 = vld [vmem:[%s1173 + $0x88] sm:$0xf]
      %v1198 = vld [vmem:[%s1173 + $0x90] sm:$0xf]
      %v1199 = vld [vmem:[%s1173 + $0x94] sm:$0xf]
      %v1200 = vld [vmem:[%s1173 + $0x9c] sm:$0xf]
      %v1201 = vld [vmem:[%s1173 + $0xa0] sm:$0xf]
      %v1202 = vld [vmem:[%s1173 + $0xa8] sm:$0xf]
      %v1203 = vld [vmem:[%s1173 + $0xac] sm:$0xf]
      %v1204 = vld [vmem:[%s1173 + $0xb4] sm:$0xf]
      %v1205 = vld [vmem:[%s1173 + $0xb8] sm:$0xf]
      %1206 = vst [vmem:[#allocation3 + $0xc] sm:$0xf] %v1174
      %1207 = vst [vmem:[#allocation3 + $0x30] sm:$0xf] %v1175
      %1208 = vst [vmem:[#allocation3 + $0x54] sm:$0xf] %v1176
      %1209 = vst [vmem:[#allocation3 + $0x78] sm:$0xf] %v1177
      %1210 = vst [vmem:[#allocation3 + $0x9c] sm:$0xf] %v1178
      %1211 = vst [vmem:[#allocation3 + $0xc0] sm:$0xf] %v1179
      %1212 = vst [vmem:[#allocation3 + $0xe4] sm:$0xf] %v1180
      %1213 = vst [vmem:[#allocation3 + $0x108] sm:$0xf] %v1181
      %1214 = vst [vmem:[#allocation3 + $0x12c] sm:$0xf] %v1182
      %1215 = vst [vmem:[#allocation3 + $0x150] sm:$0xf] %v1183
      %1216 = vst [vmem:[#allocation3 + $0x174] sm:$0xf] %v1184
      %1217 = vst [vmem:[#allocation3 + $0x198] sm:$0xf] %v1185
      %1218 = vst [vmem:[#allocation3 + $0x1bc] sm:$0xf] %v1186
      %1219 = vst [vmem:[#allocation3 + $0x1e0] sm:$0xf] %v1187
      %1220 = vst [vmem:[#allocation3 + $0x204] sm:$0xf] %v1188
      %1221 = vst [vmem:[#allocation3 + $0x228] sm:$0xf] %v1189
      %1222 = vst [vmem:[#allocation3 + $0x24c] sm:$0xf] %v1190
      %1223 = vst [vmem:[#allocation3 + $0x270] sm:$0xf] %v1191
      %1224 = vst [vmem:[#allocation3 + $0x294] sm:$0xf] %v1192
      %1225 = vst [vmem:[#allocation3 + $0x2b8] sm:$0xf] %v1193
      %1226 = vst [vmem:[#allocation3 + $0x2dc] sm:$0xf] %v1194
      %1227 = vst [vmem:[#allocation3 + $0x300] sm:$0xf] %v1195
      %1228 = vst [vmem:[#allocation3 + $0x324] sm:$0xf] %v1196
      %1229 = vst [vmem:[#allocation3 + $0x348] sm:$0xf] %v1197
      %1230 = vst [vmem:[#allocation3 + $0x36c] sm:$0xf] %v1198
      %1231 = vst [vmem:[#allocation3 + $0x390] sm:$0xf] %v1199
      %1232 = vst [vmem:[#allocation3 + $0x3b4] sm:$0xf] %v1200
      %1233 = vst [vmem:[#allocation3 + $0x3d8] sm:$0xf] %v1201
      %1234 = vst [vmem:[#allocation3 + $0x3fc] sm:$0xf] %v1202
      %1235 = vst [vmem:[#allocation3 + $0x420] sm:$0xf] %v1203
      %1236 = vst [vmem:[#allocation3 + $0x444] sm:$0xf] %v1204
      %1237 = vst [vmem:[#allocation3 + $0x468] sm:$0xf] %v1205
      %v1238 = vld [vmem:[%s1173] sm:$0xf]
      %v1239 = vld [vmem:[%s1173 + $0x4] sm:$0xf]
      %v1240 = vld [vmem:[%s1173 + $0x8] sm:$0x1]
      %v1241 = vld [vmem:[%s1173 + $0xc] sm:$0xf]
      %v1242 = vld [vmem:[%s1173 + $0x10] sm:$0xf]
      %v1243 = vld [vmem:[%s1173 + $0x14] sm:$0x1]
      %v1244 = vld [vmem:[%s1173 + $0x18] sm:$0xf]
      %v1245 = vld [vmem:[%s1173 + $0x1c] sm:$0xf]
      %v1246 = vld [vmem:[%s1173 + $0x20] sm:$0x1]
      %v1247 = vld [vmem:[%s1173 + $0x24] sm:$0xf]
      %v1248 = vld [vmem:[%s1173 + $0x28] sm:$0xf]
      %v1249 = vld [vmem:[%s1173 + $0x2c] sm:$0x1]
      %v1250 = vld [vmem:[%s1173 + $0x30] sm:$0xf]
      %v1251 = vld [vmem:[%s1173 + $0x34] sm:$0xf]
      %v1252 = vld [vmem:[%s1173 + $0x38] sm:$0x1]
      %v1253 = vld [vmem:[%s1173 + $0x3c] sm:$0xf]
      %v1254 = vld [vmem:[%s1173 + $0x40] sm:$0xf]
      %v1255 = vld [vmem:[%s1173 + $0x44] sm:$0x1]
      %v1256 = vld [vmem:[%s1173 + $0x48] sm:$0xf]
      %v1257 = vld [vmem:[%s1173 + $0x4c] sm:$0xf]
      %v1258 = vld [vmem:[%s1173 + $0x50] sm:$0x1]
      %v1259 = vld [vmem:[%s1173 + $0x54] sm:$0xf]
      %v1260 = vld [vmem:[%s1173 + $0x58] sm:$0xf]
      %v1261 = vld [vmem:[%s1173 + $0x5c] sm:$0x1]
      %v1262 = vld [vmem:[%s1173 + $0x60] sm:$0xf]
      %v1263 = vld [vmem:[%s1173 + $0x64] sm:$0xf]
      %v1264 = vld [vmem:[%s1173 + $0x68] sm:$0x1]
      %v1265 = vld [vmem:[%s1173 + $0x6c] sm:$0xf]
      %v1266 = vld [vmem:[%s1173 + $0x70] sm:$0xf]
      %v1267 = vld [vmem:[%s1173 + $0x74] sm:$0x1]
      %v1268 = vld [vmem:[%s1173 + $0x78] sm:$0xf]
      %v1269 = vld [vmem:[%s1173 + $0x7c] sm:$0xf]
      %v1270 = vld [vmem:[%s1173 + $0x80] sm:$0x1]
      %v1271 = vld [vmem:[%s1173 + $0x84] sm:$0xf]
      %v1272 = vld [vmem:[%s1173 + $0x88] sm:$0xf]
      %v1273 = vld [vmem:[%s1173 + $0x8c] sm:$0x1]
      %v1274 = vld [vmem:[%s1173 + $0x90] sm:$0xf]
      %v1275 = vld [vmem:[%s1173 + $0x94] sm:$0xf]
      %v1276 = vld [vmem:[%s1173 + $0x98] sm:$0x1]
      %v1277 = vld [vmem:[%s1173 + $0x9c] sm:$0xf]
      %v1278 = vld [vmem:[%s1173 + $0xa0] sm:$0xf]
      %v1279 = vld [vmem:[%s1173 + $0xa4] sm:$0x1]
      %v1280 = vld [vmem:[%s1173 + $0xa8] sm:$0xf]
      %v1281 = vld [vmem:[%s1173 + $0xac] sm:$0xf]
      %v1282 = vld [vmem:[%s1173 + $0xb0] sm:$0x1]
      %v1283 = vld [vmem:[%s1173 + $0xb4] sm:$0xf]
      %v1284 = vld [vmem:[%s1173 + $0xb8] sm:$0xf]
      %v1285 = vld [vmem:[%s1173 + $0xbc] sm:$0x1]
      %v1287 = vshrl.u32 %v1238, 16
      %v1289 = vrot.slane %v1287, 4
      %v1290 = vshll.u32 %v1238, 16
      %v1292 = vrot.slane %v1290, 5
      %v1293 = vor.u32 %v1289, %v1292
      %v1294 = vrot.slane %v1293, 4
      %v1296 = vshll.u32 %v1239, 16
      %v1298 = vrot.slane %v1296, 5
      %v1299 = vsel %vm449, %v1294, %v1298
      %v1300 = vshrl.u32 %v1239, 16
      %v1302 = vrot.slane %v1300, 4
      %v1303 = vor.u32 %v1302, %v1298
      %v1304 = vrot.slane %v1303, 4
      %v1306 = vshll.u32 %v1240, 16
      %v1308 = vrot.slane %v1306, 5
      %v1309 = vsel %vm449, %v1304, %v1308
      %v1311 = vshrl.u32 %v1241, 16
      %v1313 = vrot.slane %v1311, 4
      %v1314 = vshll.u32 %v1241, 16
      %v1316 = vrot.slane %v1314, 5
      %v1317 = vor.u32 %v1313, %v1316
      %v1318 = vrot.slane %v1317, 4
      %v1320 = vshll.u32 %v1242, 16
      %v1322 = vrot.slane %v1320, 5
      %v1323 = vsel %vm449, %v1318, %v1322
      %v1324 = vshrl.u32 %v1242, 16
      %v1326 = vrot.slane %v1324, 4
      %v1327 = vor.u32 %v1326, %v1322
      %v1328 = vrot.slane %v1327, 4
      %v1330 = vshll.u32 %v1243, 16
      %v1332 = vrot.slane %v1330, 5
      %v1333 = vsel %vm449, %v1328, %v1332
      %v1335 = vshrl.u32 %v1244, 16
      %v1337 = vrot.slane %v1335, 4
      %v1338 = vshll.u32 %v1244, 16
      %v1340 = vrot.slane %v1338, 5
      %v1341 = vor.u32 %v1337, %v1340
      %v1342 = vrot.slane %v1341, 4
      %v1344 = vshll.u32 %v1245, 16
      %v1346 = vrot.slane %v1344, 5
      %v1347 = vsel %vm449, %v1342, %v1346
      %v1348 = vshrl.u32 %v1245, 16
      %v1350 = vrot.slane %v1348, 4
      %v1351 = vor.u32 %v1350, %v1346
      %v1352 = vrot.slane %v1351, 4
      %v1354 = vshll.u32 %v1246, 16
      %v1356 = vrot.slane %v1354, 5
      %v1357 = vsel %vm449, %v1352, %v1356
      %v1359 = vshrl.u32 %v1247, 16
      %v1361 = vrot.slane %v1359, 4
      %v1362 = vshll.u32 %v1247, 16
      %v1364 = vrot.slane %v1362, 5
      %v1365 = vor.u32 %v1361, %v1364
      %v1366 = vrot.slane %v1365, 4
      %v1368 = vshll.u32 %v1248, 16
      %v1370 = vrot.slane %v1368, 5
      %v1371 = vsel %vm449, %v1366, %v1370
      %v1372 = vshrl.u32 %v1248, 16
      %v1374 = vrot.slane %v1372, 4
      %v1375 = vor.u32 %v1374, %v1370
      %v1376 = vrot.slane %v1375, 4
      %v1378 = vshll.u32 %v1249, 16
      %v1380 = vrot.slane %v1378, 5
      %v1381 = vsel %vm449, %v1376, %v1380
      %v1383 = vshrl.u32 %v1250, 16
      %v1385 = vrot.slane %v1383, 4
      %v1386 = vshll.u32 %v1250, 16
      %v1388 = vrot.slane %v1386, 5
      %v1389 = vor.u32 %v1385, %v1388
      %v1390 = vrot.slane %v1389, 4
      %v1392 = vshll.u32 %v1251, 16
      %v1394 = vrot.slane %v1392, 5
      %v1395 = vsel %vm449, %v1390, %v1394
      %v1396 = vshrl.u32 %v1251, 16
      %v1398 = vrot.slane %v1396, 4
      %v1399 = vor.u32 %v1398, %v1394
      %v1400 = vrot.slane %v1399, 4
      %v1402 = vshll.u32 %v1252, 16
      %v1404 = vrot.slane %v1402, 5
      %v1405 = vsel %vm449, %v1400, %v1404
      %v1407 = vshrl.u32 %v1253, 16
      %v1409 = vrot.slane %v1407, 4
      %v1410 = vshll.u32 %v1253, 16
      %v1412 = vrot.slane %v1410, 5
      %v1413 = vor.u32 %v1409, %v1412
      %v1414 = vrot.slane %v1413, 4
      %v1416 = vshll.u32 %v1254, 16
      %v1418 = vrot.slane %v1416, 5
      %v1419 = vsel %vm449, %v1414, %v1418
      %v1420 = vshrl.u32 %v1254, 16
      %v1422 = vrot.slane %v1420, 4
      %v1423 = vor.u32 %v1422, %v1418
      %v1424 = vrot.slane %v1423, 4
      %v1426 = vshll.u32 %v1255, 16
      %v1428 = vrot.slane %v1426, 5
      %v1429 = vsel %vm449, %v1424, %v1428
      %v1431 = vshrl.u32 %v1256, 16
      %v1433 = vrot.slane %v1431, 4
      %v1434 = vshll.u32 %v1256, 16
      %v1436 = vrot.slane %v1434, 5
      %v1437 = vor.u32 %v1433, %v1436
      %v1438 = vrot.slane %v1437, 4
      %v1440 = vshll.u32 %v1257, 16
      %v1442 = vrot.slane %v1440, 5
      %v1443 = vsel %vm449, %v1438, %v1442
      %v1444 = vshrl.u32 %v1257, 16
      %v1446 = vrot.slane %v1444, 4
      %v1447 = vor.u32 %v1446, %v1442
      %v1448 = vrot.slane %v1447, 4
      %v1450 = vshll.u32 %v1258, 16
      %v1452 = vrot.slane %v1450, 5
      %v1453 = vsel %vm449, %v1448, %v1452
      %v1455 = vshrl.u32 %v1259, 16
      %v1457 = vrot.slane %v1455, 4
      %v1458 = vshll.u32 %v1259, 16
      %v1460 = vrot.slane %v1458, 5
      %v1461 = vor.u32 %v1457, %v1460
      %v1462 = vrot.slane %v1461, 4
      %v1464 = vshll.u32 %v1260, 16
      %v1466 = vrot.slane %v1464, 5
      %v1467 = vsel %vm449, %v1462, %v1466
      %v1468 = vshrl.u32 %v1260, 16
      %v1470 = vrot.slane %v1468, 4
      %v1471 = vor.u32 %v1470, %v1466
      %v1472 = vrot.slane %v1471, 4
      %v1474 = vshll.u32 %v1261, 16
      %v1476 = vrot.slane %v1474, 5
      %v1477 = vsel %vm449, %v1472, %v1476
      %v1479 = vshrl.u32 %v1262, 16
      %v1481 = vrot.slane %v1479, 4
      %v1482 = vshll.u32 %v1262, 16
      %v1484 = vrot.slane %v1482, 5
      %v1485 = vor.u32 %v1481, %v1484
      %v1486 = vrot.slane %v1485, 4
      %v1488 = vshll.u32 %v1263, 16
      %v1490 = vrot.slane %v1488, 5
      %v1491 = vsel %vm449, %v1486, %v1490
      %v1492 = vshrl.u32 %v1263, 16
      %v1494 = vrot.slane %v1492, 4
      %v1495 = vor.u32 %v1494, %v1490
      %v1496 = vrot.slane %v1495, 4
      %v1498 = vshll.u32 %v1264, 16
      %v1500 = vrot.slane %v1498, 5
      %v1501 = vsel %vm449, %v1496, %v1500
      %v1503 = vshrl.u32 %v1265, 16
      %v1505 = vrot.slane %v1503, 4
      %v1506 = vshll.u32 %v1265, 16
      %v1508 = vrot.slane %v1506, 5
      %v1509 = vor.u32 %v1505, %v1508
      %v1510 = vrot.slane %v1509, 4
      %v1512 = vshll.u32 %v1266, 16
      %v1514 = vrot.slane %v1512, 5
      %v1515 = vsel %vm449, %v1510, %v1514
      %v1516 = vshrl.u32 %v1266, 16
      %v1518 = vrot.slane %v1516, 4
      %v1519 = vor.u32 %v1518, %v1514
      %v1520 = vrot.slane %v1519, 4
      %v1522 = vshll.u32 %v1267, 16
      %v1524 = vrot.slane %v1522, 5
      %v1525 = vsel %vm449, %v1520, %v1524
      %v1527 = vshrl.u32 %v1268, 16
      %v1529 = vrot.slane %v1527, 4
      %v1530 = vshll.u32 %v1268, 16
      %v1532 = vrot.slane %v1530, 5
      %v1533 = vor.u32 %v1529, %v1532
      %v1534 = vrot.slane %v1533, 4
      %v1536 = vshll.u32 %v1269, 16
      %v1538 = vrot.slane %v1536, 5
      %v1539 = vsel %vm449, %v1534, %v1538
      %v1540 = vshrl.u32 %v1269, 16
      %v1542 = vrot.slane %v1540, 4
      %v1543 = vor.u32 %v1542, %v1538
      %v1544 = vrot.slane %v1543, 4
      %v1546 = vshll.u32 %v1270, 16
      %v1548 = vrot.slane %v1546, 5
      %v1549 = vsel %vm449, %v1544, %v1548
      %v1551 = vshrl.u32 %v1271, 16
      %v1553 = vrot.slane %v1551, 4
      %v1554 = vshll.u32 %v1271, 16
      %v1556 = vrot.slane %v1554, 5
      %v1557 = vor.u32 %v1553, %v1556
      %v1558 = vrot.slane %v1557, 4
      %v1560 = vshll.u32 %v1272, 16
      %v1562 = vrot.slane %v1560, 5
      %v1563 = vsel %vm449, %v1558, %v1562
      %v1564 = vshrl.u32 %v1272, 16
      %v1566 = vrot.slane %v1564, 4
      %v1567 = vor.u32 %v1566, %v1562
      %v1568 = vrot.slane %v1567, 4
      %v1570 = vshll.u32 %v1273, 16
      %v1572 = vrot.slane %v1570, 5
      %v1573 = vsel %vm449, %v1568, %v1572
      %v1575 = vshrl.u32 %v1274, 16
      %v1577 = vrot.slane %v1575, 4
      %v1578 = vshll.u32 %v1274, 16
      %v1580 = vrot.slane %v1578, 5
      %v1581 = vor.u32 %v1577, %v1580
      %v1582 = vrot.slane %v1581, 4
      %v1584 = vshll.u32 %v1275, 16
      %v1586 = vrot.slane %v1584, 5
      %v1587 = vsel %vm449, %v1582, %v1586
      %v1588 = vshrl.u32 %v1275, 16
      %v1590 = vrot.slane %v1588, 4
      %v1591 = vor.u32 %v1590, %v1586
      %v1592 = vrot.slane %v1591, 4
      %v1594 = vshll.u32 %v1276, 16
      %v1596 = vrot.slane %v1594, 5
      %v1597 = vsel %vm449, %v1592, %v1596
      %v1599 = vshrl.u32 %v1277, 16
      %v1601 = vrot.slane %v1599, 4
      %v1602 = vshll.u32 %v1277, 16
      %v1604 = vrot.slane %v1602, 5
      %v1605 = vor.u32 %v1601, %v1604
      %v1606 = vrot.slane %v1605, 4
      %v1608 = vshll.u32 %v1278, 16
      %v1610 = vrot.slane %v1608, 5
      %v1611 = vsel %vm449, %v1606, %v1610
      %v1612 = vshrl.u32 %v1278, 16
      %v1614 = vrot.slane %v1612, 4
      %v1615 = vor.u32 %v1614, %v1610
      %v1616 = vrot.slane %v1615, 4
      %v1618 = vshll.u32 %v1279, 16
      %v1620 = vrot.slane %v1618, 5
      %v1621 = vsel %vm449, %v1616, %v1620
      %v1623 = vshrl.u32 %v1280, 16
      %v1625 = vrot.slane %v1623, 4
      %v1626 = vshll.u32 %v1280, 16
      %v1628 = vrot.slane %v1626, 5
      %v1629 = vor.u32 %v1625, %v1628
      %v1630 = vrot.slane %v1629, 4
      %v1632 = vshll.u32 %v1281, 16
      %v1634 = vrot.slane %v1632, 5
      %v1635 = vsel %vm449, %v1630, %v1634
      %v1636 = vshrl.u32 %v1281, 16
      %v1638 = vrot.slane %v1636, 4
      %v1639 = vor.u32 %v1638, %v1634
      %v1640 = vrot.slane %v1639, 4
      %v1642 = vshll.u32 %v1282, 16
      %v1644 = vrot.slane %v1642, 5
      %v1645 = vsel %vm449, %v1640, %v1644
      %v1647 = vshrl.u32 %v1283, 16
      %v1649 = vrot.slane %v1647, 4
      %v1650 = vshll.u32 %v1283, 16
      %v1652 = vrot.slane %v1650, 5
      %v1653 = vor.u32 %v1649, %v1652
      %v1654 = vrot.slane %v1653, 4
      %v1656 = vshll.u32 %v1284, 16
      %v1658 = vrot.slane %v1656, 5
      %v1659 = vsel %vm449, %v1654, %v1658
      %v1660 = vshrl.u32 %v1284, 16
      %v1662 = vrot.slane %v1660, 4
      %v1663 = vor.u32 %v1662, %v1658
      %v1664 = vrot.slane %v1663, 4
      %v1666 = vshll.u32 %v1285, 16
      %v1668 = vrot.slane %v1666, 5
      %v1669 = vsel %vm449, %v1664, %v1668
      %1702 = vst [vmem:[#allocation3 + $0x10] sm:$0xf] %v1299
      %1703 = vst [vmem:[#allocation3 + $0x34] sm:$0xf] %v1309
      %1704 = vst [vmem:[#allocation3 + $0x58] sm:$0xf] %v1323
      %1705 = vst [vmem:[#allocation3 + $0x7c] sm:$0xf] %v1333
      %1706 = vst [vmem:[#allocation3 + $0xa0] sm:$0xf] %v1347
      %1707 = vst [vmem:[#allocation3 + $0xc4] sm:$0xf] %v1357
      %1708 = vst [vmem:[#allocation3 + $0xe8] sm:$0xf] %v1371
      %1709 = vst [vmem:[#allocation3 + $0x10c] sm:$0xf] %v1381
      %1710 = vst [vmem:[#allocation3 + $0x130] sm:$0xf] %v1395
      %1711 = vst [vmem:[#allocation3 + $0x154] sm:$0xf] %v1405
      %1712 = vst [vmem:[#allocation3 + $0x178] sm:$0xf] %v1419
      %1713 = vst [vmem:[#allocation3 + $0x19c] sm:$0xf] %v1429
      %1714 = vst [vmem:[#allocation3 + $0x1c0] sm:$0xf] %v1443
      %1715 = vst [vmem:[#allocation3 + $0x1e4] sm:$0xf] %v1453
      %1716 = vst [vmem:[#allocation3 + $0x208] sm:$0xf] %v1467
      %1717 = vst [vmem:[#allocation3 + $0x22c] sm:$0xf] %v1477
      %1718 = vst [vmem:[#allocation3 + $0x250] sm:$0xf] %v1491
      %1719 = vst [vmem:[#allocation3 + $0x274] sm:$0xf] %v1501
      %1720 = vst [vmem:[#allocation3 + $0x298] sm:$0xf] %v1515
      %1721 = vst [vmem:[#allocation3 + $0x2bc] sm:$0xf] %v1525
      %1722 = vst [vmem:[#allocation3 + $0x2e0] sm:$0xf] %v1539
      %1723 = vst [vmem:[#allocation3 + $0x304] sm:$0xf] %v1549
      %1724 = vst [vmem:[#allocation3 + $0x328] sm:$0xf] %v1563
      %1725 = vst [vmem:[#allocation3 + $0x34c] sm:$0xf] %v1573
      %1726 = vst [vmem:[#allocation3 + $0x370] sm:$0xf] %v1587
      %1727 = vst [vmem:[#allocation3 + $0x394] sm:$0xf] %v1597
      %1728 = vst [vmem:[#allocation3 + $0x3b8] sm:$0xf] %v1611
      %1729 = vst [vmem:[#allocation3 + $0x3dc] sm:$0xf] %v1621
      %1730 = vst [vmem:[#allocation3 + $0x400] sm:$0xf] %v1635
      %1731 = vst [vmem:[#allocation3 + $0x424] sm:$0xf] %v1645
      %1732 = vst [vmem:[#allocation3 + $0x448] sm:$0xf] %v1659
      %1733 = vst [vmem:[#allocation3 + $0x46c] sm:$0xf] %v1669
      %v1734 = vld [vmem:[%s1173] sm:$0xe]
      %v1735 = vld [vmem:[%s1173 + $0x4] sm:$0xf]
      %v1736 = vld [vmem:[%s1173 + $0x8] sm:$0x1]
      %v1737 = vld [vmem:[%s1173 + $0xc] sm:$0xe]
      %v1738 = vld [vmem:[%s1173 + $0x10] sm:$0xf]
      %v1739 = vld [vmem:[%s1173 + $0x14] sm:$0x1]
      %v1740 = vld [vmem:[%s1173 + $0x18] sm:$0xe]
      %v1741 = vld [vmem:[%s1173 + $0x1c] sm:$0xf]
      %v1742 = vld [vmem:[%s1173 + $0x20] sm:$0x1]
      %v1743 = vld [vmem:[%s1173 + $0x24] sm:$0xe]
      %v1744 = vld [vmem:[%s1173 + $0x28] sm:$0xf]
      %v1745 = vld [vmem:[%s1173 + $0x2c] sm:$0x1]
      %v1746 = vld [vmem:[%s1173 + $0x30] sm:$0xe]
      %v1747 = vld [vmem:[%s1173 + $0x34] sm:$0xf]
      %v1748 = vld [vmem:[%s1173 + $0x38] sm:$0x1]
      %v1749 = vld [vmem:[%s1173 + $0x3c] sm:$0xe]
      %v1750 = vld [vmem:[%s1173 + $0x40] sm:$0xf]
      %v1751 = vld [vmem:[%s1173 + $0x44] sm:$0x1]
      %v1752 = vld [vmem:[%s1173 + $0x48] sm:$0xe]
      %v1753 = vld [vmem:[%s1173 + $0x4c] sm:$0xf]
      %v1754 = vld [vmem:[%s1173 + $0x50] sm:$0x1]
      %v1755 = vld [vmem:[%s1173 + $0x54] sm:$0xe]
      %v1756 = vld [vmem:[%s1173 + $0x58] sm:$0xf]
      %v1757 = vld [vmem:[%s1173 + $0x5c] sm:$0x1]
      %v1758 = vld [vmem:[%s1173 + $0x60] sm:$0xe]
      %v1759 = vld [vmem:[%s1173 + $0x64] sm:$0xf]
      %v1760 = vld [vmem:[%s1173 + $0x68] sm:$0x1]
      %v1761 = vld [vmem:[%s1173 + $0x6c] sm:$0xe]
      %v1762 = vld [vmem:[%s1173 + $0x70] sm:$0xf]
      %v1763 = vld [vmem:[%s1173 + $0x74] sm:$0x1]
      %v1764 = vld [vmem:[%s1173 + $0x78] sm:$0xe]
      %v1765 = vld [vmem:[%s1173 + $0x7c] sm:$0xf]
      %v1766 = vld [vmem:[%s1173 + $0x80] sm:$0x1]
      %v1767 = vld [vmem:[%s1173 + $0x84] sm:$0xe]
      %v1768 = vld [vmem:[%s1173 + $0x88] sm:$0xf]
      %v1769 = vld [vmem:[%s1173 + $0x8c] sm:$0x1]
      %v1770 = vld [vmem:[%s1173 + $0x90] sm:$0xe]
      %v1771 = vld [vmem:[%s1173 + $0x94] sm:$0xf]
      %v1772 = vld [vmem:[%s1173 + $0x98] sm:$0x1]
      %v1773 = vld [vmem:[%s1173 + $0x9c] sm:$0xe]
      %v1774 = vld [vmem:[%s1173 + $0xa0] sm:$0xf]
      %v1775 = vld [vmem:[%s1173 + $0xa4] sm:$0x1]
      %v1776 = vld [vmem:[%s1173 + $0xa8] sm:$0xe]
      %v1777 = vld [vmem:[%s1173 + $0xac] sm:$0xf]
      %v1778 = vld [vmem:[%s1173 + $0xb0] sm:$0x1]
      %v1779 = vld [vmem:[%s1173 + $0xb4] sm:$0xe]
      %v1780 = vld [vmem:[%s1173 + $0xb8] sm:$0xf]
      %v1781 = vld [vmem:[%s1173 + $0xbc] sm:$0x1]
      %v1830 = vrot.slane %v1734, 5
      %v1831 = vrot.slane %v1830, 4
      %v1832 = vrot.slane %v1735, 5
      %v1833 = vsel %vm996, %v1831, %v1832
      %v1834 = vrot.slane %v1832, 4
      %v1835 = vrot.slane %v1736, 5
      %v1836 = vsel %vm996, %v1834, %v1835
      %v1837 = vrot.slane %v1737, 5
      %v1838 = vrot.slane %v1837, 4
      %v1839 = vrot.slane %v1738, 5
      %v1840 = vsel %vm996, %v1838, %v1839
      %v1841 = vrot.slane %v1839, 4
      %v1842 = vrot.slane %v1739, 5
      %v1843 = vsel %vm996, %v1841, %v1842
      %v1844 = vrot.slane %v1740, 5
      %v1845 = vrot.slane %v1844, 4
      %v1846 = vrot.slane %v1741, 5
      %v1847 = vsel %vm996, %v1845, %v1846
      %v1848 = vrot.slane %v1846, 4
      %v1849 = vrot.slane %v1742, 5
      %v1850 = vsel %vm996, %v1848, %v1849
      %v1851 = vrot.slane %v1743, 5
      %v1852 = vrot.slane %v1851, 4
      %v1853 = vrot.slane %v1744, 5
      %v1854 = vsel %vm996, %v1852, %v1853
      %v1855 = vrot.slane %v1853, 4
      %v1856 = vrot.slane %v1745, 5
      %v1857 = vsel %vm996, %v1855, %v1856
      %v1858 = vrot.slane %v1746, 5
      %v1859 = vrot.slane %v1858, 4
      %v1860 = vrot.slane %v1747, 5
      %v1861 = vsel %vm996, %v1859, %v1860
      %v1862 = vrot.slane %v1860, 4
      %v1863 = vrot.slane %v1748, 5
      %v1864 = vsel %vm996, %v1862, %v1863
      %v1865 = vrot.slane %v1749, 5
      %v1866 = vrot.slane %v1865, 4
      %v1867 = vrot.slane %v1750, 5
      %v1868 = vsel %vm996, %v1866, %v1867
      %v1869 = vrot.slane %v1867, 4
      %v1870 = vrot.slane %v1751, 5
      %v1871 = vsel %vm996, %v1869, %v1870
      %v1872 = vrot.slane %v1752, 5
      %v1873 = vrot.slane %v1872, 4
      %v1874 = vrot.slane %v1753, 5
      %v1875 = vsel %vm996, %v1873, %v1874
      %v1876 = vrot.slane %v1874, 4
      %v1877 = vrot.slane %v1754, 5
      %v1878 = vsel %vm996, %v1876, %v1877
      %v1879 = vrot.slane %v1755, 5
      %v1880 = vrot.slane %v1879, 4
      %v1881 = vrot.slane %v1756, 5
      %v1882 = vsel %vm996, %v1880, %v1881
      %v1883 = vrot.slane %v1881, 4
      %v1884 = vrot.slane %v1757, 5
      %v1885 = vsel %vm996, %v1883, %v1884
      %v1886 = vrot.slane %v1758, 5
      %v1887 = vrot.slane %v1886, 4
      %v1888 = vrot.slane %v1759, 5
      %v1889 = vsel %vm996, %v1887, %v1888
      %v1890 = vrot.slane %v1888, 4
      %v1891 = vrot.slane %v1760, 5
      %v1892 = vsel %vm996, %v1890, %v1891
      %v1893 = vrot.slane %v1761, 5
      %v1894 = vrot.slane %v1893, 4
      %v1895 = vrot.slane %v1762, 5
      %v1896 = vsel %vm996, %v1894, %v1895
      %v1897 = vrot.slane %v1895, 4
      %v1898 = vrot.slane %v1763, 5
      %v1899 = vsel %vm996, %v1897, %v1898
      %v1900 = vrot.slane %v1764, 5
      %v1901 = vrot.slane %v1900, 4
      %v1902 = vrot.slane %v1765, 5
      %v1903 = vsel %vm996, %v1901, %v1902
      %v1904 = vrot.slane %v1902, 4
      %v1905 = vrot.slane %v1766, 5
      %v1906 = vsel %vm996, %v1904, %v1905
      %v1907 = vrot.slane %v1767, 5
      %v1908 = vrot.slane %v1907, 4
      %v1909 = vrot.slane %v1768, 5
      %v1910 = vsel %vm996, %v1908, %v1909
      %v1911 = vrot.slane %v1909, 4
      %v1912 = vrot.slane %v1769, 5
      %v1913 = vsel %vm996, %v1911, %v1912
      %v1914 = vrot.slane %v1770, 5
      %v1915 = vrot.slane %v1914, 4
      %v1916 = vrot.slane %v1771, 5
      %v1917 = vsel %vm996, %v1915, %v1916
      %v1918 = vrot.slane %v1916, 4
      %v1919 = vrot.slane %v1772, 5
      %v1920 = vsel %vm996, %v1918, %v1919
      %v1921 = vrot.slane %v1773, 5
      %v1922 = vrot.slane %v1921, 4
      %v1923 = vrot.slane %v1774, 5
      %v1924 = vsel %vm996, %v1922, %v1923
      %v1925 = vrot.slane %v1923, 4
      %v1926 = vrot.slane %v1775, 5
      %v1927 = vsel %vm996, %v1925, %v1926
      %v1928 = vrot.slane %v1776, 5
      %v1929 = vrot.slane %v1928, 4
      %v1930 = vrot.slane %v1777, 5
      %v1931 = vsel %vm996, %v1929, %v1930
      %v1932 = vrot.slane %v1930, 4
      %v1933 = vrot.slane %v1778, 5
      %v1934 = vsel %vm996, %v1932, %v1933
      %v1935 = vrot.slane %v1779, 5
      %v1936 = vrot.slane %v1935, 4
      %v1937 = vrot.slane %v1780, 5
      %v1938 = vsel %vm996, %v1936, %v1937
      %v1939 = vrot.slane %v1937, 4
      %v1940 = vrot.slane %v1781, 5
      %v1941 = vsel %vm996, %v1939, %v1940
      %1974 = vst [vmem:[#allocation3 + $0x14] sm:$0xf] %v1833
      %1975 = vst [vmem:[#allocation3 + $0x38] sm:$0xf] %v1836
      %1976 = vst [vmem:[#allocation3 + $0x5c] sm:$0xf] %v1840
      %1977 = vst [vmem:[#allocation3 + $0x80] sm:$0xf] %v1843
      %1978 = vst [vmem:[#allocation3 + $0xa4] sm:$0xf] %v1847
      %1979 = vst [vmem:[#allocation3 + $0xc8] sm:$0xf] %v1850
      %1980 = vst [vmem:[#allocation3 + $0xec] sm:$0xf] %v1854
      %1981 = vst [vmem:[#allocation3 + $0x110] sm:$0xf] %v1857
      %1982 = vst [vmem:[#allocation3 + $0x134] sm:$0xf] %v1861
      %1983 = vst [vmem:[#allocation3 + $0x158] sm:$0xf] %v1864
      %1984 = vst [vmem:[#allocation3 + $0x17c] sm:$0xf] %v1868
      %1985 = vst [vmem:[#allocation3 + $0x1a0] sm:$0xf] %v1871
      %1986 = vst [vmem:[#allocation3 + $0x1c4] sm:$0xf] %v1875
      %1987 = vst [vmem:[#allocation3 + $0x1e8] sm:$0xf] %v1878
      %1988 = vst [vmem:[#allocation3 + $0x20c] sm:$0xf] %v1882
      %1989 = vst [vmem:[#allocation3 + $0x230] sm:$0xf] %v1885
      %1990 = vst [vmem:[#allocation3 + $0x254] sm:$0xf] %v1889
      %1991 = vst [vmem:[#allocation3 + $0x278] sm:$0xf] %v1892
      %1992 = vst [vmem:[#allocation3 + $0x29c] sm:$0xf] %v1896
      %1993 = vst [vmem:[#allocation3 + $0x2c0] sm:$0xf] %v1899
      %1994 = vst [vmem:[#allocation3 + $0x2e4] sm:$0xf] %v1903
      %1995 = vst [vmem:[#allocation3 + $0x308] sm:$0xf] %v1906
      %1996 = vst [vmem:[#allocation3 + $0x32c] sm:$0xf] %v1910
      %1997 = vst [vmem:[#allocation3 + $0x350] sm:$0xf] %v1913
      %1998 = vst [vmem:[#allocation3 + $0x374] sm:$0xf] %v1917
      %1999 = vst [vmem:[#allocation3 + $0x398] sm:$0xf] %v1920
      %2000 = vst [vmem:[#allocation3 + $0x3bc] sm:$0xf] %v1924
      %2001 = vst [vmem:[#allocation3 + $0x3e0] sm:$0xf] %v1927
      %2002 = vst [vmem:[#allocation3 + $0x404] sm:$0xf] %v1931
      %2003 = vst [vmem:[#allocation3 + $0x428] sm:$0xf] %v1934
      %2004 = vst [vmem:[#allocation3 + $0x44c] sm:$0xf] %v1938
      %2005 = vst [vmem:[#allocation3 + $0x470] sm:$0xf] %v1941
      %s2006 = scalar_lea.vmem %s219, 24
      %v2007 = vld [vmem:[%s2006] sm:$0xf]
      %v2008 = vld [vmem:[%s2006 + $0x4] sm:$0xf]
      %v2009 = vld [vmem:[%s2006 + $0xc] sm:$0xf]
      %v2010 = vld [vmem:[%s2006 + $0x10] sm:$0xf]
      %v2011 = vld [vmem:[%s2006 + $0x18] sm:$0xf]
      %v2012 = vld [vmem:[%s2006 + $0x1c] sm:$0xf]
      %v2013 = vld [vmem:[%s2006 + $0x24] sm:$0xf]
      %v2014 = vld [vmem:[%s2006 + $0x28] sm:$0xf]
      %v2015 = vld [vmem:[%s2006 + $0x30] sm:$0xf]
      %v2016 = vld [vmem:[%s2006 + $0x34] sm:$0xf]
      %v2017 = vld [vmem:[%s2006 + $0x3c] sm:$0xf]
      %v2018 = vld [vmem:[%s2006 + $0x40] sm:$0xf]
      %v2019 = vld [vmem:[%s2006 + $0x48] sm:$0xf]
      %v2020 = vld [vmem:[%s2006 + $0x4c] sm:$0xf]
      %v2021 = vld [vmem:[%s2006 + $0x54] sm:$0xf]
      %v2022 = vld [vmem:[%s2006 + $0x58] sm:$0xf]
      %v2023 = vld [vmem:[%s2006 + $0x60] sm:$0xf]
      %v2024 = vld [vmem:[%s2006 + $0x64] sm:$0xf]
      %v2025 = vld [vmem:[%s2006 + $0x6c] sm:$0xf]
      %v2026 = vld [vmem:[%s2006 + $0x70] sm:$0xf]
      %v2027 = vld [vmem:[%s2006 + $0x78] sm:$0xf]
      %v2028 = vld [vmem:[%s2006 + $0x7c] sm:$0xf]
      %v2029 = vld [vmem:[%s2006 + $0x84] sm:$0xf]
      %v2030 = vld [vmem:[%s2006 + $0x88] sm:$0xf]
      %v2031 = vld [vmem:[%s2006 + $0x90] sm:$0xf]
      %v2032 = vld [vmem:[%s2006 + $0x94] sm:$0xf]
      %v2033 = vld [vmem:[%s2006 + $0x9c] sm:$0xf]
      %v2034 = vld [vmem:[%s2006 + $0xa0] sm:$0xf]
      %v2035 = vld [vmem:[%s2006 + $0xa8] sm:$0xf]
      %v2036 = vld [vmem:[%s2006 + $0xac] sm:$0xf]
      %v2037 = vld [vmem:[%s2006 + $0xb4] sm:$0xf]
      %v2038 = vld [vmem:[%s2006 + $0xb8] sm:$0xf]
      %2039 = vst [vmem:[#allocation3 + $0x18] sm:$0xf] %v2007
      %2040 = vst [vmem:[#allocation3 + $0x3c] sm:$0xf] %v2008
      %2041 = vst [vmem:[#allocation3 + $0x60] sm:$0xf] %v2009
      %2042 = vst [vmem:[#allocation3 + $0x84] sm:$0xf] %v2010
      %2043 = vst [vmem:[#allocation3 + $0xa8] sm:$0xf] %v2011
      %2044 = vst [vmem:[#allocation3 + $0xcc] sm:$0xf] %v2012
      %2045 = vst [vmem:[#allocation3 + $0xf0] sm:$0xf] %v2013
      %2046 = vst [vmem:[#allocation3 + $0x114] sm:$0xf] %v2014
      %2047 = vst [vmem:[#allocation3 + $0x138] sm:$0xf] %v2015
      %2048 = vst [vmem:[#allocation3 + $0x15c] sm:$0xf] %v2016
      %2049 = vst [vmem:[#allocation3 + $0x180] sm:$0xf] %v2017
      %2050 = vst [vmem:[#allocation3 + $0x1a4] sm:$0xf] %v2018
      %2051 = vst [vmem:[#allocation3 + $0x1c8] sm:$0xf] %v2019
      %2052 = vst [vmem:[#allocation3 + $0x1ec] sm:$0xf] %v2020
      %2053 = vst [vmem:[#allocation3 + $0x210] sm:$0xf] %v2021
      %2054 = vst [vmem:[#allocation3 + $0x234] sm:$0xf] %v2022
      %2055 = vst [vmem:[#allocation3 + $0x258] sm:$0xf] %v2023
      %2056 = vst [vmem:[#allocation3 + $0x27c] sm:$0xf] %v2024
      %2057 = vst [vmem:[#allocation3 + $0x2a0] sm:$0xf] %v2025
      %2058 = vst [vmem:[#allocation3 + $0x2c4] sm:$0xf] %v2026
      %2059 = vst [vmem:[#allocation3 + $0x2e8] sm:$0xf] %v2027
      %2060 = vst [vmem:[#allocation3 + $0x30c] sm:$0xf] %v2028
      %2061 = vst [vmem:[#allocation3 + $0x330] sm:$0xf] %v2029
      %2062 = vst [vmem:[#allocation3 + $0x354] sm:$0xf] %v2030
      %2063 = vst [vmem:[#allocation3 + $0x378] sm:$0xf] %v2031
      %2064 = vst [vmem:[#allocation3 + $0x39c] sm:$0xf] %v2032
      %2065 = vst [vmem:[#allocation3 + $0x3c0] sm:$0xf] %v2033
      %2066 = vst [vmem:[#allocation3 + $0x3e4] sm:$0xf] %v2034
      %2067 = vst [vmem:[#allocation3 + $0x408] sm:$0xf] %v2035
      %2068 = vst [vmem:[#allocation3 + $0x42c] sm:$0xf] %v2036
      %2069 = vst [vmem:[#allocation3 + $0x450] sm:$0xf] %v2037
      %2070 = vst [vmem:[#allocation3 + $0x474] sm:$0xf] %v2038
      %v2071 = vld [vmem:[%s2006] sm:$0xf]
      %v2072 = vld [vmem:[%s2006 + $0x4] sm:$0xf]
      %v2073 = vld [vmem:[%s2006 + $0x8] sm:$0x1]
      %v2074 = vld [vmem:[%s2006 + $0xc] sm:$0xf]
      %v2075 = vld [vmem:[%s2006 + $0x10] sm:$0xf]
      %v2076 = vld [vmem:[%s2006 + $0x14] sm:$0x1]
      %v2077 = vld [vmem:[%s2006 + $0x18] sm:$0xf]
      %v2078 = vld [vmem:[%s2006 + $0x1c] sm:$0xf]
      %v2079 = vld [vmem:[%s2006 + $0x20] sm:$0x1]
      %v2080 = vld [vmem:[%s2006 + $0x24] sm:$0xf]
      %v2081 = vld [vmem:[%s2006 + $0x28] sm:$0xf]
      %v2082 = vld [vmem:[%s2006 + $0x2c] sm:$0x1]
      %v2083 = vld [vmem:[%s2006 + $0x30] sm:$0xf]
      %v2084 = vld [vmem:[%s2006 + $0x34] sm:$0xf]
      %v2085 = vld [vmem:[%s2006 + $0x38] sm:$0x1]
      %v2086 = vld [vmem:[%s2006 + $0x3c] sm:$0xf]
      %v2087 = vld [vmem:[%s2006 + $0x40] sm:$0xf]
      %v2088 = vld [vmem:[%s2006 + $0x44] sm:$0x1]
      %v2089 = vld [vmem:[%s2006 + $0x48] sm:$0xf]
      %v2090 = vld [vmem:[%s2006 + $0x4c] sm:$0xf]
      %v2091 = vld [vmem:[%s2006 + $0x50] sm:$0x1]
      %v2092 = vld [vmem:[%s2006 + $0x54] sm:$0xf]
      %v2093 = vld [vmem:[%s2006 + $0x58] sm:$0xf]
      %v2094 = vld [vmem:[%s2006 + $0x5c] sm:$0x1]
      %v2095 = vld [vmem:[%s2006 + $0x60] sm:$0xf]
      %v2096 = vld [vmem:[%s2006 + $0x64] sm:$0xf]
      %v2097 = vld [vmem:[%s2006 + $0x68] sm:$0x1]
      %v2098 = vld [vmem:[%s2006 + $0x6c] sm:$0xf]
      %v2099 = vld [vmem:[%s2006 + $0x70] sm:$0xf]
      %v2100 = vld [vmem:[%s2006 + $0x74] sm:$0x1]
      %v2101 = vld [vmem:[%s2006 + $0x78] sm:$0xf]
      %v2102 = vld [vmem:[%s2006 + $0x7c] sm:$0xf]
      %v2103 = vld [vmem:[%s2006 + $0x80] sm:$0x1]
      %v2104 = vld [vmem:[%s2006 + $0x84] sm:$0xf]
      %v2105 = vld [vmem:[%s2006 + $0x88] sm:$0xf]
      %v2106 = vld [vmem:[%s2006 + $0x8c] sm:$0x1]
      %v2107 = vld [vmem:[%s2006 + $0x90] sm:$0xf]
      %v2108 = vld [vmem:[%s2006 + $0x94] sm:$0xf]
      %v2109 = vld [vmem:[%s2006 + $0x98] sm:$0x1]
      %v2110 = vld [vmem:[%s2006 + $0x9c] sm:$0xf]
      %v2111 = vld [vmem:[%s2006 + $0xa0] sm:$0xf]
      %v2112 = vld [vmem:[%s2006 + $0xa4] sm:$0x1]
      %v2113 = vld [vmem:[%s2006 + $0xa8] sm:$0xf]
      %v2114 = vld [vmem:[%s2006 + $0xac] sm:$0xf]
      %v2115 = vld [vmem:[%s2006 + $0xb0] sm:$0x1]
      %v2116 = vld [vmem:[%s2006 + $0xb4] sm:$0xf]
      %v2117 = vld [vmem:[%s2006 + $0xb8] sm:$0xf]
      %v2118 = vld [vmem:[%s2006 + $0xbc] sm:$0x1]
      %v2120 = vshrl.u32 %v2071, 16
      %v2122 = vrot.slane %v2120, 4
      %v2123 = vshll.u32 %v2071, 16
      %v2125 = vrot.slane %v2123, 5
      %v2126 = vor.u32 %v2122, %v2125
      %v2127 = vrot.slane %v2126, 4
      %v2129 = vshll.u32 %v2072, 16
      %v2131 = vrot.slane %v2129, 5
      %v2132 = vsel %vm449, %v2127, %v2131
      %v2133 = vshrl.u32 %v2072, 16
      %v2135 = vrot.slane %v2133, 4
      %v2136 = vor.u32 %v2135, %v2131
      %v2137 = vrot.slane %v2136, 4
      %v2139 = vshll.u32 %v2073, 16
      %v2141 = vrot.slane %v2139, 5
      %v2142 = vsel %vm449, %v2137, %v2141
      %v2144 = vshrl.u32 %v2074, 16
      %v2146 = vrot.slane %v2144, 4
      %v2147 = vshll.u32 %v2074, 16
      %v2149 = vrot.slane %v2147, 5
      %v2150 = vor.u32 %v2146, %v2149
      %v2151 = vrot.slane %v2150, 4
      %v2153 = vshll.u32 %v2075, 16
      %v2155 = vrot.slane %v2153, 5
      %v2156 = vsel %vm449, %v2151, %v2155
      %v2157 = vshrl.u32 %v2075, 16
      %v2159 = vrot.slane %v2157, 4
      %v2160 = vor.u32 %v2159, %v2155
      %v2161 = vrot.slane %v2160, 4
      %v2163 = vshll.u32 %v2076, 16
      %v2165 = vrot.slane %v2163, 5
      %v2166 = vsel %vm449, %v2161, %v2165
      %v2168 = vshrl.u32 %v2077, 16
      %v2170 = vrot.slane %v2168, 4
      %v2171 = vshll.u32 %v2077, 16
      %v2173 = vrot.slane %v2171, 5
      %v2174 = vor.u32 %v2170, %v2173
      %v2175 = vrot.slane %v2174, 4
      %v2177 = vshll.u32 %v2078, 16
      %v2179 = vrot.slane %v2177, 5
      %v2180 = vsel %vm449, %v2175, %v2179
      %v2181 = vshrl.u32 %v2078, 16
      %v2183 = vrot.slane %v2181, 4
      %v2184 = vor.u32 %v2183, %v2179
      %v2185 = vrot.slane %v2184, 4
      %v2187 = vshll.u32 %v2079, 16
      %v2189 = vrot.slane %v2187, 5
      %v2190 = vsel %vm449, %v2185, %v2189
      %v2192 = vshrl.u32 %v2080, 16
      %v2194 = vrot.slane %v2192, 4
      %v2195 = vshll.u32 %v2080, 16
      %v2197 = vrot.slane %v2195, 5
      %v2198 = vor.u32 %v2194, %v2197
      %v2199 = vrot.slane %v2198, 4
      %v2201 = vshll.u32 %v2081, 16
      %v2203 = vrot.slane %v2201, 5
      %v2204 = vsel %vm449, %v2199, %v2203
      %v2205 = vshrl.u32 %v2081, 16
      %v2207 = vrot.slane %v2205, 4
      %v2208 = vor.u32 %v2207, %v2203
      %v2209 = vrot.slane %v2208, 4
      %v2211 = vshll.u32 %v2082, 16
      %v2213 = vrot.slane %v2211, 5
      %v2214 = vsel %vm449, %v2209, %v2213
      %v2216 = vshrl.u32 %v2083, 16
      %v2218 = vrot.slane %v2216, 4
      %v2219 = vshll.u32 %v2083, 16
      %v2221 = vrot.slane %v2219, 5
      %v2222 = vor.u32 %v2218, %v2221
      %v2223 = vrot.slane %v2222, 4
      %v2225 = vshll.u32 %v2084, 16
      %v2227 = vrot.slane %v2225, 5
      %v2228 = vsel %vm449, %v2223, %v2227
      %v2229 = vshrl.u32 %v2084, 16
      %v2231 = vrot.slane %v2229, 4
      %v2232 = vor.u32 %v2231, %v2227
      %v2233 = vrot.slane %v2232, 4
      %v2235 = vshll.u32 %v2085, 16
      %v2237 = vrot.slane %v2235, 5
      %v2238 = vsel %vm449, %v2233, %v2237
      %v2240 = vshrl.u32 %v2086, 16
      %v2242 = vrot.slane %v2240, 4
      %v2243 = vshll.u32 %v2086, 16
      %v2245 = vrot.slane %v2243, 5
      %v2246 = vor.u32 %v2242, %v2245
      %v2247 = vrot.slane %v2246, 4
      %v2249 = vshll.u32 %v2087, 16
      %v2251 = vrot.slane %v2249, 5
      %v2252 = vsel %vm449, %v2247, %v2251
      %v2253 = vshrl.u32 %v2087, 16
      %v2255 = vrot.slane %v2253, 4
      %v2256 = vor.u32 %v2255, %v2251
      %v2257 = vrot.slane %v2256, 4
      %v2259 = vshll.u32 %v2088, 16
      %v2261 = vrot.slane %v2259, 5
      %v2262 = vsel %vm449, %v2257, %v2261
      %v2264 = vshrl.u32 %v2089, 16
      %v2266 = vrot.slane %v2264, 4
      %v2267 = vshll.u32 %v2089, 16
      %v2269 = vrot.slane %v2267, 5
      %v2270 = vor.u32 %v2266, %v2269
      %v2271 = vrot.slane %v2270, 4
      %v2273 = vshll.u32 %v2090, 16
      %v2275 = vrot.slane %v2273, 5
      %v2276 = vsel %vm449, %v2271, %v2275
      %v2277 = vshrl.u32 %v2090, 16
      %v2279 = vrot.slane %v2277, 4
      %v2280 = vor.u32 %v2279, %v2275
      %v2281 = vrot.slane %v2280, 4
      %v2283 = vshll.u32 %v2091, 16
      %v2285 = vrot.slane %v2283, 5
      %v2286 = vsel %vm449, %v2281, %v2285
      %v2288 = vshrl.u32 %v2092, 16
      %v2290 = vrot.slane %v2288, 4
      %v2291 = vshll.u32 %v2092, 16
      %v2293 = vrot.slane %v2291, 5
      %v2294 = vor.u32 %v2290, %v2293
      %v2295 = vrot.slane %v2294, 4
      %v2297 = vshll.u32 %v2093, 16
      %v2299 = vrot.slane %v2297, 5
      %v2300 = vsel %vm449, %v2295, %v2299
      %v2301 = vshrl.u32 %v2093, 16
      %v2303 = vrot.slane %v2301, 4
      %v2304 = vor.u32 %v2303, %v2299
      %v2305 = vrot.slane %v2304, 4
      %v2307 = vshll.u32 %v2094, 16
      %v2309 = vrot.slane %v2307, 5
      %v2310 = vsel %vm449, %v2305, %v2309
      %v2312 = vshrl.u32 %v2095, 16
      %v2314 = vrot.slane %v2312, 4
      %v2315 = vshll.u32 %v2095, 16
      %v2317 = vrot.slane %v2315, 5
      %v2318 = vor.u32 %v2314, %v2317
      %v2319 = vrot.slane %v2318, 4
      %v2321 = vshll.u32 %v2096, 16
      %v2323 = vrot.slane %v2321, 5
      %v2324 = vsel %vm449, %v2319, %v2323
      %v2325 = vshrl.u32 %v2096, 16
      %v2327 = vrot.slane %v2325, 4
      %v2328 = vor.u32 %v2327, %v2323
      %v2329 = vrot.slane %v2328, 4
      %v2331 = vshll.u32 %v2097, 16
      %v2333 = vrot.slane %v2331, 5
      %v2334 = vsel %vm449, %v2329, %v2333
      %v2336 = vshrl.u32 %v2098, 16
      %v2338 = vrot.slane %v2336, 4
      %v2339 = vshll.u32 %v2098, 16
      %v2341 = vrot.slane %v2339, 5
      %v2342 = vor.u32 %v2338, %v2341
      %v2343 = vrot.slane %v2342, 4
      %v2345 = vshll.u32 %v2099, 16
      %v2347 = vrot.slane %v2345, 5
      %v2348 = vsel %vm449, %v2343, %v2347
      %v2349 = vshrl.u32 %v2099, 16
      %v2351 = vrot.slane %v2349, 4
      %v2352 = vor.u32 %v2351, %v2347
      %v2353 = vrot.slane %v2352, 4
      %v2355 = vshll.u32 %v2100, 16
      %v2357 = vrot.slane %v2355, 5
      %v2358 = vsel %vm449, %v2353, %v2357
      %v2360 = vshrl.u32 %v2101, 16
      %v2362 = vrot.slane %v2360, 4
      %v2363 = vshll.u32 %v2101, 16
      %v2365 = vrot.slane %v2363, 5
      %v2366 = vor.u32 %v2362, %v2365
      %v2367 = vrot.slane %v2366, 4
      %v2369 = vshll.u32 %v2102, 16
      %v2371 = vrot.slane %v2369, 5
      %v2372 = vsel %vm449, %v2367, %v2371
      %v2373 = vshrl.u32 %v2102, 16
      %v2375 = vrot.slane %v2373, 4
      %v2376 = vor.u32 %v2375, %v2371
      %v2377 = vrot.slane %v2376, 4
      %v2379 = vshll.u32 %v2103, 16
      %v2381 = vrot.slane %v2379, 5
      %v2382 = vsel %vm449, %v2377, %v2381
      %v2384 = vshrl.u32 %v2104, 16
      %v2386 = vrot.slane %v2384, 4
      %v2387 = vshll.u32 %v2104, 16
      %v2389 = vrot.slane %v2387, 5
      %v2390 = vor.u32 %v2386, %v2389
      %v2391 = vrot.slane %v2390, 4
      %v2393 = vshll.u32 %v2105, 16
      %v2395 = vrot.slane %v2393, 5
      %v2396 = vsel %vm449, %v2391, %v2395
      %v2397 = vshrl.u32 %v2105, 16
      %v2399 = vrot.slane %v2397, 4
      %v2400 = vor.u32 %v2399, %v2395
      %v2401 = vrot.slane %v2400, 4
      %v2403 = vshll.u32 %v2106, 16
      %v2405 = vrot.slane %v2403, 5
      %v2406 = vsel %vm449, %v2401, %v2405
      %v2408 = vshrl.u32 %v2107, 16
      %v2410 = vrot.slane %v2408, 4
      %v2411 = vshll.u32 %v2107, 16
      %v2413 = vrot.slane %v2411, 5
      %v2414 = vor.u32 %v2410, %v2413
      %v2415 = vrot.slane %v2414, 4
      %v2417 = vshll.u32 %v2108, 16
      %v2419 = vrot.slane %v2417, 5
      %v2420 = vsel %vm449, %v2415, %v2419
      %v2421 = vshrl.u32 %v2108, 16
      %v2423 = vrot.slane %v2421, 4
      %v2424 = vor.u32 %v2423, %v2419
      %v2425 = vrot.slane %v2424, 4
      %v2427 = vshll.u32 %v2109, 16
      %v2429 = vrot.slane %v2427, 5
      %v2430 = vsel %vm449, %v2425, %v2429
      %v2432 = vshrl.u32 %v2110, 16
      %v2434 = vrot.slane %v2432, 4
      %v2435 = vshll.u32 %v2110, 16
      %v2437 = vrot.slane %v2435, 5
      %v2438 = vor.u32 %v2434, %v2437
      %v2439 = vrot.slane %v2438, 4
      %v2441 = vshll.u32 %v2111, 16
      %v2443 = vrot.slane %v2441, 5
      %v2444 = vsel %vm449, %v2439, %v2443
      %v2445 = vshrl.u32 %v2111, 16
      %v2447 = vrot.slane %v2445, 4
      %v2448 = vor.u32 %v2447, %v2443
      %v2449 = vrot.slane %v2448, 4
      %v2451 = vshll.u32 %v2112, 16
      %v2453 = vrot.slane %v2451, 5
      %v2454 = vsel %vm449, %v2449, %v2453
      %v2456 = vshrl.u32 %v2113, 16
      %v2458 = vrot.slane %v2456, 4
      %v2459 = vshll.u32 %v2113, 16
      %v2461 = vrot.slane %v2459, 5
      %v2462 = vor.u32 %v2458, %v2461
      %v2463 = vrot.slane %v2462, 4
      %v2465 = vshll.u32 %v2114, 16
      %v2467 = vrot.slane %v2465, 5
      %v2468 = vsel %vm449, %v2463, %v2467
      %v2469 = vshrl.u32 %v2114, 16
      %v2471 = vrot.slane %v2469, 4
      %v2472 = vor.u32 %v2471, %v2467
      %v2473 = vrot.slane %v2472, 4
      %v2475 = vshll.u32 %v2115, 16
      %v2477 = vrot.slane %v2475, 5
      %v2478 = vsel %vm449, %v2473, %v2477
      %v2480 = vshrl.u32 %v2116, 16
      %v2482 = vrot.slane %v2480, 4
      %v2483 = vshll.u32 %v2116, 16
      %v2485 = vrot.slane %v2483, 5
      %v2486 = vor.u32 %v2482, %v2485
      %v2487 = vrot.slane %v2486, 4
      %v2489 = vshll.u32 %v2117, 16
      %v2491 = vrot.slane %v2489, 5
      %v2492 = vsel %vm449, %v2487, %v2491
      %v2493 = vshrl.u32 %v2117, 16
      %v2495 = vrot.slane %v2493, 4
      %v2496 = vor.u32 %v2495, %v2491
      %v2497 = vrot.slane %v2496, 4
      %v2499 = vshll.u32 %v2118, 16
      %v2501 = vrot.slane %v2499, 5
      %v2502 = vsel %vm449, %v2497, %v2501
      %2535 = vst [vmem:[#allocation3 + $0x1c] sm:$0xf] %v2132
      %2536 = vst [vmem:[#allocation3 + $0x40] sm:$0xf] %v2142
      %2537 = vst [vmem:[#allocation3 + $0x64] sm:$0xf] %v2156
      %2538 = vst [vmem:[#allocation3 + $0x88] sm:$0xf] %v2166
      %2539 = vst [vmem:[#allocation3 + $0xac] sm:$0xf] %v2180
      %2540 = vst [vmem:[#allocation3 + $0xd0] sm:$0xf] %v2190
      %2541 = vst [vmem:[#allocation3 + $0xf4] sm:$0xf] %v2204
      %2542 = vst [vmem:[#allocation3 + $0x118] sm:$0xf] %v2214
      %2543 = vst [vmem:[#allocation3 + $0x13c] sm:$0xf] %v2228
      %2544 = vst [vmem:[#allocation3 + $0x160] sm:$0xf] %v2238
      %2545 = vst [vmem:[#allocation3 + $0x184] sm:$0xf] %v2252
      %2546 = vst [vmem:[#allocation3 + $0x1a8] sm:$0xf] %v2262
      %2547 = vst [vmem:[#allocation3 + $0x1cc] sm:$0xf] %v2276
      %2548 = vst [vmem:[#allocation3 + $0x1f0] sm:$0xf] %v2286
      %2549 = vst [vmem:[#allocation3 + $0x214] sm:$0xf] %v2300
      %2550 = vst [vmem:[#allocation3 + $0x238] sm:$0xf] %v2310
      %2551 = vst [vmem:[#allocation3 + $0x25c] sm:$0xf] %v2324
      %2552 = vst [vmem:[#allocation3 + $0x280] sm:$0xf] %v2334
      %2553 = vst [vmem:[#allocation3 + $0x2a4] sm:$0xf] %v2348
      %2554 = vst [vmem:[#allocation3 + $0x2c8] sm:$0xf] %v2358
      %2555 = vst [vmem:[#allocation3 + $0x2ec] sm:$0xf] %v2372
      %2556 = vst [vmem:[#allocation3 + $0x310] sm:$0xf] %v2382
      %2557 = vst [vmem:[#allocation3 + $0x334] sm:$0xf] %v2396
      %2558 = vst [vmem:[#allocation3 + $0x358] sm:$0xf] %v2406
      %2559 = vst [vmem:[#allocation3 + $0x37c] sm:$0xf] %v2420
      %2560 = vst [vmem:[#allocation3 + $0x3a0] sm:$0xf] %v2430
      %2561 = vst [vmem:[#allocation3 + $0x3c4] sm:$0xf] %v2444
      %2562 = vst [vmem:[#allocation3 + $0x3e8] sm:$0xf] %v2454
      %2563 = vst [vmem:[#allocation3 + $0x40c] sm:$0xf] %v2468
      %2564 = vst [vmem:[#allocation3 + $0x430] sm:$0xf] %v2478
      %2565 = vst [vmem:[#allocation3 + $0x454] sm:$0xf] %v2492
      %2566 = vst [vmem:[#allocation3 + $0x478] sm:$0xf] %v2502
      %v2567 = vld [vmem:[%s2006] sm:$0xe]
      %v2568 = vld [vmem:[%s2006 + $0x4] sm:$0xf]
      %v2569 = vld [vmem:[%s2006 + $0x8] sm:$0x1]
      %v2570 = vld [vmem:[%s2006 + $0xc] sm:$0xe]
      %v2571 = vld [vmem:[%s2006 + $0x10] sm:$0xf]
      %v2572 = vld [vmem:[%s2006 + $0x14] sm:$0x1]
      %v2573 = vld [vmem:[%s2006 + $0x18] sm:$0xe]
      %v2574 = vld [vmem:[%s2006 + $0x1c] sm:$0xf]
      %v2575 = vld [vmem:[%s2006 + $0x20] sm:$0x1]
      %v2576 = vld [vmem:[%s2006 + $0x24] sm:$0xe]
      %v2577 = vld [vmem:[%s2006 + $0x28] sm:$0xf]
      %v2578 = vld [vmem:[%s2006 + $0x2c] sm:$0x1]
      %v2579 = vld [vmem:[%s2006 + $0x30] sm:$0xe]
      %v2580 = vld [vmem:[%s2006 + $0x34] sm:$0xf]
      %v2581 = vld [vmem:[%s2006 + $0x38] sm:$0x1]
      %v2582 = vld [vmem:[%s2006 + $0x3c] sm:$0xe]
      %v2583 = vld [vmem:[%s2006 + $0x40] sm:$0xf]
      %v2584 = vld [vmem:[%s2006 + $0x44] sm:$0x1]
      %v2585 = vld [vmem:[%s2006 + $0x48] sm:$0xe]
      %v2586 = vld [vmem:[%s2006 + $0x4c] sm:$0xf]
      %v2587 = vld [vmem:[%s2006 + $0x50] sm:$0x1]
      %v2588 = vld [vmem:[%s2006 + $0x54] sm:$0xe]
      %v2589 = vld [vmem:[%s2006 + $0x58] sm:$0xf]
      %v2590 = vld [vmem:[%s2006 + $0x5c] sm:$0x1]
      %v2591 = vld [vmem:[%s2006 + $0x60] sm:$0xe]
      %v2592 = vld [vmem:[%s2006 + $0x64] sm:$0xf]
      %v2593 = vld [vmem:[%s2006 + $0x68] sm:$0x1]
      %v2594 = vld [vmem:[%s2006 + $0x6c] sm:$0xe]
      %v2595 = vld [vmem:[%s2006 + $0x70] sm:$0xf]
      %v2596 = vld [vmem:[%s2006 + $0x74] sm:$0x1]
      %v2597 = vld [vmem:[%s2006 + $0x78] sm:$0xe]
      %v2598 = vld [vmem:[%s2006 + $0x7c] sm:$0xf]
      %v2599 = vld [vmem:[%s2006 + $0x80] sm:$0x1]
      %v2600 = vld [vmem:[%s2006 + $0x84] sm:$0xe]
      %v2601 = vld [vmem:[%s2006 + $0x88] sm:$0xf]
      %v2602 = vld [vmem:[%s2006 + $0x8c] sm:$0x1]
      %v2603 = vld [vmem:[%s2006 + $0x90] sm:$0xe]
      %v2604 = vld [vmem:[%s2006 + $0x94] sm:$0xf]
      %v2605 = vld [vmem:[%s2006 + $0x98] sm:$0x1]
      %v2606 = vld [vmem:[%s2006 + $0x9c] sm:$0xe]
      %v2607 = vld [vmem:[%s2006 + $0xa0] sm:$0xf]
      %v2608 = vld [vmem:[%s2006 + $0xa4] sm:$0x1]
      %v2609 = vld [vmem:[%s2006 + $0xa8] sm:$0xe]
      %v2610 = vld [vmem:[%s2006 + $0xac] sm:$0xf]
      %v2611 = vld [vmem:[%s2006 + $0xb0] sm:$0x1]
      %v2612 = vld [vmem:[%s2006 + $0xb4] sm:$0xe]
      %v2613 = vld [vmem:[%s2006 + $0xb8] sm:$0xf]
      %v2614 = vld [vmem:[%s2006 + $0xbc] sm:$0x1]
      %v2663 = vrot.slane %v2567, 5
      %v2664 = vrot.slane %v2663, 4
      %v2665 = vrot.slane %v2568, 5
      %v2666 = vsel %vm996, %v2664, %v2665
      %v2667 = vrot.slane %v2665, 4
      %v2668 = vrot.slane %v2569, 5
      %v2669 = vsel %vm996, %v2667, %v2668
      %v2670 = vrot.slane %v2570, 5
      %v2671 = vrot.slane %v2670, 4
      %v2672 = vrot.slane %v2571, 5
      %v2673 = vsel %vm996, %v2671, %v2672
      %v2674 = vrot.slane %v2672, 4
      %v2675 = vrot.slane %v2572, 5
      %v2676 = vsel %vm996, %v2674, %v2675
      %v2677 = vrot.slane %v2573, 5
      %v2678 = vrot.slane %v2677, 4
      %v2679 = vrot.slane %v2574, 5
      %v2680 = vsel %vm996, %v2678, %v2679
      %v2681 = vrot.slane %v2679, 4
      %v2682 = vrot.slane %v2575, 5
      %v2683 = vsel %vm996, %v2681, %v2682
      %v2684 = vrot.slane %v2576, 5
      %v2685 = vrot.slane %v2684, 4
      %v2686 = vrot.slane %v2577, 5
      %v2687 = vsel %vm996, %v2685, %v2686
      %v2688 = vrot.slane %v2686, 4
      %v2689 = vrot.slane %v2578, 5
      %v2690 = vsel %vm996, %v2688, %v2689
      %v2691 = vrot.slane %v2579, 5
      %v2692 = vrot.slane %v2691, 4
      %v2693 = vrot.slane %v2580, 5
      %v2694 = vsel %vm996, %v2692, %v2693
      %v2695 = vrot.slane %v2693, 4
      %v2696 = vrot.slane %v2581, 5
      %v2697 = vsel %vm996, %v2695, %v2696
      %v2698 = vrot.slane %v2582, 5
      %v2699 = vrot.slane %v2698, 4
      %v2700 = vrot.slane %v2583, 5
      %v2701 = vsel %vm996, %v2699, %v2700
      %v2702 = vrot.slane %v2700, 4
      %v2703 = vrot.slane %v2584, 5
      %v2704 = vsel %vm996, %v2702, %v2703
      %v2705 = vrot.slane %v2585, 5
      %v2706 = vrot.slane %v2705, 4
      %v2707 = vrot.slane %v2586, 5
      %v2708 = vsel %vm996, %v2706, %v2707
      %v2709 = vrot.slane %v2707, 4
      %v2710 = vrot.slane %v2587, 5
      %v2711 = vsel %vm996, %v2709, %v2710
      %v2712 = vrot.slane %v2588, 5
      %v2713 = vrot.slane %v2712, 4
      %v2714 = vrot.slane %v2589, 5
      %v2715 = vsel %vm996, %v2713, %v2714
      %v2716 = vrot.slane %v2714, 4
      %v2717 = vrot.slane %v2590, 5
      %v2718 = vsel %vm996, %v2716, %v2717
      %v2719 = vrot.slane %v2591, 5
      %v2720 = vrot.slane %v2719, 4
      %v2721 = vrot.slane %v2592, 5
      %v2722 = vsel %vm996, %v2720, %v2721
      %v2723 = vrot.slane %v2721, 4
      %v2724 = vrot.slane %v2593, 5
      %v2725 = vsel %vm996, %v2723, %v2724
      %v2726 = vrot.slane %v2594, 5
      %v2727 = vrot.slane %v2726, 4
      %v2728 = vrot.slane %v2595, 5
      %v2729 = vsel %vm996, %v2727, %v2728
      %v2730 = vrot.slane %v2728, 4
      %v2731 = vrot.slane %v2596, 5
      %v2732 = vsel %vm996, %v2730, %v2731
      %v2733 = vrot.slane %v2597, 5
      %v2734 = vrot.slane %v2733, 4
      %v2735 = vrot.slane %v2598, 5
      %v2736 = vsel %vm996, %v2734, %v2735
      %v2737 = vrot.slane %v2735, 4
      %v2738 = vrot.slane %v2599, 5
      %v2739 = vsel %vm996, %v2737, %v2738
      %v2740 = vrot.slane %v2600, 5
      %v2741 = vrot.slane %v2740, 4
      %v2742 = vrot.slane %v2601, 5
      %v2743 = vsel %vm996, %v2741, %v2742
      %v2744 = vrot.slane %v2742, 4
      %v2745 = vrot.slane %v2602, 5
      %v2746 = vsel %vm996, %v2744, %v2745
      %v2747 = vrot.slane %v2603, 5
      %v2748 = vrot.slane %v2747, 4
      %v2749 = vrot.slane %v2604, 5
      %v2750 = vsel %vm996, %v2748, %v2749
      %v2751 = vrot.slane %v2749, 4
      %v2752 = vrot.slane %v2605, 5
      %v2753 = vsel %vm996, %v2751, %v2752
      %v2754 = vrot.slane %v2606, 5
      %v2755 = vrot.slane %v2754, 4
      %v2756 = vrot.slane %v2607, 5
      %v2757 = vsel %vm996, %v2755, %v2756
      %v2758 = vrot.slane %v2756, 4
      %v2759 = vrot.slane %v2608, 5
      %v2760 = vsel %vm996, %v2758, %v2759
      %v2761 = vrot.slane %v2609, 5
      %v2762 = vrot.slane %v2761, 4
      %v2763 = vrot.slane %v2610, 5
      %v2764 = vsel %vm996, %v2762, %v2763
      %v2765 = vrot.slane %v2763, 4
      %v2766 = vrot.slane %v2611, 5
      %v2767 = vsel %vm996, %v2765, %v2766
      %v2768 = vrot.slane %v2612, 5
      %v2769 = vrot.slane %v2768, 4
      %v2770 = vrot.slane %v2613, 5
      %v2771 = vsel %vm996, %v2769, %v2770
      %v2772 = vrot.slane %v2770, 4
      %v2773 = vrot.slane %v2614, 5
      %v2774 = vsel %vm996, %v2772, %v2773
      %2807 = vst [vmem:[#allocation3 + $0x20] sm:$0xf] %v2666
      %2808 = vst [vmem:[#allocation3 + $0x44] sm:$0xf] %v2669
      %2809 = vst [vmem:[#allocation3 + $0x68] sm:$0xf] %v2673
      %2810 = vst [vmem:[#allocation3 + $0x8c] sm:$0xf] %v2676
      %2811 = vst [vmem:[#allocation3 + $0xb0] sm:$0xf] %v2680
      %2812 = vst [vmem:[#allocation3 + $0xd4] sm:$0xf] %v2683
      %2813 = vst [vmem:[#allocation3 + $0xf8] sm:$0xf] %v2687
      %2814 = vst [vmem:[#allocation3 + $0x11c] sm:$0xf] %v2690
      %2815 = vst [vmem:[#allocation3 + $0x140] sm:$0xf] %v2694
      %2816 = vst [vmem:[#allocation3 + $0x164] sm:$0xf] %v2697
      %2817 = vst [vmem:[#allocation3 + $0x188] sm:$0xf] %v2701
      %2818 = vst [vmem:[#allocation3 + $0x1ac] sm:$0xf] %v2704
      %2819 = vst [vmem:[#allocation3 + $0x1d0] sm:$0xf] %v2708
      %2820 = vst [vmem:[#allocation3 + $0x1f4] sm:$0xf] %v2711
      %2821 = vst [vmem:[#allocation3 + $0x218] sm:$0xf] %v2715
      %2822 = vst [vmem:[#allocation3 + $0x23c] sm:$0xf] %v2718
      %2823 = vst [vmem:[#allocation3 + $0x260] sm:$0xf] %v2722
      %2824 = vst [vmem:[#allocation3 + $0x284] sm:$0xf] %v2725
      %2825 = vst [vmem:[#allocation3 + $0x2a8] sm:$0xf] %v2729
      %2826 = vst [vmem:[#allocation3 + $0x2cc] sm:$0xf] %v2732
      %2827 = vst [vmem:[#allocation3 + $0x2f0] sm:$0xf] %v2736
      %2828 = vst [vmem:[#allocation3 + $0x314] sm:$0xf] %v2739
      %2829 = vst [vmem:[#allocation3 + $0x338] sm:$0xf] %v2743
      %2830 = vst [vmem:[#allocation3 + $0x35c] sm:$0xf] %v2746
      %2831 = vst [vmem:[#allocation3 + $0x380] sm:$0xf] %v2750
      %2832 = vst [vmem:[#allocation3 + $0x3a4] sm:$0xf] %v2753
      %2833 = vst [vmem:[#allocation3 + $0x3c8] sm:$0xf] %v2757
      %2834 = vst [vmem:[#allocation3 + $0x3ec] sm:$0xf] %v2760
      %2835 = vst [vmem:[#allocation3 + $0x410] sm:$0xf] %v2764
      %2836 = vst [vmem:[#allocation3 + $0x434] sm:$0xf] %v2767
      %2837 = vst [vmem:[#allocation3 + $0x458] sm:$0xf] %v2771
      %2838 = vst [vmem:[#allocation3 + $0x47c] sm:$0xf] %v2774
      %v2839 = vld [vmem:[#allocation3] sm:$0xff]
      %v2840 = vld [vmem:[#allocation3 + $0x8] sm:$0xff]
      %v2841 = vld [vmem:[#allocation3 + $0x10] sm:$0xff]
      %v2842 = vld [vmem:[#allocation3 + $0x18] sm:$0xff]
      %v2843 = vld [vmem:[#allocation3 + $0x20] sm:$0xf]
      %v2844 = vld [vmem:[#allocation3 + $0x24] sm:$0xff]
      %v2845 = vld [vmem:[#allocation3 + $0x2c] sm:$0xff]
      %v2846 = vld [vmem:[#allocation3 + $0x34] sm:$0xff]
      %v2847 = vld [vmem:[#allocation3 + $0x3c] sm:$0xff]
      %v2848 = vld [vmem:[#allocation3 + $0x44] sm:$0xf]
      %v2849 = vld [vmem:[#allocation3 + $0x48] sm:$0xff]
      %v2850 = vld [vmem:[#allocation3 + $0x50] sm:$0xff]
      %v2851 = vld [vmem:[#allocation3 + $0x58] sm:$0xff]
      %v2852 = vld [vmem:[#allocation3 + $0x60] sm:$0xff]
      %v2853 = vld [vmem:[#allocation3 + $0x68] sm:$0xf]
      %v2854 = vld [vmem:[#allocation3 + $0x6c] sm:$0xff]
      %v2855 = vld [vmem:[#allocation3 + $0x74] sm:$0xff]
      %v2856 = vld [vmem:[#allocation3 + $0x7c] sm:$0xff]
      %v2857 = vld [vmem:[#allocation3 + $0x84] sm:$0xff]
      %v2858 = vld [vmem:[#allocation3 + $0x8c] sm:$0xf]
      %v2859 = vld [vmem:[#allocation3 + $0x90] sm:$0xff]
      %v2860 = vld [vmem:[#allocation3 + $0x98] sm:$0xff]
      %v2861 = vld [vmem:[#allocation3 + $0xa0] sm:$0xff]
      %v2862 = vld [vmem:[#allocation3 + $0xa8] sm:$0xff]
      %v2863 = vld [vmem:[#allocation3 + $0xb0] sm:$0xf]
      %v2864 = vld [vmem:[#allocation3 + $0xb4] sm:$0xff]
      %v2865 = vld [vmem:[#allocation3 + $0xbc] sm:$0xff]
      %v2866 = vld [vmem:[#allocation3 + $0xc4] sm:$0xff]
      %v2867 = vld [vmem:[#allocation3 + $0xcc] sm:$0xff]
      %v2868 = vld [vmem:[#allocation3 + $0xd4] sm:$0xf]
      %v2869 = vld [vmem:[#allocation3 + $0xd8] sm:$0xff]
      %v2870 = vld [vmem:[#allocation3 + $0xe0] sm:$0xff]
      %v2871 = vld [vmem:[#allocation3 + $0xe8] sm:$0xff]
      %v2872 = vld [vmem:[#allocation3 + $0xf0] sm:$0xff]
      %v2873 = vld [vmem:[#allocation3 + $0xf8] sm:$0xf]
      %v2874 = vld [vmem:[#allocation3 + $0xfc] sm:$0xff]
      %v2875 = vld [vmem:[#allocation3 + $0x104] sm:$0xff]
      %v2876 = vld [vmem:[#allocation3 + $0x10c] sm:$0xff]
      %v2877 = vld [vmem:[#allocation3 + $0x114] sm:$0xff]
      %v2878 = vld [vmem:[#allocation3 + $0x11c] sm:$0xf]
      %v2879 = vld [vmem:[#allocation3 + $0x120] sm:$0xff]
      %v2880 = vld [vmem:[#allocation3 + $0x128] sm:$0xff]
      %v2881 = vld [vmem:[#allocation3 + $0x130] sm:$0xff]
      %v2882 = vld [vmem:[#allocation3 + $0x138] sm:$0xff]
      %v2883 = vld [vmem:[#allocation3 + $0x140] sm:$0xf]
      %v2884 = vld [vmem:[#allocation3 + $0x144] sm:$0xff]
      %v2885 = vld [vmem:[#allocation3 + $0x14c] sm:$0xff]
      %v2886 = vld [vmem:[#allocation3 + $0x154] sm:$0xff]
      %v2887 = vld [vmem:[#allocation3 + $0x15c] sm:$0xff]
      %v2888 = vld [vmem:[#allocation3 + $0x164] sm:$0xf]
      %v2889 = vld [vmem:[#allocation3 + $0x168] sm:$0xff]
      %v2890 = vld [vmem:[#allocation3 + $0x170] sm:$0xff]
      %v2891 = vld [vmem:[#allocation3 + $0x178] sm:$0xff]
      %v2892 = vld [vmem:[#allocation3 + $0x180] sm:$0xff]
      %v2893 = vld [vmem:[#allocation3 + $0x188] sm:$0xf]
      %v2894 = vld [vmem:[#allocation3 + $0x18c] sm:$0xff]
      %v2895 = vld [vmem:[#allocation3 + $0x194] sm:$0xff]
      %v2896 = vld [vmem:[#allocation3 + $0x19c] sm:$0xff]
      %v2897 = vld [vmem:[#allocation3 + $0x1a4] sm:$0xff]
      %v2898 = vld [vmem:[#allocation3 + $0x1ac] sm:$0xf]
      %v2899 = vld [vmem:[#allocation3 + $0x1b0] sm:$0xff]
      %v2900 = vld [vmem:[#allocation3 + $0x1b8] sm:$0xff]
      %v2901 = vld [vmem:[#allocation3 + $0x1c0] sm:$0xff]
      %v2902 = vld [vmem:[#allocation3 + $0x1c8] sm:$0xff]
      %v2903 = vld [vmem:[#allocation3 + $0x1d0] sm:$0xf]
      %v2904 = vld [vmem:[#allocation3 + $0x1d4] sm:$0xff]
      %v2905 = vld [vmem:[#allocation3 + $0x1dc] sm:$0xff]
      %v2906 = vld [vmem:[#allocation3 + $0x1e4] sm:$0xff]
      %v2907 = vld [vmem:[#allocation3 + $0x1ec] sm:$0xff]
      %v2908 = vld [vmem:[#allocation3 + $0x1f4] sm:$0xf]
      %v2909 = vld [vmem:[#allocation3 + $0x1f8] sm:$0xff]
      %v2910 = vld [vmem:[#allocation3 + $0x200] sm:$0xff]
      %v2911 = vld [vmem:[#allocation3 + $0x208] sm:$0xff]
      %v2912 = vld [vmem:[#allocation3 + $0x210] sm:$0xff]
      %v2913 = vld [vmem:[#allocation3 + $0x218] sm:$0xf]
      %v2914 = vld [vmem:[#allocation3 + $0x21c] sm:$0xff]
      %v2915 = vld [vmem:[#allocation3 + $0x224] sm:$0xff]
      %v2916 = vld [vmem:[#allocation3 + $0x22c] sm:$0xff]
      %v2917 = vld [vmem:[#allocation3 + $0x234] sm:$0xff]
      %v2918 = vld [vmem:[#allocation3 + $0x23c] sm:$0xf]
      %v2919 = vld [vmem:[#allocation3 + $0x240] sm:$0xff]
      %v2920 = vld [vmem:[#allocation3 + $0x248] sm:$0xff]
      %v2921 = vld [vmem:[#allocation3 + $0x250] sm:$0xff]
      %v2922 = vld [vmem:[#allocation3 + $0x258] sm:$0xff]
      %v2923 = vld [vmem:[#allocation3 + $0x260] sm:$0xf]
      %v2924 = vld [vmem:[#allocation3 + $0x264] sm:$0xff]
      %v2925 = vld [vmem:[#allocation3 + $0x26c] sm:$0xff]
      %v2926 = vld [vmem:[#allocation3 + $0x274] sm:$0xff]
      %v2927 = vld [vmem:[#allocation3 + $0x27c] sm:$0xff]
      %v2928 = vld [vmem:[#allocation3 + $0x284] sm:$0xf]
      %v2929 = vld [vmem:[#allocation3 + $0x288] sm:$0xff]
      %v2930 = vld [vmem:[#allocation3 + $0x290] sm:$0xff]
      %v2931 = vld [vmem:[#allocation3 + $0x298] sm:$0xff]
      %v2932 = vld [vmem:[#allocation3 + $0x2a0] sm:$0xff]
      %v2933 = vld [vmem:[#allocation3 + $0x2a8] sm:$0xf]
      %v2934 = vld [vmem:[#allocation3 + $0x2ac] sm:$0xff]
      %v2935 = vld [vmem:[#allocation3 + $0x2b4] sm:$0xff]
      %v2936 = vld [vmem:[#allocation3 + $0x2bc] sm:$0xff]
      %v2937 = vld [vmem:[#allocation3 + $0x2c4] sm:$0xff]
      %v2938 = vld [vmem:[#allocation3 + $0x2cc] sm:$0xf]
      %v2939 = vld [vmem:[#allocation3 + $0x2d0] sm:$0xff]
      %v2940 = vld [vmem:[#allocation3 + $0x2d8] sm:$0xff]
      %v2941 = vld [vmem:[#allocation3 + $0x2e0] sm:$0xff]
      %v2942 = vld [vmem:[#allocation3 + $0x2e8] sm:$0xff]
      %v2943 = vld [vmem:[#allocation3 + $0x2f0] sm:$0xf]
      %v2944 = vld [vmem:[#allocation3 + $0x2f4] sm:$0xff]
      %v2945 = vld [vmem:[#allocation3 + $0x2fc] sm:$0xff]
      %v2946 = vld [vmem:[#allocation3 + $0x304] sm:$0xff]
      %v2947 = vld [vmem:[#allocation3 + $0x30c] sm:$0xff]
      %v2948 = vld [vmem:[#allocation3 + $0x314] sm:$0xf]
      %v2949 = vld [vmem:[#allocation3 + $0x318] sm:$0xff]
      %v2950 = vld [vmem:[#allocation3 + $0x320] sm:$0xff]
      %v2951 = vld [vmem:[#allocation3 + $0x328] sm:$0xff]
      %v2952 = vld [vmem:[#allocation3 + $0x330] sm:$0xff]
      %v2953 = vld [vmem:[#allocation3 + $0x338] sm:$0xf]
      %v2954 = vld [vmem:[#allocation3 + $0x33c] sm:$0xff]
      %v2955 = vld [vmem:[#allocation3 + $0x344] sm:$0xff]
      %v2956 = vld [vmem:[#allocation3 + $0x34c] sm:$0xff]
      %v2957 = vld [vmem:[#allocation3 + $0x354] sm:$0xff]
      %v2958 = vld [vmem:[#allocation3 + $0x35c] sm:$0xf]
      %v2959 = vld [vmem:[#allocation3 + $0x360] sm:$0xff]
      %v2960 = vld [vmem:[#allocation3 + $0x368] sm:$0xff]
      %v2961 = vld [vmem:[#allocation3 + $0x370] sm:$0xff]
      %v2962 = vld [vmem:[#allocation3 + $0x378] sm:$0xff]
      %v2963 = vld [vmem:[#allocation3 + $0x380] sm:$0xf]
      %v2964 = vld [vmem:[#allocation3 + $0x384] sm:$0xff]
      %v2965 = vld [vmem:[#allocation3 + $0x38c] sm:$0xff]
      %v2966 = vld [vmem:[#allocation3 + $0x394] sm:$0xff]
      %v2967 = vld [vmem:[#allocation3 + $0x39c] sm:$0xff]
      %v2968 = vld [vmem:[#allocation3 + $0x3a4] sm:$0xf]
      %v2969 = vld [vmem:[#allocation3 + $0x3a8] sm:$0xff]
      %v2970 = vld [vmem:[#allocation3 + $0x3b0] sm:$0xff]
      %v2971 = vld [vmem:[#allocation3 + $0x3b8] sm:$0xff]
      %v2972 = vld [vmem:[#allocation3 + $0x3c0] sm:$0xff]
      %v2973 = vld [vmem:[#allocation3 + $0x3c8] sm:$0xf]
      %v2974 = vld [vmem:[#allocation3 + $0x3cc] sm:$0xff]
      %v2975 = vld [vmem:[#allocation3 + $0x3d4] sm:$0xff]
      %v2976 = vld [vmem:[#allocation3 + $0x3dc] sm:$0xff]
      %v2977 = vld [vmem:[#allocation3 + $0x3e4] sm:$0xff]
      %v2978 = vld [vmem:[#allocation3 + $0x3ec] sm:$0xf]
      %v2979 = vld [vmem:[#allocation3 + $0x3f0] sm:$0xff]
      %v2980 = vld [vmem:[#allocation3 + $0x3f8] sm:$0xff]
      %v2981 = vld [vmem:[#allocation3 + $0x400] sm:$0xff]
      %v2982 = vld [vmem:[#allocation3 + $0x408] sm:$0xff]
      %v2983 = vld [vmem:[#allocation3 + $0x410] sm:$0xf]
      %v2984 = vld [vmem:[#allocation3 + $0x414] sm:$0xff]
      %v2985 = vld [vmem:[#allocation3 + $0x41c] sm:$0xff]
      %v2986 = vld [vmem:[#allocation3 + $0x424] sm:$0xff]
      %v2987 = vld [vmem:[#allocation3 + $0x42c] sm:$0xff]
      %v2988 = vld [vmem:[#allocation3 + $0x434] sm:$0xf]
      %v2989 = vld [vmem:[#allocation3 + $0x438] sm:$0xff]
      %v2990 = vld [vmem:[#allocation3 + $0x440] sm:$0xff]
      %v2991 = vld [vmem:[#allocation3 + $0x448] sm:$0xff]
      %v2992 = vld [vmem:[#allocation3 + $0x450] sm:$0xff]
      %v2993 = vld [vmem:[#allocation3 + $0x458] sm:$0xf]
      %v2994 = vld [vmem:[#allocation3 + $0x45c] sm:$0xff]
      %v2995 = vld [vmem:[#allocation3 + $0x464] sm:$0xff]
      %v2996 = vld [vmem:[#allocation3 + $0x46c] sm:$0xff]
      %v2997 = vld [vmem:[#allocation3 + $0x474] sm:$0xff]
      %v2998 = vld [vmem:[#allocation3 + $0x47c] sm:$0xf]
      %v2999 = vld [vmem:[%s1] sm:$0xf]
      %v3000 = vld [vmem:[%s1 + $0x4] sm:$0xf]
      %v3001 = vld [vmem:[%s1 + $0x8] sm:$0xf]
      %v3002 = vld [vmem:[%s1 + $0xc] sm:$0xf]
      %v3003 = vld [vmem:[%s1 + $0x10] sm:$0xf]
      %v3004 = vld [vmem:[%s1 + $0x14] sm:$0xf]
      %v3005 = vld [vmem:[%s1 + $0x18] sm:$0xf]
      %v3006 = vld [vmem:[%s1 + $0x1c] sm:$0xf]
      %v3007 = vld [vmem:[%s1 + $0x20] sm:$0xf]
      %v3008 = vld [vmem:[%s1 + $0x24] sm:$0xf]
      %v3009 = vld [vmem:[%s1 + $0x28] sm:$0xf]
      %v3010 = vld [vmem:[%s1 + $0x2c] sm:$0xf]
      %v3011 = vld [vmem:[%s1 + $0x30] sm:$0xf]
      %v3012 = vld [vmem:[%s1 + $0x34] sm:$0xf]
      %v3013 = vld [vmem:[%s1 + $0x38] sm:$0xf]
      %v3014 = vld [vmem:[%s1 + $0x3c] sm:$0xf]
      %v3015 = vld [vmem:[%s1 + $0x40] sm:$0xf]
      %v3016 = vld [vmem:[%s1 + $0x44] sm:$0xf]
      %v3017 = vld [vmem:[%s1 + $0x48] sm:$0xf]
      %v3018 = vld [vmem:[%s1 + $0x4c] sm:$0xf]
      %v3019 = vld [vmem:[%s1 + $0x50] sm:$0xf]
      %v3020 = vld [vmem:[%s1 + $0x54] sm:$0xf]
      %v3021 = vld [vmem:[%s1 + $0x58] sm:$0xf]
      %v3022 = vld [vmem:[%s1 + $0x5c] sm:$0xf]
      %v3023 = vld [vmem:[%s1 + $0x60] sm:$0xf]
      %v3024 = vld [vmem:[%s1 + $0x64] sm:$0xf]
      %v3025 = vld [vmem:[%s1 + $0x68] sm:$0xf]
      %v3026 = vld [vmem:[%s1 + $0x6c] sm:$0xf]
      %v3027 = vld [vmem:[%s1 + $0x70] sm:$0xf]
      %v3028 = vld [vmem:[%s1 + $0x74] sm:$0xf]
      %v3029 = vld [vmem:[%s1 + $0x78] sm:$0xf]
      %v3030 = vld [vmem:[%s1 + $0x7c] sm:$0xf]
      %v3031 = vld [vmem:[%s1 + $0x80] sm:$0xf]
      %v3032 = vld [vmem:[%s1 + $0x84] sm:$0xf]
      %v3033 = vld [vmem:[%s1 + $0x88] sm:$0xf]
      %v3034 = vld [vmem:[%s1 + $0x8c] sm:$0xf]
      %v3035 = vld [vmem:[%s1 + $0x90] sm:$0xf]
      %v3036 = vld [vmem:[%s1 + $0x94] sm:$0xf]
      %v3037 = vld [vmem:[%s1 + $0x98] sm:$0xf]
      %v3038 = vld [vmem:[%s1 + $0x9c] sm:$0xf]
      %v3039 = vld [vmem:[%s1 + $0xa0] sm:$0xf]
      %v3040 = vld [vmem:[%s1 + $0xa4] sm:$0xf]
      %v3041 = vld [vmem:[%s1 + $0xa8] sm:$0xf]
      %v3042 = vld [vmem:[%s1 + $0xac] sm:$0xf]
      %v3043 = vld [vmem:[%s1 + $0xb0] sm:$0xf]
      %v3044 = vld [vmem:[%s1 + $0xb4] sm:$0xf]
      %v3045 = vld [vmem:[%s1 + $0xb8] sm:$0xf]
      %v3046 = vld [vmem:[%s1 + $0xbc] sm:$0xf]
      %v3047 = vld [vmem:[%s1 + $0xc0] sm:$0xf]
      %v3048 = vld [vmem:[%s1 + $0xc4] sm:$0xf]
      %v3049 = vld [vmem:[%s1 + $0xc8] sm:$0xf]
      %v3050 = vld [vmem:[%s1 + $0xcc] sm:$0xf]
      %v3051 = vld [vmem:[%s1 + $0xd0] sm:$0xf]
      %v3052 = vld [vmem:[%s1 + $0xd4] sm:$0xf]
      %v3053 = vld [vmem:[%s1 + $0xd8] sm:$0xf]
      %v3054 = vld [vmem:[%s1 + $0xdc] sm:$0xf]
      %v3055 = vld [vmem:[%s1 + $0xe0] sm:$0xf]
      %v3056 = vld [vmem:[%s1 + $0xe4] sm:$0xf]
      %v3057 = vld [vmem:[%s1 + $0xe8] sm:$0xf]
      %v3058 = vld [vmem:[%s1 + $0xec] sm:$0xf]
      %v3059 = vld [vmem:[%s1 + $0xf0] sm:$0xf]
      %v3060 = vld [vmem:[%s1 + $0xf4] sm:$0xf]
      %v3061 = vld [vmem:[%s1 + $0xf8] sm:$0xf]
      %v3062 = vld [vmem:[%s1 + $0xfc] sm:$0xf]
      %v3063 = vld [vmem:[%s1 + $0x100] sm:$0xf]
      %v3064 = vld [vmem:[%s1 + $0x104] sm:$0xf]
      %v3065 = vld [vmem:[%s1 + $0x108] sm:$0xf]
      %v3066 = vld [vmem:[%s1 + $0x10c] sm:$0xf]
      %v3067 = vld [vmem:[%s1 + $0x110] sm:$0xf]
      %v3068 = vld [vmem:[%s1 + $0x114] sm:$0xf]
      %v3069 = vld [vmem:[%s1 + $0x118] sm:$0xf]
      %v3070 = vld [vmem:[%s1 + $0x11c] sm:$0xf]
      %v3071 = vld [vmem:[%s1 + $0x120] sm:$0xf]
      %v3072 = vld [vmem:[%s1 + $0x124] sm:$0xf]
      %v3073 = vld [vmem:[%s1 + $0x128] sm:$0xf]
      %v3074 = vld [vmem:[%s1 + $0x12c] sm:$0xf]
      %v3075 = vld [vmem:[%s1 + $0x130] sm:$0xf]
      %v3076 = vld [vmem:[%s1 + $0x134] sm:$0xf]
      %v3077 = vld [vmem:[%s1 + $0x138] sm:$0xf]
      %v3078 = vld [vmem:[%s1 + $0x13c] sm:$0xf]
      %v3079 = vld [vmem:[%s1 + $0x140] sm:$0xf]
      %v3080 = vld [vmem:[%s1 + $0x144] sm:$0xf]
      %v3081 = vld [vmem:[%s1 + $0x148] sm:$0xf]
      %v3082 = vld [vmem:[%s1 + $0x14c] sm:$0xf]
      %v3083 = vld [vmem:[%s1 + $0x150] sm:$0xf]
      %v3084 = vld [vmem:[%s1 + $0x154] sm:$0xf]
      %v3085 = vld [vmem:[%s1 + $0x158] sm:$0xf]
      %v3086 = vld [vmem:[%s1 + $0x15c] sm:$0xf]
      %v3087 = vld [vmem:[%s1 + $0x160] sm:$0xf]
      %v3088 = vld [vmem:[%s1 + $0x164] sm:$0xf]
      %v3089 = vld [vmem:[%s1 + $0x168] sm:$0xf]
      %v3090 = vld [vmem:[%s1 + $0x16c] sm:$0xf]
      %v3091 = vld [vmem:[%s1 + $0x170] sm:$0xf]
      %v3092 = vld [vmem:[%s1 + $0x174] sm:$0xf]
      %v3093 = vld [vmem:[%s1 + $0x178] sm:$0xf]
      %v3094 = vld [vmem:[%s1 + $0x17c] sm:$0xf]
      %v3095 = vld [vmem:[%s1 + $0x180] sm:$0xf]
      %v3096 = vld [vmem:[%s1 + $0x184] sm:$0xf]
      %v3097 = vld [vmem:[%s1 + $0x188] sm:$0xf]
      %v3098 = vld [vmem:[%s1 + $0x18c] sm:$0xf]
      %v3099 = vld [vmem:[%s1 + $0x190] sm:$0xf]
      %v3100 = vld [vmem:[%s1 + $0x194] sm:$0xf]
      %v3101 = vld [vmem:[%s1 + $0x198] sm:$0xf]
      %v3102 = vld [vmem:[%s1 + $0x19c] sm:$0xf]
      %v3103 = vld [vmem:[%s1 + $0x1a0] sm:$0xf]
      %v3104 = vld [vmem:[%s1 + $0x1a4] sm:$0xf]
      %v3105 = vld [vmem:[%s1 + $0x1a8] sm:$0xf]
      %v3106 = vld [vmem:[%s1 + $0x1ac] sm:$0xf]
      %v3107 = vld [vmem:[%s1 + $0x1b0] sm:$0xf]
      %v3108 = vld [vmem:[%s1 + $0x1b4] sm:$0xf]
      %v3109 = vld [vmem:[%s1 + $0x1b8] sm:$0xf]
      %v3110 = vld [vmem:[%s1 + $0x1bc] sm:$0xf]
      %v3111 = vld [vmem:[%s1 + $0x1c0] sm:$0xf]
      %v3112 = vld [vmem:[%s1 + $0x1c4] sm:$0xf]
      %v3113 = vld [vmem:[%s1 + $0x1c8] sm:$0xf]
      %v3114 = vld [vmem:[%s1 + $0x1cc] sm:$0xf]
      %v3115 = vld [vmem:[%s1 + $0x1d0] sm:$0xf]
      %v3116 = vld [vmem:[%s1 + $0x1d4] sm:$0xf]
      %v3117 = vld [vmem:[%s1 + $0x1d8] sm:$0xf]
      %v3118 = vld [vmem:[%s1 + $0x1dc] sm:$0xf]
      %v3119 = vld [vmem:[%s1 + $0x1e0] sm:$0xf]
      %v3120 = vld [vmem:[%s1 + $0x1e4] sm:$0xf]
      %v3121 = vld [vmem:[%s1 + $0x1e8] sm:$0xf]
      %v3122 = vld [vmem:[%s1 + $0x1ec] sm:$0xf]
      %v3123 = vld [vmem:[%s1 + $0x1f0] sm:$0xf]
      %v3124 = vld [vmem:[%s1 + $0x1f4] sm:$0xf]
      %v3125 = vld [vmem:[%s1 + $0x1f8] sm:$0xf]
      %v3126 = vld [vmem:[%s1 + $0x1fc] sm:$0xf]
      %v3127 = vld [vmem:[%s1 + $0x200] sm:$0xf]
      %v3128 = vld [vmem:[%s1 + $0x204] sm:$0xf]
      %v3129 = vld [vmem:[%s1 + $0x208] sm:$0xf]
      %v3130 = vld [vmem:[%s1 + $0x20c] sm:$0xf]
      %v3131 = vld [vmem:[%s1 + $0x210] sm:$0xf]
      %v3132 = vld [vmem:[%s1 + $0x214] sm:$0xf]
      %v3133 = vld [vmem:[%s1 + $0x218] sm:$0xf]
      %v3134 = vld [vmem:[%s1 + $0x21c] sm:$0xf]
      %v3135 = vld [vmem:[%s1 + $0x220] sm:$0xf]
      %v3136 = vld [vmem:[%s1 + $0x224] sm:$0xf]
      %v3137 = vld [vmem:[%s1 + $0x228] sm:$0xf]
      %v3138 = vld [vmem:[%s1 + $0x22c] sm:$0xf]
      %v3139 = vld [vmem:[%s1 + $0x230] sm:$0xf]
      %v3140 = vld [vmem:[%s1 + $0x234] sm:$0xf]
      %v3141 = vld [vmem:[%s1 + $0x238] sm:$0xf]
      %v3142 = vld [vmem:[%s1 + $0x23c] sm:$0xf]
      %v3303 = vunpack.c.l.b16 %v2839
      %v3304 = vunpack.c.h.b16 %v2839
      %v3305 = vunpack.c.l.b16 %v2840
      %v3306 = vunpack.c.h.b16 %v2840
      %v3307 = vunpack.c.l.b16 %v2841
      %v3308 = vunpack.c.h.b16 %v2841
      %v3309 = vunpack.c.l.b16 %v2842
      %v3310 = vunpack.c.h.b16 %v2842
      %v3311 = vunpack.c.l.b16 %v2843
      %v3312 = vunpack.c.l.b16 %v2844
      %v3313 = vunpack.c.h.b16 %v2844
      %v3314 = vunpack.c.l.b16 %v2845
      %v3315 = vunpack.c.h.b16 %v2845
      %v3316 = vunpack.c.l.b16 %v2846
      %v3317 = vunpack.c.h.b16 %v2846
      %v3318 = vunpack.c.l.b16 %v2847
      %v3319 = vunpack.c.h.b16 %v2847
      %v3320 = vunpack.c.l.b16 %v2848
      %v3321 = vunpack.c.l.b16 %v2849
      %v3322 = vunpack.c.h.b16 %v2849
      %v3323 = vunpack.c.l.b16 %v2850
      %v3324 = vunpack.c.h.b16 %v2850
      %v3325 = vunpack.c.l.b16 %v2851
      %v3326 = vunpack.c.h.b16 %v2851
      %v3327 = vunpack.c.l.b16 %v2852
      %v3328 = vunpack.c.h.b16 %v2852
      %v3329 = vunpack.c.l.b16 %v2853
      %v3330 = vunpack.c.l.b16 %v2854
      %v3331 = vunpack.c.h.b16 %v2854
      %v3332 = vunpack.c.l.b16 %v2855
      %v3333 = vunpack.c.h.b16 %v2855
      %v3334 = vunpack.c.l.b16 %v2856
      %v3335 = vunpack.c.h.b16 %v2856
      %v3336 = vunpack.c.l.b16 %v2857
      %v3337 = vunpack.c.h.b16 %v2857
      %v3338 = vunpack.c.l.b16 %v2858
      %v3339 = vunpack.c.l.b16 %v2859
      %v3340 = vunpack.c.h.b16 %v2859
      %v3341 = vunpack.c.l.b16 %v2860
      %v3342 = vunpack.c.h.b16 %v2860
      %v3343 = vunpack.c.l.b16 %v2861
      %v3344 = vunpack.c.h.b16 %v2861
      %v3345 = vunpack.c.l.b16 %v2862
      %v3346 = vunpack.c.h.b16 %v2862
      %v3347 = vunpack.c.l.b16 %v2863
      %v3348 = vunpack.c.l.b16 %v2864
      %v3349 = vunpack.c.h.b16 %v2864
      %v3350 = vunpack.c.l.b16 %v2865
      %v3351 = vunpack.c.h.b16 %v2865
      %v3352 = vunpack.c.l.b16 %v2866
      %v3353 = vunpack.c.h.b16 %v2866
      %v3354 = vunpack.c.l.b16 %v2867
      %v3355 = vunpack.c.h.b16 %v2867
      %v3356 = vunpack.c.l.b16 %v2868
      %v3357 = vunpack.c.l.b16 %v2869
      %v3358 = vunpack.c.h.b16 %v2869
      %v3359 = vunpack.c.l.b16 %v2870
      %v3360 = vunpack.c.h.b16 %v2870
      %v3361 = vunpack.c.l.b16 %v2871
      %v3362 = vunpack.c.h.b16 %v2871
      %v3363 = vunpack.c.l.b16 %v2872
      %v3364 = vunpack.c.h.b16 %v2872
      %v3365 = vunpack.c.l.b16 %v2873
      %v3366 = vunpack.c.l.b16 %v2874
      %v3367 = vunpack.c.h.b16 %v2874
      %v3368 = vunpack.c.l.b16 %v2875
      %v3369 = vunpack.c.h.b16 %v2875
      %v3370 = vunpack.c.l.b16 %v2876
      %v3371 = vunpack.c.h.b16 %v2876
      %v3372 = vunpack.c.l.b16 %v2877
      %v3373 = vunpack.c.h.b16 %v2877
      %v3374 = vunpack.c.l.b16 %v2878
      %v3375 = vunpack.c.l.b16 %v2879
      %v3376 = vunpack.c.h.b16 %v2879
      %v3377 = vunpack.c.l.b16 %v2880
      %v3378 = vunpack.c.h.b16 %v2880
      %v3379 = vunpack.c.l.b16 %v2881
      %v3380 = vunpack.c.h.b16 %v2881
      %v3381 = vunpack.c.l.b16 %v2882
      %v3382 = vunpack.c.h.b16 %v2882
      %v3383 = vunpack.c.l.b16 %v2883
      %v3384 = vunpack.c.l.b16 %v2884
      %v3385 = vunpack.c.h.b16 %v2884
      %v3386 = vunpack.c.l.b16 %v2885
      %v3387 = vunpack.c.h.b16 %v2885
      %v3388 = vunpack.c.l.b16 %v2886
      %v3389 = vunpack.c.h.b16 %v2886
      %v3390 = vunpack.c.l.b16 %v2887
      %v3391 = vunpack.c.h.b16 %v2887
      %v3392 = vunpack.c.l.b16 %v2888
      %v3393 = vunpack.c.l.b16 %v2889
      %v3394 = vunpack.c.h.b16 %v2889
      %v3395 = vunpack.c.l.b16 %v2890
      %v3396 = vunpack.c.h.b16 %v2890
      %v3397 = vunpack.c.l.b16 %v2891
      %v3398 = vunpack.c.h.b16 %v2891
      %v3399 = vunpack.c.l.b16 %v2892
      %v3400 = vunpack.c.h.b16 %v2892
      %v3401 = vunpack.c.l.b16 %v2893
      %v3402 = vunpack.c.l.b16 %v2894
      %v3403 = vunpack.c.h.b16 %v2894
      %v3404 = vunpack.c.l.b16 %v2895
      %v3405 = vunpack.c.h.b16 %v2895
      %v3406 = vunpack.c.l.b16 %v2896
      %v3407 = vunpack.c.h.b16 %v2896
      %v3408 = vunpack.c.l.b16 %v2897
      %v3409 = vunpack.c.h.b16 %v2897
      %v3410 = vunpack.c.l.b16 %v2898
      %v3411 = vunpack.c.l.b16 %v2899
      %v3412 = vunpack.c.h.b16 %v2899
      %v3413 = vunpack.c.l.b16 %v2900
      %v3414 = vunpack.c.h.b16 %v2900
      %v3415 = vunpack.c.l.b16 %v2901
      %v3416 = vunpack.c.h.b16 %v2901
      %v3417 = vunpack.c.l.b16 %v2902
      %v3418 = vunpack.c.h.b16 %v2902
      %v3419 = vunpack.c.l.b16 %v2903
      %v3420 = vunpack.c.l.b16 %v2904
      %v3421 = vunpack.c.h.b16 %v2904
      %v3422 = vunpack.c.l.b16 %v2905
      %v3423 = vunpack.c.h.b16 %v2905
      %v3424 = vunpack.c.l.b16 %v2906
      %v3425 = vunpack.c.h.b16 %v2906
      %v3426 = vunpack.c.l.b16 %v2907
      %v3427 = vunpack.c.h.b16 %v2907
      %v3428 = vunpack.c.l.b16 %v2908
      %v3429 = vunpack.c.l.b16 %v2909
      %v3430 = vunpack.c.h.b16 %v2909
      %v3431 = vunpack.c.l.b16 %v2910
      %v3432 = vunpack.c.h.b16 %v2910
      %v3433 = vunpack.c.l.b16 %v2911
      %v3434 = vunpack.c.h.b16 %v2911
      %v3435 = vunpack.c.l.b16 %v2912
      %v3436 = vunpack.c.h.b16 %v2912
      %v3437 = vunpack.c.l.b16 %v2913
      %v3438 = vunpack.c.l.b16 %v2914
      %v3439 = vunpack.c.h.b16 %v2914
      %v3440 = vunpack.c.l.b16 %v2915
      %v3441 = vunpack.c.h.b16 %v2915
      %v3442 = vunpack.c.l.b16 %v2916
      %v3443 = vunpack.c.h.b16 %v2916
      %v3444 = vunpack.c.l.b16 %v2917
      %v3445 = vunpack.c.h.b16 %v2917
      %v3446 = vunpack.c.l.b16 %v2918
      %v3447 = vunpack.c.l.b16 %v2919
      %v3448 = vunpack.c.h.b16 %v2919
      %v3449 = vunpack.c.l.b16 %v2920
      %v3450 = vunpack.c.h.b16 %v2920
      %v3451 = vunpack.c.l.b16 %v2921
      %v3452 = vunpack.c.h.b16 %v2921
      %v3453 = vunpack.c.l.b16 %v2922
      %v3454 = vunpack.c.h.b16 %v2922
      %v3455 = vunpack.c.l.b16 %v2923
      %v3456 = vunpack.c.l.b16 %v2924
      %v3457 = vunpack.c.h.b16 %v2924
      %v3458 = vunpack.c.l.b16 %v2925
      %v3459 = vunpack.c.h.b16 %v2925
      %v3460 = vunpack.c.l.b16 %v2926
      %v3461 = vunpack.c.h.b16 %v2926
      %v3462 = vunpack.c.l.b16 %v2927
      %v3463 = vunpack.c.h.b16 %v2927
      %v3464 = vunpack.c.l.b16 %v2928
      %v3465 = vunpack.c.l.b16 %v2929
      %v3466 = vunpack.c.h.b16 %v2929
      %v3467 = vunpack.c.l.b16 %v2930
      %v3468 = vunpack.c.h.b16 %v2930
      %v3469 = vunpack.c.l.b16 %v2931
      %v3470 = vunpack.c.h.b16 %v2931
      %v3471 = vunpack.c.l.b16 %v2932
      %v3472 = vunpack.c.h.b16 %v2932
      %v3473 = vunpack.c.l.b16 %v2933
      %v3474 = vunpack.c.l.b16 %v2934
      %v3475 = vunpack.c.h.b16 %v2934
      %v3476 = vunpack.c.l.b16 %v2935
      %v3477 = vunpack.c.h.b16 %v2935
      %v3478 = vunpack.c.l.b16 %v2936
      %v3479 = vunpack.c.h.b16 %v2936
      %v3480 = vunpack.c.l.b16 %v2937
      %v3481 = vunpack.c.h.b16 %v2937
      %v3482 = vunpack.c.l.b16 %v2938
      %v3483 = vunpack.c.l.b16 %v2939
      %v3484 = vunpack.c.h.b16 %v2939
      %v3485 = vunpack.c.l.b16 %v2940
      %v3486 = vunpack.c.h.b16 %v2940
      %v3487 = vunpack.c.l.b16 %v2941
      %v3488 = vunpack.c.h.b16 %v2941
      %v3489 = vunpack.c.l.b16 %v2942
      %v3490 = vunpack.c.h.b16 %v2942
      %v3491 = vunpack.c.l.b16 %v2943
      %v3492 = vunpack.c.l.b16 %v2944
      %v3493 = vunpack.c.h.b16 %v2944
      %v3494 = vunpack.c.l.b16 %v2945
      %v3495 = vunpack.c.h.b16 %v2945
      %v3496 = vunpack.c.l.b16 %v2946
      %v3497 = vunpack.c.h.b16 %v2946
      %v3498 = vunpack.c.l.b16 %v2947
      %v3499 = vunpack.c.h.b16 %v2947
      %v3500 = vunpack.c.l.b16 %v2948
      %v3501 = vunpack.c.l.b16 %v2949
      %v3502 = vunpack.c.h.b16 %v2949
      %v3503 = vunpack.c.l.b16 %v2950
      %v3504 = vunpack.c.h.b16 %v2950
      %v3505 = vunpack.c.l.b16 %v2951
      %v3506 = vunpack.c.h.b16 %v2951
      %v3507 = vunpack.c.l.b16 %v2952
      %v3508 = vunpack.c.h.b16 %v2952
      %v3509 = vunpack.c.l.b16 %v2953
      %v3510 = vunpack.c.l.b16 %v2954
      %v3511 = vunpack.c.h.b16 %v2954
      %v3512 = vunpack.c.l.b16 %v2955
      %v3513 = vunpack.c.h.b16 %v2955
      %v3514 = vunpack.c.l.b16 %v2956
      %v3515 = vunpack.c.h.b16 %v2956
      %v3516 = vunpack.c.l.b16 %v2957
      %v3517 = vunpack.c.h.b16 %v2957
      %v3518 = vunpack.c.l.b16 %v2958
      %v3519 = vunpack.c.l.b16 %v2959
      %v3520 = vunpack.c.h.b16 %v2959
      %v3521 = vunpack.c.l.b16 %v2960
      %v3522 = vunpack.c.h.b16 %v2960
      %v3523 = vunpack.c.l.b16 %v2961
      %v3524 = vunpack.c.h.b16 %v2961
      %v3525 = vunpack.c.l.b16 %v2962
      %v3526 = vunpack.c.h.b16 %v2962
      %v3527 = vunpack.c.l.b16 %v2963
      %v3528 = vunpack.c.l.b16 %v2964
      %v3529 = vunpack.c.h.b16 %v2964
      %v3530 = vunpack.c.l.b16 %v2965
      %v3531 = vunpack.c.h.b16 %v2965
      %v3532 = vunpack.c.l.b16 %v2966
      %v3533 = vunpack.c.h.b16 %v2966
      %v3534 = vunpack.c.l.b16 %v2967
      %v3535 = vunpack.c.h.b16 %v2967
      %v3536 = vunpack.c.l.b16 %v2968
      %v3537 = vunpack.c.l.b16 %v2969
      %v3538 = vunpack.c.h.b16 %v2969
      %v3539 = vunpack.c.l.b16 %v2970
      %v3540 = vunpack.c.h.b16 %v2970
      %v3541 = vunpack.c.l.b16 %v2971
      %v3542 = vunpack.c.h.b16 %v2971
      %v3543 = vunpack.c.l.b16 %v2972
      %v3544 = vunpack.c.h.b16 %v2972
      %v3545 = vunpack.c.l.b16 %v2973
      %v3546 = vunpack.c.l.b16 %v2974
      %v3547 = vunpack.c.h.b16 %v2974
      %v3548 = vunpack.c.l.b16 %v2975
      %v3549 = vunpack.c.h.b16 %v2975
      %v3550 = vunpack.c.l.b16 %v2976
      %v3551 = vunpack.c.h.b16 %v2976
      %v3552 = vunpack.c.l.b16 %v2977
      %v3553 = vunpack.c.h.b16 %v2977
      %v3554 = vunpack.c.l.b16 %v2978
      %v3555 = vunpack.c.l.b16 %v2979
      %v3556 = vunpack.c.h.b16 %v2979
      %v3557 = vunpack.c.l.b16 %v2980
      %v3558 = vunpack.c.h.b16 %v2980
      %v3559 = vunpack.c.l.b16 %v2981
      %v3560 = vunpack.c.h.b16 %v2981
      %v3561 = vunpack.c.l.b16 %v2982
      %v3562 = vunpack.c.h.b16 %v2982
      %v3563 = vunpack.c.l.b16 %v2983
      %v3564 = vunpack.c.l.b16 %v2984
      %v3565 = vunpack.c.h.b16 %v2984
      %v3566 = vunpack.c.l.b16 %v2985
      %v3567 = vunpack.c.h.b16 %v2985
      %v3568 = vunpack.c.l.b16 %v2986
      %v3569 = vunpack.c.h.b16 %v2986
      %v3570 = vunpack.c.l.b16 %v2987
      %v3571 = vunpack.c.h.b16 %v2987
      %v3572 = vunpack.c.l.b16 %v2988
      %v3573 = vunpack.c.l.b16 %v2989
      %v3574 = vunpack.c.h.b16 %v2989
      %v3575 = vunpack.c.l.b16 %v2990
      %v3576 = vunpack.c.h.b16 %v2990
      %v3577 = vunpack.c.l.b16 %v2991
      %v3578 = vunpack.c.h.b16 %v2991
      %v3579 = vunpack.c.l.b16 %v2992
      %v3580 = vunpack.c.h.b16 %v2992
      %v3581 = vunpack.c.l.b16 %v2993
      %v3582 = vunpack.c.l.b16 %v2994
      %v3583 = vunpack.c.h.b16 %v2994
      %v3584 = vunpack.c.l.b16 %v2995
      %v3585 = vunpack.c.h.b16 %v2995
      %v3586 = vunpack.c.l.b16 %v2996
      %v3587 = vunpack.c.h.b16 %v2996
      %v3588 = vunpack.c.l.b16 %v2997
      %v3589 = vunpack.c.h.b16 %v2997
      %v3590 = vunpack.c.l.b16 %v2998
      %v3591 = vpack.c.b16 %v3312, %v3303
      %v3592 = vpack.c.b16 %v3313, %v3304
      %v3593 = vpack.c.b16 %v3314, %v3305
      %v3594 = vpack.c.b16 %v3315, %v3306
      %v3595 = vpack.c.b16 %v3316, %v3307
      %v3596 = vpack.c.b16 %v3317, %v3308
      %v3597 = vpack.c.b16 %v3318, %v3309
      %v3598 = vpack.c.b16 %v3319, %v3310
      %v3599 = vpack.c.b16 %v3320, %v3311
      %v3600 = vpack.c.b16 %v3330, %v3321
      %v3601 = vpack.c.b16 %v3331, %v3322
      %v3602 = vpack.c.b16 %v3332, %v3323
      %v3603 = vpack.c.b16 %v3333, %v3324
      %v3604 = vpack.c.b16 %v3334, %v3325
      %v3605 = vpack.c.b16 %v3335, %v3326
      %v3606 = vpack.c.b16 %v3336, %v3327
      %v3607 = vpack.c.b16 %v3337, %v3328
      %v3608 = vpack.c.b16 %v3338, %v3329
      %v3609 = vpack.c.b16 %v3348, %v3339
      %v3610 = vpack.c.b16 %v3349, %v3340
      %v3611 = vpack.c.b16 %v3350, %v3341
      %v3612 = vpack.c.b16 %v3351, %v3342
      %v3613 = vpack.c.b16 %v3352, %v3343
      %v3614 = vpack.c.b16 %v3353, %v3344
      %v3615 = vpack.c.b16 %v3354, %v3345
      %v3616 = vpack.c.b16 %v3355, %v3346
      %v3617 = vpack.c.b16 %v3356, %v3347
      %v3618 = vpack.c.b16 %v3366, %v3357
      %v3619 = vpack.c.b16 %v3367, %v3358
      %v3620 = vpack.c.b16 %v3368, %v3359
      %v3621 = vpack.c.b16 %v3369, %v3360
      %v3622 = vpack.c.b16 %v3370, %v3361
      %v3623 = vpack.c.b16 %v3371, %v3362
      %v3624 = vpack.c.b16 %v3372, %v3363
      %v3625 = vpack.c.b16 %v3373, %v3364
      %v3626 = vpack.c.b16 %v3374, %v3365
      %v3627 = vpack.c.b16 %v3384, %v3375
      %v3628 = vpack.c.b16 %v3385, %v3376
      %v3629 = vpack.c.b16 %v3386, %v3377
      %v3630 = vpack.c.b16 %v3387, %v3378
      %v3631 = vpack.c.b16 %v3388, %v3379
      %v3632 = vpack.c.b16 %v3389, %v3380
      %v3633 = vpack.c.b16 %v3390, %v3381
      %v3634 = vpack.c.b16 %v3391, %v3382
      %v3635 = vpack.c.b16 %v3392, %v3383
      %v3636 = vpack.c.b16 %v3402, %v3393
      %v3637 = vpack.c.b16 %v3403, %v3394
      %v3638 = vpack.c.b16 %v3404, %v3395
      %v3639 = vpack.c.b16 %v3405, %v3396
      %v3640 = vpack.c.b16 %v3406, %v3397
      %v3641 = vpack.c.b16 %v3407, %v3398
      %v3642 = vpack.c.b16 %v3408, %v3399
      %v3643 = vpack.c.b16 %v3409, %v3400
      %v3644 = vpack.c.b16 %v3410, %v3401
      %v3645 = vpack.c.b16 %v3420, %v3411
      %v3646 = vpack.c.b16 %v3421, %v3412
      %v3647 = vpack.c.b16 %v3422, %v3413
      %v3648 = vpack.c.b16 %v3423, %v3414
      %v3649 = vpack.c.b16 %v3424, %v3415
      %v3650 = vpack.c.b16 %v3425, %v3416
      %v3651 = vpack.c.b16 %v3426, %v3417
      %v3652 = vpack.c.b16 %v3427, %v3418
      %v3653 = vpack.c.b16 %v3428, %v3419
      %v3654 = vpack.c.b16 %v3438, %v3429
      %v3655 = vpack.c.b16 %v3439, %v3430
      %v3656 = vpack.c.b16 %v3440, %v3431
      %v3657 = vpack.c.b16 %v3441, %v3432
      %v3658 = vpack.c.b16 %v3442, %v3433
      %v3659 = vpack.c.b16 %v3443, %v3434
      %v3660 = vpack.c.b16 %v3444, %v3435
      %v3661 = vpack.c.b16 %v3445, %v3436
      %v3662 = vpack.c.b16 %v3446, %v3437
      %v3663 = vpack.c.b16 %v3456, %v3447
      %v3664 = vpack.c.b16 %v3457, %v3448
      %v3665 = vpack.c.b16 %v3458, %v3449
      %v3666 = vpack.c.b16 %v3459, %v3450
      %v3667 = vpack.c.b16 %v3460, %v3451
      %v3668 = vpack.c.b16 %v3461, %v3452
      %v3669 = vpack.c.b16 %v3462, %v3453
      %v3670 = vpack.c.b16 %v3463, %v3454
      %v3671 = vpack.c.b16 %v3464, %v3455
      %v3672 = vpack.c.b16 %v3474, %v3465
      %v3673 = vpack.c.b16 %v3475, %v3466
      %v3674 = vpack.c.b16 %v3476, %v3467
      %v3675 = vpack.c.b16 %v3477, %v3468
      %v3676 = vpack.c.b16 %v3478, %v3469
      %v3677 = vpack.c.b16 %v3479, %v3470
      %v3678 = vpack.c.b16 %v3480, %v3471
      %v3679 = vpack.c.b16 %v3481, %v3472
      %v3680 = vpack.c.b16 %v3482, %v3473
      %v3681 = vpack.c.b16 %v3492, %v3483
      %v3682 = vpack.c.b16 %v3493, %v3484
      %v3683 = vpack.c.b16 %v3494, %v3485
      %v3684 = vpack.c.b16 %v3495, %v3486
      %v3685 = vpack.c.b16 %v3496, %v3487
      %v3686 = vpack.c.b16 %v3497, %v3488
      %v3687 = vpack.c.b16 %v3498, %v3489
      %v3688 = vpack.c.b16 %v3499, %v3490
      %v3689 = vpack.c.b16 %v3500, %v3491
      %v3690 = vpack.c.b16 %v3510, %v3501
      %v3691 = vpack.c.b16 %v3511, %v3502
      %v3692 = vpack.c.b16 %v3512, %v3503
      %v3693 = vpack.c.b16 %v3513, %v3504
      %v3694 = vpack.c.b16 %v3514, %v3505
      %v3695 = vpack.c.b16 %v3515, %v3506
      %v3696 = vpack.c.b16 %v3516, %v3507
      %v3697 = vpack.c.b16 %v3517, %v3508
      %v3698 = vpack.c.b16 %v3518, %v3509
      %v3699 = vpack.c.b16 %v3528, %v3519
      %v3700 = vpack.c.b16 %v3529, %v3520
      %v3701 = vpack.c.b16 %v3530, %v3521
      %v3702 = vpack.c.b16 %v3531, %v3522
      %v3703 = vpack.c.b16 %v3532, %v3523
      %v3704 = vpack.c.b16 %v3533, %v3524
      %v3705 = vpack.c.b16 %v3534, %v3525
      %v3706 = vpack.c.b16 %v3535, %v3526
      %v3707 = vpack.c.b16 %v3536, %v3527
      %v3708 = vpack.c.b16 %v3546, %v3537
      %v3709 = vpack.c.b16 %v3547, %v3538
      %v3710 = vpack.c.b16 %v3548, %v3539
      %v3711 = vpack.c.b16 %v3549, %v3540
      %v3712 = vpack.c.b16 %v3550, %v3541
      %v3713 = vpack.c.b16 %v3551, %v3542
      %v3714 = vpack.c.b16 %v3552, %v3543
      %v3715 = vpack.c.b16 %v3553, %v3544
      %v3716 = vpack.c.b16 %v3554, %v3545
      %v3717 = vpack.c.b16 %v3564, %v3555
      %v3718 = vpack.c.b16 %v3565, %v3556
      %v3719 = vpack.c.b16 %v3566, %v3557
      %v3720 = vpack.c.b16 %v3567, %v3558
      %v3721 = vpack.c.b16 %v3568, %v3559
      %v3722 = vpack.c.b16 %v3569, %v3560
      %v3723 = vpack.c.b16 %v3570, %v3561
      %v3724 = vpack.c.b16 %v3571, %v3562
      %v3725 = vpack.c.b16 %v3572, %v3563
      %v3726 = vpack.c.b16 %v3582, %v3573
      %v3727 = vpack.c.b16 %v3583, %v3574
      %v3728 = vpack.c.b16 %v3584, %v3575
      %v3729 = vpack.c.b16 %v3585, %v3576
      %v3730 = vpack.c.b16 %v3586, %v3577
      %v3731 = vpack.c.b16 %v3587, %v3578
      %v3732 = vpack.c.b16 %v3588, %v3579
      %v3733 = vpack.c.b16 %v3589, %v3580
      %v3734 = vpack.c.b16 %v3590, %v3581
      %v4023 = vunpack.c.l.b16 %v2999
      %v4024 = vunpack.c.l.b16 %v3000
      %v4025 = vunpack.c.l.b16 %v3001
      %v4026 = vunpack.c.l.b16 %v3002
      %v4027 = vunpack.c.l.b16 %v3003
      %v4028 = vunpack.c.l.b16 %v3004
      %v4029 = vunpack.c.l.b16 %v3005
      %v4030 = vunpack.c.l.b16 %v3006
      %v4031 = vunpack.c.l.b16 %v3007
      %v4032 = vunpack.c.l.b16 %v3008
      %v4033 = vunpack.c.l.b16 %v3009
      %v4034 = vunpack.c.l.b16 %v3010
      %v4035 = vunpack.c.l.b16 %v3011
      %v4036 = vunpack.c.l.b16 %v3012
      %v4037 = vunpack.c.l.b16 %v3013
      %v4038 = vunpack.c.l.b16 %v3014
      %v4039 = vunpack.c.l.b16 %v3015
      %v4040 = vunpack.c.l.b16 %v3016
      %v4041 = vunpack.c.l.b16 %v3017
      %v4042 = vunpack.c.l.b16 %v3018
      %v4043 = vunpack.c.l.b16 %v3019
      %v4044 = vunpack.c.l.b16 %v3020
      %v4045 = vunpack.c.l.b16 %v3021
      %v4046 = vunpack.c.l.b16 %v3022
      %v4047 = vunpack.c.l.b16 %v3023
      %v4048 = vunpack.c.l.b16 %v3024
      %v4049 = vunpack.c.l.b16 %v3025
      %v4050 = vunpack.c.l.b16 %v3026
      %v4051 = vunpack.c.l.b16 %v3027
      %v4052 = vunpack.c.l.b16 %v3028
      %v4053 = vunpack.c.l.b16 %v3029
      %v4054 = vunpack.c.l.b16 %v3030
      %v4055 = vunpack.c.l.b16 %v3031
      %v4056 = vunpack.c.l.b16 %v3032
      %v4057 = vunpack.c.l.b16 %v3033
      %v4058 = vunpack.c.l.b16 %v3034
      %v4059 = vunpack.c.l.b16 %v3035
      %v4060 = vunpack.c.l.b16 %v3036
      %v4061 = vunpack.c.l.b16 %v3037
      %v4062 = vunpack.c.l.b16 %v3038
      %v4063 = vunpack.c.l.b16 %v3039
      %v4064 = vunpack.c.l.b16 %v3040
      %v4065 = vunpack.c.l.b16 %v3041
      %v4066 = vunpack.c.l.b16 %v3042
      %v4067 = vunpack.c.l.b16 %v3043
      %v4068 = vunpack.c.l.b16 %v3044
      %v4069 = vunpack.c.l.b16 %v3045
      %v4070 = vunpack.c.l.b16 %v3046
      %v4071 = vunpack.c.l.b16 %v3047
      %v4072 = vunpack.c.l.b16 %v3048
      %v4073 = vunpack.c.l.b16 %v3049
      %v4074 = vunpack.c.l.b16 %v3050
      %v4075 = vunpack.c.l.b16 %v3051
      %v4076 = vunpack.c.l.b16 %v3052
      %v4077 = vunpack.c.l.b16 %v3053
      %v4078 = vunpack.c.l.b16 %v3054
      %v4079 = vunpack.c.l.b16 %v3055
      %v4080 = vunpack.c.l.b16 %v3056
      %v4081 = vunpack.c.l.b16 %v3057
      %v4082 = vunpack.c.l.b16 %v3058
      %v4083 = vunpack.c.l.b16 %v3059
      %v4084 = vunpack.c.l.b16 %v3060
      %v4085 = vunpack.c.l.b16 %v3061
      %v4086 = vunpack.c.l.b16 %v3062
      %v4087 = vunpack.c.l.b16 %v3063
      %v4088 = vunpack.c.l.b16 %v3064
      %v4089 = vunpack.c.l.b16 %v3065
      %v4090 = vunpack.c.l.b16 %v3066
      %v4091 = vunpack.c.l.b16 %v3067
      %v4092 = vunpack.c.l.b16 %v3068
      %v4093 = vunpack.c.l.b16 %v3069
      %v4094 = vunpack.c.l.b16 %v3070
      %v4095 = vunpack.c.l.b16 %v3071
      %v4096 = vunpack.c.l.b16 %v3072
      %v4097 = vunpack.c.l.b16 %v3073
      %v4098 = vunpack.c.l.b16 %v3074
      %v4099 = vunpack.c.l.b16 %v3075
      %v4100 = vunpack.c.l.b16 %v3076
      %v4101 = vunpack.c.l.b16 %v3077
      %v4102 = vunpack.c.l.b16 %v3078
      %v4103 = vunpack.c.l.b16 %v3079
      %v4104 = vunpack.c.l.b16 %v3080
      %v4105 = vunpack.c.l.b16 %v3081
      %v4106 = vunpack.c.l.b16 %v3082
      %v4107 = vunpack.c.l.b16 %v3083
      %v4108 = vunpack.c.l.b16 %v3084
      %v4109 = vunpack.c.l.b16 %v3085
      %v4110 = vunpack.c.l.b16 %v3086
      %v4111 = vunpack.c.l.b16 %v3087
      %v4112 = vunpack.c.l.b16 %v3088
      %v4113 = vunpack.c.l.b16 %v3089
      %v4114 = vunpack.c.l.b16 %v3090
      %v4115 = vunpack.c.l.b16 %v3091
      %v4116 = vunpack.c.l.b16 %v3092
      %v4117 = vunpack.c.l.b16 %v3093
      %v4118 = vunpack.c.l.b16 %v3094
      %v4119 = vunpack.c.l.b16 %v3095
      %v4120 = vunpack.c.l.b16 %v3096
      %v4121 = vunpack.c.l.b16 %v3097
      %v4122 = vunpack.c.l.b16 %v3098
      %v4123 = vunpack.c.l.b16 %v3099
      %v4124 = vunpack.c.l.b16 %v3100
      %v4125 = vunpack.c.l.b16 %v3101
      %v4126 = vunpack.c.l.b16 %v3102
      %v4127 = vunpack.c.l.b16 %v3103
      %v4128 = vunpack.c.l.b16 %v3104
      %v4129 = vunpack.c.l.b16 %v3105
      %v4130 = vunpack.c.l.b16 %v3106
      %v4131 = vunpack.c.l.b16 %v3107
      %v4132 = vunpack.c.l.b16 %v3108
      %v4133 = vunpack.c.l.b16 %v3109
      %v4134 = vunpack.c.l.b16 %v3110
      %v4135 = vunpack.c.l.b16 %v3111
      %v4136 = vunpack.c.l.b16 %v3112
      %v4137 = vunpack.c.l.b16 %v3113
      %v4138 = vunpack.c.l.b16 %v3114
      %v4139 = vunpack.c.l.b16 %v3115
      %v4140 = vunpack.c.l.b16 %v3116
      %v4141 = vunpack.c.l.b16 %v3117
      %v4142 = vunpack.c.l.b16 %v3118
      %v4143 = vunpack.c.l.b16 %v3119
      %v4144 = vunpack.c.l.b16 %v3120
      %v4145 = vunpack.c.l.b16 %v3121
      %v4146 = vunpack.c.l.b16 %v3122
      %v4147 = vunpack.c.l.b16 %v3123
      %v4148 = vunpack.c.l.b16 %v3124
      %v4149 = vunpack.c.l.b16 %v3125
      %v4150 = vunpack.c.l.b16 %v3126
      %v4151 = vunpack.c.l.b16 %v3127
      %v4152 = vunpack.c.l.b16 %v3128
      %v4153 = vunpack.c.l.b16 %v3129
      %v4154 = vunpack.c.l.b16 %v3130
      %v4155 = vunpack.c.l.b16 %v3131
      %v4156 = vunpack.c.l.b16 %v3132
      %v4157 = vunpack.c.l.b16 %v3133
      %v4158 = vunpack.c.l.b16 %v3134
      %v4159 = vunpack.c.l.b16 %v3135
      %v4160 = vunpack.c.l.b16 %v3136
      %v4161 = vunpack.c.l.b16 %v3137
      %v4162 = vunpack.c.l.b16 %v3138
      %v4163 = vunpack.c.l.b16 %v3139
      %v4164 = vunpack.c.l.b16 %v3140
      %v4165 = vunpack.c.l.b16 %v3141
      %v4166 = vunpack.c.l.b16 %v3142
      %v4167 = vpack.c.b16 %v4024, %v4023
      %v4168 = vpack.c.b16 %v4026, %v4025
      %v4169 = vpack.c.b16 %v4028, %v4027
      %v4170 = vpack.c.b16 %v4030, %v4029
      %v4171 = vpack.c.b16 %v4032, %v4031
      %v4172 = vpack.c.b16 %v4034, %v4033
      %v4173 = vpack.c.b16 %v4036, %v4035
      %v4174 = vpack.c.b16 %v4038, %v4037
      %v4175 = vpack.c.b16 %v4040, %v4039
      %v4176 = vpack.c.b16 %v4042, %v4041
      %v4177 = vpack.c.b16 %v4044, %v4043
      %v4178 = vpack.c.b16 %v4046, %v4045
      %v4179 = vpack.c.b16 %v4048, %v4047
      %v4180 = vpack.c.b16 %v4050, %v4049
      %v4181 = vpack.c.b16 %v4052, %v4051
      %v4182 = vpack.c.b16 %v4054, %v4053
      %v4183 = vpack.c.b16 %v4056, %v4055
      %v4184 = vpack.c.b16 %v4058, %v4057
      %v4185 = vpack.c.b16 %v4060, %v4059
      %v4186 = vpack.c.b16 %v4062, %v4061
      %v4187 = vpack.c.b16 %v4064, %v4063
      %v4188 = vpack.c.b16 %v4066, %v4065
      %v4189 = vpack.c.b16 %v4068, %v4067
      %v4190 = vpack.c.b16 %v4070, %v4069
      %v4191 = vpack.c.b16 %v4072, %v4071
      %v4192 = vpack.c.b16 %v4074, %v4073
      %v4193 = vpack.c.b16 %v4076, %v4075
      %v4194 = vpack.c.b16 %v4078, %v4077
      %v4195 = vpack.c.b16 %v4080, %v4079
      %v4196 = vpack.c.b16 %v4082, %v4081
      %v4197 = vpack.c.b16 %v4084, %v4083
      %v4198 = vpack.c.b16 %v4086, %v4085
      %v4199 = vpack.c.b16 %v4088, %v4087
      %v4200 = vpack.c.b16 %v4090, %v4089
      %v4201 = vpack.c.b16 %v4092, %v4091
      %v4202 = vpack.c.b16 %v4094, %v4093
      %v4203 = vpack.c.b16 %v4096, %v4095
      %v4204 = vpack.c.b16 %v4098, %v4097
      %v4205 = vpack.c.b16 %v4100, %v4099
      %v4206 = vpack.c.b16 %v4102, %v4101
      %v4207 = vpack.c.b16 %v4104, %v4103
      %v4208 = vpack.c.b16 %v4106, %v4105
      %v4209 = vpack.c.b16 %v4108, %v4107
      %v4210 = vpack.c.b16 %v4110, %v4109
      %v4211 = vpack.c.b16 %v4112, %v4111
      %v4212 = vpack.c.b16 %v4114, %v4113
      %v4213 = vpack.c.b16 %v4116, %v4115
      %v4214 = vpack.c.b16 %v4118, %v4117
      %v4215 = vpack.c.b16 %v4120, %v4119
      %v4216 = vpack.c.b16 %v4122, %v4121
      %v4217 = vpack.c.b16 %v4124, %v4123
      %v4218 = vpack.c.b16 %v4126, %v4125
      %v4219 = vpack.c.b16 %v4128, %v4127
      %v4220 = vpack.c.b16 %v4130, %v4129
      %v4221 = vpack.c.b16 %v4132, %v4131
      %v4222 = vpack.c.b16 %v4134, %v4133
      %v4223 = vpack.c.b16 %v4136, %v4135
      %v4224 = vpack.c.b16 %v4138, %v4137
      %v4225 = vpack.c.b16 %v4140, %v4139
      %v4226 = vpack.c.b16 %v4142, %v4141
      %v4227 = vpack.c.b16 %v4144, %v4143
      %v4228 = vpack.c.b16 %v4146, %v4145
      %v4229 = vpack.c.b16 %v4148, %v4147
      %v4230 = vpack.c.b16 %v4150, %v4149
      %v4231 = vpack.c.b16 %v4152, %v4151
      %v4232 = vpack.c.b16 %v4154, %v4153
      %v4233 = vpack.c.b16 %v4156, %v4155
      %v4234 = vpack.c.b16 %v4158, %v4157
      %v4235 = vpack.c.b16 %v4160, %v4159
      %v4236 = vpack.c.b16 %v4162, %v4161
      %v4237 = vpack.c.b16 %v4164, %v4163
      %v4238 = vpack.c.b16 %v4166, %v4165
      %4311 = vmatpush.bf16.msra.mxu0 %v4174
      %4312 = vmatpush.bf16.msra.mxu0 %v4173
      %4313 = vmatpush.bf16.msra.mxu0 %v4172
      %4314 = vmatpush.bf16.msra.mxu0 %v4171
      %4315 = vmatpush.bf16.msra.mxu0 %v4170
      %4316 = vmatpush.bf16.msra.mxu0 %v4169
      %4317 = vmatpush.bf16.msra.mxu0 %v4168
      %4318 = vmatpush.bf16.msra.mxu0 %v4167
      %4319 = vmatmul.bf16.gmra.mxu0 %v3591
      %v4320 = vpop.f32.mrf.mxu0
      %v4321 = vadd.f32 0.0, %v4320
      %v4322 = vpop.f32.mrf.mxu0
      %v4323 = vadd.f32 0.0, %v4322
      %4324 = vmatmul.bf16.gmra.mxu0 %v3600
      %v4325 = vpop.f32.mrf.mxu0
      %v4326 = vadd.f32 0.0, %v4325
      %v4327 = vpop.f32.mrf.mxu0
      %v4328 = vadd.f32 0.0, %v4327
      %4329 = vmatmul.bf16.gmra.mxu0 %v3609
      %v4330 = vpop.f32.mrf.mxu0
      %v4331 = vadd.f32 0.0, %v4330
      %v4332 = vpop.f32.mrf.mxu0
      %v4333 = vadd.f32 0.0, %v4332
      %4334 = vmatmul.bf16.gmra.mxu0 %v3618
      %v4335 = vpop.f32.mrf.mxu0
      %v4336 = vadd.f32 0.0, %v4335
      %v4337 = vpop.f32.mrf.mxu0
      %v4338 = vadd.f32 0.0, %v4337
      %4339 = vmatmul.bf16.gmra.mxu0 %v3627
      %v4340 = vpop.f32.mrf.mxu0
      %v4341 = vadd.f32 0.0, %v4340
      %v4342 = vpop.f32.mrf.mxu0
      %v4343 = vadd.f32 0.0, %v4342
      %4344 = vmatmul.bf16.gmra.mxu0 %v3636
      %v4345 = vpop.f32.mrf.mxu0
      %v4346 = vadd.f32 0.0, %v4345
      %v4347 = vpop.f32.mrf.mxu0
      %v4348 = vadd.f32 0.0, %v4347
      %4349 = vmatmul.bf16.gmra.mxu0 %v3645
      %v4350 = vpop.f32.mrf.mxu0
      %v4351 = vadd.f32 0.0, %v4350
      %v4352 = vpop.f32.mrf.mxu0
      %v4353 = vadd.f32 0.0, %v4352
      %4354 = vmatmul.bf16.gmra.mxu0 %v3654
      %v4355 = vpop.f32.mrf.mxu0
      %v4356 = vadd.f32 0.0, %v4355
      %v4357 = vpop.f32.mrf.mxu0
      %v4358 = vadd.f32 0.0, %v4357
      %4359 = vmatmul.bf16.gmra.mxu0 %v3663
      %v4360 = vpop.f32.mrf.mxu0
      %v4361 = vadd.f32 0.0, %v4360
      %v4362 = vpop.f32.mrf.mxu0
      %v4363 = vadd.f32 0.0, %v4362
      %4364 = vmatmul.bf16.gmra.mxu0 %v3672
      %v4365 = vpop.f32.mrf.mxu0
      %v4366 = vadd.f32 0.0, %v4365
      %v4367 = vpop.f32.mrf.mxu0
      %v4368 = vadd.f32 0.0, %v4367
      %4369 = vmatmul.bf16.gmra.mxu0 %v3681
      %v4370 = vpop.f32.mrf.mxu0
      %v4371 = vadd.f32 0.0, %v4370
      %v4372 = vpop.f32.mrf.mxu0
      %v4373 = vadd.f32 0.0, %v4372
      %4374 = vmatmul.bf16.gmra.mxu0 %v3690
      %v4375 = vpop.f32.mrf.mxu0
      %v4376 = vadd.f32 0.0, %v4375
      %v4377 = vpop.f32.mrf.mxu0
      %v4378 = vadd.f32 0.0, %v4377
      %4379 = vmatmul.bf16.gmra.mxu0 %v3699
      %v4380 = vpop.f32.mrf.mxu0
      %v4381 = vadd.f32 0.0, %v4380
      %v4382 = vpop.f32.mrf.mxu0
      %v4383 = vadd.f32 0.0, %v4382
      %4384 = vmatmul.bf16.gmra.mxu0 %v3708
      %v4385 = vpop.f32.mrf.mxu0
      %v4386 = vadd.f32 0.0, %v4385
      %v4387 = vpop.f32.mrf.mxu0
      %v4388 = vadd.f32 0.0, %v4387
      %4389 = vmatmul.bf16.gmra.mxu0 %v3717
      %v4390 = vpop.f32.mrf.mxu0
      %v4391 = vadd.f32 0.0, %v4390
      %v4392 = vpop.f32.mrf.mxu0
      %v4393 = vadd.f32 0.0, %v4392
      %4394 = vmatmul.bf16.gmra.mxu0 %v3726
      %v4395 = vpop.f32.mrf.mxu0
      %v4396 = vadd.f32 0.0, %v4395
      %v4397 = vpop.f32.mrf.mxu0
      %v4398 = vadd.f32 0.0, %v4397
      %4399 = vdwg.mxu0
      %4400 = vmatpush.bf16.msra.mxu0 %v4182
      %4401 = vmatpush.bf16.msra.mxu0 %v4181
      %4402 = vmatpush.bf16.msra.mxu0 %v4180
      %4403 = vmatpush.bf16.msra.mxu0 %v4179
      %4404 = vmatpush.bf16.msra.mxu0 %v4178
      %4405 = vmatpush.bf16.msra.mxu0 %v4177
      %4406 = vmatpush.bf16.msra.mxu0 %v4176
      %4407 = vmatpush.bf16.msra.mxu0 %v4175
      %4408 = vmatmul.bf16.gmra.mxu0 %v3592
      %v4409 = vpop.f32.mrf.mxu0
      %v4410 = vadd.f32 %v4321, %v4409
      %v4411 = vpop.f32.mrf.mxu0
      %v4412 = vadd.f32 %v4323, %v4411
      %4413 = vmatmul.bf16.gmra.mxu0 %v3601
      %v4414 = vpop.f32.mrf.mxu0
      %v4415 = vadd.f32 %v4326, %v4414
      %v4416 = vpop.f32.mrf.mxu0
      %v4417 = vadd.f32 %v4328, %v4416
      %4418 = vmatmul.bf16.gmra.mxu0 %v3610
      %v4419 = vpop.f32.mrf.mxu0
      %v4420 = vadd.f32 %v4331, %v4419
      %v4421 = vpop.f32.mrf.mxu0
      %v4422 = vadd.f32 %v4333, %v4421
      %4423 = vmatmul.bf16.gmra.mxu0 %v3619
      %v4424 = vpop.f32.mrf.mxu0
      %v4425 = vadd.f32 %v4336, %v4424
      %v4426 = vpop.f32.mrf.mxu0
      %v4427 = vadd.f32 %v4338, %v4426
      %4428 = vmatmul.bf16.gmra.mxu0 %v3628
      %v4429 = vpop.f32.mrf.mxu0
      %v4430 = vadd.f32 %v4341, %v4429
      %v4431 = vpop.f32.mrf.mxu0
      %v4432 = vadd.f32 %v4343, %v4431
      %4433 = vmatmul.bf16.gmra.mxu0 %v3637
      %v4434 = vpop.f32.mrf.mxu0
      %v4435 = vadd.f32 %v4346, %v4434
      %v4436 = vpop.f32.mrf.mxu0
      %v4437 = vadd.f32 %v4348, %v4436
      %4438 = vmatmul.bf16.gmra.mxu0 %v3646
      %v4439 = vpop.f32.mrf.mxu0
      %v4440 = vadd.f32 %v4351, %v4439
      %v4441 = vpop.f32.mrf.mxu0
      %v4442 = vadd.f32 %v4353, %v4441
      %4443 = vmatmul.bf16.gmra.mxu0 %v3655
      %v4444 = vpop.f32.mrf.mxu0
      %v4445 = vadd.f32 %v4356, %v4444
      %v4446 = vpop.f32.mrf.mxu0
      %v4447 = vadd.f32 %v4358, %v4446
      %4448 = vmatmul.bf16.gmra.mxu0 %v3664
      %v4449 = vpop.f32.mrf.mxu0
      %v4450 = vadd.f32 %v4361, %v4449
      %v4451 = vpop.f32.mrf.mxu0
      %v4452 = vadd.f32 %v4363, %v4451
      %4453 = vmatmul.bf16.gmra.mxu0 %v3673
      %v4454 = vpop.f32.mrf.mxu0
      %v4455 = vadd.f32 %v4366, %v4454
      %v4456 = vpop.f32.mrf.mxu0
      %v4457 = vadd.f32 %v4368, %v4456
      %4458 = vmatmul.bf16.gmra.mxu0 %v3682
      %v4459 = vpop.f32.mrf.mxu0
      %v4460 = vadd.f32 %v4371, %v4459
      %v4461 = vpop.f32.mrf.mxu0
      %v4462 = vadd.f32 %v4373, %v4461
      %4463 = vmatmul.bf16.gmra.mxu0 %v3691
      %v4464 = vpop.f32.mrf.mxu0
      %v4465 = vadd.f32 %v4376, %v4464
      %v4466 = vpop.f32.mrf.mxu0
      %v4467 = vadd.f32 %v4378, %v4466
      %4468 = vmatmul.bf16.gmra.mxu0 %v3700
      %v4469 = vpop.f32.mrf.mxu0
      %v4470 = vadd.f32 %v4381, %v4469
      %v4471 = vpop.f32.mrf.mxu0
      %v4472 = vadd.f32 %v4383, %v4471
      %4473 = vmatmul.bf16.gmra.mxu0 %v3709
      %v4474 = vpop.f32.mrf.mxu0
      %v4475 = vadd.f32 %v4386, %v4474
      %v4476 = vpop.f32.mrf.mxu0
      %v4477 = vadd.f32 %v4388, %v4476
      %4478 = vmatmul.bf16.gmra.mxu0 %v3718
      %v4479 = vpop.f32.mrf.mxu0
      %v4480 = vadd.f32 %v4391, %v4479
      %v4481 = vpop.f32.mrf.mxu0
      %v4482 = vadd.f32 %v4393, %v4481
      %4483 = vmatmul.bf16.gmra.mxu0 %v3727
      %v4484 = vpop.f32.mrf.mxu0
      %v4485 = vadd.f32 %v4396, %v4484
      %v4486 = vpop.f32.mrf.mxu0
      %v4487 = vadd.f32 %v4398, %v4486
      %4488 = vdwg.mxu0
      %4489 = vmatpush.bf16.msra.mxu0 %v4190
      %4490 = vmatpush.bf16.msra.mxu0 %v4189
      %4491 = vmatpush.bf16.msra.mxu0 %v4188
      %4492 = vmatpush.bf16.msra.mxu0 %v4187
      %4493 = vmatpush.bf16.msra.mxu0 %v4186
      %4494 = vmatpush.bf16.msra.mxu0 %v4185
      %4495 = vmatpush.bf16.msra.mxu0 %v4184
      %4496 = vmatpush.bf16.msra.mxu0 %v4183
      %4497 = vmatmul.bf16.gmra.mxu0 %v3593
      %v4498 = vpop.f32.mrf.mxu0
      %v4499 = vadd.f32 %v4410, %v4498
      %v4500 = vpop.f32.mrf.mxu0
      %v4501 = vadd.f32 %v4412, %v4500
      %4502 = vmatmul.bf16.gmra.mxu0 %v3602
      %v4503 = vpop.f32.mrf.mxu0
      %v4504 = vadd.f32 %v4415, %v4503
      %v4505 = vpop.f32.mrf.mxu0
      %v4506 = vadd.f32 %v4417, %v4505
      %4507 = vmatmul.bf16.gmra.mxu0 %v3611
      %v4508 = vpop.f32.mrf.mxu0
      %v4509 = vadd.f32 %v4420, %v4508
      %v4510 = vpop.f32.mrf.mxu0
      %v4511 = vadd.f32 %v4422, %v4510
      %4512 = vmatmul.bf16.gmra.mxu0 %v3620
      %v4513 = vpop.f32.mrf.mxu0
      %v4514 = vadd.f32 %v4425, %v4513
      %v4515 = vpop.f32.mrf.mxu0
      %v4516 = vadd.f32 %v4427, %v4515
      %4517 = vmatmul.bf16.gmra.mxu0 %v3629
      %v4518 = vpop.f32.mrf.mxu0
      %v4519 = vadd.f32 %v4430, %v4518
      %v4520 = vpop.f32.mrf.mxu0
      %v4521 = vadd.f32 %v4432, %v4520
      %4522 = vmatmul.bf16.gmra.mxu0 %v3638
      %v4523 = vpop.f32.mrf.mxu0
      %v4524 = vadd.f32 %v4435, %v4523
      %v4525 = vpop.f32.mrf.mxu0
      %v4526 = vadd.f32 %v4437, %v4525
      %4527 = vmatmul.bf16.gmra.mxu0 %v3647
      %v4528 = vpop.f32.mrf.mxu0
      %v4529 = vadd.f32 %v4440, %v4528
      %v4530 = vpop.f32.mrf.mxu0
      %v4531 = vadd.f32 %v4442, %v4530
      %4532 = vmatmul.bf16.gmra.mxu0 %v3656
      %v4533 = vpop.f32.mrf.mxu0
      %v4534 = vadd.f32 %v4445, %v4533
      %v4535 = vpop.f32.mrf.mxu0
      %v4536 = vadd.f32 %v4447, %v4535
      %4537 = vmatmul.bf16.gmra.mxu0 %v3665
      %v4538 = vpop.f32.mrf.mxu0
      %v4539 = vadd.f32 %v4450, %v4538
      %v4540 = vpop.f32.mrf.mxu0
      %v4541 = vadd.f32 %v4452, %v4540
      %4542 = vmatmul.bf16.gmra.mxu0 %v3674
      %v4543 = vpop.f32.mrf.mxu0
      %v4544 = vadd.f32 %v4455, %v4543
      %v4545 = vpop.f32.mrf.mxu0
      %v4546 = vadd.f32 %v4457, %v4545
      %4547 = vmatmul.bf16.gmra.mxu0 %v3683
      %v4548 = vpop.f32.mrf.mxu0
      %v4549 = vadd.f32 %v4460, %v4548
      %v4550 = vpop.f32.mrf.mxu0
      %v4551 = vadd.f32 %v4462, %v4550
      %4552 = vmatmul.bf16.gmra.mxu0 %v3692
      %v4553 = vpop.f32.mrf.mxu0
      %v4554 = vadd.f32 %v4465, %v4553
      %v4555 = vpop.f32.mrf.mxu0
      %v4556 = vadd.f32 %v4467, %v4555
      %4557 = vmatmul.bf16.gmra.mxu0 %v3701
      %v4558 = vpop.f32.mrf.mxu0
      %v4559 = vadd.f32 %v4470, %v4558
      %v4560 = vpop.f32.mrf.mxu0
      %v4561 = vadd.f32 %v4472, %v4560
      %4562 = vmatmul.bf16.gmra.mxu0 %v3710
      %v4563 = vpop.f32.mrf.mxu0
      %v4564 = vadd.f32 %v4475, %v4563
      %v4565 = vpop.f32.mrf.mxu0
      %v4566 = vadd.f32 %v4477, %v4565
      %4567 = vmatmul.bf16.gmra.mxu0 %v3719
      %v4568 = vpop.f32.mrf.mxu0
      %v4569 = vadd.f32 %v4480, %v4568
      %v4570 = vpop.f32.mrf.mxu0
      %v4571 = vadd.f32 %v4482, %v4570
      %4572 = vmatmul.bf16.gmra.mxu0 %v3728
      %v4573 = vpop.f32.mrf.mxu0
      %v4574 = vadd.f32 %v4485, %v4573
      %v4575 = vpop.f32.mrf.mxu0
      %v4576 = vadd.f32 %v4487, %v4575
      %4577 = vdwg.mxu0
      %4578 = vmatpush.bf16.msra.mxu0 %v4198
      %4579 = vmatpush.bf16.msra.mxu0 %v4197
      %4580 = vmatpush.bf16.msra.mxu0 %v4196
      %4581 = vmatpush.bf16.msra.mxu0 %v4195
      %4582 = vmatpush.bf16.msra.mxu0 %v4194
      %4583 = vmatpush.bf16.msra.mxu0 %v4193
      %4584 = vmatpush.bf16.msra.mxu0 %v4192
      %4585 = vmatpush.bf16.msra.mxu0 %v4191
      %4586 = vmatmul.bf16.gmra.mxu0 %v3594
      %v4587 = vpop.f32.mrf.mxu0
      %v4588 = vadd.f32 %v4499, %v4587
      %v4589 = vpop.f32.mrf.mxu0
      %v4590 = vadd.f32 %v4501, %v4589
      %4591 = vmatmul.bf16.gmra.mxu0 %v3603
      %v4592 = vpop.f32.mrf.mxu0
      %v4593 = vadd.f32 %v4504, %v4592
      %v4594 = vpop.f32.mrf.mxu0
      %v4595 = vadd.f32 %v4506, %v4594
      %4596 = vmatmul.bf16.gmra.mxu0 %v3612
      %v4597 = vpop.f32.mrf.mxu0
      %v4598 = vadd.f32 %v4509, %v4597
      %v4599 = vpop.f32.mrf.mxu0
      %v4600 = vadd.f32 %v4511, %v4599
      %4601 = vmatmul.bf16.gmra.mxu0 %v3621
      %v4602 = vpop.f32.mrf.mxu0
      %v4603 = vadd.f32 %v4514, %v4602
      %v4604 = vpop.f32.mrf.mxu0
      %v4605 = vadd.f32 %v4516, %v4604
      %4606 = vmatmul.bf16.gmra.mxu0 %v3630
      %v4607 = vpop.f32.mrf.mxu0
      %v4608 = vadd.f32 %v4519, %v4607
      %v4609 = vpop.f32.mrf.mxu0
      %v4610 = vadd.f32 %v4521, %v4609
      %4611 = vmatmul.bf16.gmra.mxu0 %v3639
      %v4612 = vpop.f32.mrf.mxu0
      %v4613 = vadd.f32 %v4524, %v4612
      %v4614 = vpop.f32.mrf.mxu0
      %v4615 = vadd.f32 %v4526, %v4614
      %4616 = vmatmul.bf16.gmra.mxu0 %v3648
      %v4617 = vpop.f32.mrf.mxu0
      %v4618 = vadd.f32 %v4529, %v4617
      %v4619 = vpop.f32.mrf.mxu0
      %v4620 = vadd.f32 %v4531, %v4619
      %4621 = vmatmul.bf16.gmra.mxu0 %v3657
      %v4622 = vpop.f32.mrf.mxu0
      %v4623 = vadd.f32 %v4534, %v4622
      %v4624 = vpop.f32.mrf.mxu0
      %v4625 = vadd.f32 %v4536, %v4624
      %4626 = vmatmul.bf16.gmra.mxu0 %v3666
      %v4627 = vpop.f32.mrf.mxu0
      %v4628 = vadd.f32 %v4539, %v4627
      %v4629 = vpop.f32.mrf.mxu0
      %v4630 = vadd.f32 %v4541, %v4629
      %4631 = vmatmul.bf16.gmra.mxu0 %v3675
      %v4632 = vpop.f32.mrf.mxu0
      %v4633 = vadd.f32 %v4544, %v4632
      %v4634 = vpop.f32.mrf.mxu0
      %v4635 = vadd.f32 %v4546, %v4634
      %4636 = vmatmul.bf16.gmra.mxu0 %v3684
      %v4637 = vpop.f32.mrf.mxu0
      %v4638 = vadd.f32 %v4549, %v4637
      %v4639 = vpop.f32.mrf.mxu0
      %v4640 = vadd.f32 %v4551, %v4639
      %4641 = vmatmul.bf16.gmra.mxu0 %v3693
      %v4642 = vpop.f32.mrf.mxu0
      %v4643 = vadd.f32 %v4554, %v4642
      %v4644 = vpop.f32.mrf.mxu0
      %v4645 = vadd.f32 %v4556, %v4644
      %4646 = vmatmul.bf16.gmra.mxu0 %v3702
      %v4647 = vpop.f32.mrf.mxu0
      %v4648 = vadd.f32 %v4559, %v4647
      %v4649 = vpop.f32.mrf.mxu0
      %v4650 = vadd.f32 %v4561, %v4649
      %4651 = vmatmul.bf16.gmra.mxu0 %v3711
      %v4652 = vpop.f32.mrf.mxu0
      %v4653 = vadd.f32 %v4564, %v4652
      %v4654 = vpop.f32.mrf.mxu0
      %v4655 = vadd.f32 %v4566, %v4654
      %4656 = vmatmul.bf16.gmra.mxu0 %v3720
      %v4657 = vpop.f32.mrf.mxu0
      %v4658 = vadd.f32 %v4569, %v4657
      %v4659 = vpop.f32.mrf.mxu0
      %v4660 = vadd.f32 %v4571, %v4659
      %4661 = vmatmul.bf16.gmra.mxu0 %v3729
      %v4662 = vpop.f32.mrf.mxu0
      %v4663 = vadd.f32 %v4574, %v4662
      %v4664 = vpop.f32.mrf.mxu0
      %v4665 = vadd.f32 %v4576, %v4664
      %4666 = vdwg.mxu0
      %4667 = vmatpush.bf16.msra.mxu0 %v4206
      %4668 = vmatpush.bf16.msra.mxu0 %v4205
      %4669 = vmatpush.bf16.msra.mxu0 %v4204
      %4670 = vmatpush.bf16.msra.mxu0 %v4203
      %4671 = vmatpush.bf16.msra.mxu0 %v4202
      %4672 = vmatpush.bf16.msra.mxu0 %v4201
      %4673 = vmatpush.bf16.msra.mxu0 %v4200
      %4674 = vmatpush.bf16.msra.mxu0 %v4199
      %4675 = vmatmul.bf16.gmra.mxu0 %v3595
      %v4676 = vpop.f32.mrf.mxu0
      %v4677 = vadd.f32 %v4588, %v4676
      %v4678 = vpop.f32.mrf.mxu0
      %v4679 = vadd.f32 %v4590, %v4678
      %4680 = vmatmul.bf16.gmra.mxu0 %v3604
      %v4681 = vpop.f32.mrf.mxu0
      %v4682 = vadd.f32 %v4593, %v4681
      %v4683 = vpop.f32.mrf.mxu0
      %v4684 = vadd.f32 %v4595, %v4683
      %4685 = vmatmul.bf16.gmra.mxu0 %v3613
      %v4686 = vpop.f32.mrf.mxu0
      %v4687 = vadd.f32 %v4598, %v4686
      %v4688 = vpop.f32.mrf.mxu0
      %v4689 = vadd.f32 %v4600, %v4688
      %4690 = vmatmul.bf16.gmra.mxu0 %v3622
      %v4691 = vpop.f32.mrf.mxu0
      %v4692 = vadd.f32 %v4603, %v4691
      %v4693 = vpop.f32.mrf.mxu0
      %v4694 = vadd.f32 %v4605, %v4693
      %4695 = vmatmul.bf16.gmra.mxu0 %v3631
      %v4696 = vpop.f32.mrf.mxu0
      %v4697 = vadd.f32 %v4608, %v4696
      %v4698 = vpop.f32.mrf.mxu0
      %v4699 = vadd.f32 %v4610, %v4698
      %4700 = vmatmul.bf16.gmra.mxu0 %v3640
      %v4701 = vpop.f32.mrf.mxu0
      %v4702 = vadd.f32 %v4613, %v4701
      %v4703 = vpop.f32.mrf.mxu0
      %v4704 = vadd.f32 %v4615, %v4703
      %4705 = vmatmul.bf16.gmra.mxu0 %v3649
      %v4706 = vpop.f32.mrf.mxu0
      %v4707 = vadd.f32 %v4618, %v4706
      %v4708 = vpop.f32.mrf.mxu0
      %v4709 = vadd.f32 %v4620, %v4708
      %4710 = vmatmul.bf16.gmra.mxu0 %v3658
      %v4711 = vpop.f32.mrf.mxu0
      %v4712 = vadd.f32 %v4623, %v4711
      %v4713 = vpop.f32.mrf.mxu0
      %v4714 = vadd.f32 %v4625, %v4713
      %4715 = vmatmul.bf16.gmra.mxu0 %v3667
      %v4716 = vpop.f32.mrf.mxu0
      %v4717 = vadd.f32 %v4628, %v4716
      %v4718 = vpop.f32.mrf.mxu0
      %v4719 = vadd.f32 %v4630, %v4718
      %4720 = vmatmul.bf16.gmra.mxu0 %v3676
      %v4721 = vpop.f32.mrf.mxu0
      %v4722 = vadd.f32 %v4633, %v4721
      %v4723 = vpop.f32.mrf.mxu0
      %v4724 = vadd.f32 %v4635, %v4723
      %4725 = vmatmul.bf16.gmra.mxu0 %v3685
      %v4726 = vpop.f32.mrf.mxu0
      %v4727 = vadd.f32 %v4638, %v4726
      %v4728 = vpop.f32.mrf.mxu0
      %v4729 = vadd.f32 %v4640, %v4728
      %4730 = vmatmul.bf16.gmra.mxu0 %v3694
      %v4731 = vpop.f32.mrf.mxu0
      %v4732 = vadd.f32 %v4643, %v4731
      %v4733 = vpop.f32.mrf.mxu0
      %v4734 = vadd.f32 %v4645, %v4733
      %4735 = vmatmul.bf16.gmra.mxu0 %v3703
      %v4736 = vpop.f32.mrf.mxu0
      %v4737 = vadd.f32 %v4648, %v4736
      %v4738 = vpop.f32.mrf.mxu0
      %v4739 = vadd.f32 %v4650, %v4738
      %4740 = vmatmul.bf16.gmra.mxu0 %v3712
      %v4741 = vpop.f32.mrf.mxu0
      %v4742 = vadd.f32 %v4653, %v4741
      %v4743 = vpop.f32.mrf.mxu0
      %v4744 = vadd.f32 %v4655, %v4743
      %4745 = vmatmul.bf16.gmra.mxu0 %v3721
      %v4746 = vpop.f32.mrf.mxu0
      %v4747 = vadd.f32 %v4658, %v4746
      %v4748 = vpop.f32.mrf.mxu0
      %v4749 = vadd.f32 %v4660, %v4748
      %4750 = vmatmul.bf16.gmra.mxu0 %v3730
      %v4751 = vpop.f32.mrf.mxu0
      %v4752 = vadd.f32 %v4663, %v4751
      %v4753 = vpop.f32.mrf.mxu0
      %v4754 = vadd.f32 %v4665, %v4753
      %4755 = vdwg.mxu0
      %4756 = vmatpush.bf16.msra.mxu0 %v4214
      %4757 = vmatpush.bf16.msra.mxu0 %v4213
      %4758 = vmatpush.bf16.msra.mxu0 %v4212
      %4759 = vmatpush.bf16.msra.mxu0 %v4211
      %4760 = vmatpush.bf16.msra.mxu0 %v4210
      %4761 = vmatpush.bf16.msra.mxu0 %v4209
      %4762 = vmatpush.bf16.msra.mxu0 %v4208
      %4763 = vmatpush.bf16.msra.mxu0 %v4207
      %4764 = vmatmul.bf16.gmra.mxu0 %v3596
      %v4765 = vpop.f32.mrf.mxu0
      %v4766 = vadd.f32 %v4677, %v4765
      %v4767 = vpop.f32.mrf.mxu0
      %v4768 = vadd.f32 %v4679, %v4767
      %4769 = vmatmul.bf16.gmra.mxu0 %v3605
      %v4770 = vpop.f32.mrf.mxu0
      %v4771 = vadd.f32 %v4682, %v4770
      %v4772 = vpop.f32.mrf.mxu0
      %v4773 = vadd.f32 %v4684, %v4772
      %4774 = vmatmul.bf16.gmra.mxu0 %v3614
      %v4775 = vpop.f32.mrf.mxu0
      %v4776 = vadd.f32 %v4687, %v4775
      %v4777 = vpop.f32.mrf.mxu0
      %v4778 = vadd.f32 %v4689, %v4777
      %4779 = vmatmul.bf16.gmra.mxu0 %v3623
      %v4780 = vpop.f32.mrf.mxu0
      %v4781 = vadd.f32 %v4692, %v4780
      %v4782 = vpop.f32.mrf.mxu0
      %v4783 = vadd.f32 %v4694, %v4782
      %4784 = vmatmul.bf16.gmra.mxu0 %v3632
      %v4785 = vpop.f32.mrf.mxu0
      %v4786 = vadd.f32 %v4697, %v4785
      %v4787 = vpop.f32.mrf.mxu0
      %v4788 = vadd.f32 %v4699, %v4787
      %4789 = vmatmul.bf16.gmra.mxu0 %v3641
      %v4790 = vpop.f32.mrf.mxu0
      %v4791 = vadd.f32 %v4702, %v4790
      %v4792 = vpop.f32.mrf.mxu0
      %v4793 = vadd.f32 %v4704, %v4792
      %4794 = vmatmul.bf16.gmra.mxu0 %v3650
      %v4795 = vpop.f32.mrf.mxu0
      %v4796 = vadd.f32 %v4707, %v4795
      %v4797 = vpop.f32.mrf.mxu0
      %v4798 = vadd.f32 %v4709, %v4797
      %4799 = vmatmul.bf16.gmra.mxu0 %v3659
      %v4800 = vpop.f32.mrf.mxu0
      %v4801 = vadd.f32 %v4712, %v4800
      %v4802 = vpop.f32.mrf.mxu0
      %v4803 = vadd.f32 %v4714, %v4802
      %4804 = vmatmul.bf16.gmra.mxu0 %v3668
      %v4805 = vpop.f32.mrf.mxu0
      %v4806 = vadd.f32 %v4717, %v4805
      %v4807 = vpop.f32.mrf.mxu0
      %v4808 = vadd.f32 %v4719, %v4807
      %4809 = vmatmul.bf16.gmra.mxu0 %v3677
      %v4810 = vpop.f32.mrf.mxu0
      %v4811 = vadd.f32 %v4722, %v4810
      %v4812 = vpop.f32.mrf.mxu0
      %v4813 = vadd.f32 %v4724, %v4812
      %4814 = vmatmul.bf16.gmra.mxu0 %v3686
      %v4815 = vpop.f32.mrf.mxu0
      %v4816 = vadd.f32 %v4727, %v4815
      %v4817 = vpop.f32.mrf.mxu0
      %v4818 = vadd.f32 %v4729, %v4817
      %4819 = vmatmul.bf16.gmra.mxu0 %v3695
      %v4820 = vpop.f32.mrf.mxu0
      %v4821 = vadd.f32 %v4732, %v4820
      %v4822 = vpop.f32.mrf.mxu0
      %v4823 = vadd.f32 %v4734, %v4822
      %4824 = vmatmul.bf16.gmra.mxu0 %v3704
      %v4825 = vpop.f32.mrf.mxu0
      %v4826 = vadd.f32 %v4737, %v4825
      %v4827 = vpop.f32.mrf.mxu0
      %v4828 = vadd.f32 %v4739, %v4827
      %4829 = vmatmul.bf16.gmra.mxu0 %v3713
      %v4830 = vpop.f32.mrf.mxu0
      %v4831 = vadd.f32 %v4742, %v4830
      %v4832 = vpop.f32.mrf.mxu0
      %v4833 = vadd.f32 %v4744, %v4832
      %4834 = vmatmul.bf16.gmra.mxu0 %v3722
      %v4835 = vpop.f32.mrf.mxu0
      %v4836 = vadd.f32 %v4747, %v4835
      %v4837 = vpop.f32.mrf.mxu0
      %v4838 = vadd.f32 %v4749, %v4837
      %4839 = vmatmul.bf16.gmra.mxu0 %v3731
      %v4840 = vpop.f32.mrf.mxu0
      %v4841 = vadd.f32 %v4752, %v4840
      %v4842 = vpop.f32.mrf.mxu0
      %v4843 = vadd.f32 %v4754, %v4842
      %4844 = vdwg.mxu0
      %4845 = vmatpush.bf16.msra.mxu0 %v4222
      %4846 = vmatpush.bf16.msra.mxu0 %v4221
      %4847 = vmatpush.bf16.msra.mxu0 %v4220
      %4848 = vmatpush.bf16.msra.mxu0 %v4219
      %4849 = vmatpush.bf16.msra.mxu0 %v4218
      %4850 = vmatpush.bf16.msra.mxu0 %v4217
      %4851 = vmatpush.bf16.msra.mxu0 %v4216
      %4852 = vmatpush.bf16.msra.mxu0 %v4215
      %4853 = vmatmul.bf16.gmra.mxu0 %v3597
      %v4854 = vpop.f32.mrf.mxu0
      %v4855 = vadd.f32 %v4766, %v4854
      %v4856 = vpop.f32.mrf.mxu0
      %v4857 = vadd.f32 %v4768, %v4856
      %4858 = vmatmul.bf16.gmra.mxu0 %v3606
      %v4859 = vpop.f32.mrf.mxu0
      %v4860 = vadd.f32 %v4771, %v4859
      %v4861 = vpop.f32.mrf.mxu0
      %v4862 = vadd.f32 %v4773, %v4861
      %4863 = vmatmul.bf16.gmra.mxu0 %v3615
      %v4864 = vpop.f32.mrf.mxu0
      %v4865 = vadd.f32 %v4776, %v4864
      %v4866 = vpop.f32.mrf.mxu0
      %v4867 = vadd.f32 %v4778, %v4866
      %4868 = vmatmul.bf16.gmra.mxu0 %v3624
      %v4869 = vpop.f32.mrf.mxu0
      %v4870 = vadd.f32 %v4781, %v4869
      %v4871 = vpop.f32.mrf.mxu0
      %v4872 = vadd.f32 %v4783, %v4871
      %4873 = vmatmul.bf16.gmra.mxu0 %v3633
      %v4874 = vpop.f32.mrf.mxu0
      %v4875 = vadd.f32 %v4786, %v4874
      %v4876 = vpop.f32.mrf.mxu0
      %v4877 = vadd.f32 %v4788, %v4876
      %4878 = vmatmul.bf16.gmra.mxu0 %v3642
      %v4879 = vpop.f32.mrf.mxu0
      %v4880 = vadd.f32 %v4791, %v4879
      %v4881 = vpop.f32.mrf.mxu0
      %v4882 = vadd.f32 %v4793, %v4881
      %4883 = vmatmul.bf16.gmra.mxu0 %v3651
      %v4884 = vpop.f32.mrf.mxu0
      %v4885 = vadd.f32 %v4796, %v4884
      %v4886 = vpop.f32.mrf.mxu0
      %v4887 = vadd.f32 %v4798, %v4886
      %4888 = vmatmul.bf16.gmra.mxu0 %v3660
      %v4889 = vpop.f32.mrf.mxu0
      %v4890 = vadd.f32 %v4801, %v4889
      %v4891 = vpop.f32.mrf.mxu0
      %v4892 = vadd.f32 %v4803, %v4891
      %4893 = vmatmul.bf16.gmra.mxu0 %v3669
      %v4894 = vpop.f32.mrf.mxu0
      %v4895 = vadd.f32 %v4806, %v4894
      %v4896 = vpop.f32.mrf.mxu0
      %v4897 = vadd.f32 %v4808, %v4896
      %4898 = vmatmul.bf16.gmra.mxu0 %v3678
      %v4899 = vpop.f32.mrf.mxu0
      %v4900 = vadd.f32 %v4811, %v4899
      %v4901 = vpop.f32.mrf.mxu0
      %v4902 = vadd.f32 %v4813, %v4901
      %4903 = vmatmul.bf16.gmra.mxu0 %v3687
      %v4904 = vpop.f32.mrf.mxu0
      %v4905 = vadd.f32 %v4816, %v4904
      %v4906 = vpop.f32.mrf.mxu0
      %v4907 = vadd.f32 %v4818, %v4906
      %4908 = vmatmul.bf16.gmra.mxu0 %v3696
      %v4909 = vpop.f32.mrf.mxu0
      %v4910 = vadd.f32 %v4821, %v4909
      %v4911 = vpop.f32.mrf.mxu0
      %v4912 = vadd.f32 %v4823, %v4911
      %4913 = vmatmul.bf16.gmra.mxu0 %v3705
      %v4914 = vpop.f32.mrf.mxu0
      %v4915 = vadd.f32 %v4826, %v4914
      %v4916 = vpop.f32.mrf.mxu0
      %v4917 = vadd.f32 %v4828, %v4916
      %4918 = vmatmul.bf16.gmra.mxu0 %v3714
      %v4919 = vpop.f32.mrf.mxu0
      %v4920 = vadd.f32 %v4831, %v4919
      %v4921 = vpop.f32.mrf.mxu0
      %v4922 = vadd.f32 %v4833, %v4921
      %4923 = vmatmul.bf16.gmra.mxu0 %v3723
      %v4924 = vpop.f32.mrf.mxu0
      %v4925 = vadd.f32 %v4836, %v4924
      %v4926 = vpop.f32.mrf.mxu0
      %v4927 = vadd.f32 %v4838, %v4926
      %4928 = vmatmul.bf16.gmra.mxu0 %v3732
      %v4929 = vpop.f32.mrf.mxu0
      %v4930 = vadd.f32 %v4841, %v4929
      %v4931 = vpop.f32.mrf.mxu0
      %v4932 = vadd.f32 %v4843, %v4931
      %4933 = vdwg.mxu0
      %4934 = vmatpush.bf16.msra.mxu0 %v4230
      %4935 = vmatpush.bf16.msra.mxu0 %v4229
      %4936 = vmatpush.bf16.msra.mxu0 %v4228
      %4937 = vmatpush.bf16.msra.mxu0 %v4227
      %4938 = vmatpush.bf16.msra.mxu0 %v4226
      %4939 = vmatpush.bf16.msra.mxu0 %v4225
      %4940 = vmatpush.bf16.msra.mxu0 %v4224
      %4941 = vmatpush.bf16.msra.mxu0 %v4223
      %4942 = vmatmul.bf16.gmra.mxu0 %v3598
      %v4943 = vpop.f32.mrf.mxu0
      %v4944 = vadd.f32 %v4855, %v4943
      %v4945 = vpop.f32.mrf.mxu0
      %v4946 = vadd.f32 %v4857, %v4945
      %4947 = vmatmul.bf16.gmra.mxu0 %v3607
      %v4948 = vpop.f32.mrf.mxu0
      %v4949 = vadd.f32 %v4860, %v4948
      %v4950 = vpop.f32.mrf.mxu0
      %v4951 = vadd.f32 %v4862, %v4950
      %4952 = vmatmul.bf16.gmra.mxu0 %v3616
      %v4953 = vpop.f32.mrf.mxu0
      %v4954 = vadd.f32 %v4865, %v4953
      %v4955 = vpop.f32.mrf.mxu0
      %v4956 = vadd.f32 %v4867, %v4955
      %4957 = vmatmul.bf16.gmra.mxu0 %v3625
      %v4958 = vpop.f32.mrf.mxu0
      %v4959 = vadd.f32 %v4870, %v4958
      %v4960 = vpop.f32.mrf.mxu0
      %v4961 = vadd.f32 %v4872, %v4960
      %4962 = vmatmul.bf16.gmra.mxu0 %v3634
      %v4963 = vpop.f32.mrf.mxu0
      %v4964 = vadd.f32 %v4875, %v4963
      %v4965 = vpop.f32.mrf.mxu0
      %v4966 = vadd.f32 %v4877, %v4965
      %4967 = vmatmul.bf16.gmra.mxu0 %v3643
      %v4968 = vpop.f32.mrf.mxu0
      %v4969 = vadd.f32 %v4880, %v4968
      %v4970 = vpop.f32.mrf.mxu0
      %v4971 = vadd.f32 %v4882, %v4970
      %4972 = vmatmul.bf16.gmra.mxu0 %v3652
      %v4973 = vpop.f32.mrf.mxu0
      %v4974 = vadd.f32 %v4885, %v4973
      %v4975 = vpop.f32.mrf.mxu0
      %v4976 = vadd.f32 %v4887, %v4975
      %4977 = vmatmul.bf16.gmra.mxu0 %v3661
      %v4978 = vpop.f32.mrf.mxu0
      %v4979 = vadd.f32 %v4890, %v4978
      %v4980 = vpop.f32.mrf.mxu0
      %v4981 = vadd.f32 %v4892, %v4980
      %4982 = vmatmul.bf16.gmra.mxu0 %v3670
      %v4983 = vpop.f32.mrf.mxu0
      %v4984 = vadd.f32 %v4895, %v4983
      %v4985 = vpop.f32.mrf.mxu0
      %v4986 = vadd.f32 %v4897, %v4985
      %4987 = vmatmul.bf16.gmra.mxu0 %v3679
      %v4988 = vpop.f32.mrf.mxu0
      %v4989 = vadd.f32 %v4900, %v4988
      %v4990 = vpop.f32.mrf.mxu0
      %v4991 = vadd.f32 %v4902, %v4990
      %4992 = vmatmul.bf16.gmra.mxu0 %v3688
      %v4993 = vpop.f32.mrf.mxu0
      %v4994 = vadd.f32 %v4905, %v4993
      %v4995 = vpop.f32.mrf.mxu0
      %v4996 = vadd.f32 %v4907, %v4995
      %4997 = vmatmul.bf16.gmra.mxu0 %v3697
      %v4998 = vpop.f32.mrf.mxu0
      %v4999 = vadd.f32 %v4910, %v4998
      %v5000 = vpop.f32.mrf.mxu0
      %v5001 = vadd.f32 %v4912, %v5000
      %5002 = vmatmul.bf16.gmra.mxu0 %v3706
      %v5003 = vpop.f32.mrf.mxu0
      %v5004 = vadd.f32 %v4915, %v5003
      %v5005 = vpop.f32.mrf.mxu0
      %v5006 = vadd.f32 %v4917, %v5005
      %5007 = vmatmul.bf16.gmra.mxu0 %v3715
      %v5008 = vpop.f32.mrf.mxu0
      %v5009 = vadd.f32 %v4920, %v5008
      %v5010 = vpop.f32.mrf.mxu0
      %v5011 = vadd.f32 %v4922, %v5010
      %5012 = vmatmul.bf16.gmra.mxu0 %v3724
      %v5013 = vpop.f32.mrf.mxu0
      %v5014 = vadd.f32 %v4925, %v5013
      %v5015 = vpop.f32.mrf.mxu0
      %v5016 = vadd.f32 %v4927, %v5015
      %5017 = vmatmul.bf16.gmra.mxu0 %v3733
      %v5018 = vpop.f32.mrf.mxu0
      %v5019 = vadd.f32 %v4930, %v5018
      %v5020 = vpop.f32.mrf.mxu0
      %v5021 = vadd.f32 %v4932, %v5020
      %5022 = vdwg.mxu0
      %5023 = vmatpush.bf16.msra.mxu0 %v4238
      %5024 = vmatpush.bf16.msra.mxu0 %v4237
      %5025 = vmatpush.bf16.msra.mxu0 %v4236
      %5026 = vmatpush.bf16.msra.mxu0 %v4235
      %5027 = vmatpush.bf16.msra.mxu0 %v4234
      %5028 = vmatpush.bf16.msra.mxu0 %v4233
      %5029 = vmatpush.bf16.msra.mxu0 %v4232
      %5030 = vmatpush.bf16.msra.mxu0 %v4231
      %5031 = vmatmul.bf16.gmra.mxu0 %v3599
      %v5032 = vpop.f32.mrf.mxu0
      %v5033 = vadd.f32 %v4944, %v5032
      %v5034 = vpop.f32.mrf.mxu0
      %v5035 = vadd.f32 %v4946, %v5034
      %5036 = vmatmul.bf16.gmra.mxu0 %v3608
      %v5037 = vpop.f32.mrf.mxu0
      %v5038 = vadd.f32 %v4949, %v5037
      %v5039 = vpop.f32.mrf.mxu0
      %v5040 = vadd.f32 %v4951, %v5039
      %5041 = vmatmul.bf16.gmra.mxu0 %v3617
      %v5042 = vpop.f32.mrf.mxu0
      %v5043 = vadd.f32 %v4954, %v5042
      %v5044 = vpop.f32.mrf.mxu0
      %v5045 = vadd.f32 %v4956, %v5044
      %5046 = vmatmul.bf16.gmra.mxu0 %v3626
      %v5047 = vpop.f32.mrf.mxu0
      %v5048 = vadd.f32 %v4959, %v5047
      %v5049 = vpop.f32.mrf.mxu0
      %v5050 = vadd.f32 %v4961, %v5049
      %5051 = vmatmul.bf16.gmra.mxu0 %v3635
      %v5052 = vpop.f32.mrf.mxu0
      %v5053 = vadd.f32 %v4964, %v5052
      %v5054 = vpop.f32.mrf.mxu0
      %v5055 = vadd.f32 %v4966, %v5054
      %5056 = vmatmul.bf16.gmra.mxu0 %v3644
      %v5057 = vpop.f32.mrf.mxu0
      %v5058 = vadd.f32 %v4969, %v5057
      %v5059 = vpop.f32.mrf.mxu0
      %v5060 = vadd.f32 %v4971, %v5059
      %5061 = vmatmul.bf16.gmra.mxu0 %v3653
      %v5062 = vpop.f32.mrf.mxu0
      %v5063 = vadd.f32 %v4974, %v5062
      %v5064 = vpop.f32.mrf.mxu0
      %v5065 = vadd.f32 %v4976, %v5064
      %5066 = vmatmul.bf16.gmra.mxu0 %v3662
      %v5067 = vpop.f32.mrf.mxu0
      %v5068 = vadd.f32 %v4979, %v5067
      %v5069 = vpop.f32.mrf.mxu0
      %v5070 = vadd.f32 %v4981, %v5069
      %5071 = vmatmul.bf16.gmra.mxu0 %v3671
      %v5072 = vpop.f32.mrf.mxu0
      %v5073 = vadd.f32 %v4984, %v5072
      %v5074 = vpop.f32.mrf.mxu0
      %v5075 = vadd.f32 %v4986, %v5074
      %5076 = vmatmul.bf16.gmra.mxu0 %v3680
      %v5077 = vpop.f32.mrf.mxu0
      %v5078 = vadd.f32 %v4989, %v5077
      %v5079 = vpop.f32.mrf.mxu0
      %v5080 = vadd.f32 %v4991, %v5079
      %5081 = vmatmul.bf16.gmra.mxu0 %v3689
      %v5082 = vpop.f32.mrf.mxu0
      %v5083 = vadd.f32 %v4994, %v5082
      %v5084 = vpop.f32.mrf.mxu0
      %v5085 = vadd.f32 %v4996, %v5084
      %5086 = vmatmul.bf16.gmra.mxu0 %v3698
      %v5087 = vpop.f32.mrf.mxu0
      %v5088 = vadd.f32 %v4999, %v5087
      %v5089 = vpop.f32.mrf.mxu0
      %v5090 = vadd.f32 %v5001, %v5089
      %5091 = vmatmul.bf16.gmra.mxu0 %v3707
      %v5092 = vpop.f32.mrf.mxu0
      %v5093 = vadd.f32 %v5004, %v5092
      %v5094 = vpop.f32.mrf.mxu0
      %v5095 = vadd.f32 %v5006, %v5094
      %5096 = vmatmul.bf16.gmra.mxu0 %v3716
      %v5097 = vpop.f32.mrf.mxu0
      %v5098 = vadd.f32 %v5009, %v5097
      %v5099 = vpop.f32.mrf.mxu0
      %v5100 = vadd.f32 %v5011, %v5099
      %5101 = vmatmul.bf16.gmra.mxu0 %v3725
      %v5102 = vpop.f32.mrf.mxu0
      %v5103 = vadd.f32 %v5014, %v5102
      %v5104 = vpop.f32.mrf.mxu0
      %v5105 = vadd.f32 %v5016, %v5104
      %5106 = vmatmul.bf16.gmra.mxu0 %v3734
      %v5107 = vpop.f32.mrf.mxu0
      %v5108 = vadd.f32 %v5019, %v5107
      %v5109 = vpop.f32.mrf.mxu0
      %v5110 = vadd.f32 %v5021, %v5109
      %5111 = vdwg.mxu0
      %v5112 = vld [vmem:[%s3] sm:$0x1]
      %v5113 = vperm.slane %v5112, 0
      %v5114 = vmul.f32 %v5033, %v5113
      %v5115 = vmul.f32 %v5035, %v5113
      %v5116 = vmul.f32 %v5038, %v5113
      %v5117 = vmul.f32 %v5040, %v5113
      %v5118 = vmul.f32 %v5043, %v5113
      %v5119 = vmul.f32 %v5045, %v5113
      %v5120 = vmul.f32 %v5048, %v5113
      %v5121 = vmul.f32 %v5050, %v5113
      %v5122 = vmul.f32 %v5053, %v5113
      %v5123 = vmul.f32 %v5055, %v5113
      %v5124 = vmul.f32 %v5058, %v5113
      %v5125 = vmul.f32 %v5060, %v5113
      %v5126 = vmul.f32 %v5063, %v5113
      %v5127 = vmul.f32 %v5065, %v5113
      %v5128 = vmul.f32 %v5068, %v5113
      %v5129 = vmul.f32 %v5070, %v5113
      %v5130 = vmul.f32 %v5073, %v5113
      %v5131 = vmul.f32 %v5075, %v5113
      %v5132 = vmul.f32 %v5078, %v5113
      %v5133 = vmul.f32 %v5080, %v5113
      %v5134 = vmul.f32 %v5083, %v5113
      %v5135 = vmul.f32 %v5085, %v5113
      %v5136 = vmul.f32 %v5088, %v5113
      %v5137 = vmul.f32 %v5090, %v5113
      %v5138 = vmul.f32 %v5093, %v5113
      %v5139 = vmul.f32 %v5095, %v5113
      %v5140 = vmul.f32 %v5098, %v5113
      %v5141 = vmul.f32 %v5100, %v5113
      %v5142 = vmul.f32 %v5103, %v5113
      %v5143 = vmul.f32 %v5105, %v5113
      %v5144 = vmul.f32 %v5108, %v5113
      %v5145 = vmul.f32 %v5110, %v5113
      %v5146 = vld [vmem:[%s3 + $0x1] sm:$0x1]
      %v5147 = vperm.slane %v5146, 0
      %v5148 = vadd.f32 %v5114, %v5147
      %v5149 = vadd.f32 %v5115, %v5147
      %v5150 = vadd.f32 %v5116, %v5147
      %v5151 = vadd.f32 %v5117, %v5147
      %v5152 = vadd.f32 %v5118, %v5147
      %v5153 = vadd.f32 %v5119, %v5147
      %v5154 = vadd.f32 %v5120, %v5147
      %v5155 = vadd.f32 %v5121, %v5147
      %v5156 = vadd.f32 %v5122, %v5147
      %v5157 = vadd.f32 %v5123, %v5147
      %v5158 = vadd.f32 %v5124, %v5147
      %v5159 = vadd.f32 %v5125, %v5147
      %v5160 = vadd.f32 %v5126, %v5147
      %v5161 = vadd.f32 %v5127, %v5147
      %v5162 = vadd.f32 %v5128, %v5147
      %v5163 = vadd.f32 %v5129, %v5147
      %v5164 = vadd.f32 %v5130, %v5147
      %v5165 = vadd.f32 %v5131, %v5147
      %v5166 = vadd.f32 %v5132, %v5147
      %v5167 = vadd.f32 %v5133, %v5147
      %v5168 = vadd.f32 %v5134, %v5147
      %v5169 = vadd.f32 %v5135, %v5147
      %v5170 = vadd.f32 %v5136, %v5147
      %v5171 = vadd.f32 %v5137, %v5147
      %v5172 = vadd.f32 %v5138, %v5147
      %v5173 = vadd.f32 %v5139, %v5147
      %v5174 = vadd.f32 %v5140, %v5147
      %v5175 = vadd.f32 %v5141, %v5147
      %v5176 = vadd.f32 %v5142, %v5147
      %v5177 = vadd.f32 %v5143, %v5147
      %v5178 = vadd.f32 %v5144, %v5147
      %v5179 = vadd.f32 %v5145, %v5147
      %v5180 = vmax.f32 %v5148, 0.0
      %v5181 = vmax.f32 %v5149, 0.0
      %v5182 = vmax.f32 %v5150, 0.0
      %v5183 = vmax.f32 %v5151, 0.0
      %v5184 = vmax.f32 %v5152, 0.0
      %v5185 = vmax.f32 %v5153, 0.0
      %v5186 = vmax.f32 %v5154, 0.0
      %v5187 = vmax.f32 %v5155, 0.0
      %v5188 = vmax.f32 %v5156, 0.0
      %v5189 = vmax.f32 %v5157, 0.0
      %v5190 = vmax.f32 %v5158, 0.0
      %v5191 = vmax.f32 %v5159, 0.0
      %v5192 = vmax.f32 %v5160, 0.0
      %v5193 = vmax.f32 %v5161, 0.0
      %v5194 = vmax.f32 %v5162, 0.0
      %v5195 = vmax.f32 %v5163, 0.0
      %v5196 = vmax.f32 %v5164, 0.0
      %v5197 = vmax.f32 %v5165, 0.0
      %v5198 = vmax.f32 %v5166, 0.0
      %v5199 = vmax.f32 %v5167, 0.0
      %v5200 = vmax.f32 %v5168, 0.0
      %v5201 = vmax.f32 %v5169, 0.0
      %v5202 = vmax.f32 %v5170, 0.0
      %v5203 = vmax.f32 %v5171, 0.0
      %v5204 = vmax.f32 %v5172, 0.0
      %v5205 = vmax.f32 %v5173, 0.0
      %v5206 = vmax.f32 %v5174, 0.0
      %v5207 = vmax.f32 %v5175, 0.0
      %v5208 = vmax.f32 %v5176, 0.0
      %v5209 = vmax.f32 %v5177, 0.0
      %v5210 = vmax.f32 %v5178, 0.0
      %v5211 = vmax.f32 %v5179, 0.0
      %v5212 = vpack.c.bf16 %v5180, %v5180
      %v5213 = vpack.c.bf16 %v5181, %v5181
      %v5214 = vpack.c.bf16 %v5182, %v5182
      %v5215 = vpack.c.bf16 %v5183, %v5183
      %v5216 = vpack.c.bf16 %v5184, %v5184
      %v5217 = vpack.c.bf16 %v5185, %v5185
      %v5218 = vpack.c.bf16 %v5186, %v5186
      %v5219 = vpack.c.bf16 %v5187, %v5187
      %v5220 = vpack.c.bf16 %v5188, %v5188
      %v5221 = vpack.c.bf16 %v5189, %v5189
      %v5222 = vpack.c.bf16 %v5190, %v5190
      %v5223 = vpack.c.bf16 %v5191, %v5191
      %v5224 = vpack.c.bf16 %v5192, %v5192
      %v5225 = vpack.c.bf16 %v5193, %v5193
      %v5226 = vpack.c.bf16 %v5194, %v5194
      %v5227 = vpack.c.bf16 %v5195, %v5195
      %v5228 = vpack.c.bf16 %v5196, %v5196
      %v5229 = vpack.c.bf16 %v5197, %v5197
      %v5230 = vpack.c.bf16 %v5198, %v5198
      %v5231 = vpack.c.bf16 %v5199, %v5199
      %v5232 = vpack.c.bf16 %v5200, %v5200
      %v5233 = vpack.c.bf16 %v5201, %v5201
      %v5234 = vpack.c.bf16 %v5202, %v5202
      %v5235 = vpack.c.bf16 %v5203, %v5203
      %v5236 = vpack.c.bf16 %v5204, %v5204
      %v5237 = vpack.c.bf16 %v5205, %v5205
      %v5238 = vpack.c.bf16 %v5206, %v5206
      %v5239 = vpack.c.bf16 %v5207, %v5207
      %v5240 = vpack.c.bf16 %v5208, %v5208
      %v5241 = vpack.c.bf16 %v5209, %v5209
      %v5242 = vpack.c.bf16 %v5210, %v5210
      %v5243 = vpack.c.bf16 %v5211, %v5211
      %vm5244 = vsmask.f32 4368
      %vm5245 = vmor %vm235, %vm5244
      %v5247 = vshrl.u32 %v5212, 16
      %v5249 = vrot.slane %v5247, 7
      %v5250 = vshll.u32 %v5212, 16
      %v5252 = vor.u32 %v5249, %v5250
      %v5253 = vrot.slane %v5249, 4
      %v5255 = vshrl.u32 %v5213, 16
      %v5257 = vrot.slane %v5255, 7
      %v5258 = vshll.u32 %v5213, 16
      %v5260 = vor.u32 %v5257, %v5258
      %v5261 = vsel %vm5245, %v5253, %v5260
      %v5262 = vrot.slane %v5257, 4
      %v5264 = vshrl.u32 %v5214, 16
      %v5266 = vrot.slane %v5264, 7
      %v5267 = vshll.u32 %v5214, 16
      %v5269 = vor.u32 %v5266, %v5267
      %v5270 = vrot.slane %v5266, 4
      %v5272 = vshrl.u32 %v5215, 16
      %v5274 = vrot.slane %v5272, 7
      %v5275 = vshll.u32 %v5215, 16
      %v5277 = vor.u32 %v5274, %v5275
      %v5278 = vsel %vm5245, %v5270, %v5277
      %v5279 = vrot.slane %v5274, 4
      %v5281 = vshrl.u32 %v5216, 16
      %v5283 = vrot.slane %v5281, 7
      %v5284 = vshll.u32 %v5216, 16
      %v5286 = vor.u32 %v5283, %v5284
      %v5287 = vrot.slane %v5283, 4
      %v5289 = vshrl.u32 %v5217, 16
      %v5291 = vrot.slane %v5289, 7
      %v5292 = vshll.u32 %v5217, 16
      %v5294 = vor.u32 %v5291, %v5292
      %v5295 = vsel %vm5245, %v5287, %v5294
      %v5296 = vrot.slane %v5291, 4
      %v5298 = vshrl.u32 %v5218, 16
      %v5300 = vrot.slane %v5298, 7
      %v5301 = vshll.u32 %v5218, 16
      %v5303 = vor.u32 %v5300, %v5301
      %v5304 = vrot.slane %v5300, 4
      %v5306 = vshrl.u32 %v5219, 16
      %v5308 = vrot.slane %v5306, 7
      %v5309 = vshll.u32 %v5219, 16
      %v5311 = vor.u32 %v5308, %v5309
      %v5312 = vsel %vm5245, %v5304, %v5311
      %v5313 = vrot.slane %v5308, 4
      %v5315 = vshrl.u32 %v5220, 16
      %v5317 = vrot.slane %v5315, 7
      %v5318 = vshll.u32 %v5220, 16
      %v5320 = vor.u32 %v5317, %v5318
      %v5321 = vrot.slane %v5317, 4
      %v5323 = vshrl.u32 %v5221, 16
      %v5325 = vrot.slane %v5323, 7
      %v5326 = vshll.u32 %v5221, 16
      %v5328 = vor.u32 %v5325, %v5326
      %v5329 = vsel %vm5245, %v5321, %v5328
      %v5330 = vrot.slane %v5325, 4
      %v5332 = vshrl.u32 %v5222, 16
      %v5334 = vrot.slane %v5332, 7
      %v5335 = vshll.u32 %v5222, 16
      %v5337 = vor.u32 %v5334, %v5335
      %v5338 = vrot.slane %v5334, 4
      %v5340 = vshrl.u32 %v5223, 16
      %v5342 = vrot.slane %v5340, 7
      %v5343 = vshll.u32 %v5223, 16
      %v5345 = vor.u32 %v5342, %v5343
      %v5346 = vsel %vm5245, %v5338, %v5345
      %v5347 = vrot.slane %v5342, 4
      %v5349 = vshrl.u32 %v5224, 16
      %v5351 = vrot.slane %v5349, 7
      %v5352 = vshll.u32 %v5224, 16
      %v5354 = vor.u32 %v5351, %v5352
      %v5355 = vrot.slane %v5351, 4
      %v5357 = vshrl.u32 %v5225, 16
      %v5359 = vrot.slane %v5357, 7
      %v5360 = vshll.u32 %v5225, 16
      %v5362 = vor.u32 %v5359, %v5360
      %v5363 = vsel %vm5245, %v5355, %v5362
      %v5364 = vrot.slane %v5359, 4
      %v5366 = vshrl.u32 %v5226, 16
      %v5368 = vrot.slane %v5366, 7
      %v5369 = vshll.u32 %v5226, 16
      %v5371 = vor.u32 %v5368, %v5369
      %v5372 = vrot.slane %v5368, 4
      %v5374 = vshrl.u32 %v5227, 16
      %v5376 = vrot.slane %v5374, 7
      %v5377 = vshll.u32 %v5227, 16
      %v5379 = vor.u32 %v5376, %v5377
      %v5380 = vsel %vm5245, %v5372, %v5379
      %v5381 = vrot.slane %v5376, 4
      %v5383 = vshrl.u32 %v5228, 16
      %v5385 = vrot.slane %v5383, 7
      %v5386 = vshll.u32 %v5228, 16
      %v5388 = vor.u32 %v5385, %v5386
      %v5389 = vrot.slane %v5385, 4
      %v5391 = vshrl.u32 %v5229, 16
      %v5393 = vrot.slane %v5391, 7
      %v5394 = vshll.u32 %v5229, 16
      %v5396 = vor.u32 %v5393, %v5394
      %v5397 = vsel %vm5245, %v5389, %v5396
      %v5398 = vrot.slane %v5393, 4
      %v5400 = vshrl.u32 %v5230, 16
      %v5402 = vrot.slane %v5400, 7
      %v5403 = vshll.u32 %v5230, 16
      %v5405 = vor.u32 %v5402, %v5403
      %v5406 = vrot.slane %v5402, 4
      %v5408 = vshrl.u32 %v5231, 16
      %v5410 = vrot.slane %v5408, 7
      %v5411 = vshll.u32 %v5231, 16
      %v5413 = vor.u32 %v5410, %v5411
      %v5414 = vsel %vm5245, %v5406, %v5413
      %v5415 = vrot.slane %v5410, 4
      %v5417 = vshrl.u32 %v5232, 16
      %v5419 = vrot.slane %v5417, 7
      %v5420 = vshll.u32 %v5232, 16
      %v5422 = vor.u32 %v5419, %v5420
      %v5423 = vrot.slane %v5419, 4
      %v5425 = vshrl.u32 %v5233, 16
      %v5427 = vrot.slane %v5425, 7
      %v5428 = vshll.u32 %v5233, 16
      %v5430 = vor.u32 %v5427, %v5428
      %v5431 = vsel %vm5245, %v5423, %v5430
      %v5432 = vrot.slane %v5427, 4
      %v5434 = vshrl.u32 %v5234, 16
      %v5436 = vrot.slane %v5434, 7
      %v5437 = vshll.u32 %v5234, 16
      %v5439 = vor.u32 %v5436, %v5437
      %v5440 = vrot.slane %v5436, 4
      %v5442 = vshrl.u32 %v5235, 16
      %v5444 = vrot.slane %v5442, 7
      %v5445 = vshll.u32 %v5235, 16
      %v5447 = vor.u32 %v5444, %v5445
      %v5448 = vsel %vm5245, %v5440, %v5447
      %v5449 = vrot.slane %v5444, 4
      %v5451 = vshrl.u32 %v5236, 16
      %v5453 = vrot.slane %v5451, 7
      %v5454 = vshll.u32 %v5236, 16
      %v5456 = vor.u32 %v5453, %v5454
      %v5457 = vrot.slane %v5453, 4
      %v5459 = vshrl.u32 %v5237, 16
      %v5461 = vrot.slane %v5459, 7
      %v5462 = vshll.u32 %v5237, 16
      %v5464 = vor.u32 %v5461, %v5462
      %v5465 = vsel %vm5245, %v5457, %v5464
      %v5466 = vrot.slane %v5461, 4
      %v5468 = vshrl.u32 %v5238, 16
      %v5470 = vrot.slane %v5468, 7
      %v5471 = vshll.u32 %v5238, 16
      %v5473 = vor.u32 %v5470, %v5471
      %v5474 = vrot.slane %v5470, 4
      %v5476 = vshrl.u32 %v5239, 16
      %v5478 = vrot.slane %v5476, 7
      %v5479 = vshll.u32 %v5239, 16
      %v5481 = vor.u32 %v5478, %v5479
      %v5482 = vsel %vm5245, %v5474, %v5481
      %v5483 = vrot.slane %v5478, 4
      %v5485 = vshrl.u32 %v5240, 16
      %v5487 = vrot.slane %v5485, 7
      %v5488 = vshll.u32 %v5240, 16
      %v5490 = vor.u32 %v5487, %v5488
      %v5491 = vrot.slane %v5487, 4
      %v5493 = vshrl.u32 %v5241, 16
      %v5495 = vrot.slane %v5493, 7
      %v5496 = vshll.u32 %v5241, 16
      %v5498 = vor.u32 %v5495, %v5496
      %v5499 = vsel %vm5245, %v5491, %v5498
      %v5500 = vrot.slane %v5495, 4
      %v5502 = vshrl.u32 %v5242, 16
      %v5504 = vrot.slane %v5502, 7
      %v5505 = vshll.u32 %v5242, 16
      %v5507 = vor.u32 %v5504, %v5505
      %v5508 = vrot.slane %v5504, 4
      %v5510 = vshrl.u32 %v5243, 16
      %v5512 = vrot.slane %v5510, 7
      %v5513 = vshll.u32 %v5243, 16
      %v5515 = vor.u32 %v5512, %v5513
      %v5516 = vsel %vm5245, %v5508, %v5515
      %v5517 = vrot.slane %v5512, 4
      %vm5566 = vcmask 1043456
      %vm5567 = vmand %vm5566, %vm285
      %v5568 = vld [vmem:[%s233] sm:$0xf]
      %v5569 = vsel %vm5567, %v5252, %v5568
      %5570 = vst [vmem:[%s233] sm:$0xf] %v5569
      %5571 = vst [vmem:[%s233 + $0x4] sm:$0xf] %v5261
      %v5572 = vld [vmem:[%s233 + $0x8] sm:$0x1]
      %v5573 = vsel %vm236, %v5262, %v5572
      %5574 = vst [vmem:[%s233 + $0x8] sm:$0x1] %v5573
      %v5575 = vld [vmem:[%s233 + $0xc] sm:$0xf]
      %v5576 = vsel %vm5567, %v5269, %v5575
      %5577 = vst [vmem:[%s233 + $0xc] sm:$0xf] %v5576
      %5578 = vst [vmem:[%s233 + $0x10] sm:$0xf] %v5278
      %v5579 = vld [vmem:[%s233 + $0x14] sm:$0x1]
      %v5580 = vsel %vm236, %v5279, %v5579
      %5581 = vst [vmem:[%s233 + $0x14] sm:$0x1] %v5580
      %v5582 = vld [vmem:[%s233 + $0x18] sm:$0xf]
      %v5583 = vsel %vm5567, %v5286, %v5582
      %5584 = vst [vmem:[%s233 + $0x18] sm:$0xf] %v5583
      %5585 = vst [vmem:[%s233 + $0x1c] sm:$0xf] %v5295
      %v5586 = vld [vmem:[%s233 + $0x20] sm:$0x1]
      %v5587 = vsel %vm236, %v5296, %v5586
      %5588 = vst [vmem:[%s233 + $0x20] sm:$0x1] %v5587
      %v5589 = vld [vmem:[%s233 + $0x24] sm:$0xf]
      %v5590 = vsel %vm5567, %v5303, %v5589
      %5591 = vst [vmem:[%s233 + $0x24] sm:$0xf] %v5590
      %5592 = vst [vmem:[%s233 + $0x28] sm:$0xf] %v5312
      %v5593 = vld [vmem:[%s233 + $0x2c] sm:$0x1]
      %v5594 = vsel %vm236, %v5313, %v5593
      %5595 = vst [vmem:[%s233 + $0x2c] sm:$0x1] %v5594
      %v5596 = vld [vmem:[%s233 + $0x30] sm:$0xf]
      %v5597 = vsel %vm5567, %v5320, %v5596
      %5598 = vst [vmem:[%s233 + $0x30] sm:$0xf] %v5597
      %5599 = vst [vmem:[%s233 + $0x34] sm:$0xf] %v5329
      %v5600 = vld [vmem:[%s233 + $0x38] sm:$0x1]
      %v5601 = vsel %vm236, %v5330, %v5600
      %5602 = vst [vmem:[%s233 + $0x38] sm:$0x1] %v5601
      %v5603 = vld [vmem:[%s233 + $0x3c] sm:$0xf]
      %v5604 = vsel %vm5567, %v5337, %v5603
      %5605 = vst [vmem:[%s233 + $0x3c] sm:$0xf] %v5604
      %5606 = vst [vmem:[%s233 + $0x40] sm:$0xf] %v5346
      %v5607 = vld [vmem:[%s233 + $0x44] sm:$0x1]
      %v5608 = vsel %vm236, %v5347, %v5607
      %5609 = vst [vmem:[%s233 + $0x44] sm:$0x1] %v5608
      %v5610 = vld [vmem:[%s233 + $0x48] sm:$0xf]
      %v5611 = vsel %vm5567, %v5354, %v5610
      %5612 = vst [vmem:[%s233 + $0x48] sm:$0xf] %v5611
      %5613 = vst [vmem:[%s233 + $0x4c] sm:$0xf] %v5363
      %v5614 = vld [vmem:[%s233 + $0x50] sm:$0x1]
      %v5615 = vsel %vm236, %v5364, %v5614
      %5616 = vst [vmem:[%s233 + $0x50] sm:$0x1] %v5615
      %v5617 = vld [vmem:[%s233 + $0x54] sm:$0xf]
      %v5618 = vsel %vm5567, %v5371, %v5617
      %5619 = vst [vmem:[%s233 + $0x54] sm:$0xf] %v5618
      %5620 = vst [vmem:[%s233 + $0x58] sm:$0xf] %v5380
      %v5621 = vld [vmem:[%s233 + $0x5c] sm:$0x1]
      %v5622 = vsel %vm236, %v5381, %v5621
      %5623 = vst [vmem:[%s233 + $0x5c] sm:$0x1] %v5622
      %v5624 = vld [vmem:[%s233 + $0x60] sm:$0xf]
      %v5625 = vsel %vm5567, %v5388, %v5624
      %5626 = vst [vmem:[%s233 + $0x60] sm:$0xf] %v5625
      %5627 = vst [vmem:[%s233 + $0x64] sm:$0xf] %v5397
      %v5628 = vld [vmem:[%s233 + $0x68] sm:$0x1]
      %v5629 = vsel %vm236, %v5398, %v5628
      %5630 = vst [vmem:[%s233 + $0x68] sm:$0x1] %v5629
      %v5631 = vld [vmem:[%s233 + $0x6c] sm:$0xf]
      %v5632 = vsel %vm5567, %v5405, %v5631
      %5633 = vst [vmem:[%s233 + $0x6c] sm:$0xf] %v5632
      %5634 = vst [vmem:[%s233 + $0x70] sm:$0xf] %v5414
      %v5635 = vld [vmem:[%s233 + $0x74] sm:$0x1]
      %v5636 = vsel %vm236, %v5415, %v5635
      %5637 = vst [vmem:[%s233 + $0x74] sm:$0x1] %v5636
      %v5638 = vld [vmem:[%s233 + $0x78] sm:$0xf]
      %v5639 = vsel %vm5567, %v5422, %v5638
      %5640 = vst [vmem:[%s233 + $0x78] sm:$0xf] %v5639
      %5641 = vst [vmem:[%s233 + $0x7c] sm:$0xf] %v5431
      %v5642 = vld [vmem:[%s233 + $0x80] sm:$0x1]
      %v5643 = vsel %vm236, %v5432, %v5642
      %5644 = vst [vmem:[%s233 + $0x80] sm:$0x1] %v5643
      %v5645 = vld [vmem:[%s233 + $0x84] sm:$0xf]
      %v5646 = vsel %vm5567, %v5439, %v5645
      %5647 = vst [vmem:[%s233 + $0x84] sm:$0xf] %v5646
      %5648 = vst [vmem:[%s233 + $0x88] sm:$0xf] %v5448
      %v5649 = vld [vmem:[%s233 + $0x8c] sm:$0x1]
      %v5650 = vsel %vm236, %v5449, %v5649
      %5651 = vst [vmem:[%s233 + $0x8c] sm:$0x1] %v5650
      %v5652 = vld [vmem:[%s233 + $0x90] sm:$0xf]
      %v5653 = vsel %vm5567, %v5456, %v5652
      %5654 = vst [vmem:[%s233 + $0x90] sm:$0xf] %v5653
      %5655 = vst [vmem:[%s233 + $0x94] sm:$0xf] %v5465
      %v5656 = vld [vmem:[%s233 + $0x98] sm:$0x1]
      %v5657 = vsel %vm236, %v5466, %v5656
      %5658 = vst [vmem:[%s233 + $0x98] sm:$0x1] %v5657
      %v5659 = vld [vmem:[%s233 + $0x9c] sm:$0xf]
      %v5660 = vsel %vm5567, %v5473, %v5659
      %5661 = vst [vmem:[%s233 + $0x9c] sm:$0xf] %v5660
      %5662 = vst [vmem:[%s233 + $0xa0] sm:$0xf] %v5482
      %v5663 = vld [vmem:[%s233 + $0xa4] sm:$0x1]
      %v5664 = vsel %vm236, %v5483, %v5663
      %5665 = vst [vmem:[%s233 + $0xa4] sm:$0x1] %v5664
      %v5666 = vld [vmem:[%s233 + $0xa8] sm:$0xf]
      %v5667 = vsel %vm5567, %v5490, %v5666
      %5668 = vst [vmem:[%s233 + $0xa8] sm:$0xf] %v5667
      %5669 = vst [vmem:[%s233 + $0xac] sm:$0xf] %v5499
      %v5670 = vld [vmem:[%s233 + $0xb0] sm:$0x1]
      %v5671 = vsel %vm236, %v5500, %v5670
      %5672 = vst [vmem:[%s233 + $0xb0] sm:$0x1] %v5671
      %v5673 = vld [vmem:[%s233 + $0xb4] sm:$0xf]
      %v5674 = vsel %vm5567, %v5507, %v5673
      %5675 = vst [vmem:[%s233 + $0xb4] sm:$0xf] %v5674
      %5676 = vst [vmem:[%s233 + $0xb8] sm:$0xf] %v5516
      %v5677 = vld [vmem:[%s233 + $0xbc] sm:$0x1]
      %v5678 = vsel %vm236, %v5517, %v5677
      %5679 = vst [vmem:[%s233 + $0xbc] sm:$0x1] %v5678
      %v5680 = vld [vmem:[#allocation2] sm:$0xf]
      %v5681 = vld [vmem:[#allocation2 + $0x4] sm:$0xf]
      %v5682 = vld [vmem:[#allocation2 + $0xc] sm:$0xf]
      %v5683 = vld [vmem:[#allocation2 + $0x10] sm:$0xf]
      %v5684 = vld [vmem:[#allocation2 + $0x18] sm:$0xf]
      %v5685 = vld [vmem:[#allocation2 + $0x1c] sm:$0xf]
      %v5686 = vld [vmem:[#allocation2 + $0x24] sm:$0xf]
      %v5687 = vld [vmem:[#allocation2 + $0x28] sm:$0xf]
      %v5688 = vld [vmem:[#allocation2 + $0x30] sm:$0xf]
      %v5689 = vld [vmem:[#allocation2 + $0x34] sm:$0xf]
      %v5690 = vld [vmem:[#allocation2 + $0x3c] sm:$0xf]
      %v5691 = vld [vmem:[#allocation2 + $0x40] sm:$0xf]
      %v5692 = vld [vmem:[#allocation2 + $0x48] sm:$0xf]
      %v5693 = vld [vmem:[#allocation2 + $0x4c] sm:$0xf]
      %v5694 = vld [vmem:[#allocation2 + $0x54] sm:$0xf]
      %v5695 = vld [vmem:[#allocation2 + $0x58] sm:$0xf]
      %v5696 = vld [vmem:[#allocation2 + $0x60] sm:$0xf]
      %v5697 = vld [vmem:[#allocation2 + $0x64] sm:$0xf]
      %v5698 = vld [vmem:[#allocation2 + $0x6c] sm:$0xf]
      %v5699 = vld [vmem:[#allocation2 + $0x70] sm:$0xf]
      %v5700 = vld [vmem:[#allocation2 + $0x78] sm:$0xf]
      %v5701 = vld [vmem:[#allocation2 + $0x7c] sm:$0xf]
      %v5702 = vld [vmem:[#allocation2 + $0x84] sm:$0xf]
      %v5703 = vld [vmem:[#allocation2 + $0x88] sm:$0xf]
      %v5704 = vld [vmem:[#allocation2 + $0x90] sm:$0xf]
      %v5705 = vld [vmem:[#allocation2 + $0x94] sm:$0xf]
      %v5706 = vld [vmem:[#allocation2 + $0x9c] sm:$0xf]
      %v5707 = vld [vmem:[#allocation2 + $0xa0] sm:$0xf]
      %v5708 = vld [vmem:[#allocation2 + $0xa8] sm:$0xf]
      %v5709 = vld [vmem:[#allocation2 + $0xac] sm:$0xf]
      %v5710 = vld [vmem:[#allocation2 + $0xb4] sm:$0xf]
      %v5711 = vld [vmem:[#allocation2 + $0xb8] sm:$0xf]
      %5712 = vst [vmem:[#allocation3] sm:$0xf] %v5680
      %5713 = vst [vmem:[#allocation3 + $0x24] sm:$0xf] %v5681
      %5714 = vst [vmem:[#allocation3 + $0x48] sm:$0xf] %v5682
      %5715 = vst [vmem:[#allocation3 + $0x6c] sm:$0xf] %v5683
      %5716 = vst [vmem:[#allocation3 + $0x90] sm:$0xf] %v5684
      %5717 = vst [vmem:[#allocation3 + $0xb4] sm:$0xf] %v5685
      %5718 = vst [vmem:[#allocation3 + $0xd8] sm:$0xf] %v5686
      %5719 = vst [vmem:[#allocation3 + $0xfc] sm:$0xf] %v5687
      %5720 = vst [vmem:[#allocation3 + $0x120] sm:$0xf] %v5688
      %5721 = vst [vmem:[#allocation3 + $0x144] sm:$0xf] %v5689
      %5722 = vst [vmem:[#allocation3 + $0x168] sm:$0xf] %v5690
      %5723 = vst [vmem:[#allocation3 + $0x18c] sm:$0xf] %v5691
      %5724 = vst [vmem:[#allocation3 + $0x1b0] sm:$0xf] %v5692
      %5725 = vst [vmem:[#allocation3 + $0x1d4] sm:$0xf] %v5693
      %5726 = vst [vmem:[#allocation3 + $0x1f8] sm:$0xf] %v5694
      %5727 = vst [vmem:[#allocation3 + $0x21c] sm:$0xf] %v5695
      %5728 = vst [vmem:[#allocation3 + $0x240] sm:$0xf] %v5696
      %5729 = vst [vmem:[#allocation3 + $0x264] sm:$0xf] %v5697
      %5730 = vst [vmem:[#allocation3 + $0x288] sm:$0xf] %v5698
      %5731 = vst [vmem:[#allocation3 + $0x2ac] sm:$0xf] %v5699
      %5732 = vst [vmem:[#allocation3 + $0x2d0] sm:$0xf] %v5700
      %5733 = vst [vmem:[#allocation3 + $0x2f4] sm:$0xf] %v5701
      %5734 = vst [vmem:[#allocation3 + $0x318] sm:$0xf] %v5702
      %5735 = vst [vmem:[#allocation3 + $0x33c] sm:$0xf] %v5703
      %5736 = vst [vmem:[#allocation3 + $0x360] sm:$0xf] %v5704
      %5737 = vst [vmem:[#allocation3 + $0x384] sm:$0xf] %v5705
      %5738 = vst [vmem:[#allocation3 + $0x3a8] sm:$0xf] %v5706
      %5739 = vst [vmem:[#allocation3 + $0x3cc] sm:$0xf] %v5707
      %5740 = vst [vmem:[#allocation3 + $0x3f0] sm:$0xf] %v5708
      %5741 = vst [vmem:[#allocation3 + $0x414] sm:$0xf] %v5709
      %5742 = vst [vmem:[#allocation3 + $0x438] sm:$0xf] %v5710
      %5743 = vst [vmem:[#allocation3 + $0x45c] sm:$0xf] %v5711
      %v5744 = vld [vmem:[#allocation2] sm:$0xf]
      %v5745 = vld [vmem:[#allocation2 + $0x4] sm:$0xf]
      %v5746 = vld [vmem:[#allocation2 + $0x8] sm:$0x1]
      %v5747 = vld [vmem:[#allocation2 + $0xc] sm:$0xf]
      %v5748 = vld [vmem:[#allocation2 + $0x10] sm:$0xf]
      %v5749 = vld [vmem:[#allocation2 + $0x14] sm:$0x1]
      %v5750 = vld [vmem:[#allocation2 + $0x18] sm:$0xf]
      %v5751 = vld [vmem:[#allocation2 + $0x1c] sm:$0xf]
      %v5752 = vld [vmem:[#allocation2 + $0x20] sm:$0x1]
      %v5753 = vld [vmem:[#allocation2 + $0x24] sm:$0xf]
      %v5754 = vld [vmem:[#allocation2 + $0x28] sm:$0xf]
      %v5755 = vld [vmem:[#allocation2 + $0x2c] sm:$0x1]
      %v5756 = vld [vmem:[#allocation2 + $0x30] sm:$0xf]
      %v5757 = vld [vmem:[#allocation2 + $0x34] sm:$0xf]
      %v5758 = vld [vmem:[#allocation2 + $0x38] sm:$0x1]
      %v5759 = vld [vmem:[#allocation2 + $0x3c] sm:$0xf]
      %v5760 = vld [vmem:[#allocation2 + $0x40] sm:$0xf]
      %v5761 = vld [vmem:[#allocation2 + $0x44] sm:$0x1]
      %v5762 = vld [vmem:[#allocation2 + $0x48] sm:$0xf]
      %v5763 = vld [vmem:[#allocation2 + $0x4c] sm:$0xf]
      %v5764 = vld [vmem:[#allocation2 + $0x50] sm:$0x1]
      %v5765 = vld [vmem:[#allocation2 + $0x54] sm:$0xf]
      %v5766 = vld [vmem:[#allocation2 + $0x58] sm:$0xf]
      %v5767 = vld [vmem:[#allocation2 + $0x5c] sm:$0x1]
      %v5768 = vld [vmem:[#allocation2 + $0x60] sm:$0xf]
      %v5769 = vld [vmem:[#allocation2 + $0x64] sm:$0xf]
      %v5770 = vld [vmem:[#allocation2 + $0x68] sm:$0x1]
      %v5771 = vld [vmem:[#allocation2 + $0x6c] sm:$0xf]
      %v5772 = vld [vmem:[#allocation2 + $0x70] sm:$0xf]
      %v5773 = vld [vmem:[#allocation2 + $0x74] sm:$0x1]
      %v5774 = vld [vmem:[#allocation2 + $0x78] sm:$0xf]
      %v5775 = vld [vmem:[#allocation2 + $0x7c] sm:$0xf]
      %v5776 = vld [vmem:[#allocation2 + $0x80] sm:$0x1]
      %v5777 = vld [vmem:[#allocation2 + $0x84] sm:$0xf]
      %v5778 = vld [vmem:[#allocation2 + $0x88] sm:$0xf]
      %v5779 = vld [vmem:[#allocation2 + $0x8c] sm:$0x1]
      %v5780 = vld [vmem:[#allocation2 + $0x90] sm:$0xf]
      %v5781 = vld [vmem:[#allocation2 + $0x94] sm:$0xf]
      %v5782 = vld [vmem:[#allocation2 + $0x98] sm:$0x1]
      %v5783 = vld [vmem:[#allocation2 + $0x9c] sm:$0xf]
      %v5784 = vld [vmem:[#allocation2 + $0xa0] sm:$0xf]
      %v5785 = vld [vmem:[#allocation2 + $0xa4] sm:$0x1]
      %v5786 = vld [vmem:[#allocation2 + $0xa8] sm:$0xf]
      %v5787 = vld [vmem:[#allocation2 + $0xac] sm:$0xf]
      %v5788 = vld [vmem:[#allocation2 + $0xb0] sm:$0x1]
      %v5789 = vld [vmem:[#allocation2 + $0xb4] sm:$0xf]
      %v5790 = vld [vmem:[#allocation2 + $0xb8] sm:$0xf]
      %v5791 = vld [vmem:[#allocation2 + $0xbc] sm:$0x1]
      %v5793 = vshrl.u32 %v5744, 16
      %v5795 = vrot.slane %v5793, 4
      %v5796 = vshll.u32 %v5744, 16
      %v5798 = vrot.slane %v5796, 5
      %v5799 = vor.u32 %v5795, %v5798
      %v5800 = vrot.slane %v5799, 4
      %v5802 = vshll.u32 %v5745, 16
      %v5804 = vrot.slane %v5802, 5
      %v5805 = vsel %vm449, %v5800, %v5804
      %v5806 = vshrl.u32 %v5745, 16
      %v5808 = vrot.slane %v5806, 4
      %v5809 = vor.u32 %v5808, %v5804
      %v5810 = vrot.slane %v5809, 4
      %v5812 = vshll.u32 %v5746, 16
      %v5814 = vrot.slane %v5812, 5
      %v5815 = vsel %vm449, %v5810, %v5814
      %v5817 = vshrl.u32 %v5747, 16
      %v5819 = vrot.slane %v5817, 4
      %v5820 = vshll.u32 %v5747, 16
      %v5822 = vrot.slane %v5820, 5
      %v5823 = vor.u32 %v5819, %v5822
      %v5824 = vrot.slane %v5823, 4
      %v5826 = vshll.u32 %v5748, 16
      %v5828 = vrot.slane %v5826, 5
      %v5829 = vsel %vm449, %v5824, %v5828
      %v5830 = vshrl.u32 %v5748, 16
      %v5832 = vrot.slane %v5830, 4
      %v5833 = vor.u32 %v5832, %v5828
      %v5834 = vrot.slane %v5833, 4
      %v5836 = vshll.u32 %v5749, 16
      %v5838 = vrot.slane %v5836, 5
      %v5839 = vsel %vm449, %v5834, %v5838
      %v5841 = vshrl.u32 %v5750, 16
      %v5843 = vrot.slane %v5841, 4
      %v5844 = vshll.u32 %v5750, 16
      %v5846 = vrot.slane %v5844, 5
      %v5847 = vor.u32 %v5843, %v5846
      %v5848 = vrot.slane %v5847, 4
      %v5850 = vshll.u32 %v5751, 16
      %v5852 = vrot.slane %v5850, 5
      %v5853 = vsel %vm449, %v5848, %v5852
      %v5854 = vshrl.u32 %v5751, 16
      %v5856 = vrot.slane %v5854, 4
      %v5857 = vor.u32 %v5856, %v5852
      %v5858 = vrot.slane %v5857, 4
      %v5860 = vshll.u32 %v5752, 16
      %v5862 = vrot.slane %v5860, 5
      %v5863 = vsel %vm449, %v5858, %v5862
      %v5865 = vshrl.u32 %v5753, 16
      %v5867 = vrot.slane %v5865, 4
      %v5868 = vshll.u32 %v5753, 16
      %v5870 = vrot.slane %v5868, 5
      %v5871 = vor.u32 %v5867, %v5870
      %v5872 = vrot.slane %v5871, 4
      %v5874 = vshll.u32 %v5754, 16
      %v5876 = vrot.slane %v5874, 5
      %v5877 = vsel %vm449, %v5872, %v5876
      %v5878 = vshrl.u32 %v5754, 16
      %v5880 = vrot.slane %v5878, 4
      %v5881 = vor.u32 %v5880, %v5876
      %v5882 = vrot.slane %v5881, 4
      %v5884 = vshll.u32 %v5755, 16
      %v5886 = vrot.slane %v5884, 5
      %v5887 = vsel %vm449, %v5882, %v5886
      %v5889 = vshrl.u32 %v5756, 16
      %v5891 = vrot.slane %v5889, 4
      %v5892 = vshll.u32 %v5756, 16
      %v5894 = vrot.slane %v5892, 5
      %v5895 = vor.u32 %v5891, %v5894
      %v5896 = vrot.slane %v5895, 4
      %v5898 = vshll.u32 %v5757, 16
      %v5900 = vrot.slane %v5898, 5
      %v5901 = vsel %vm449, %v5896, %v5900
      %v5902 = vshrl.u32 %v5757, 16
      %v5904 = vrot.slane %v5902, 4
      %v5905 = vor.u32 %v5904, %v5900
      %v5906 = vrot.slane %v5905, 4
      %v5908 = vshll.u32 %v5758, 16
      %v5910 = vrot.slane %v5908, 5
      %v5911 = vsel %vm449, %v5906, %v5910
      %v5913 = vshrl.u32 %v5759, 16
      %v5915 = vrot.slane %v5913, 4
      %v5916 = vshll.u32 %v5759, 16
      %v5918 = vrot.slane %v5916, 5
      %v5919 = vor.u32 %v5915, %v5918
      %v5920 = vrot.slane %v5919, 4
      %v5922 = vshll.u32 %v5760, 16
      %v5924 = vrot.slane %v5922, 5
      %v5925 = vsel %vm449, %v5920, %v5924
      %v5926 = vshrl.u32 %v5760, 16
      %v5928 = vrot.slane %v5926, 4
      %v5929 = vor.u32 %v5928, %v5924
      %v5930 = vrot.slane %v5929, 4
      %v5932 = vshll.u32 %v5761, 16
      %v5934 = vrot.slane %v5932, 5
      %v5935 = vsel %vm449, %v5930, %v5934
      %v5937 = vshrl.u32 %v5762, 16
      %v5939 = vrot.slane %v5937, 4
      %v5940 = vshll.u32 %v5762, 16
      %v5942 = vrot.slane %v5940, 5
      %v5943 = vor.u32 %v5939, %v5942
      %v5944 = vrot.slane %v5943, 4
      %v5946 = vshll.u32 %v5763, 16
      %v5948 = vrot.slane %v5946, 5
      %v5949 = vsel %vm449, %v5944, %v5948
      %v5950 = vshrl.u32 %v5763, 16
      %v5952 = vrot.slane %v5950, 4
      %v5953 = vor.u32 %v5952, %v5948
      %v5954 = vrot.slane %v5953, 4
      %v5956 = vshll.u32 %v5764, 16
      %v5958 = vrot.slane %v5956, 5
      %v5959 = vsel %vm449, %v5954, %v5958
      %v5961 = vshrl.u32 %v5765, 16
      %v5963 = vrot.slane %v5961, 4
      %v5964 = vshll.u32 %v5765, 16
      %v5966 = vrot.slane %v5964, 5
      %v5967 = vor.u32 %v5963, %v5966
      %v5968 = vrot.slane %v5967, 4
      %v5970 = vshll.u32 %v5766, 16
      %v5972 = vrot.slane %v5970, 5
      %v5973 = vsel %vm449, %v5968, %v5972
      %v5974 = vshrl.u32 %v5766, 16
      %v5976 = vrot.slane %v5974, 4
      %v5977 = vor.u32 %v5976, %v5972
      %v5978 = vrot.slane %v5977, 4
      %v5980 = vshll.u32 %v5767, 16
      %v5982 = vrot.slane %v5980, 5
      %v5983 = vsel %vm449, %v5978, %v5982
      %v5985 = vshrl.u32 %v5768, 16
      %v5987 = vrot.slane %v5985, 4
      %v5988 = vshll.u32 %v5768, 16
      %v5990 = vrot.slane %v5988, 5
      %v5991 = vor.u32 %v5987, %v5990
      %v5992 = vrot.slane %v5991, 4
      %v5994 = vshll.u32 %v5769, 16
      %v5996 = vrot.slane %v5994, 5
      %v5997 = vsel %vm449, %v5992, %v5996
      %v5998 = vshrl.u32 %v5769, 16
      %v6000 = vrot.slane %v5998, 4
      %v6001 = vor.u32 %v6000, %v5996
      %v6002 = vrot.slane %v6001, 4
      %v6004 = vshll.u32 %v5770, 16
      %v6006 = vrot.slane %v6004, 5
      %v6007 = vsel %vm449, %v6002, %v6006
      %v6009 = vshrl.u32 %v5771, 16
      %v6011 = vrot.slane %v6009, 4
      %v6012 = vshll.u32 %v5771, 16
      %v6014 = vrot.slane %v6012, 5
      %v6015 = vor.u32 %v6011, %v6014
      %v6016 = vrot.slane %v6015, 4
      %v6018 = vshll.u32 %v5772, 16
      %v6020 = vrot.slane %v6018, 5
      %v6021 = vsel %vm449, %v6016, %v6020
      %v6022 = vshrl.u32 %v5772, 16
      %v6024 = vrot.slane %v6022, 4
      %v6025 = vor.u32 %v6024, %v6020
      %v6026 = vrot.slane %v6025, 4
      %v6028 = vshll.u32 %v5773, 16
      %v6030 = vrot.slane %v6028, 5
      %v6031 = vsel %vm449, %v6026, %v6030
      %v6033 = vshrl.u32 %v5774, 16
      %v6035 = vrot.slane %v6033, 4
      %v6036 = vshll.u32 %v5774, 16
      %v6038 = vrot.slane %v6036, 5
      %v6039 = vor.u32 %v6035, %v6038
      %v6040 = vrot.slane %v6039, 4
      %v6042 = vshll.u32 %v5775, 16
      %v6044 = vrot.slane %v6042, 5
      %v6045 = vsel %vm449, %v6040, %v6044
      %v6046 = vshrl.u32 %v5775, 16
      %v6048 = vrot.slane %v6046, 4
      %v6049 = vor.u32 %v6048, %v6044
      %v6050 = vrot.slane %v6049, 4
      %v6052 = vshll.u32 %v5776, 16
      %v6054 = vrot.slane %v6052, 5
      %v6055 = vsel %vm449, %v6050, %v6054
      %v6057 = vshrl.u32 %v5777, 16
      %v6059 = vrot.slane %v6057, 4
      %v6060 = vshll.u32 %v5777, 16
      %v6062 = vrot.slane %v6060, 5
      %v6063 = vor.u32 %v6059, %v6062
      %v6064 = vrot.slane %v6063, 4
      %v6066 = vshll.u32 %v5778, 16
      %v6068 = vrot.slane %v6066, 5
      %v6069 = vsel %vm449, %v6064, %v6068
      %v6070 = vshrl.u32 %v5778, 16
      %v6072 = vrot.slane %v6070, 4
      %v6073 = vor.u32 %v6072, %v6068
      %v6074 = vrot.slane %v6073, 4
      %v6076 = vshll.u32 %v5779, 16
      %v6078 = vrot.slane %v6076, 5
      %v6079 = vsel %vm449, %v6074, %v6078
      %v6081 = vshrl.u32 %v5780, 16
      %v6083 = vrot.slane %v6081, 4
      %v6084 = vshll.u32 %v5780, 16
      %v6086 = vrot.slane %v6084, 5
      %v6087 = vor.u32 %v6083, %v6086
      %v6088 = vrot.slane %v6087, 4
      %v6090 = vshll.u32 %v5781, 16
      %v6092 = vrot.slane %v6090, 5
      %v6093 = vsel %vm449, %v6088, %v6092
      %v6094 = vshrl.u32 %v5781, 16
      %v6096 = vrot.slane %v6094, 4
      %v6097 = vor.u32 %v6096, %v6092
      %v6098 = vrot.slane %v6097, 4
      %v6100 = vshll.u32 %v5782, 16
      %v6102 = vrot.slane %v6100, 5
      %v6103 = vsel %vm449, %v6098, %v6102
      %v6105 = vshrl.u32 %v5783, 16
      %v6107 = vrot.slane %v6105, 4
      %v6108 = vshll.u32 %v5783, 16
      %v6110 = vrot.slane %v6108, 5
      %v6111 = vor.u32 %v6107, %v6110
      %v6112 = vrot.slane %v6111, 4
      %v6114 = vshll.u32 %v5784, 16
      %v6116 = vrot.slane %v6114, 5
      %v6117 = vsel %vm449, %v6112, %v6116
      %v6118 = vshrl.u32 %v5784, 16
      %v6120 = vrot.slane %v6118, 4
      %v6121 = vor.u32 %v6120, %v6116
      %v6122 = vrot.slane %v6121, 4
      %v6124 = vshll.u32 %v5785, 16
      %v6126 = vrot.slane %v6124, 5
      %v6127 = vsel %vm449, %v6122, %v6126
      %v6129 = vshrl.u32 %v5786, 16
      %v6131 = vrot.slane %v6129, 4
      %v6132 = vshll.u32 %v5786, 16
      %v6134 = vrot.slane %v6132, 5
      %v6135 = vor.u32 %v6131, %v6134
      %v6136 = vrot.slane %v6135, 4
      %v6138 = vshll.u32 %v5787, 16
      %v6140 = vrot.slane %v6138, 5
      %v6141 = vsel %vm449, %v6136, %v6140
      %v6142 = vshrl.u32 %v5787, 16
      %v6144 = vrot.slane %v6142, 4
      %v6145 = vor.u32 %v6144, %v6140
      %v6146 = vrot.slane %v6145, 4
      %v6148 = vshll.u32 %v5788, 16
      %v6150 = vrot.slane %v6148, 5
      %v6151 = vsel %vm449, %v6146, %v6150
      %v6153 = vshrl.u32 %v5789, 16
      %v6155 = vrot.slane %v6153, 4
      %v6156 = vshll.u32 %v5789, 16
      %v6158 = vrot.slane %v6156, 5
      %v6159 = vor.u32 %v6155, %v6158
      %v6160 = vrot.slane %v6159, 4
      %v6162 = vshll.u32 %v5790, 16
      %v6164 = vrot.slane %v6162, 5
      %v6165 = vsel %vm449, %v6160, %v6164
      %v6166 = vshrl.u32 %v5790, 16
      %v6168 = vrot.slane %v6166, 4
      %v6169 = vor.u32 %v6168, %v6164
      %v6170 = vrot.slane %v6169, 4
      %v6172 = vshll.u32 %v5791, 16
      %v6174 = vrot.slane %v6172, 5
      %v6175 = vsel %vm449, %v6170, %v6174
      %6208 = vst [vmem:[#allocation3 + $0x4] sm:$0xf] %v5805
      %6209 = vst [vmem:[#allocation3 + $0x28] sm:$0xf] %v5815
      %6210 = vst [vmem:[#allocation3 + $0x4c] sm:$0xf] %v5829
      %6211 = vst [vmem:[#allocation3 + $0x70] sm:$0xf] %v5839
      %6212 = vst [vmem:[#allocation3 + $0x94] sm:$0xf] %v5853
      %6213 = vst [vmem:[#allocation3 + $0xb8] sm:$0xf] %v5863
      %6214 = vst [vmem:[#allocation3 + $0xdc] sm:$0xf] %v5877
      %6215 = vst [vmem:[#allocation3 + $0x100] sm:$0xf] %v5887
      %6216 = vst [vmem:[#allocation3 + $0x124] sm:$0xf] %v5901
      %6217 = vst [vmem:[#allocation3 + $0x148] sm:$0xf] %v5911
      %6218 = vst [vmem:[#allocation3 + $0x16c] sm:$0xf] %v5925
      %6219 = vst [vmem:[#allocation3 + $0x190] sm:$0xf] %v5935
      %6220 = vst [vmem:[#allocation3 + $0x1b4] sm:$0xf] %v5949
      %6221 = vst [vmem:[#allocation3 + $0x1d8] sm:$0xf] %v5959
      %6222 = vst [vmem:[#allocation3 + $0x1fc] sm:$0xf] %v5973
      %6223 = vst [vmem:[#allocation3 + $0x220] sm:$0xf] %v5983
      %6224 = vst [vmem:[#allocation3 + $0x244] sm:$0xf] %v5997
      %6225 = vst [vmem:[#allocation3 + $0x268] sm:$0xf] %v6007
      %6226 = vst [vmem:[#allocation3 + $0x28c] sm:$0xf] %v6021
      %6227 = vst [vmem:[#allocation3 + $0x2b0] sm:$0xf] %v6031
      %6228 = vst [vmem:[#allocation3 + $0x2d4] sm:$0xf] %v6045
      %6229 = vst [vmem:[#allocation3 + $0x2f8] sm:$0xf] %v6055
      %6230 = vst [vmem:[#allocation3 + $0x31c] sm:$0xf] %v6069
      %6231 = vst [vmem:[#allocation3 + $0x340] sm:$0xf] %v6079
      %6232 = vst [vmem:[#allocation3 + $0x364] sm:$0xf] %v6093
      %6233 = vst [vmem:[#allocation3 + $0x388] sm:$0xf] %v6103
      %6234 = vst [vmem:[#allocation3 + $0x3ac] sm:$0xf] %v6117
      %6235 = vst [vmem:[#allocation3 + $0x3d0] sm:$0xf] %v6127
      %6236 = vst [vmem:[#allocation3 + $0x3f4] sm:$0xf] %v6141
      %6237 = vst [vmem:[#allocation3 + $0x418] sm:$0xf] %v6151
      %6238 = vst [vmem:[#allocation3 + $0x43c] sm:$0xf] %v6165
      %6239 = vst [vmem:[#allocation3 + $0x460] sm:$0xf] %v6175
      %v6240 = vld [vmem:[#allocation2] sm:$0xe]
      %v6241 = vld [vmem:[#allocation2 + $0x4] sm:$0xf]
      %v6242 = vld [vmem:[#allocation2 + $0x8] sm:$0x1]
      %v6243 = vld [vmem:[#allocation2 + $0xc] sm:$0xe]
      %v6244 = vld [vmem:[#allocation2 + $0x10] sm:$0xf]
      %v6245 = vld [vmem:[#allocation2 + $0x14] sm:$0x1]
      %v6246 = vld [vmem:[#allocation2 + $0x18] sm:$0xe]
      %v6247 = vld [vmem:[#allocation2 + $0x1c] sm:$0xf]
      %v6248 = vld [vmem:[#allocation2 + $0x20] sm:$0x1]
      %v6249 = vld [vmem:[#allocation2 + $0x24] sm:$0xe]
      %v6250 = vld [vmem:[#allocation2 + $0x28] sm:$0xf]
      %v6251 = vld [vmem:[#allocation2 + $0x2c] sm:$0x1]
      %v6252 = vld [vmem:[#allocation2 + $0x30] sm:$0xe]
      %v6253 = vld [vmem:[#allocation2 + $0x34] sm:$0xf]
      %v6254 = vld [vmem:[#allocation2 + $0x38] sm:$0x1]
      %v6255 = vld [vmem:[#allocation2 + $0x3c] sm:$0xe]
      %v6256 = vld [vmem:[#allocation2 + $0x40] sm:$0xf]
      %v6257 = vld [vmem:[#allocation2 + $0x44] sm:$0x1]
      %v6258 = vld [vmem:[#allocation2 + $0x48] sm:$0xe]
      %v6259 = vld [vmem:[#allocation2 + $0x4c] sm:$0xf]
      %v6260 = vld [vmem:[#allocation2 + $0x50] sm:$0x1]
      %v6261 = vld [vmem:[#allocation2 + $0x54] sm:$0xe]
      %v6262 = vld [vmem:[#allocation2 + $0x58] sm:$0xf]
      %v6263 = vld [vmem:[#allocation2 + $0x5c] sm:$0x1]
      %v6264 = vld [vmem:[#allocation2 + $0x60] sm:$0xe]
      %v6265 = vld [vmem:[#allocation2 + $0x64] sm:$0xf]
      %v6266 = vld [vmem:[#allocation2 + $0x68] sm:$0x1]
      %v6267 = vld [vmem:[#allocation2 + $0x6c] sm:$0xe]
      %v6268 = vld [vmem:[#allocation2 + $0x70] sm:$0xf]
      %v6269 = vld [vmem:[#allocation2 + $0x74] sm:$0x1]
      %v6270 = vld [vmem:[#allocation2 + $0x78] sm:$0xe]
      %v6271 = vld [vmem:[#allocation2 + $0x7c] sm:$0xf]
      %v6272 = vld [vmem:[#allocation2 + $0x80] sm:$0x1]
      %v6273 = vld [vmem:[#allocation2 + $0x84] sm:$0xe]
      %v6274 = vld [vmem:[#allocation2 + $0x88] sm:$0xf]
      %v6275 = vld [vmem:[#allocation2 + $0x8c] sm:$0x1]
      %v6276 = vld [vmem:[#allocation2 + $0x90] sm:$0xe]
      %v6277 = vld [vmem:[#allocation2 + $0x94] sm:$0xf]
      %v6278 = vld [vmem:[#allocation2 + $0x98] sm:$0x1]
      %v6279 = vld [vmem:[#allocation2 + $0x9c] sm:$0xe]
      %v6280 = vld [vmem:[#allocation2 + $0xa0] sm:$0xf]
      %v6281 = vld [vmem:[#allocation2 + $0xa4] sm:$0x1]
      %v6282 = vld [vmem:[#allocation2 + $0xa8] sm:$0xe]
      %v6283 = vld [vmem:[#allocation2 + $0xac] sm:$0xf]
      %v6284 = vld [vmem:[#allocation2 + $0xb0] sm:$0x1]
      %v6285 = vld [vmem:[#allocation2 + $0xb4] sm:$0xe]
      %v6286 = vld [vmem:[#allocation2 + $0xb8] sm:$0xf]
      %v6287 = vld [vmem:[#allocation2 + $0xbc] sm:$0x1]
      %v6336 = vrot.slane %v6240, 5
      %v6337 = vrot.slane %v6336, 4
      %v6338 = vrot.slane %v6241, 5
      %v6339 = vsel %vm996, %v6337, %v6338
      %v6340 = vrot.slane %v6338, 4
      %v6341 = vrot.slane %v6242, 5
      %v6342 = vsel %vm996, %v6340, %v6341
      %v6343 = vrot.slane %v6243, 5
      %v6344 = vrot.slane %v6343, 4
      %v6345 = vrot.slane %v6244, 5
      %v6346 = vsel %vm996, %v6344, %v6345
      %v6347 = vrot.slane %v6345, 4
      %v6348 = vrot.slane %v6245, 5
      %v6349 = vsel %vm996, %v6347, %v6348
      %v6350 = vrot.slane %v6246, 5
      %v6351 = vrot.slane %v6350, 4
      %v6352 = vrot.slane %v6247, 5
      %v6353 = vsel %vm996, %v6351, %v6352
      %v6354 = vrot.slane %v6352, 4
      %v6355 = vrot.slane %v6248, 5
      %v6356 = vsel %vm996, %v6354, %v6355
      %v6357 = vrot.slane %v6249, 5
      %v6358 = vrot.slane %v6357, 4
      %v6359 = vrot.slane %v6250, 5
      %v6360 = vsel %vm996, %v6358, %v6359
      %v6361 = vrot.slane %v6359, 4
      %v6362 = vrot.slane %v6251, 5
      %v6363 = vsel %vm996, %v6361, %v6362
      %v6364 = vrot.slane %v6252, 5
      %v6365 = vrot.slane %v6364, 4
      %v6366 = vrot.slane %v6253, 5
      %v6367 = vsel %vm996, %v6365, %v6366
      %v6368 = vrot.slane %v6366, 4
      %v6369 = vrot.slane %v6254, 5
      %v6370 = vsel %vm996, %v6368, %v6369
      %v6371 = vrot.slane %v6255, 5
      %v6372 = vrot.slane %v6371, 4
      %v6373 = vrot.slane %v6256, 5
      %v6374 = vsel %vm996, %v6372, %v6373
      %v6375 = vrot.slane %v6373, 4
      %v6376 = vrot.slane %v6257, 5
      %v6377 = vsel %vm996, %v6375, %v6376
      %v6378 = vrot.slane %v6258, 5
      %v6379 = vrot.slane %v6378, 4
      %v6380 = vrot.slane %v6259, 5
      %v6381 = vsel %vm996, %v6379, %v6380
      %v6382 = vrot.slane %v6380, 4
      %v6383 = vrot.slane %v6260, 5
      %v6384 = vsel %vm996, %v6382, %v6383
      %v6385 = vrot.slane %v6261, 5
      %v6386 = vrot.slane %v6385, 4
      %v6387 = vrot.slane %v6262, 5
      %v6388 = vsel %vm996, %v6386, %v6387
      %v6389 = vrot.slane %v6387, 4
      %v6390 = vrot.slane %v6263, 5
      %v6391 = vsel %vm996, %v6389, %v6390
      %v6392 = vrot.slane %v6264, 5
      %v6393 = vrot.slane %v6392, 4
      %v6394 = vrot.slane %v6265, 5
      %v6395 = vsel %vm996, %v6393, %v6394
      %v6396 = vrot.slane %v6394, 4
      %v6397 = vrot.slane %v6266, 5
      %v6398 = vsel %vm996, %v6396, %v6397
      %v6399 = vrot.slane %v6267, 5
      %v6400 = vrot.slane %v6399, 4
      %v6401 = vrot.slane %v6268, 5
      %v6402 = vsel %vm996, %v6400, %v6401
      %v6403 = vrot.slane %v6401, 4
      %v6404 = vrot.slane %v6269, 5
      %v6405 = vsel %vm996, %v6403, %v6404
      %v6406 = vrot.slane %v6270, 5
      %v6407 = vrot.slane %v6406, 4
      %v6408 = vrot.slane %v6271, 5
      %v6409 = vsel %vm996, %v6407, %v6408
      %v6410 = vrot.slane %v6408, 4
      %v6411 = vrot.slane %v6272, 5
      %v6412 = vsel %vm996, %v6410, %v6411
      %v6413 = vrot.slane %v6273, 5
      %v6414 = vrot.slane %v6413, 4
      %v6415 = vrot.slane %v6274, 5
      %v6416 = vsel %vm996, %v6414, %v6415
      %v6417 = vrot.slane %v6415, 4
      %v6418 = vrot.slane %v6275, 5
      %v6419 = vsel %vm996, %v6417, %v6418
      %v6420 = vrot.slane %v6276, 5
      %v6421 = vrot.slane %v6420, 4
      %v6422 = vrot.slane %v6277, 5
      %v6423 = vsel %vm996, %v6421, %v6422
      %v6424 = vrot.slane %v6422, 4
      %v6425 = vrot.slane %v6278, 5
      %v6426 = vsel %vm996, %v6424, %v6425
      %v6427 = vrot.slane %v6279, 5
      %v6428 = vrot.slane %v6427, 4
      %v6429 = vrot.slane %v6280, 5
      %v6430 = vsel %vm996, %v6428, %v6429
      %v6431 = vrot.slane %v6429, 4
      %v6432 = vrot.slane %v6281, 5
      %v6433 = vsel %vm996, %v6431, %v6432
      %v6434 = vrot.slane %v6282, 5
      %v6435 = vrot.slane %v6434, 4
      %v6436 = vrot.slane %v6283, 5
      %v6437 = vsel %vm996, %v6435, %v6436
      %v6438 = vrot.slane %v6436, 4
      %v6439 = vrot.slane %v6284, 5
      %v6440 = vsel %vm996, %v6438, %v6439
      %v6441 = vrot.slane %v6285, 5
      %v6442 = vrot.slane %v6441, 4
      %v6443 = vrot.slane %v6286, 5
      %v6444 = vsel %vm996, %v6442, %v6443
      %v6445 = vrot.slane %v6443, 4
      %v6446 = vrot.slane %v6287, 5
      %v6447 = vsel %vm996, %v6445, %v6446
      %6480 = vst [vmem:[#allocation3 + $0x8] sm:$0xf] %v6339
      %6481 = vst [vmem:[#allocation3 + $0x2c] sm:$0xf] %v6342
      %6482 = vst [vmem:[#allocation3 + $0x50] sm:$0xf] %v6346
      %6483 = vst [vmem:[#allocation3 + $0x74] sm:$0xf] %v6349
      %6484 = vst [vmem:[#allocation3 + $0x98] sm:$0xf] %v6353
      %6485 = vst [vmem:[#allocation3 + $0xbc] sm:$0xf] %v6356
      %6486 = vst [vmem:[#allocation3 + $0xe0] sm:$0xf] %v6360
      %6487 = vst [vmem:[#allocation3 + $0x104] sm:$0xf] %v6363
      %6488 = vst [vmem:[#allocation3 + $0x128] sm:$0xf] %v6367
      %6489 = vst [vmem:[#allocation3 + $0x14c] sm:$0xf] %v6370
      %6490 = vst [vmem:[#allocation3 + $0x170] sm:$0xf] %v6374
      %6491 = vst [vmem:[#allocation3 + $0x194] sm:$0xf] %v6377
      %6492 = vst [vmem:[#allocation3 + $0x1b8] sm:$0xf] %v6381
      %6493 = vst [vmem:[#allocation3 + $0x1dc] sm:$0xf] %v6384
      %6494 = vst [vmem:[#allocation3 + $0x200] sm:$0xf] %v6388
      %6495 = vst [vmem:[#allocation3 + $0x224] sm:$0xf] %v6391
      %6496 = vst [vmem:[#allocation3 + $0x248] sm:$0xf] %v6395
      %6497 = vst [vmem:[#allocation3 + $0x26c] sm:$0xf] %v6398
      %6498 = vst [vmem:[#allocation3 + $0x290] sm:$0xf] %v6402
      %6499 = vst [vmem:[#allocation3 + $0x2b4] sm:$0xf] %v6405
      %6500 = vst [vmem:[#allocation3 + $0x2d8] sm:$0xf] %v6409
      %6501 = vst [vmem:[#allocation3 + $0x2fc] sm:$0xf] %v6412
      %6502 = vst [vmem:[#allocation3 + $0x320] sm:$0xf] %v6416
      %6503 = vst [vmem:[#allocation3 + $0x344] sm:$0xf] %v6419
      %6504 = vst [vmem:[#allocation3 + $0x368] sm:$0xf] %v6423
      %6505 = vst [vmem:[#allocation3 + $0x38c] sm:$0xf] %v6426
      %6506 = vst [vmem:[#allocation3 + $0x3b0] sm:$0xf] %v6430
      %6507 = vst [vmem:[#allocation3 + $0x3d4] sm:$0xf] %v6433
      %6508 = vst [vmem:[#allocation3 + $0x3f8] sm:$0xf] %v6437
      %6509 = vst [vmem:[#allocation3 + $0x41c] sm:$0xf] %v6440
      %6510 = vst [vmem:[#allocation3 + $0x440] sm:$0xf] %v6444
      %6511 = vst [vmem:[#allocation3 + $0x464] sm:$0xf] %v6447
      %v6512 = vld [vmem:[%s233] sm:$0xf]
      %v6513 = vld [vmem:[%s233 + $0x4] sm:$0xf]
      %v6514 = vld [vmem:[%s233 + $0xc] sm:$0xf]
      %v6515 = vld [vmem:[%s233 + $0x10] sm:$0xf]
      %v6516 = vld [vmem:[%s233 + $0x18] sm:$0xf]
      %v6517 = vld [vmem:[%s233 + $0x1c] sm:$0xf]
      %v6518 = vld [vmem:[%s233 + $0x24] sm:$0xf]
      %v6519 = vld [vmem:[%s233 + $0x28] sm:$0xf]
      %v6520 = vld [vmem:[%s233 + $0x30] sm:$0xf]
      %v6521 = vld [vmem:[%s233 + $0x34] sm:$0xf]
      %v6522 = vld [vmem:[%s233 + $0x3c] sm:$0xf]
      %v6523 = vld [vmem:[%s233 + $0x40] sm:$0xf]
      %v6524 = vld [vmem:[%s233 + $0x48] sm:$0xf]
      %v6525 = vld [vmem:[%s233 + $0x4c] sm:$0xf]
      %v6526 = vld [vmem:[%s233 + $0x54] sm:$0xf]
      %v6527 = vld [vmem:[%s233 + $0x58] sm:$0xf]
      %v6528 = vld [vmem:[%s233 + $0x60] sm:$0xf]
      %v6529 = vld [vmem:[%s233 + $0x64] sm:$0xf]
      %v6530 = vld [vmem:[%s233 + $0x6c] sm:$0xf]
      %v6531 = vld [vmem:[%s233 + $0x70] sm:$0xf]
      %v6532 = vld [vmem:[%s233 + $0x78] sm:$0xf]
      %v6533 = vld [vmem:[%s233 + $0x7c] sm:$0xf]
      %v6534 = vld [vmem:[%s233 + $0x84] sm:$0xf]
      %v6535 = vld [vmem:[%s233 + $0x88] sm:$0xf]
      %v6536 = vld [vmem:[%s233 + $0x90] sm:$0xf]
      %v6537 = vld [vmem:[%s233 + $0x94] sm:$0xf]
      %v6538 = vld [vmem:[%s233 + $0x9c] sm:$0xf]
      %v6539 = vld [vmem:[%s233 + $0xa0] sm:$0xf]
      %v6540 = vld [vmem:[%s233 + $0xa8] sm:$0xf]
      %v6541 = vld [vmem:[%s233 + $0xac] sm:$0xf]
      %v6542 = vld [vmem:[%s233 + $0xb4] sm:$0xf]
      %v6543 = vld [vmem:[%s233 + $0xb8] sm:$0xf]
      %6544 = vst [vmem:[#allocation3 + $0xc] sm:$0xf] %v6512
      %6545 = vst [vmem:[#allocation3 + $0x30] sm:$0xf] %v6513
      %6546 = vst [vmem:[#allocation3 + $0x54] sm:$0xf] %v6514
      %6547 = vst [vmem:[#allocation3 + $0x78] sm:$0xf] %v6515
      %6548 = vst [vmem:[#allocation3 + $0x9c] sm:$0xf] %v6516
      %6549 = vst [vmem:[#allocation3 + $0xc0] sm:$0xf] %v6517
      %6550 = vst [vmem:[#allocation3 + $0xe4] sm:$0xf] %v6518
      %6551 = vst [vmem:[#allocation3 + $0x108] sm:$0xf] %v6519
      %6552 = vst [vmem:[#allocation3 + $0x12c] sm:$0xf] %v6520
      %6553 = vst [vmem:[#allocation3 + $0x150] sm:$0xf] %v6521
      %6554 = vst [vmem:[#allocation3 + $0x174] sm:$0xf] %v6522
      %6555 = vst [vmem:[#allocation3 + $0x198] sm:$0xf] %v6523
      %6556 = vst [vmem:[#allocation3 + $0x1bc] sm:$0xf] %v6524
      %6557 = vst [vmem:[#allocation3 + $0x1e0] sm:$0xf] %v6525
      %6558 = vst [vmem:[#allocation3 + $0x204] sm:$0xf] %v6526
      %6559 = vst [vmem:[#allocation3 + $0x228] sm:$0xf] %v6527
      %6560 = vst [vmem:[#allocation3 + $0x24c] sm:$0xf] %v6528
      %6561 = vst [vmem:[#allocation3 + $0x270] sm:$0xf] %v6529
      %6562 = vst [vmem:[#allocation3 + $0x294] sm:$0xf] %v6530
      %6563 = vst [vmem:[#allocation3 + $0x2b8] sm:$0xf] %v6531
      %6564 = vst [vmem:[#allocation3 + $0x2dc] sm:$0xf] %v6532
      %6565 = vst [vmem:[#allocation3 + $0x300] sm:$0xf] %v6533
      %6566 = vst [vmem:[#allocation3 + $0x324] sm:$0xf] %v6534
      %6567 = vst [vmem:[#allocation3 + $0x348] sm:$0xf] %v6535
      %6568 = vst [vmem:[#allocation3 + $0x36c] sm:$0xf] %v6536
      %6569 = vst [vmem:[#allocation3 + $0x390] sm:$0xf] %v6537
      %6570 = vst [vmem:[#allocation3 + $0x3b4] sm:$0xf] %v6538
      %6571 = vst [vmem:[#allocation3 + $0x3d8] sm:$0xf] %v6539
      %6572 = vst [vmem:[#allocation3 + $0x3fc] sm:$0xf] %v6540
      %6573 = vst [vmem:[#allocation3 + $0x420] sm:$0xf] %v6541
      %6574 = vst [vmem:[#allocation3 + $0x444] sm:$0xf] %v6542
      %6575 = vst [vmem:[#allocation3 + $0x468] sm:$0xf] %v6543
      %v6576 = vld [vmem:[%s233] sm:$0xf]
      %v6577 = vld [vmem:[%s233 + $0x4] sm:$0xf]
      %v6578 = vld [vmem:[%s233 + $0x8] sm:$0x1]
      %v6579 = vld [vmem:[%s233 + $0xc] sm:$0xf]
      %v6580 = vld [vmem:[%s233 + $0x10] sm:$0xf]
      %v6581 = vld [vmem:[%s233 + $0x14] sm:$0x1]
      %v6582 = vld [vmem:[%s233 + $0x18] sm:$0xf]
      %v6583 = vld [vmem:[%s233 + $0x1c] sm:$0xf]
      %v6584 = vld [vmem:[%s233 + $0x20] sm:$0x1]
      %v6585 = vld [vmem:[%s233 + $0x24] sm:$0xf]
      %v6586 = vld [vmem:[%s233 + $0x28] sm:$0xf]
      %v6587 = vld [vmem:[%s233 + $0x2c] sm:$0x1]
      %v6588 = vld [vmem:[%s233 + $0x30] sm:$0xf]
      %v6589 = vld [vmem:[%s233 + $0x34] sm:$0xf]
      %v6590 = vld [vmem:[%s233 + $0x38] sm:$0x1]
      %v6591 = vld [vmem:[%s233 + $0x3c] sm:$0xf]
      %v6592 = vld [vmem:[%s233 + $0x40] sm:$0xf]
      %v6593 = vld [vmem:[%s233 + $0x44] sm:$0x1]
      %v6594 = vld [vmem:[%s233 + $0x48] sm:$0xf]
      %v6595 = vld [vmem:[%s233 + $0x4c] sm:$0xf]
      %v6596 = vld [vmem:[%s233 + $0x50] sm:$0x1]
      %v6597 = vld [vmem:[%s233 + $0x54] sm:$0xf]
      %v6598 = vld [vmem:[%s233 + $0x58] sm:$0xf]
      %v6599 = vld [vmem:[%s233 + $0x5c] sm:$0x1]
      %v6600 = vld [vmem:[%s233 + $0x60] sm:$0xf]
      %v6601 = vld [vmem:[%s233 + $0x64] sm:$0xf]
      %v6602 = vld [vmem:[%s233 + $0x68] sm:$0x1]
      %v6603 = vld [vmem:[%s233 + $0x6c] sm:$0xf]
      %v6604 = vld [vmem:[%s233 + $0x70] sm:$0xf]
      %v6605 = vld [vmem:[%s233 + $0x74] sm:$0x1]
      %v6606 = vld [vmem:[%s233 + $0x78] sm:$0xf]
      %v6607 = vld [vmem:[%s233 + $0x7c] sm:$0xf]
      %v6608 = vld [vmem:[%s233 + $0x80] sm:$0x1]
      %v6609 = vld [vmem:[%s233 + $0x84] sm:$0xf]
      %v6610 = vld [vmem:[%s233 + $0x88] sm:$0xf]
      %v6611 = vld [vmem:[%s233 + $0x8c] sm:$0x1]
      %v6612 = vld [vmem:[%s233 + $0x90] sm:$0xf]
      %v6613 = vld [vmem:[%s233 + $0x94] sm:$0xf]
      %v6614 = vld [vmem:[%s233 + $0x98] sm:$0x1]
      %v6615 = vld [vmem:[%s233 + $0x9c] sm:$0xf]
      %v6616 = vld [vmem:[%s233 + $0xa0] sm:$0xf]
      %v6617 = vld [vmem:[%s233 + $0xa4] sm:$0x1]
      %v6618 = vld [vmem:[%s233 + $0xa8] sm:$0xf]
      %v6619 = vld [vmem:[%s233 + $0xac] sm:$0xf]
      %v6620 = vld [vmem:[%s233 + $0xb0] sm:$0x1]
      %v6621 = vld [vmem:[%s233 + $0xb4] sm:$0xf]
      %v6622 = vld [vmem:[%s233 + $0xb8] sm:$0xf]
      %v6623 = vld [vmem:[%s233 + $0xbc] sm:$0x1]
      %v6625 = vshrl.u32 %v6576, 16
      %v6627 = vrot.slane %v6625, 4
      %v6628 = vshll.u32 %v6576, 16
      %v6630 = vrot.slane %v6628, 5
      %v6631 = vor.u32 %v6627, %v6630
      %v6632 = vrot.slane %v6631, 4
      %v6634 = vshll.u32 %v6577, 16
      %v6636 = vrot.slane %v6634, 5
      %v6637 = vsel %vm449, %v6632, %v6636
      %v6638 = vshrl.u32 %v6577, 16
      %v6640 = vrot.slane %v6638, 4
      %v6641 = vor.u32 %v6640, %v6636
      %v6642 = vrot.slane %v6641, 4
      %v6644 = vshll.u32 %v6578, 16
      %v6646 = vrot.slane %v6644, 5
      %v6647 = vsel %vm449, %v6642, %v6646
      %v6649 = vshrl.u32 %v6579, 16
      %v6651 = vrot.slane %v6649, 4
      %v6652 = vshll.u32 %v6579, 16
      %v6654 = vrot.slane %v6652, 5
      %v6655 = vor.u32 %v6651, %v6654
      %v6656 = vrot.slane %v6655, 4
      %v6658 = vshll.u32 %v6580, 16
      %v6660 = vrot.slane %v6658, 5
      %v6661 = vsel %vm449, %v6656, %v6660
      %v6662 = vshrl.u32 %v6580, 16
      %v6664 = vrot.slane %v6662, 4
      %v6665 = vor.u32 %v6664, %v6660
      %v6666 = vrot.slane %v6665, 4
      %v6668 = vshll.u32 %v6581, 16
      %v6670 = vrot.slane %v6668, 5
      %v6671 = vsel %vm449, %v6666, %v6670
      %v6673 = vshrl.u32 %v6582, 16
      %v6675 = vrot.slane %v6673, 4
      %v6676 = vshll.u32 %v6582, 16
      %v6678 = vrot.slane %v6676, 5
      %v6679 = vor.u32 %v6675, %v6678
      %v6680 = vrot.slane %v6679, 4
      %v6682 = vshll.u32 %v6583, 16
      %v6684 = vrot.slane %v6682, 5
      %v6685 = vsel %vm449, %v6680, %v6684
      %v6686 = vshrl.u32 %v6583, 16
      %v6688 = vrot.slane %v6686, 4
      %v6689 = vor.u32 %v6688, %v6684
      %v6690 = vrot.slane %v6689, 4
      %v6692 = vshll.u32 %v6584, 16
      %v6694 = vrot.slane %v6692, 5
      %v6695 = vsel %vm449, %v6690, %v6694
      %v6697 = vshrl.u32 %v6585, 16
      %v6699 = vrot.slane %v6697, 4
      %v6700 = vshll.u32 %v6585, 16
      %v6702 = vrot.slane %v6700, 5
      %v6703 = vor.u32 %v6699, %v6702
      %v6704 = vrot.slane %v6703, 4
      %v6706 = vshll.u32 %v6586, 16
      %v6708 = vrot.slane %v6706, 5
      %v6709 = vsel %vm449, %v6704, %v6708
      %v6710 = vshrl.u32 %v6586, 16
      %v6712 = vrot.slane %v6710, 4
      %v6713 = vor.u32 %v6712, %v6708
      %v6714 = vrot.slane %v6713, 4
      %v6716 = vshll.u32 %v6587, 16
      %v6718 = vrot.slane %v6716, 5
      %v6719 = vsel %vm449, %v6714, %v6718
      %v6721 = vshrl.u32 %v6588, 16
      %v6723 = vrot.slane %v6721, 4
      %v6724 = vshll.u32 %v6588, 16
      %v6726 = vrot.slane %v6724, 5
      %v6727 = vor.u32 %v6723, %v6726
      %v6728 = vrot.slane %v6727, 4
      %v6730 = vshll.u32 %v6589, 16
      %v6732 = vrot.slane %v6730, 5
      %v6733 = vsel %vm449, %v6728, %v6732
      %v6734 = vshrl.u32 %v6589, 16
      %v6736 = vrot.slane %v6734, 4
      %v6737 = vor.u32 %v6736, %v6732
      %v6738 = vrot.slane %v6737, 4
      %v6740 = vshll.u32 %v6590, 16
      %v6742 = vrot.slane %v6740, 5
      %v6743 = vsel %vm449, %v6738, %v6742
      %v6745 = vshrl.u32 %v6591, 16
      %v6747 = vrot.slane %v6745, 4
      %v6748 = vshll.u32 %v6591, 16
      %v6750 = vrot.slane %v6748, 5
      %v6751 = vor.u32 %v6747, %v6750
      %v6752 = vrot.slane %v6751, 4
      %v6754 = vshll.u32 %v6592, 16
      %v6756 = vrot.slane %v6754, 5
      %v6757 = vsel %vm449, %v6752, %v6756
      %v6758 = vshrl.u32 %v6592, 16
      %v6760 = vrot.slane %v6758, 4
      %v6761 = vor.u32 %v6760, %v6756
      %v6762 = vrot.slane %v6761, 4
      %v6764 = vshll.u32 %v6593, 16
      %v6766 = vrot.slane %v6764, 5
      %v6767 = vsel %vm449, %v6762, %v6766
      %v6769 = vshrl.u32 %v6594, 16
      %v6771 = vrot.slane %v6769, 4
      %v6772 = vshll.u32 %v6594, 16
      %v6774 = vrot.slane %v6772, 5
      %v6775 = vor.u32 %v6771, %v6774
      %v6776 = vrot.slane %v6775, 4
      %v6778 = vshll.u32 %v6595, 16
      %v6780 = vrot.slane %v6778, 5
      %v6781 = vsel %vm449, %v6776, %v6780
      %v6782 = vshrl.u32 %v6595, 16
      %v6784 = vrot.slane %v6782, 4
      %v6785 = vor.u32 %v6784, %v6780
      %v6786 = vrot.slane %v6785, 4
      %v6788 = vshll.u32 %v6596, 16
      %v6790 = vrot.slane %v6788, 5
      %v6791 = vsel %vm449, %v6786, %v6790
      %v6793 = vshrl.u32 %v6597, 16
      %v6795 = vrot.slane %v6793, 4
      %v6796 = vshll.u32 %v6597, 16
      %v6798 = vrot.slane %v6796, 5
      %v6799 = vor.u32 %v6795, %v6798
      %v6800 = vrot.slane %v6799, 4
      %v6802 = vshll.u32 %v6598, 16
      %v6804 = vrot.slane %v6802, 5
      %v6805 = vsel %vm449, %v6800, %v6804
      %v6806 = vshrl.u32 %v6598, 16
      %v6808 = vrot.slane %v6806, 4
      %v6809 = vor.u32 %v6808, %v6804
      %v6810 = vrot.slane %v6809, 4
      %v6812 = vshll.u32 %v6599, 16
      %v6814 = vrot.slane %v6812, 5
      %v6815 = vsel %vm449, %v6810, %v6814
      %v6817 = vshrl.u32 %v6600, 16
      %v6819 = vrot.slane %v6817, 4
      %v6820 = vshll.u32 %v6600, 16
      %v6822 = vrot.slane %v6820, 5
      %v6823 = vor.u32 %v6819, %v6822
      %v6824 = vrot.slane %v6823, 4
      %v6826 = vshll.u32 %v6601, 16
      %v6828 = vrot.slane %v6826, 5
      %v6829 = vsel %vm449, %v6824, %v6828
      %v6830 = vshrl.u32 %v6601, 16
      %v6832 = vrot.slane %v6830, 4
      %v6833 = vor.u32 %v6832, %v6828
      %v6834 = vrot.slane %v6833, 4
      %v6836 = vshll.u32 %v6602, 16
      %v6838 = vrot.slane %v6836, 5
      %v6839 = vsel %vm449, %v6834, %v6838
      %v6841 = vshrl.u32 %v6603, 16
      %v6843 = vrot.slane %v6841, 4
      %v6844 = vshll.u32 %v6603, 16
      %v6846 = vrot.slane %v6844, 5
      %v6847 = vor.u32 %v6843, %v6846
      %v6848 = vrot.slane %v6847, 4
      %v6850 = vshll.u32 %v6604, 16
      %v6852 = vrot.slane %v6850, 5
      %v6853 = vsel %vm449, %v6848, %v6852
      %v6854 = vshrl.u32 %v6604, 16
      %v6856 = vrot.slane %v6854, 4
      %v6857 = vor.u32 %v6856, %v6852
      %v6858 = vrot.slane %v6857, 4
      %v6860 = vshll.u32 %v6605, 16
      %v6862 = vrot.slane %v6860, 5
      %v6863 = vsel %vm449, %v6858, %v6862
      %v6865 = vshrl.u32 %v6606, 16
      %v6867 = vrot.slane %v6865, 4
      %v6868 = vshll.u32 %v6606, 16
      %v6870 = vrot.slane %v6868, 5
      %v6871 = vor.u32 %v6867, %v6870
      %v6872 = vrot.slane %v6871, 4
      %v6874 = vshll.u32 %v6607, 16
      %v6876 = vrot.slane %v6874, 5
      %v6877 = vsel %vm449, %v6872, %v6876
      %v6878 = vshrl.u32 %v6607, 16
      %v6880 = vrot.slane %v6878, 4
      %v6881 = vor.u32 %v6880, %v6876
      %v6882 = vrot.slane %v6881, 4
      %v6884 = vshll.u32 %v6608, 16
      %v6886 = vrot.slane %v6884, 5
      %v6887 = vsel %vm449, %v6882, %v6886
      %v6889 = vshrl.u32 %v6609, 16
      %v6891 = vrot.slane %v6889, 4
      %v6892 = vshll.u32 %v6609, 16
      %v6894 = vrot.slane %v6892, 5
      %v6895 = vor.u32 %v6891, %v6894
      %v6896 = vrot.slane %v6895, 4
      %v6898 = vshll.u32 %v6610, 16
      %v6900 = vrot.slane %v6898, 5
      %v6901 = vsel %vm449, %v6896, %v6900
      %v6902 = vshrl.u32 %v6610, 16
      %v6904 = vrot.slane %v6902, 4
      %v6905 = vor.u32 %v6904, %v6900
      %v6906 = vrot.slane %v6905, 4
      %v6908 = vshll.u32 %v6611, 16
      %v6910 = vrot.slane %v6908, 5
      %v6911 = vsel %vm449, %v6906, %v6910
      %v6913 = vshrl.u32 %v6612, 16
      %v6915 = vrot.slane %v6913, 4
      %v6916 = vshll.u32 %v6612, 16
      %v6918 = vrot.slane %v6916, 5
      %v6919 = vor.u32 %v6915, %v6918
      %v6920 = vrot.slane %v6919, 4
      %v6922 = vshll.u32 %v6613, 16
      %v6924 = vrot.slane %v6922, 5
      %v6925 = vsel %vm449, %v6920, %v6924
      %v6926 = vshrl.u32 %v6613, 16
      %v6928 = vrot.slane %v6926, 4
      %v6929 = vor.u32 %v6928, %v6924
      %v6930 = vrot.slane %v6929, 4
      %v6932 = vshll.u32 %v6614, 16
      %v6934 = vrot.slane %v6932, 5
      %v6935 = vsel %vm449, %v6930, %v6934
      %v6937 = vshrl.u32 %v6615, 16
      %v6939 = vrot.slane %v6937, 4
      %v6940 = vshll.u32 %v6615, 16
      %v6942 = vrot.slane %v6940, 5
      %v6943 = vor.u32 %v6939, %v6942
      %v6944 = vrot.slane %v6943, 4
      %v6946 = vshll.u32 %v6616, 16
      %v6948 = vrot.slane %v6946, 5
      %v6949 = vsel %vm449, %v6944, %v6948
      %v6950 = vshrl.u32 %v6616, 16
      %v6952 = vrot.slane %v6950, 4
      %v6953 = vor.u32 %v6952, %v6948
      %v6954 = vrot.slane %v6953, 4
      %v6956 = vshll.u32 %v6617, 16
      %v6958 = vrot.slane %v6956, 5
      %v6959 = vsel %vm449, %v6954, %v6958
      %v6961 = vshrl.u32 %v6618, 16
      %v6963 = vrot.slane %v6961, 4
      %v6964 = vshll.u32 %v6618, 16
      %v6966 = vrot.slane %v6964, 5
      %v6967 = vor.u32 %v6963, %v6966
      %v6968 = vrot.slane %v6967, 4
      %v6970 = vshll.u32 %v6619, 16
      %v6972 = vrot.slane %v6970, 5
      %v6973 = vsel %vm449, %v6968, %v6972
      %v6974 = vshrl.u32 %v6619, 16
      %v6976 = vrot.slane %v6974, 4
      %v6977 = vor.u32 %v6976, %v6972
      %v6978 = vrot.slane %v6977, 4
      %v6980 = vshll.u32 %v6620, 16
      %v6982 = vrot.slane %v6980, 5
      %v6983 = vsel %vm449, %v6978, %v6982
      %v6985 = vshrl.u32 %v6621, 16
      %v6987 = vrot.slane %v6985, 4
      %v6988 = vshll.u32 %v6621, 16
      %v6990 = vrot.slane %v6988, 5
      %v6991 = vor.u32 %v6987, %v6990
      %v6992 = vrot.slane %v6991, 4
      %v6994 = vshll.u32 %v6622, 16
      %v6996 = vrot.slane %v6994, 5
      %v6997 = vsel %vm449, %v6992, %v6996
      %v6998 = vshrl.u32 %v6622, 16
      %v7000 = vrot.slane %v6998, 4
      %v7001 = vor.u32 %v7000, %v6996
      %v7002 = vrot.slane %v7001, 4
      %v7004 = vshll.u32 %v6623, 16
      %v7006 = vrot.slane %v7004, 5
      %v7007 = vsel %vm449, %v7002, %v7006
      %7040 = vst [vmem:[#allocation3 + $0x10] sm:$0xf] %v6637
      %7041 = vst [vmem:[#allocation3 + $0x34] sm:$0xf] %v6647
      %7042 = vst [vmem:[#allocation3 + $0x58] sm:$0xf] %v6661
      %7043 = vst [vmem:[#allocation3 + $0x7c] sm:$0xf] %v6671
      %7044 = vst [vmem:[#allocation3 + $0xa0] sm:$0xf] %v6685
      %7045 = vst [vmem:[#allocation3 + $0xc4] sm:$0xf] %v6695
      %7046 = vst [vmem:[#allocation3 + $0xe8] sm:$0xf] %v6709
      %7047 = vst [vmem:[#allocation3 + $0x10c] sm:$0xf] %v6719
      %7048 = vst [vmem:[#allocation3 + $0x130] sm:$0xf] %v6733
      %7049 = vst [vmem:[#allocation3 + $0x154] sm:$0xf] %v6743
      %7050 = vst [vmem:[#allocation3 + $0x178] sm:$0xf] %v6757
      %7051 = vst [vmem:[#allocation3 + $0x19c] sm:$0xf] %v6767
      %7052 = vst [vmem:[#allocation3 + $0x1c0] sm:$0xf] %v6781
      %7053 = vst [vmem:[#allocation3 + $0x1e4] sm:$0xf] %v6791
      %7054 = vst [vmem:[#allocation3 + $0x208] sm:$0xf] %v6805
      %7055 = vst [vmem:[#allocation3 + $0x22c] sm:$0xf] %v6815
      %7056 = vst [vmem:[#allocation3 + $0x250] sm:$0xf] %v6829
      %7057 = vst [vmem:[#allocation3 + $0x274] sm:$0xf] %v6839
      %7058 = vst [vmem:[#allocation3 + $0x298] sm:$0xf] %v6853
      %7059 = vst [vmem:[#allocation3 + $0x2bc] sm:$0xf] %v6863
      %7060 = vst [vmem:[#allocation3 + $0x2e0] sm:$0xf] %v6877
      %7061 = vst [vmem:[#allocation3 + $0x304] sm:$0xf] %v6887
      %7062 = vst [vmem:[#allocation3 + $0x328] sm:$0xf] %v6901
      %7063 = vst [vmem:[#allocation3 + $0x34c] sm:$0xf] %v6911
      %7064 = vst [vmem:[#allocation3 + $0x370] sm:$0xf] %v6925
      %7065 = vst [vmem:[#allocation3 + $0x394] sm:$0xf] %v6935
      %7066 = vst [vmem:[#allocation3 + $0x3b8] sm:$0xf] %v6949
      %7067 = vst [vmem:[#allocation3 + $0x3dc] sm:$0xf] %v6959
      %7068 = vst [vmem:[#allocation3 + $0x400] sm:$0xf] %v6973
      %7069 = vst [vmem:[#allocation3 + $0x424] sm:$0xf] %v6983
      %7070 = vst [vmem:[#allocation3 + $0x448] sm:$0xf] %v6997
      %7071 = vst [vmem:[#allocation3 + $0x46c] sm:$0xf] %v7007
      %v7072 = vld [vmem:[%s233] sm:$0xe]
      %v7073 = vld [vmem:[%s233 + $0x4] sm:$0xf]
      %v7074 = vld [vmem:[%s233 + $0x8] sm:$0x1]
      %v7075 = vld [vmem:[%s233 + $0xc] sm:$0xe]
      %v7076 = vld [vmem:[%s233 + $0x10] sm:$0xf]
      %v7077 = vld [vmem:[%s233 + $0x14] sm:$0x1]
      %v7078 = vld [vmem:[%s233 + $0x18] sm:$0xe]
      %v7079 = vld [vmem:[%s233 + $0x1c] sm:$0xf]
      %v7080 = vld [vmem:[%s233 + $0x20] sm:$0x1]
      %v7081 = vld [vmem:[%s233 + $0x24] sm:$0xe]
      %v7082 = vld [vmem:[%s233 + $0x28] sm:$0xf]
      %v7083 = vld [vmem:[%s233 + $0x2c] sm:$0x1]
      %v7084 = vld [vmem:[%s233 + $0x30] sm:$0xe]
      %v7085 = vld [vmem:[%s233 + $0x34] sm:$0xf]
      %v7086 = vld [vmem:[%s233 + $0x38] sm:$0x1]
      %v7087 = vld [vmem:[%s233 + $0x3c] sm:$0xe]
      %v7088 = vld [vmem:[%s233 + $0x40] sm:$0xf]
      %v7089 = vld [vmem:[%s233 + $0x44] sm:$0x1]
      %v7090 = vld [vmem:[%s233 + $0x48] sm:$0xe]
      %v7091 = vld [vmem:[%s233 + $0x4c] sm:$0xf]
      %v7092 = vld [vmem:[%s233 + $0x50] sm:$0x1]
      %v7093 = vld [vmem:[%s233 + $0x54] sm:$0xe]
      %v7094 = vld [vmem:[%s233 + $0x58] sm:$0xf]
      %v7095 = vld [vmem:[%s233 + $0x5c] sm:$0x1]
      %v7096 = vld [vmem:[%s233 + $0x60] sm:$0xe]
      %v7097 = vld [vmem:[%s233 + $0x64] sm:$0xf]
      %v7098 = vld [vmem:[%s233 + $0x68] sm:$0x1]
      %v7099 = vld [vmem:[%s233 + $0x6c] sm:$0xe]
      %v7100 = vld [vmem:[%s233 + $0x70] sm:$0xf]
      %v7101 = vld [vmem:[%s233 + $0x74] sm:$0x1]
      %v7102 = vld [vmem:[%s233 + $0x78] sm:$0xe]
      %v7103 = vld [vmem:[%s233 + $0x7c] sm:$0xf]
      %v7104 = vld [vmem:[%s233 + $0x80] sm:$0x1]
      %v7105 = vld [vmem:[%s233 + $0x84] sm:$0xe]
      %v7106 = vld [vmem:[%s233 + $0x88] sm:$0xf]
      %v7107 = vld [vmem:[%s233 + $0x8c] sm:$0x1]
      %v7108 = vld [vmem:[%s233 + $0x90] sm:$0xe]
      %v7109 = vld [vmem:[%s233 + $0x94] sm:$0xf]
      %v7110 = vld [vmem:[%s233 + $0x98] sm:$0x1]
      %v7111 = vld [vmem:[%s233 + $0x9c] sm:$0xe]
      %v7112 = vld [vmem:[%s233 + $0xa0] sm:$0xf]
      %v7113 = vld [vmem:[%s233 + $0xa4] sm:$0x1]
      %v7114 = vld [vmem:[%s233 + $0xa8] sm:$0xe]
      %v7115 = vld [vmem:[%s233 + $0xac] sm:$0xf]
      %v7116 = vld [vmem:[%s233 + $0xb0] sm:$0x1]
      %v7117 = vld [vmem:[%s233 + $0xb4] sm:$0xe]
      %v7118 = vld [vmem:[%s233 + $0xb8] sm:$0xf]
      %v7119 = vld [vmem:[%s233 + $0xbc] sm:$0x1]
      %v7168 = vrot.slane %v7072, 5
      %v7169 = vrot.slane %v7168, 4
      %v7170 = vrot.slane %v7073, 5
      %v7171 = vsel %vm996, %v7169, %v7170
      %v7172 = vrot.slane %v7170, 4
      %v7173 = vrot.slane %v7074, 5
      %v7174 = vsel %vm996, %v7172, %v7173
      %v7175 = vrot.slane %v7075, 5
      %v7176 = vrot.slane %v7175, 4
      %v7177 = vrot.slane %v7076, 5
      %v7178 = vsel %vm996, %v7176, %v7177
      %v7179 = vrot.slane %v7177, 4
      %v7180 = vrot.slane %v7077, 5
      %v7181 = vsel %vm996, %v7179, %v7180
      %v7182 = vrot.slane %v7078, 5
      %v7183 = vrot.slane %v7182, 4
      %v7184 = vrot.slane %v7079, 5
      %v7185 = vsel %vm996, %v7183, %v7184
      %v7186 = vrot.slane %v7184, 4
      %v7187 = vrot.slane %v7080, 5
      %v7188 = vsel %vm996, %v7186, %v7187
      %v7189 = vrot.slane %v7081, 5
      %v7190 = vrot.slane %v7189, 4
      %v7191 = vrot.slane %v7082, 5
      %v7192 = vsel %vm996, %v7190, %v7191
      %v7193 = vrot.slane %v7191, 4
      %v7194 = vrot.slane %v7083, 5
      %v7195 = vsel %vm996, %v7193, %v7194
      %v7196 = vrot.slane %v7084, 5
      %v7197 = vrot.slane %v7196, 4
      %v7198 = vrot.slane %v7085, 5
      %v7199 = vsel %vm996, %v7197, %v7198
      %v7200 = vrot.slane %v7198, 4
      %v7201 = vrot.slane %v7086, 5
      %v7202 = vsel %vm996, %v7200, %v7201
      %v7203 = vrot.slane %v7087, 5
      %v7204 = vrot.slane %v7203, 4
      %v7205 = vrot.slane %v7088, 5
      %v7206 = vsel %vm996, %v7204, %v7205
      %v7207 = vrot.slane %v7205, 4
      %v7208 = vrot.slane %v7089, 5
      %v7209 = vsel %vm996, %v7207, %v7208
      %v7210 = vrot.slane %v7090, 5
      %v7211 = vrot.slane %v7210, 4
      %v7212 = vrot.slane %v7091, 5
      %v7213 = vsel %vm996, %v7211, %v7212
      %v7214 = vrot.slane %v7212, 4
      %v7215 = vrot.slane %v7092, 5
      %v7216 = vsel %vm996, %v7214, %v7215
      %v7217 = vrot.slane %v7093, 5
      %v7218 = vrot.slane %v7217, 4
      %v7219 = vrot.slane %v7094, 5
      %v7220 = vsel %vm996, %v7218, %v7219
      %v7221 = vrot.slane %v7219, 4
      %v7222 = vrot.slane %v7095, 5
      %v7223 = vsel %vm996, %v7221, %v7222
      %v7224 = vrot.slane %v7096, 5
      %v7225 = vrot.slane %v7224, 4
      %v7226 = vrot.slane %v7097, 5
      %v7227 = vsel %vm996, %v7225, %v7226
      %v7228 = vrot.slane %v7226, 4
      %v7229 = vrot.slane %v7098, 5
      %v7230 = vsel %vm996, %v7228, %v7229
      %v7231 = vrot.slane %v7099, 5
      %v7232 = vrot.slane %v7231, 4
      %v7233 = vrot.slane %v7100, 5
      %v7234 = vsel %vm996, %v7232, %v7233
      %v7235 = vrot.slane %v7233, 4
      %v7236 = vrot.slane %v7101, 5
      %v7237 = vsel %vm996, %v7235, %v7236
      %v7238 = vrot.slane %v7102, 5
      %v7239 = vrot.slane %v7238, 4
      %v7240 = vrot.slane %v7103, 5
      %v7241 = vsel %vm996, %v7239, %v7240
      %v7242 = vrot.slane %v7240, 4
      %v7243 = vrot.slane %v7104, 5
      %v7244 = vsel %vm996, %v7242, %v7243
      %v7245 = vrot.slane %v7105, 5
      %v7246 = vrot.slane %v7245, 4
      %v7247 = vrot.slane %v7106, 5
      %v7248 = vsel %vm996, %v7246, %v7247
      %v7249 = vrot.slane %v7247, 4
      %v7250 = vrot.slane %v7107, 5
      %v7251 = vsel %vm996, %v7249, %v7250
      %v7252 = vrot.slane %v7108, 5
      %v7253 = vrot.slane %v7252, 4
      %v7254 = vrot.slane %v7109, 5
      %v7255 = vsel %vm996, %v7253, %v7254
      %v7256 = vrot.slane %v7254, 4
      %v7257 = vrot.slane %v7110, 5
      %v7258 = vsel %vm996, %v7256, %v7257
      %v7259 = vrot.slane %v7111, 5
      %v7260 = vrot.slane %v7259, 4
      %v7261 = vrot.slane %v7112, 5
      %v7262 = vsel %vm996, %v7260, %v7261
      %v7263 = vrot.slane %v7261, 4
      %v7264 = vrot.slane %v7113, 5
      %v7265 = vsel %vm996, %v7263, %v7264
      %v7266 = vrot.slane %v7114, 5
      %v7267 = vrot.slane %v7266, 4
      %v7268 = vrot.slane %v7115, 5
      %v7269 = vsel %vm996, %v7267, %v7268
      %v7270 = vrot.slane %v7268, 4
      %v7271 = vrot.slane %v7116, 5
      %v7272 = vsel %vm996, %v7270, %v7271
      %v7273 = vrot.slane %v7117, 5
      %v7274 = vrot.slane %v7273, 4
      %v7275 = vrot.slane %v7118, 5
      %v7276 = vsel %vm996, %v7274, %v7275
      %v7277 = vrot.slane %v7275, 4
      %v7278 = vrot.slane %v7119, 5
      %v7279 = vsel %vm996, %v7277, %v7278
      %7312 = vst [vmem:[#allocation3 + $0x14] sm:$0xf] %v7171
      %7313 = vst [vmem:[#allocation3 + $0x38] sm:$0xf] %v7174
      %7314 = vst [vmem:[#allocation3 + $0x5c] sm:$0xf] %v7178
      %7315 = vst [vmem:[#allocation3 + $0x80] sm:$0xf] %v7181
      %7316 = vst [vmem:[#allocation3 + $0xa4] sm:$0xf] %v7185
      %7317 = vst [vmem:[#allocation3 + $0xc8] sm:$0xf] %v7188
      %7318 = vst [vmem:[#allocation3 + $0xec] sm:$0xf] %v7192
      %7319 = vst [vmem:[#allocation3 + $0x110] sm:$0xf] %v7195
      %7320 = vst [vmem:[#allocation3 + $0x134] sm:$0xf] %v7199
      %7321 = vst [vmem:[#allocation3 + $0x158] sm:$0xf] %v7202
      %7322 = vst [vmem:[#allocation3 + $0x17c] sm:$0xf] %v7206
      %7323 = vst [vmem:[#allocation3 + $0x1a0] sm:$0xf] %v7209
      %7324 = vst [vmem:[#allocation3 + $0x1c4] sm:$0xf] %v7213
      %7325 = vst [vmem:[#allocation3 + $0x1e8] sm:$0xf] %v7216
      %7326 = vst [vmem:[#allocation3 + $0x20c] sm:$0xf] %v7220
      %7327 = vst [vmem:[#allocation3 + $0x230] sm:$0xf] %v7223
      %7328 = vst [vmem:[#allocation3 + $0x254] sm:$0xf] %v7227
      %7329 = vst [vmem:[#allocation3 + $0x278] sm:$0xf] %v7230
      %7330 = vst [vmem:[#allocation3 + $0x29c] sm:$0xf] %v7234
      %7331 = vst [vmem:[#allocation3 + $0x2c0] sm:$0xf] %v7237
      %7332 = vst [vmem:[#allocation3 + $0x2e4] sm:$0xf] %v7241
      %7333 = vst [vmem:[#allocation3 + $0x308] sm:$0xf] %v7244
      %7334 = vst [vmem:[#allocation3 + $0x32c] sm:$0xf] %v7248
      %7335 = vst [vmem:[#allocation3 + $0x350] sm:$0xf] %v7251
      %7336 = vst [vmem:[#allocation3 + $0x374] sm:$0xf] %v7255
      %7337 = vst [vmem:[#allocation3 + $0x398] sm:$0xf] %v7258
      %7338 = vst [vmem:[#allocation3 + $0x3bc] sm:$0xf] %v7262
      %7339 = vst [vmem:[#allocation3 + $0x3e0] sm:$0xf] %v7265
      %7340 = vst [vmem:[#allocation3 + $0x404] sm:$0xf] %v7269
      %7341 = vst [vmem:[#allocation3 + $0x428] sm:$0xf] %v7272
      %7342 = vst [vmem:[#allocation3 + $0x44c] sm:$0xf] %v7276
      %7343 = vst [vmem:[#allocation3 + $0x470] sm:$0xf] %v7279
      %s7344 = scalar_lea.vmem [#allocation2], 24
      %v7345 = vld [vmem:[%s7344] sm:$0xf]
      %v7346 = vld [vmem:[%s7344 + $0x4] sm:$0xf]
      %v7347 = vld [vmem:[%s7344 + $0xc] sm:$0xf]
      %v7348 = vld [vmem:[%s7344 + $0x10] sm:$0xf]
      %v7349 = vld [vmem:[%s7344 + $0x18] sm:$0xf]
      %v7350 = vld [vmem:[%s7344 + $0x1c] sm:$0xf]
      %v7351 = vld [vmem:[%s7344 + $0x24] sm:$0xf]
      %v7352 = vld [vmem:[%s7344 + $0x28] sm:$0xf]
      %v7353 = vld [vmem:[%s7344 + $0x30] sm:$0xf]
      %v7354 = vld [vmem:[%s7344 + $0x34] sm:$0xf]
      %v7355 = vld [vmem:[%s7344 + $0x3c] sm:$0xf]
      %v7356 = vld [vmem:[%s7344 + $0x40] sm:$0xf]
      %v7357 = vld [vmem:[%s7344 + $0x48] sm:$0xf]
      %v7358 = vld [vmem:[%s7344 + $0x4c] sm:$0xf]
      %v7359 = vld [vmem:[%s7344 + $0x54] sm:$0xf]
      %v7360 = vld [vmem:[%s7344 + $0x58] sm:$0xf]
      %v7361 = vld [vmem:[%s7344 + $0x60] sm:$0xf]
      %v7362 = vld [vmem:[%s7344 + $0x64] sm:$0xf]
      %v7363 = vld [vmem:[%s7344 + $0x6c] sm:$0xf]
      %v7364 = vld [vmem:[%s7344 + $0x70] sm:$0xf]
      %v7365 = vld [vmem:[%s7344 + $0x78] sm:$0xf]
      %v7366 = vld [vmem:[%s7344 + $0x7c] sm:$0xf]
      %v7367 = vld [vmem:[%s7344 + $0x84] sm:$0xf]
      %v7368 = vld [vmem:[%s7344 + $0x88] sm:$0xf]
      %v7369 = vld [vmem:[%s7344 + $0x90] sm:$0xf]
      %v7370 = vld [vmem:[%s7344 + $0x94] sm:$0xf]
      %v7371 = vld [vmem:[%s7344 + $0x9c] sm:$0xf]
      %v7372 = vld [vmem:[%s7344 + $0xa0] sm:$0xf]
      %v7373 = vld [vmem:[%s7344 + $0xa8] sm:$0xf]
      %v7374 = vld [vmem:[%s7344 + $0xac] sm:$0xf]
      %v7375 = vld [vmem:[%s7344 + $0xb4] sm:$0xf]
      %v7376 = vld [vmem:[%s7344 + $0xb8] sm:$0xf]
      %7377 = vst [vmem:[#allocation3 + $0x18] sm:$0xf] %v7345
      %7378 = vst [vmem:[#allocation3 + $0x3c] sm:$0xf] %v7346
      %7379 = vst [vmem:[#allocation3 + $0x60] sm:$0xf] %v7347
      %7380 = vst [vmem:[#allocation3 + $0x84] sm:$0xf] %v7348
      %7381 = vst [vmem:[#allocation3 + $0xa8] sm:$0xf] %v7349
      %7382 = vst [vmem:[#allocation3 + $0xcc] sm:$0xf] %v7350
      %7383 = vst [vmem:[#allocation3 + $0xf0] sm:$0xf] %v7351
      %7384 = vst [vmem:[#allocation3 + $0x114] sm:$0xf] %v7352
      %7385 = vst [vmem:[#allocation3 + $0x138] sm:$0xf] %v7353
      %7386 = vst [vmem:[#allocation3 + $0x15c] sm:$0xf] %v7354
      %7387 = vst [vmem:[#allocation3 + $0x180] sm:$0xf] %v7355
      %7388 = vst [vmem:[#allocation3 + $0x1a4] sm:$0xf] %v7356
      %7389 = vst [vmem:[#allocation3 + $0x1c8] sm:$0xf] %v7357
      %7390 = vst [vmem:[#allocation3 + $0x1ec] sm:$0xf] %v7358
      %7391 = vst [vmem:[#allocation3 + $0x210] sm:$0xf] %v7359
      %7392 = vst [vmem:[#allocation3 + $0x234] sm:$0xf] %v7360
      %7393 = vst [vmem:[#allocation3 + $0x258] sm:$0xf] %v7361
      %7394 = vst [vmem:[#allocation3 + $0x27c] sm:$0xf] %v7362
      %7395 = vst [vmem:[#allocation3 + $0x2a0] sm:$0xf] %v7363
      %7396 = vst [vmem:[#allocation3 + $0x2c4] sm:$0xf] %v7364
      %7397 = vst [vmem:[#allocation3 + $0x2e8] sm:$0xf] %v7365
      %7398 = vst [vmem:[#allocation3 + $0x30c] sm:$0xf] %v7366
      %7399 = vst [vmem:[#allocation3 + $0x330] sm:$0xf] %v7367
      %7400 = vst [vmem:[#allocation3 + $0x354] sm:$0xf] %v7368
      %7401 = vst [vmem:[#allocation3 + $0x378] sm:$0xf] %v7369
      %7402 = vst [vmem:[#allocation3 + $0x39c] sm:$0xf] %v7370
      %7403 = vst [vmem:[#allocation3 + $0x3c0] sm:$0xf] %v7371
      %7404 = vst [vmem:[#allocation3 + $0x3e4] sm:$0xf] %v7372
      %7405 = vst [vmem:[#allocation3 + $0x408] sm:$0xf] %v7373
      %7406 = vst [vmem:[#allocation3 + $0x42c] sm:$0xf] %v7374
      %7407 = vst [vmem:[#allocation3 + $0x450] sm:$0xf] %v7375
      %7408 = vst [vmem:[#allocation3 + $0x474] sm:$0xf] %v7376
      %v7409 = vld [vmem:[%s7344] sm:$0xf]
      %v7410 = vld [vmem:[%s7344 + $0x4] sm:$0xf]
      %v7411 = vld [vmem:[%s7344 + $0x8] sm:$0x1]
      %v7412 = vld [vmem:[%s7344 + $0xc] sm:$0xf]
      %v7413 = vld [vmem:[%s7344 + $0x10] sm:$0xf]
      %v7414 = vld [vmem:[%s7344 + $0x14] sm:$0x1]
      %v7415 = vld [vmem:[%s7344 + $0x18] sm:$0xf]
      %v7416 = vld [vmem:[%s7344 + $0x1c] sm:$0xf]
      %v7417 = vld [vmem:[%s7344 + $0x20] sm:$0x1]
      %v7418 = vld [vmem:[%s7344 + $0x24] sm:$0xf]
      %v7419 = vld [vmem:[%s7344 + $0x28] sm:$0xf]
      %v7420 = vld [vmem:[%s7344 + $0x2c] sm:$0x1]
      %v7421 = vld [vmem:[%s7344 + $0x30] sm:$0xf]
      %v7422 = vld [vmem:[%s7344 + $0x34] sm:$0xf]
      %v7423 = vld [vmem:[%s7344 + $0x38] sm:$0x1]
      %v7424 = vld [vmem:[%s7344 + $0x3c] sm:$0xf]
      %v7425 = vld [vmem:[%s7344 + $0x40] sm:$0xf]
      %v7426 = vld [vmem:[%s7344 + $0x44] sm:$0x1]
      %v7427 = vld [vmem:[%s7344 + $0x48] sm:$0xf]
      %v7428 = vld [vmem:[%s7344 + $0x4c] sm:$0xf]
      %v7429 = vld [vmem:[%s7344 + $0x50] sm:$0x1]
      %v7430 = vld [vmem:[%s7344 + $0x54] sm:$0xf]
      %v7431 = vld [vmem:[%s7344 + $0x58] sm:$0xf]
      %v7432 = vld [vmem:[%s7344 + $0x5c] sm:$0x1]
      %v7433 = vld [vmem:[%s7344 + $0x60] sm:$0xf]
      %v7434 = vld [vmem:[%s7344 + $0x64] sm:$0xf]
      %v7435 = vld [vmem:[%s7344 + $0x68] sm:$0x1]
      %v7436 = vld [vmem:[%s7344 + $0x6c] sm:$0xf]
      %v7437 = vld [vmem:[%s7344 + $0x70] sm:$0xf]
      %v7438 = vld [vmem:[%s7344 + $0x74] sm:$0x1]
      %v7439 = vld [vmem:[%s7344 + $0x78] sm:$0xf]
      %v7440 = vld [vmem:[%s7344 + $0x7c] sm:$0xf]
      %v7441 = vld [vmem:[%s7344 + $0x80] sm:$0x1]
      %v7442 = vld [vmem:[%s7344 + $0x84] sm:$0xf]
      %v7443 = vld [vmem:[%s7344 + $0x88] sm:$0xf]
      %v7444 = vld [vmem:[%s7344 + $0x8c] sm:$0x1]
      %v7445 = vld [vmem:[%s7344 + $0x90] sm:$0xf]
      %v7446 = vld [vmem:[%s7344 + $0x94] sm:$0xf]
      %v7447 = vld [vmem:[%s7344 + $0x98] sm:$0x1]
      %v7448 = vld [vmem:[%s7344 + $0x9c] sm:$0xf]
      %v7449 = vld [vmem:[%s7344 + $0xa0] sm:$0xf]
      %v7450 = vld [vmem:[%s7344 + $0xa4] sm:$0x1]
      %v7451 = vld [vmem:[%s7344 + $0xa8] sm:$0xf]
      %v7452 = vld [vmem:[%s7344 + $0xac] sm:$0xf]
      %v7453 = vld [vmem:[%s7344 + $0xb0] sm:$0x1]
      %v7454 = vld [vmem:[%s7344 + $0xb4] sm:$0xf]
      %v7455 = vld [vmem:[%s7344 + $0xb8] sm:$0xf]
      %v7456 = vld [vmem:[%s7344 + $0xbc] sm:$0x1]
      %v7458 = vshrl.u32 %v7409, 16
      %v7460 = vrot.slane %v7458, 4
      %v7461 = vshll.u32 %v7409, 16
      %v7463 = vrot.slane %v7461, 5
      %v7464 = vor.u32 %v7460, %v7463
      %v7465 = vrot.slane %v7464, 4
      %v7467 = vshll.u32 %v7410, 16
      %v7469 = vrot.slane %v7467, 5
      %v7470 = vsel %vm449, %v7465, %v7469
      %v7471 = vshrl.u32 %v7410, 16
      %v7473 = vrot.slane %v7471, 4
      %v7474 = vor.u32 %v7473, %v7469
      %v7475 = vrot.slane %v7474, 4
      %v7477 = vshll.u32 %v7411, 16
      %v7479 = vrot.slane %v7477, 5
      %v7480 = vsel %vm449, %v7475, %v7479
      %v7482 = vshrl.u32 %v7412, 16
      %v7484 = vrot.slane %v7482, 4
      %v7485 = vshll.u32 %v7412, 16
      %v7487 = vrot.slane %v7485, 5
      %v7488 = vor.u32 %v7484, %v7487
      %v7489 = vrot.slane %v7488, 4
      %v7491 = vshll.u32 %v7413, 16
      %v7493 = vrot.slane %v7491, 5
      %v7494 = vsel %vm449, %v7489, %v7493
      %v7495 = vshrl.u32 %v7413, 16
      %v7497 = vrot.slane %v7495, 4
      %v7498 = vor.u32 %v7497, %v7493
      %v7499 = vrot.slane %v7498, 4
      %v7501 = vshll.u32 %v7414, 16
      %v7503 = vrot.slane %v7501, 5
      %v7504 = vsel %vm449, %v7499, %v7503
      %v7506 = vshrl.u32 %v7415, 16
      %v7508 = vrot.slane %v7506, 4
      %v7509 = vshll.u32 %v7415, 16
      %v7511 = vrot.slane %v7509, 5
      %v7512 = vor.u32 %v7508, %v7511
      %v7513 = vrot.slane %v7512, 4
      %v7515 = vshll.u32 %v7416, 16
      %v7517 = vrot.slane %v7515, 5
      %v7518 = vsel %vm449, %v7513, %v7517
      %v7519 = vshrl.u32 %v7416, 16
      %v7521 = vrot.slane %v7519, 4
      %v7522 = vor.u32 %v7521, %v7517
      %v7523 = vrot.slane %v7522, 4
      %v7525 = vshll.u32 %v7417, 16
      %v7527 = vrot.slane %v7525, 5
      %v7528 = vsel %vm449, %v7523, %v7527
      %v7530 = vshrl.u32 %v7418, 16
      %v7532 = vrot.slane %v7530, 4
      %v7533 = vshll.u32 %v7418, 16
      %v7535 = vrot.slane %v7533, 5
      %v7536 = vor.u32 %v7532, %v7535
      %v7537 = vrot.slane %v7536, 4
      %v7539 = vshll.u32 %v7419, 16
      %v7541 = vrot.slane %v7539, 5
      %v7542 = vsel %vm449, %v7537, %v7541
      %v7543 = vshrl.u32 %v7419, 16
      %v7545 = vrot.slane %v7543, 4
      %v7546 = vor.u32 %v7545, %v7541
      %v7547 = vrot.slane %v7546, 4
      %v7549 = vshll.u32 %v7420, 16
      %v7551 = vrot.slane %v7549, 5
      %v7552 = vsel %vm449, %v7547, %v7551
      %v7554 = vshrl.u32 %v7421, 16
      %v7556 = vrot.slane %v7554, 4
      %v7557 = vshll.u32 %v7421, 16
      %v7559 = vrot.slane %v7557, 5
      %v7560 = vor.u32 %v7556, %v7559
      %v7561 = vrot.slane %v7560, 4
      %v7563 = vshll.u32 %v7422, 16
      %v7565 = vrot.slane %v7563, 5
      %v7566 = vsel %vm449, %v7561, %v7565
      %v7567 = vshrl.u32 %v7422, 16
      %v7569 = vrot.slane %v7567, 4
      %v7570 = vor.u32 %v7569, %v7565
      %v7571 = vrot.slane %v7570, 4
      %v7573 = vshll.u32 %v7423, 16
      %v7575 = vrot.slane %v7573, 5
      %v7576 = vsel %vm449, %v7571, %v7575
      %v7578 = vshrl.u32 %v7424, 16
      %v7580 = vrot.slane %v7578, 4
      %v7581 = vshll.u32 %v7424, 16
      %v7583 = vrot.slane %v7581, 5
      %v7584 = vor.u32 %v7580, %v7583
      %v7585 = vrot.slane %v7584, 4
      %v7587 = vshll.u32 %v7425, 16
      %v7589 = vrot.slane %v7587, 5
      %v7590 = vsel %vm449, %v7585, %v7589
      %v7591 = vshrl.u32 %v7425, 16
      %v7593 = vrot.slane %v7591, 4
      %v7594 = vor.u32 %v7593, %v7589
      %v7595 = vrot.slane %v7594, 4
      %v7597 = vshll.u32 %v7426, 16
      %v7599 = vrot.slane %v7597, 5
      %v7600 = vsel %vm449, %v7595, %v7599
      %v7602 = vshrl.u32 %v7427, 16
      %v7604 = vrot.slane %v7602, 4
      %v7605 = vshll.u32 %v7427, 16
      %v7607 = vrot.slane %v7605, 5
      %v7608 = vor.u32 %v7604, %v7607
      %v7609 = vrot.slane %v7608, 4
      %v7611 = vshll.u32 %v7428, 16
      %v7613 = vrot.slane %v7611, 5
      %v7614 = vsel %vm449, %v7609, %v7613
      %v7615 = vshrl.u32 %v7428, 16
      %v7617 = vrot.slane %v7615, 4
      %v7618 = vor.u32 %v7617, %v7613
      %v7619 = vrot.slane %v7618, 4
      %v7621 = vshll.u32 %v7429, 16
      %v7623 = vrot.slane %v7621, 5
      %v7624 = vsel %vm449, %v7619, %v7623
      %v7626 = vshrl.u32 %v7430, 16
      %v7628 = vrot.slane %v7626, 4
      %v7629 = vshll.u32 %v7430, 16
      %v7631 = vrot.slane %v7629, 5
      %v7632 = vor.u32 %v7628, %v7631
      %v7633 = vrot.slane %v7632, 4
      %v7635 = vshll.u32 %v7431, 16
      %v7637 = vrot.slane %v7635, 5
      %v7638 = vsel %vm449, %v7633, %v7637
      %v7639 = vshrl.u32 %v7431, 16
      %v7641 = vrot.slane %v7639, 4
      %v7642 = vor.u32 %v7641, %v7637
      %v7643 = vrot.slane %v7642, 4
      %v7645 = vshll.u32 %v7432, 16
      %v7647 = vrot.slane %v7645, 5
      %v7648 = vsel %vm449, %v7643, %v7647
      %v7650 = vshrl.u32 %v7433, 16
      %v7652 = vrot.slane %v7650, 4
      %v7653 = vshll.u32 %v7433, 16
      %v7655 = vrot.slane %v7653, 5
      %v7656 = vor.u32 %v7652, %v7655
      %v7657 = vrot.slane %v7656, 4
      %v7659 = vshll.u32 %v7434, 16
      %v7661 = vrot.slane %v7659, 5
      %v7662 = vsel %vm449, %v7657, %v7661
      %v7663 = vshrl.u32 %v7434, 16
      %v7665 = vrot.slane %v7663, 4
      %v7666 = vor.u32 %v7665, %v7661
      %v7667 = vrot.slane %v7666, 4
      %v7669 = vshll.u32 %v7435, 16
      %v7671 = vrot.slane %v7669, 5
      %v7672 = vsel %vm449, %v7667, %v7671
      %v7674 = vshrl.u32 %v7436, 16
      %v7676 = vrot.slane %v7674, 4
      %v7677 = vshll.u32 %v7436, 16
      %v7679 = vrot.slane %v7677, 5
      %v7680 = vor.u32 %v7676, %v7679
      %v7681 = vrot.slane %v7680, 4
      %v7683 = vshll.u32 %v7437, 16
      %v7685 = vrot.slane %v7683, 5
      %v7686 = vsel %vm449, %v7681, %v7685
      %v7687 = vshrl.u32 %v7437, 16
      %v7689 = vrot.slane %v7687, 4
      %v7690 = vor.u32 %v7689, %v7685
      %v7691 = vrot.slane %v7690, 4
      %v7693 = vshll.u32 %v7438, 16
      %v7695 = vrot.slane %v7693, 5
      %v7696 = vsel %vm449, %v7691, %v7695
      %v7698 = vshrl.u32 %v7439, 16
      %v7700 = vrot.slane %v7698, 4
      %v7701 = vshll.u32 %v7439, 16
      %v7703 = vrot.slane %v7701, 5
      %v7704 = vor.u32 %v7700, %v7703
      %v7705 = vrot.slane %v7704, 4
      %v7707 = vshll.u32 %v7440, 16
      %v7709 = vrot.slane %v7707, 5
      %v7710 = vsel %vm449, %v7705, %v7709
      %v7711 = vshrl.u32 %v7440, 16
      %v7713 = vrot.slane %v7711, 4
      %v7714 = vor.u32 %v7713, %v7709
      %v7715 = vrot.slane %v7714, 4
      %v7717 = vshll.u32 %v7441, 16
      %v7719 = vrot.slane %v7717, 5
      %v7720 = vsel %vm449, %v7715, %v7719
      %v7722 = vshrl.u32 %v7442, 16
      %v7724 = vrot.slane %v7722, 4
      %v7725 = vshll.u32 %v7442, 16
      %v7727 = vrot.slane %v7725, 5
      %v7728 = vor.u32 %v7724, %v7727
      %v7729 = vrot.slane %v7728, 4
      %v7731 = vshll.u32 %v7443, 16
      %v7733 = vrot.slane %v7731, 5
      %v7734 = vsel %vm449, %v7729, %v7733
      %v7735 = vshrl.u32 %v7443, 16
      %v7737 = vrot.slane %v7735, 4
      %v7738 = vor.u32 %v7737, %v7733
      %v7739 = vrot.slane %v7738, 4
      %v7741 = vshll.u32 %v7444, 16
      %v7743 = vrot.slane %v7741, 5
      %v7744 = vsel %vm449, %v7739, %v7743
      %v7746 = vshrl.u32 %v7445, 16
      %v7748 = vrot.slane %v7746, 4
      %v7749 = vshll.u32 %v7445, 16
      %v7751 = vrot.slane %v7749, 5
      %v7752 = vor.u32 %v7748, %v7751
      %v7753 = vrot.slane %v7752, 4
      %v7755 = vshll.u32 %v7446, 16
      %v7757 = vrot.slane %v7755, 5
      %v7758 = vsel %vm449, %v7753, %v7757
      %v7759 = vshrl.u32 %v7446, 16
      %v7761 = vrot.slane %v7759, 4
      %v7762 = vor.u32 %v7761, %v7757
      %v7763 = vrot.slane %v7762, 4
      %v7765 = vshll.u32 %v7447, 16
      %v7767 = vrot.slane %v7765, 5
      %v7768 = vsel %vm449, %v7763, %v7767
      %v7770 = vshrl.u32 %v7448, 16
      %v7772 = vrot.slane %v7770, 4
      %v7773 = vshll.u32 %v7448, 16
      %v7775 = vrot.slane %v7773, 5
      %v7776 = vor.u32 %v7772, %v7775
      %v7777 = vrot.slane %v7776, 4
      %v7779 = vshll.u32 %v7449, 16
      %v7781 = vrot.slane %v7779, 5
      %v7782 = vsel %vm449, %v7777, %v7781
      %v7783 = vshrl.u32 %v7449, 16
      %v7785 = vrot.slane %v7783, 4
      %v7786 = vor.u32 %v7785, %v7781
      %v7787 = vrot.slane %v7786, 4
      %v7789 = vshll.u32 %v7450, 16
      %v7791 = vrot.slane %v7789, 5
      %v7792 = vsel %vm449, %v7787, %v7791
      %v7794 = vshrl.u32 %v7451, 16
      %v7796 = vrot.slane %v7794, 4
      %v7797 = vshll.u32 %v7451, 16
      %v7799 = vrot.slane %v7797, 5
      %v7800 = vor.u32 %v7796, %v7799
      %v7801 = vrot.slane %v7800, 4
      %v7803 = vshll.u32 %v7452, 16
      %v7805 = vrot.slane %v7803, 5
      %v7806 = vsel %vm449, %v7801, %v7805
      %v7807 = vshrl.u32 %v7452, 16
      %v7809 = vrot.slane %v7807, 4
      %v7810 = vor.u32 %v7809, %v7805
      %v7811 = vrot.slane %v7810, 4
      %v7813 = vshll.u32 %v7453, 16
      %v7815 = vrot.slane %v7813, 5
      %v7816 = vsel %vm449, %v7811, %v7815
      %v7818 = vshrl.u32 %v7454, 16
      %v7820 = vrot.slane %v7818, 4
      %v7821 = vshll.u32 %v7454, 16
      %v7823 = vrot.slane %v7821, 5
      %v7824 = vor.u32 %v7820, %v7823
      %v7825 = vrot.slane %v7824, 4
      %v7827 = vshll.u32 %v7455, 16
      %v7829 = vrot.slane %v7827, 5
      %v7830 = vsel %vm449, %v7825, %v7829
      %v7831 = vshrl.u32 %v7455, 16
      %v7833 = vrot.slane %v7831, 4
      %v7834 = vor.u32 %v7833, %v7829
      %v7835 = vrot.slane %v7834, 4
      %v7837 = vshll.u32 %v7456, 16
      %v7839 = vrot.slane %v7837, 5
      %v7840 = vsel %vm449, %v7835, %v7839
      %7873 = vst [vmem:[#allocation3 + $0x1c] sm:$0xf] %v7470
      %7874 = vst [vmem:[#allocation3 + $0x40] sm:$0xf] %v7480
      %7875 = vst [vmem:[#allocation3 + $0x64] sm:$0xf] %v7494
      %7876 = vst [vmem:[#allocation3 + $0x88] sm:$0xf] %v7504
      %7877 = vst [vmem:[#allocation3 + $0xac] sm:$0xf] %v7518
      %7878 = vst [vmem:[#allocation3 + $0xd0] sm:$0xf] %v7528
      %7879 = vst [vmem:[#allocation3 + $0xf4] sm:$0xf] %v7542
      %7880 = vst [vmem:[#allocation3 + $0x118] sm:$0xf] %v7552
      %7881 = vst [vmem:[#allocation3 + $0x13c] sm:$0xf] %v7566
      %7882 = vst [vmem:[#allocation3 + $0x160] sm:$0xf] %v7576
      %7883 = vst [vmem:[#allocation3 + $0x184] sm:$0xf] %v7590
      %7884 = vst [vmem:[#allocation3 + $0x1a8] sm:$0xf] %v7600
      %7885 = vst [vmem:[#allocation3 + $0x1cc] sm:$0xf] %v7614
      %7886 = vst [vmem:[#allocation3 + $0x1f0] sm:$0xf] %v7624
      %7887 = vst [vmem:[#allocation3 + $0x214] sm:$0xf] %v7638
      %7888 = vst [vmem:[#allocation3 + $0x238] sm:$0xf] %v7648
      %7889 = vst [vmem:[#allocation3 + $0x25c] sm:$0xf] %v7662
      %7890 = vst [vmem:[#allocation3 + $0x280] sm:$0xf] %v7672
      %7891 = vst [vmem:[#allocation3 + $0x2a4] sm:$0xf] %v7686
      %7892 = vst [vmem:[#allocation3 + $0x2c8] sm:$0xf] %v7696
      %7893 = vst [vmem:[#allocation3 + $0x2ec] sm:$0xf] %v7710
      %7894 = vst [vmem:[#allocation3 + $0x310] sm:$0xf] %v7720
      %7895 = vst [vmem:[#allocation3 + $0x334] sm:$0xf] %v7734
      %7896 = vst [vmem:[#allocation3 + $0x358] sm:$0xf] %v7744
      %7897 = vst [vmem:[#allocation3 + $0x37c] sm:$0xf] %v7758
      %7898 = vst [vmem:[#allocation3 + $0x3a0] sm:$0xf] %v7768
      %7899 = vst [vmem:[#allocation3 + $0x3c4] sm:$0xf] %v7782
      %7900 = vst [vmem:[#allocation3 + $0x3e8] sm:$0xf] %v7792
      %7901 = vst [vmem:[#allocation3 + $0x40c] sm:$0xf] %v7806
      %7902 = vst [vmem:[#allocation3 + $0x430] sm:$0xf] %v7816
      %7903 = vst [vmem:[#allocation3 + $0x454] sm:$0xf] %v7830
      %7904 = vst [vmem:[#allocation3 + $0x478] sm:$0xf] %v7840
      %v7905 = vld [vmem:[%s7344] sm:$0xe]
      %v7906 = vld [vmem:[%s7344 + $0x4] sm:$0xf]
      %v7907 = vld [vmem:[%s7344 + $0x8] sm:$0x1]
      %v7908 = vld [vmem:[%s7344 + $0xc] sm:$0xe]
      %v7909 = vld [vmem:[%s7344 + $0x10] sm:$0xf]
      %v7910 = vld [vmem:[%s7344 + $0x14] sm:$0x1]
      %v7911 = vld [vmem:[%s7344 + $0x18] sm:$0xe]
      %v7912 = vld [vmem:[%s7344 + $0x1c] sm:$0xf]
      %v7913 = vld [vmem:[%s7344 + $0x20] sm:$0x1]
      %v7914 = vld [vmem:[%s7344 + $0x24] sm:$0xe]
      %v7915 = vld [vmem:[%s7344 + $0x28] sm:$0xf]
      %v7916 = vld [vmem:[%s7344 + $0x2c] sm:$0x1]
      %v7917 = vld [vmem:[%s7344 + $0x30] sm:$0xe]
      %v7918 = vld [vmem:[%s7344 + $0x34] sm:$0xf]
      %v7919 = vld [vmem:[%s7344 + $0x38] sm:$0x1]
      %v7920 = vld [vmem:[%s7344 + $0x3c] sm:$0xe]
      %v7921 = vld [vmem:[%s7344 + $0x40] sm:$0xf]
      %v7922 = vld [vmem:[%s7344 + $0x44] sm:$0x1]
      %v7923 = vld [vmem:[%s7344 + $0x48] sm:$0xe]
      %v7924 = vld [vmem:[%s7344 + $0x4c] sm:$0xf]
      %v7925 = vld [vmem:[%s7344 + $0x50] sm:$0x1]
      %v7926 = vld [vmem:[%s7344 + $0x54] sm:$0xe]
      %v7927 = vld [vmem:[%s7344 + $0x58] sm:$0xf]
      %v7928 = vld [vmem:[%s7344 + $0x5c] sm:$0x1]
      %v7929 = vld [vmem:[%s7344 + $0x60] sm:$0xe]
      %v7930 = vld [vmem:[%s7344 + $0x64] sm:$0xf]
      %v7931 = vld [vmem:[%s7344 + $0x68] sm:$0x1]
      %v7932 = vld [vmem:[%s7344 + $0x6c] sm:$0xe]
      %v7933 = vld [vmem:[%s7344 + $0x70] sm:$0xf]
      %v7934 = vld [vmem:[%s7344 + $0x74] sm:$0x1]
      %v7935 = vld [vmem:[%s7344 + $0x78] sm:$0xe]
      %v7936 = vld [vmem:[%s7344 + $0x7c] sm:$0xf]
      %v7937 = vld [vmem:[%s7344 + $0x80] sm:$0x1]
      %v7938 = vld [vmem:[%s7344 + $0x84] sm:$0xe]
      %v7939 = vld [vmem:[%s7344 + $0x88] sm:$0xf]
      %v7940 = vld [vmem:[%s7344 + $0x8c] sm:$0x1]
      %v7941 = vld [vmem:[%s7344 + $0x90] sm:$0xe]
      %v7942 = vld [vmem:[%s7344 + $0x94] sm:$0xf]
      %v7943 = vld [vmem:[%s7344 + $0x98] sm:$0x1]
      %v7944 = vld [vmem:[%s7344 + $0x9c] sm:$0xe]
      %v7945 = vld [vmem:[%s7344 + $0xa0] sm:$0xf]
      %v7946 = vld [vmem:[%s7344 + $0xa4] sm:$0x1]
      %v7947 = vld [vmem:[%s7344 + $0xa8] sm:$0xe]
      %v7948 = vld [vmem:[%s7344 + $0xac] sm:$0xf]
      %v7949 = vld [vmem:[%s7344 + $0xb0] sm:$0x1]
      %v7950 = vld [vmem:[%s7344 + $0xb4] sm:$0xe]
      %v7951 = vld [vmem:[%s7344 + $0xb8] sm:$0xf]
      %v7952 = vld [vmem:[%s7344 + $0xbc] sm:$0x1]
      %v8001 = vrot.slane %v7905, 5
      %v8002 = vrot.slane %v8001, 4
      %v8003 = vrot.slane %v7906, 5
      %v8004 = vsel %vm996, %v8002, %v8003
      %v8005 = vrot.slane %v8003, 4
      %v8006 = vrot.slane %v7907, 5
      %v8007 = vsel %vm996, %v8005, %v8006
      %v8008 = vrot.slane %v7908, 5
      %v8009 = vrot.slane %v8008, 4
      %v8010 = vrot.slane %v7909, 5
      %v8011 = vsel %vm996, %v8009, %v8010
      %v8012 = vrot.slane %v8010, 4
      %v8013 = vrot.slane %v7910, 5
      %v8014 = vsel %vm996, %v8012, %v8013
      %v8015 = vrot.slane %v7911, 5
      %v8016 = vrot.slane %v8015, 4
      %v8017 = vrot.slane %v7912, 5
      %v8018 = vsel %vm996, %v8016, %v8017
      %v8019 = vrot.slane %v8017, 4
      %v8020 = vrot.slane %v7913, 5
      %v8021 = vsel %vm996, %v8019, %v8020
      %v8022 = vrot.slane %v7914, 5
      %v8023 = vrot.slane %v8022, 4
      %v8024 = vrot.slane %v7915, 5
      %v8025 = vsel %vm996, %v8023, %v8024
      %v8026 = vrot.slane %v8024, 4
      %v8027 = vrot.slane %v7916, 5
      %v8028 = vsel %vm996, %v8026, %v8027
      %v8029 = vrot.slane %v7917, 5
      %v8030 = vrot.slane %v8029, 4
      %v8031 = vrot.slane %v7918, 5
      %v8032 = vsel %vm996, %v8030, %v8031
      %v8033 = vrot.slane %v8031, 4
      %v8034 = vrot.slane %v7919, 5
      %v8035 = vsel %vm996, %v8033, %v8034
      %v8036 = vrot.slane %v7920, 5
      %v8037 = vrot.slane %v8036, 4
      %v8038 = vrot.slane %v7921, 5
      %v8039 = vsel %vm996, %v8037, %v8038
      %v8040 = vrot.slane %v8038, 4
      %v8041 = vrot.slane %v7922, 5
      %v8042 = vsel %vm996, %v8040, %v8041
      %v8043 = vrot.slane %v7923, 5
      %v8044 = vrot.slane %v8043, 4
      %v8045 = vrot.slane %v7924, 5
      %v8046 = vsel %vm996, %v8044, %v8045
      %v8047 = vrot.slane %v8045, 4
      %v8048 = vrot.slane %v7925, 5
      %v8049 = vsel %vm996, %v8047, %v8048
      %v8050 = vrot.slane %v7926, 5
      %v8051 = vrot.slane %v8050, 4
      %v8052 = vrot.slane %v7927, 5
      %v8053 = vsel %vm996, %v8051, %v8052
      %v8054 = vrot.slane %v8052, 4
      %v8055 = vrot.slane %v7928, 5
      %v8056 = vsel %vm996, %v8054, %v8055
      %v8057 = vrot.slane %v7929, 5
      %v8058 = vrot.slane %v8057, 4
      %v8059 = vrot.slane %v7930, 5
      %v8060 = vsel %vm996, %v8058, %v8059
      %v8061 = vrot.slane %v8059, 4
      %v8062 = vrot.slane %v7931, 5
      %v8063 = vsel %vm996, %v8061, %v8062
      %v8064 = vrot.slane %v7932, 5
      %v8065 = vrot.slane %v8064, 4
      %v8066 = vrot.slane %v7933, 5
      %v8067 = vsel %vm996, %v8065, %v8066
      %v8068 = vrot.slane %v8066, 4
      %v8069 = vrot.slane %v7934, 5
      %v8070 = vsel %vm996, %v8068, %v8069
      %v8071 = vrot.slane %v7935, 5
      %v8072 = vrot.slane %v8071, 4
      %v8073 = vrot.slane %v7936, 5
      %v8074 = vsel %vm996, %v8072, %v8073
      %v8075 = vrot.slane %v8073, 4
      %v8076 = vrot.slane %v7937, 5
      %v8077 = vsel %vm996, %v8075, %v8076
      %v8078 = vrot.slane %v7938, 5
      %v8079 = vrot.slane %v8078, 4
      %v8080 = vrot.slane %v7939, 5
      %v8081 = vsel %vm996, %v8079, %v8080
      %v8082 = vrot.slane %v8080, 4
      %v8083 = vrot.slane %v7940, 5
      %v8084 = vsel %vm996, %v8082, %v8083
      %v8085 = vrot.slane %v7941, 5
      %v8086 = vrot.slane %v8085, 4
      %v8087 = vrot.slane %v7942, 5
      %v8088 = vsel %vm996, %v8086, %v8087
      %v8089 = vrot.slane %v8087, 4
      %v8090 = vrot.slane %v7943, 5
      %v8091 = vsel %vm996, %v8089, %v8090
      %v8092 = vrot.slane %v7944, 5
      %v8093 = vrot.slane %v8092, 4
      %v8094 = vrot.slane %v7945, 5
      %v8095 = vsel %vm996, %v8093, %v8094
      %v8096 = vrot.slane %v8094, 4
      %v8097 = vrot.slane %v7946, 5
      %v8098 = vsel %vm996, %v8096, %v8097
      %v8099 = vrot.slane %v7947, 5
      %v8100 = vrot.slane %v8099, 4
      %v8101 = vrot.slane %v7948, 5
      %v8102 = vsel %vm996, %v8100, %v8101
      %v8103 = vrot.slane %v8101, 4
      %v8104 = vrot.slane %v7949, 5
      %v8105 = vsel %vm996, %v8103, %v8104
      %v8106 = vrot.slane %v7950, 5
      %v8107 = vrot.slane %v8106, 4
      %v8108 = vrot.slane %v7951, 5
      %v8109 = vsel %vm996, %v8107, %v8108
      %v8110 = vrot.slane %v8108, 4
      %v8111 = vrot.slane %v7952, 5
      %v8112 = vsel %vm996, %v8110, %v8111
      %8145 = vst [vmem:[#allocation3 + $0x20] sm:$0xf] %v8004
      %8146 = vst [vmem:[#allocation3 + $0x44] sm:$0xf] %v8007
      %8147 = vst [vmem:[#allocation3 + $0x68] sm:$0xf] %v8011
      %8148 = vst [vmem:[#allocation3 + $0x8c] sm:$0xf] %v8014
      %8149 = vst [vmem:[#allocation3 + $0xb0] sm:$0xf] %v8018
      %8150 = vst [vmem:[#allocation3 + $0xd4] sm:$0xf] %v8021
      %8151 = vst [vmem:[#allocation3 + $0xf8] sm:$0xf] %v8025
      %8152 = vst [vmem:[#allocation3 + $0x11c] sm:$0xf] %v8028
      %8153 = vst [vmem:[#allocation3 + $0x140] sm:$0xf] %v8032
      %8154 = vst [vmem:[#allocation3 + $0x164] sm:$0xf] %v8035
      %8155 = vst [vmem:[#allocation3 + $0x188] sm:$0xf] %v8039
      %8156 = vst [vmem:[#allocation3 + $0x1ac] sm:$0xf] %v8042
      %8157 = vst [vmem:[#allocation3 + $0x1d0] sm:$0xf] %v8046
      %8158 = vst [vmem:[#allocation3 + $0x1f4] sm:$0xf] %v8049
      %8159 = vst [vmem:[#allocation3 + $0x218] sm:$0xf] %v8053
      %8160 = vst [vmem:[#allocation3 + $0x23c] sm:$0xf] %v8056
      %8161 = vst [vmem:[#allocation3 + $0x260] sm:$0xf] %v8060
      %8162 = vst [vmem:[#allocation3 + $0x284] sm:$0xf] %v8063
      %8163 = vst [vmem:[#allocation3 + $0x2a8] sm:$0xf] %v8067
      %8164 = vst [vmem:[#allocation3 + $0x2cc] sm:$0xf] %v8070
      %8165 = vst [vmem:[#allocation3 + $0x2f0] sm:$0xf] %v8074
      %8166 = vst [vmem:[#allocation3 + $0x314] sm:$0xf] %v8077
      %8167 = vst [vmem:[#allocation3 + $0x338] sm:$0xf] %v8081
      %8168 = vst [vmem:[#allocation3 + $0x35c] sm:$0xf] %v8084
      %8169 = vst [vmem:[#allocation3 + $0x380] sm:$0xf] %v8088
      %8170 = vst [vmem:[#allocation3 + $0x3a4] sm:$0xf] %v8091
      %8171 = vst [vmem:[#allocation3 + $0x3c8] sm:$0xf] %v8095
      %8172 = vst [vmem:[#allocation3 + $0x3ec] sm:$0xf] %v8098
      %8173 = vst [vmem:[#allocation3 + $0x410] sm:$0xf] %v8102
      %8174 = vst [vmem:[#allocation3 + $0x434] sm:$0xf] %v8105
      %8175 = vst [vmem:[#allocation3 + $0x458] sm:$0xf] %v8109
      %8176 = vst [vmem:[#allocation3 + $0x47c] sm:$0xf] %v8112
      %v8177 = vld [vmem:[#allocation3] sm:$0xff]
      %v8178 = vld [vmem:[#allocation3 + $0x8] sm:$0xff]
      %v8179 = vld [vmem:[#allocation3 + $0x10] sm:$0xff]
      %v8180 = vld [vmem:[#allocation3 + $0x18] sm:$0xff]
      %v8181 = vld [vmem:[#allocation3 + $0x20] sm:$0xf]
      %v8182 = vld [vmem:[#allocation3 + $0x24] sm:$0xff]
      %v8183 = vld [vmem:[#allocation3 + $0x2c] sm:$0xff]
      %v8184 = vld [vmem:[#allocation3 + $0x34] sm:$0xff]
      %v8185 = vld [vmem:[#allocation3 + $0x3c] sm:$0xff]
      %v8186 = vld [vmem:[#allocation3 + $0x44] sm:$0xf]
      %v8187 = vld [vmem:[#allocation3 + $0x48] sm:$0xff]
      %v8188 = vld [vmem:[#allocation3 + $0x50] sm:$0xff]
      %v8189 = vld [vmem:[#allocation3 + $0x58] sm:$0xff]
      %v8190 = vld [vmem:[#allocation3 + $0x60] sm:$0xff]
      %v8191 = vld [vmem:[#allocation3 + $0x68] sm:$0xf]
      %v8192 = vld [vmem:[#allocation3 + $0x6c] sm:$0xff]
      %v8193 = vld [vmem:[#allocation3 + $0x74] sm:$0xff]
      %v8194 = vld [vmem:[#allocation3 + $0x7c] sm:$0xff]
      %v8195 = vld [vmem:[#allocation3 + $0x84] sm:$0xff]
      %v8196 = vld [vmem:[#allocation3 + $0x8c] sm:$0xf]
      %v8197 = vld [vmem:[#allocation3 + $0x90] sm:$0xff]
      %v8198 = vld [vmem:[#allocation3 + $0x98] sm:$0xff]
      %v8199 = vld [vmem:[#allocation3 + $0xa0] sm:$0xff]
      %v8200 = vld [vmem:[#allocation3 + $0xa8] sm:$0xff]
      %v8201 = vld [vmem:[#allocation3 + $0xb0] sm:$0xf]
      %v8202 = vld [vmem:[#allocation3 + $0xb4] sm:$0xff]
      %v8203 = vld [vmem:[#allocation3 + $0xbc] sm:$0xff]
      %v8204 = vld [vmem:[#allocation3 + $0xc4] sm:$0xff]
      %v8205 = vld [vmem:[#allocation3 + $0xcc] sm:$0xff]
      %v8206 = vld [vmem:[#allocation3 + $0xd4] sm:$0xf]
      %v8207 = vld [vmem:[#allocation3 + $0xd8] sm:$0xff]
      %v8208 = vld [vmem:[#allocation3 + $0xe0] sm:$0xff]
      %v8209 = vld [vmem:[#allocation3 + $0xe8] sm:$0xff]
      %v8210 = vld [vmem:[#allocation3 + $0xf0] sm:$0xff]
      %v8211 = vld [vmem:[#allocation3 + $0xf8] sm:$0xf]
      %v8212 = vld [vmem:[#allocation3 + $0xfc] sm:$0xff]
      %v8213 = vld [vmem:[#allocation3 + $0x104] sm:$0xff]
      %v8214 = vld [vmem:[#allocation3 + $0x10c] sm:$0xff]
      %v8215 = vld [vmem:[#allocation3 + $0x114] sm:$0xff]
      %v8216 = vld [vmem:[#allocation3 + $0x11c] sm:$0xf]
      %v8217 = vld [vmem:[#allocation3 + $0x120] sm:$0xff]
      %v8218 = vld [vmem:[#allocation3 + $0x128] sm:$0xff]
      %v8219 = vld [vmem:[#allocation3 + $0x130] sm:$0xff]
      %v8220 = vld [vmem:[#allocation3 + $0x138] sm:$0xff]
      %v8221 = vld [vmem:[#allocation3 + $0x140] sm:$0xf]
      %v8222 = vld [vmem:[#allocation3 + $0x144] sm:$0xff]
      %v8223 = vld [vmem:[#allocation3 + $0x14c] sm:$0xff]
      %v8224 = vld [vmem:[#allocation3 + $0x154] sm:$0xff]
      %v8225 = vld [vmem:[#allocation3 + $0x15c] sm:$0xff]
      %v8226 = vld [vmem:[#allocation3 + $0x164] sm:$0xf]
      %v8227 = vld [vmem:[#allocation3 + $0x168] sm:$0xff]
      %v8228 = vld [vmem:[#allocation3 + $0x170] sm:$0xff]
      %v8229 = vld [vmem:[#allocation3 + $0x178] sm:$0xff]
      %v8230 = vld [vmem:[#allocation3 + $0x180] sm:$0xff]
      %v8231 = vld [vmem:[#allocation3 + $0x188] sm:$0xf]
      %v8232 = vld [vmem:[#allocation3 + $0x18c] sm:$0xff]
      %v8233 = vld [vmem:[#allocation3 + $0x194] sm:$0xff]
      %v8234 = vld [vmem:[#allocation3 + $0x19c] sm:$0xff]
      %v8235 = vld [vmem:[#allocation3 + $0x1a4] sm:$0xff]
      %v8236 = vld [vmem:[#allocation3 + $0x1ac] sm:$0xf]
      %v8237 = vld [vmem:[#allocation3 + $0x1b0] sm:$0xff]
      %v8238 = vld [vmem:[#allocation3 + $0x1b8] sm:$0xff]
      %v8239 = vld [vmem:[#allocation3 + $0x1c0] sm:$0xff]
      %v8240 = vld [vmem:[#allocation3 + $0x1c8] sm:$0xff]
      %v8241 = vld [vmem:[#allocation3 + $0x1d0] sm:$0xf]
      %v8242 = vld [vmem:[#allocation3 + $0x1d4] sm:$0xff]
      %v8243 = vld [vmem:[#allocation3 + $0x1dc] sm:$0xff]
      %v8244 = vld [vmem:[#allocation3 + $0x1e4] sm:$0xff]
      %v8245 = vld [vmem:[#allocation3 + $0x1ec] sm:$0xff]
      %v8246 = vld [vmem:[#allocation3 + $0x1f4] sm:$0xf]
      %v8247 = vld [vmem:[#allocation3 + $0x1f8] sm:$0xff]
      %v8248 = vld [vmem:[#allocation3 + $0x200] sm:$0xff]
      %v8249 = vld [vmem:[#allocation3 + $0x208] sm:$0xff]
      %v8250 = vld [vmem:[#allocation3 + $0x210] sm:$0xff]
      %v8251 = vld [vmem:[#allocation3 + $0x218] sm:$0xf]
      %v8252 = vld [vmem:[#allocation3 + $0x21c] sm:$0xff]
      %v8253 = vld [vmem:[#allocation3 + $0x224] sm:$0xff]
      %v8254 = vld [vmem:[#allocation3 + $0x22c] sm:$0xff]
      %v8255 = vld [vmem:[#allocation3 + $0x234] sm:$0xff]
      %v8256 = vld [vmem:[#allocation3 + $0x23c] sm:$0xf]
      %v8257 = vld [vmem:[#allocation3 + $0x240] sm:$0xff]
      %v8258 = vld [vmem:[#allocation3 + $0x248] sm:$0xff]
      %v8259 = vld [vmem:[#allocation3 + $0x250] sm:$0xff]
      %v8260 = vld [vmem:[#allocation3 + $0x258] sm:$0xff]
      %v8261 = vld [vmem:[#allocation3 + $0x260] sm:$0xf]
      %v8262 = vld [vmem:[#allocation3 + $0x264] sm:$0xff]
      %v8263 = vld [vmem:[#allocation3 + $0x26c] sm:$0xff]
      %v8264 = vld [vmem:[#allocation3 + $0x274] sm:$0xff]
      %v8265 = vld [vmem:[#allocation3 + $0x27c] sm:$0xff]
      %v8266 = vld [vmem:[#allocation3 + $0x284] sm:$0xf]
      %v8267 = vld [vmem:[#allocation3 + $0x288] sm:$0xff]
      %v8268 = vld [vmem:[#allocation3 + $0x290] sm:$0xff]
      %v8269 = vld [vmem:[#allocation3 + $0x298] sm:$0xff]
      %v8270 = vld [vmem:[#allocation3 + $0x2a0] sm:$0xff]
      %v8271 = vld [vmem:[#allocation3 + $0x2a8] sm:$0xf]
      %v8272 = vld [vmem:[#allocation3 + $0x2ac] sm:$0xff]
      %v8273 = vld [vmem:[#allocation3 + $0x2b4] sm:$0xff]
      %v8274 = vld [vmem:[#allocation3 + $0x2bc] sm:$0xff]
      %v8275 = vld [vmem:[#allocation3 + $0x2c4] sm:$0xff]
      %v8276 = vld [vmem:[#allocation3 + $0x2cc] sm:$0xf]
      %v8277 = vld [vmem:[#allocation3 + $0x2d0] sm:$0xff]
      %v8278 = vld [vmem:[#allocation3 + $0x2d8] sm:$0xff]
      %v8279 = vld [vmem:[#allocation3 + $0x2e0] sm:$0xff]
      %v8280 = vld [vmem:[#allocation3 + $0x2e8] sm:$0xff]
      %v8281 = vld [vmem:[#allocation3 + $0x2f0] sm:$0xf]
      %v8282 = vld [vmem:[#allocation3 + $0x2f4] sm:$0xff]
      %v8283 = vld [vmem:[#allocation3 + $0x2fc] sm:$0xff]
      %v8284 = vld [vmem:[#allocation3 + $0x304] sm:$0xff]
      %v8285 = vld [vmem:[#allocation3 + $0x30c] sm:$0xff]
      %v8286 = vld [vmem:[#allocation3 + $0x314] sm:$0xf]
      %v8287 = vld [vmem:[#allocation3 + $0x318] sm:$0xff]
      %v8288 = vld [vmem:[#allocation3 + $0x320] sm:$0xff]
      %v8289 = vld [vmem:[#allocation3 + $0x328] sm:$0xff]
      %v8290 = vld [vmem:[#allocation3 + $0x330] sm:$0xff]
      %v8291 = vld [vmem:[#allocation3 + $0x338] sm:$0xf]
      %v8292 = vld [vmem:[#allocation3 + $0x33c] sm:$0xff]
      %v8293 = vld [vmem:[#allocation3 + $0x344] sm:$0xff]
      %v8294 = vld [vmem:[#allocation3 + $0x34c] sm:$0xff]
      %v8295 = vld [vmem:[#allocation3 + $0x354] sm:$0xff]
      %v8296 = vld [vmem:[#allocation3 + $0x35c] sm:$0xf]
      %v8297 = vld [vmem:[#allocation3 + $0x360] sm:$0xff]
      %v8298 = vld [vmem:[#allocation3 + $0x368] sm:$0xff]
      %v8299 = vld [vmem:[#allocation3 + $0x370] sm:$0xff]
      %v8300 = vld [vmem:[#allocation3 + $0x378] sm:$0xff]
      %v8301 = vld [vmem:[#allocation3 + $0x380] sm:$0xf]
      %v8302 = vld [vmem:[#allocation3 + $0x384] sm:$0xff]
      %v8303 = vld [vmem:[#allocation3 + $0x38c] sm:$0xff]
      %v8304 = vld [vmem:[#allocation3 + $0x394] sm:$0xff]
      %v8305 = vld [vmem:[#allocation3 + $0x39c] sm:$0xff]
      %v8306 = vld [vmem:[#allocation3 + $0x3a4] sm:$0xf]
      %v8307 = vld [vmem:[#allocation3 + $0x3a8] sm:$0xff]
      %v8308 = vld [vmem:[#allocation3 + $0x3b0] sm:$0xff]
      %v8309 = vld [vmem:[#allocation3 + $0x3b8] sm:$0xff]
      %v8310 = vld [vmem:[#allocation3 + $0x3c0] sm:$0xff]
      %v8311 = vld [vmem:[#allocation3 + $0x3c8] sm:$0xf]
      %v8312 = vld [vmem:[#allocation3 + $0x3cc] sm:$0xff]
      %v8313 = vld [vmem:[#allocation3 + $0x3d4] sm:$0xff]
      %v8314 = vld [vmem:[#allocation3 + $0x3dc] sm:$0xff]
      %v8315 = vld [vmem:[#allocation3 + $0x3e4] sm:$0xff]
      %v8316 = vld [vmem:[#allocation3 + $0x3ec] sm:$0xf]
      %v8317 = vld [vmem:[#allocation3 + $0x3f0] sm:$0xff]
      %v8318 = vld [vmem:[#allocation3 + $0x3f8] sm:$0xff]
      %v8319 = vld [vmem:[#allocation3 + $0x400] sm:$0xff]
      %v8320 = vld [vmem:[#allocation3 + $0x408] sm:$0xff]
      %v8321 = vld [vmem:[#allocation3 + $0x410] sm:$0xf]
      %v8322 = vld [vmem:[#allocation3 + $0x414] sm:$0xff]
      %v8323 = vld [vmem:[#allocation3 + $0x41c] sm:$0xff]
      %v8324 = vld [vmem:[#allocation3 + $0x424] sm:$0xff]
      %v8325 = vld [vmem:[#allocation3 + $0x42c] sm:$0xff]
      %v8326 = vld [vmem:[#allocation3 + $0x434] sm:$0xf]
      %v8327 = vld [vmem:[#allocation3 + $0x438] sm:$0xff]
      %v8328 = vld [vmem:[#allocation3 + $0x440] sm:$0xff]
      %v8329 = vld [vmem:[#allocation3 + $0x448] sm:$0xff]
      %v8330 = vld [vmem:[#allocation3 + $0x450] sm:$0xff]
      %v8331 = vld [vmem:[#allocation3 + $0x458] sm:$0xf]
      %v8332 = vld [vmem:[#allocation3 + $0x45c] sm:$0xff]
      %v8333 = vld [vmem:[#allocation3 + $0x464] sm:$0xff]
      %v8334 = vld [vmem:[#allocation3 + $0x46c] sm:$0xff]
      %v8335 = vld [vmem:[#allocation3 + $0x474] sm:$0xff]
      %v8336 = vld [vmem:[#allocation3 + $0x47c] sm:$0xf]
      %v8337 = vld [vmem:[%s2] sm:$0xf]
      %v8338 = vld [vmem:[%s2 + $0x4] sm:$0xf]
      %v8339 = vld [vmem:[%s2 + $0x8] sm:$0xf]
      %v8340 = vld [vmem:[%s2 + $0xc] sm:$0xf]
      %v8341 = vld [vmem:[%s2 + $0x10] sm:$0xf]
      %v8342 = vld [vmem:[%s2 + $0x14] sm:$0xf]
      %v8343 = vld [vmem:[%s2 + $0x18] sm:$0xf]
      %v8344 = vld [vmem:[%s2 + $0x1c] sm:$0xf]
      %v8345 = vld [vmem:[%s2 + $0x20] sm:$0xf]
      %v8346 = vld [vmem:[%s2 + $0x24] sm:$0xf]
      %v8347 = vld [vmem:[%s2 + $0x28] sm:$0xf]
      %v8348 = vld [vmem:[%s2 + $0x2c] sm:$0xf]
      %v8349 = vld [vmem:[%s2 + $0x30] sm:$0xf]
      %v8350 = vld [vmem:[%s2 + $0x34] sm:$0xf]
      %v8351 = vld [vmem:[%s2 + $0x38] sm:$0xf]
      %v8352 = vld [vmem:[%s2 + $0x3c] sm:$0xf]
      %v8353 = vld [vmem:[%s2 + $0x40] sm:$0xf]
      %v8354 = vld [vmem:[%s2 + $0x44] sm:$0xf]
      %v8355 = vld [vmem:[%s2 + $0x48] sm:$0xf]
      %v8356 = vld [vmem:[%s2 + $0x4c] sm:$0xf]
      %v8357 = vld [vmem:[%s2 + $0x50] sm:$0xf]
      %v8358 = vld [vmem:[%s2 + $0x54] sm:$0xf]
      %v8359 = vld [vmem:[%s2 + $0x58] sm:$0xf]
      %v8360 = vld [vmem:[%s2 + $0x5c] sm:$0xf]
      %v8361 = vld [vmem:[%s2 + $0x60] sm:$0xf]
      %v8362 = vld [vmem:[%s2 + $0x64] sm:$0xf]
      %v8363 = vld [vmem:[%s2 + $0x68] sm:$0xf]
      %v8364 = vld [vmem:[%s2 + $0x6c] sm:$0xf]
      %v8365 = vld [vmem:[%s2 + $0x70] sm:$0xf]
      %v8366 = vld [vmem:[%s2 + $0x74] sm:$0xf]
      %v8367 = vld [vmem:[%s2 + $0x78] sm:$0xf]
      %v8368 = vld [vmem:[%s2 + $0x7c] sm:$0xf]
      %v8369 = vld [vmem:[%s2 + $0x80] sm:$0xf]
      %v8370 = vld [vmem:[%s2 + $0x84] sm:$0xf]
      %v8371 = vld [vmem:[%s2 + $0x88] sm:$0xf]
      %v8372 = vld [vmem:[%s2 + $0x8c] sm:$0xf]
      %v8373 = vld [vmem:[%s2 + $0x90] sm:$0xf]
      %v8374 = vld [vmem:[%s2 + $0x94] sm:$0xf]
      %v8375 = vld [vmem:[%s2 + $0x98] sm:$0xf]
      %v8376 = vld [vmem:[%s2 + $0x9c] sm:$0xf]
      %v8377 = vld [vmem:[%s2 + $0xa0] sm:$0xf]
      %v8378 = vld [vmem:[%s2 + $0xa4] sm:$0xf]
      %v8379 = vld [vmem:[%s2 + $0xa8] sm:$0xf]
      %v8380 = vld [vmem:[%s2 + $0xac] sm:$0xf]
      %v8381 = vld [vmem:[%s2 + $0xb0] sm:$0xf]
      %v8382 = vld [vmem:[%s2 + $0xb4] sm:$0xf]
      %v8383 = vld [vmem:[%s2 + $0xb8] sm:$0xf]
      %v8384 = vld [vmem:[%s2 + $0xbc] sm:$0xf]
      %v8385 = vld [vmem:[%s2 + $0xc0] sm:$0xf]
      %v8386 = vld [vmem:[%s2 + $0xc4] sm:$0xf]
      %v8387 = vld [vmem:[%s2 + $0xc8] sm:$0xf]
      %v8388 = vld [vmem:[%s2 + $0xcc] sm:$0xf]
      %v8389 = vld [vmem:[%s2 + $0xd0] sm:$0xf]
      %v8390 = vld [vmem:[%s2 + $0xd4] sm:$0xf]
      %v8391 = vld [vmem:[%s2 + $0xd8] sm:$0xf]
      %v8392 = vld [vmem:[%s2 + $0xdc] sm:$0xf]
      %v8393 = vld [vmem:[%s2 + $0xe0] sm:$0xf]
      %v8394 = vld [vmem:[%s2 + $0xe4] sm:$0xf]
      %v8395 = vld [vmem:[%s2 + $0xe8] sm:$0xf]
      %v8396 = vld [vmem:[%s2 + $0xec] sm:$0xf]
      %v8397 = vld [vmem:[%s2 + $0xf0] sm:$0xf]
      %v8398 = vld [vmem:[%s2 + $0xf4] sm:$0xf]
      %v8399 = vld [vmem:[%s2 + $0xf8] sm:$0xf]
      %v8400 = vld [vmem:[%s2 + $0xfc] sm:$0xf]
      %v8401 = vld [vmem:[%s2 + $0x100] sm:$0xf]
      %v8402 = vld [vmem:[%s2 + $0x104] sm:$0xf]
      %v8403 = vld [vmem:[%s2 + $0x108] sm:$0xf]
      %v8404 = vld [vmem:[%s2 + $0x10c] sm:$0xf]
      %v8405 = vld [vmem:[%s2 + $0x110] sm:$0xf]
      %v8406 = vld [vmem:[%s2 + $0x114] sm:$0xf]
      %v8407 = vld [vmem:[%s2 + $0x118] sm:$0xf]
      %v8408 = vld [vmem:[%s2 + $0x11c] sm:$0xf]
      %v8409 = vld [vmem:[%s2 + $0x120] sm:$0xf]
      %v8410 = vld [vmem:[%s2 + $0x124] sm:$0xf]
      %v8411 = vld [vmem:[%s2 + $0x128] sm:$0xf]
      %v8412 = vld [vmem:[%s2 + $0x12c] sm:$0xf]
      %v8413 = vld [vmem:[%s2 + $0x130] sm:$0xf]
      %v8414 = vld [vmem:[%s2 + $0x134] sm:$0xf]
      %v8415 = vld [vmem:[%s2 + $0x138] sm:$0xf]
      %v8416 = vld [vmem:[%s2 + $0x13c] sm:$0xf]
      %v8417 = vld [vmem:[%s2 + $0x140] sm:$0xf]
      %v8418 = vld [vmem:[%s2 + $0x144] sm:$0xf]
      %v8419 = vld [vmem:[%s2 + $0x148] sm:$0xf]
      %v8420 = vld [vmem:[%s2 + $0x14c] sm:$0xf]
      %v8421 = vld [vmem:[%s2 + $0x150] sm:$0xf]
      %v8422 = vld [vmem:[%s2 + $0x154] sm:$0xf]
      %v8423 = vld [vmem:[%s2 + $0x158] sm:$0xf]
      %v8424 = vld [vmem:[%s2 + $0x15c] sm:$0xf]
      %v8425 = vld [vmem:[%s2 + $0x160] sm:$0xf]
      %v8426 = vld [vmem:[%s2 + $0x164] sm:$0xf]
      %v8427 = vld [vmem:[%s2 + $0x168] sm:$0xf]
      %v8428 = vld [vmem:[%s2 + $0x16c] sm:$0xf]
      %v8429 = vld [vmem:[%s2 + $0x170] sm:$0xf]
      %v8430 = vld [vmem:[%s2 + $0x174] sm:$0xf]
      %v8431 = vld [vmem:[%s2 + $0x178] sm:$0xf]
      %v8432 = vld [vmem:[%s2 + $0x17c] sm:$0xf]
      %v8433 = vld [vmem:[%s2 + $0x180] sm:$0xf]
      %v8434 = vld [vmem:[%s2 + $0x184] sm:$0xf]
      %v8435 = vld [vmem:[%s2 + $0x188] sm:$0xf]
      %v8436 = vld [vmem:[%s2 + $0x18c] sm:$0xf]
      %v8437 = vld [vmem:[%s2 + $0x190] sm:$0xf]
      %v8438 = vld [vmem:[%s2 + $0x194] sm:$0xf]
      %v8439 = vld [vmem:[%s2 + $0x198] sm:$0xf]
      %v8440 = vld [vmem:[%s2 + $0x19c] sm:$0xf]
      %v8441 = vld [vmem:[%s2 + $0x1a0] sm:$0xf]
      %v8442 = vld [vmem:[%s2 + $0x1a4] sm:$0xf]
      %v8443 = vld [vmem:[%s2 + $0x1a8] sm:$0xf]
      %v8444 = vld [vmem:[%s2 + $0x1ac] sm:$0xf]
      %v8445 = vld [vmem:[%s2 + $0x1b0] sm:$0xf]
      %v8446 = vld [vmem:[%s2 + $0x1b4] sm:$0xf]
      %v8447 = vld [vmem:[%s2 + $0x1b8] sm:$0xf]
      %v8448 = vld [vmem:[%s2 + $0x1bc] sm:$0xf]
      %v8449 = vld [vmem:[%s2 + $0x1c0] sm:$0xf]
      %v8450 = vld [vmem:[%s2 + $0x1c4] sm:$0xf]
      %v8451 = vld [vmem:[%s2 + $0x1c8] sm:$0xf]
      %v8452 = vld [vmem:[%s2 + $0x1cc] sm:$0xf]
      %v8453 = vld [vmem:[%s2 + $0x1d0] sm:$0xf]
      %v8454 = vld [vmem:[%s2 + $0x1d4] sm:$0xf]
      %v8455 = vld [vmem:[%s2 + $0x1d8] sm:$0xf]
      %v8456 = vld [vmem:[%s2 + $0x1dc] sm:$0xf]
      %v8457 = vld [vmem:[%s2 + $0x1e0] sm:$0xf]
      %v8458 = vld [vmem:[%s2 + $0x1e4] sm:$0xf]
      %v8459 = vld [vmem:[%s2 + $0x1e8] sm:$0xf]
      %v8460 = vld [vmem:[%s2 + $0x1ec] sm:$0xf]
      %v8461 = vld [vmem:[%s2 + $0x1f0] sm:$0xf]
      %v8462 = vld [vmem:[%s2 + $0x1f4] sm:$0xf]
      %v8463 = vld [vmem:[%s2 + $0x1f8] sm:$0xf]
      %v8464 = vld [vmem:[%s2 + $0x1fc] sm:$0xf]
      %v8465 = vld [vmem:[%s2 + $0x200] sm:$0xf]
      %v8466 = vld [vmem:[%s2 + $0x204] sm:$0xf]
      %v8467 = vld [vmem:[%s2 + $0x208] sm:$0xf]
      %v8468 = vld [vmem:[%s2 + $0x20c] sm:$0xf]
      %v8469 = vld [vmem:[%s2 + $0x210] sm:$0xf]
      %v8470 = vld [vmem:[%s2 + $0x214] sm:$0xf]
      %v8471 = vld [vmem:[%s2 + $0x218] sm:$0xf]
      %v8472 = vld [vmem:[%s2 + $0x21c] sm:$0xf]
      %v8473 = vld [vmem:[%s2 + $0x220] sm:$0xf]
      %v8474 = vld [vmem:[%s2 + $0x224] sm:$0xf]
      %v8475 = vld [vmem:[%s2 + $0x228] sm:$0xf]
      %v8476 = vld [vmem:[%s2 + $0x22c] sm:$0xf]
      %v8477 = vld [vmem:[%s2 + $0x230] sm:$0xf]
      %v8478 = vld [vmem:[%s2 + $0x234] sm:$0xf]
      %v8479 = vld [vmem:[%s2 + $0x238] sm:$0xf]
      %v8480 = vld [vmem:[%s2 + $0x23c] sm:$0xf]
      %v8641 = vunpack.c.l.b16 %v8177
      %v8642 = vunpack.c.h.b16 %v8177
      %v8643 = vunpack.c.l.b16 %v8178
      %v8644 = vunpack.c.h.b16 %v8178
      %v8645 = vunpack.c.l.b16 %v8179
      %v8646 = vunpack.c.h.b16 %v8179
      %v8647 = vunpack.c.l.b16 %v8180
      %v8648 = vunpack.c.h.b16 %v8180
      %v8649 = vunpack.c.l.b16 %v8181
      %v8650 = vunpack.c.l.b16 %v8182
      %v8651 = vunpack.c.h.b16 %v8182
      %v8652 = vunpack.c.l.b16 %v8183
      %v8653 = vunpack.c.h.b16 %v8183
      %v8654 = vunpack.c.l.b16 %v8184
      %v8655 = vunpack.c.h.b16 %v8184
      %v8656 = vunpack.c.l.b16 %v8185
      %v8657 = vunpack.c.h.b16 %v8185
      %v8658 = vunpack.c.l.b16 %v8186
      %v8659 = vunpack.c.l.b16 %v8187
      %v8660 = vunpack.c.h.b16 %v8187
      %v8661 = vunpack.c.l.b16 %v8188
      %v8662 = vunpack.c.h.b16 %v8188
      %v8663 = vunpack.c.l.b16 %v8189
      %v8664 = vunpack.c.h.b16 %v8189
      %v8665 = vunpack.c.l.b16 %v8190
      %v8666 = vunpack.c.h.b16 %v8190
      %v8667 = vunpack.c.l.b16 %v8191
      %v8668 = vunpack.c.l.b16 %v8192
      %v8669 = vunpack.c.h.b16 %v8192
      %v8670 = vunpack.c.l.b16 %v8193
      %v8671 = vunpack.c.h.b16 %v8193
      %v8672 = vunpack.c.l.b16 %v8194
      %v8673 = vunpack.c.h.b16 %v8194
      %v8674 = vunpack.c.l.b16 %v8195
      %v8675 = vunpack.c.h.b16 %v8195
      %v8676 = vunpack.c.l.b16 %v8196
      %v8677 = vunpack.c.l.b16 %v8197
      %v8678 = vunpack.c.h.b16 %v8197
      %v8679 = vunpack.c.l.b16 %v8198
      %v8680 = vunpack.c.h.b16 %v8198
      %v8681 = vunpack.c.l.b16 %v8199
      %v8682 = vunpack.c.h.b16 %v8199
      %v8683 = vunpack.c.l.b16 %v8200
      %v8684 = vunpack.c.h.b16 %v8200
      %v8685 = vunpack.c.l.b16 %v8201
      %v8686 = vunpack.c.l.b16 %v8202
      %v8687 = vunpack.c.h.b16 %v8202
      %v8688 = vunpack.c.l.b16 %v8203
      %v8689 = vunpack.c.h.b16 %v8203
      %v8690 = vunpack.c.l.b16 %v8204
      %v8691 = vunpack.c.h.b16 %v8204
      %v8692 = vunpack.c.l.b16 %v8205
      %v8693 = vunpack.c.h.b16 %v8205
      %v8694 = vunpack.c.l.b16 %v8206
      %v8695 = vunpack.c.l.b16 %v8207
      %v8696 = vunpack.c.h.b16 %v8207
      %v8697 = vunpack.c.l.b16 %v8208
      %v8698 = vunpack.c.h.b16 %v8208
      %v8699 = vunpack.c.l.b16 %v8209
      %v8700 = vunpack.c.h.b16 %v8209
      %v8701 = vunpack.c.l.b16 %v8210
      %v8702 = vunpack.c.h.b16 %v8210
      %v8703 = vunpack.c.l.b16 %v8211
      %v8704 = vunpack.c.l.b16 %v8212
      %v8705 = vunpack.c.h.b16 %v8212
      %v8706 = vunpack.c.l.b16 %v8213
      %v8707 = vunpack.c.h.b16 %v8213
      %v8708 = vunpack.c.l.b16 %v8214
      %v8709 = vunpack.c.h.b16 %v8214
      %v8710 = vunpack.c.l.b16 %v8215
      %v8711 = vunpack.c.h.b16 %v8215
      %v8712 = vunpack.c.l.b16 %v8216
      %v8713 = vunpack.c.l.b16 %v8217
      %v8714 = vunpack.c.h.b16 %v8217
      %v8715 = vunpack.c.l.b16 %v8218
      %v8716 = vunpack.c.h.b16 %v8218
      %v8717 = vunpack.c.l.b16 %v8219
      %v8718 = vunpack.c.h.b16 %v8219
      %v8719 = vunpack.c.l.b16 %v8220
      %v8720 = vunpack.c.h.b16 %v8220
      %v8721 = vunpack.c.l.b16 %v8221
      %v8722 = vunpack.c.l.b16 %v8222
      %v8723 = vunpack.c.h.b16 %v8222
      %v8724 = vunpack.c.l.b16 %v8223
      %v8725 = vunpack.c.h.b16 %v8223
      %v8726 = vunpack.c.l.b16 %v8224
      %v8727 = vunpack.c.h.b16 %v8224
      %v8728 = vunpack.c.l.b16 %v8225
      %v8729 = vunpack.c.h.b16 %v8225
      %v8730 = vunpack.c.l.b16 %v8226
      %v8731 = vunpack.c.l.b16 %v8227
      %v8732 = vunpack.c.h.b16 %v8227
      %v8733 = vunpack.c.l.b16 %v8228
      %v8734 = vunpack.c.h.b16 %v8228
      %v8735 = vunpack.c.l.b16 %v8229
      %v8736 = vunpack.c.h.b16 %v8229
      %v8737 = vunpack.c.l.b16 %v8230
      %v8738 = vunpack.c.h.b16 %v8230
      %v8739 = vunpack.c.l.b16 %v8231
      %v8740 = vunpack.c.l.b16 %v8232
      %v8741 = vunpack.c.h.b16 %v8232
      %v8742 = vunpack.c.l.b16 %v8233
      %v8743 = vunpack.c.h.b16 %v8233
      %v8744 = vunpack.c.l.b16 %v8234
      %v8745 = vunpack.c.h.b16 %v8234
      %v8746 = vunpack.c.l.b16 %v8235
      %v8747 = vunpack.c.h.b16 %v8235
      %v8748 = vunpack.c.l.b16 %v8236
      %v8749 = vunpack.c.l.b16 %v8237
      %v8750 = vunpack.c.h.b16 %v8237
      %v8751 = vunpack.c.l.b16 %v8238
      %v8752 = vunpack.c.h.b16 %v8238
      %v8753 = vunpack.c.l.b16 %v8239
      %v8754 = vunpack.c.h.b16 %v8239
      %v8755 = vunpack.c.l.b16 %v8240
      %v8756 = vunpack.c.h.b16 %v8240
      %v8757 = vunpack.c.l.b16 %v8241
      %v8758 = vunpack.c.l.b16 %v8242
      %v8759 = vunpack.c.h.b16 %v8242
      %v8760 = vunpack.c.l.b16 %v8243
      %v8761 = vunpack.c.h.b16 %v8243
      %v8762 = vunpack.c.l.b16 %v8244
      %v8763 = vunpack.c.h.b16 %v8244
      %v8764 = vunpack.c.l.b16 %v8245
      %v8765 = vunpack.c.h.b16 %v8245
      %v8766 = vunpack.c.l.b16 %v8246
      %v8767 = vunpack.c.l.b16 %v8247
      %v8768 = vunpack.c.h.b16 %v8247
      %v8769 = vunpack.c.l.b16 %v8248
      %v8770 = vunpack.c.h.b16 %v8248
      %v8771 = vunpack.c.l.b16 %v8249
      %v8772 = vunpack.c.h.b16 %v8249
      %v8773 = vunpack.c.l.b16 %v8250
      %v8774 = vunpack.c.h.b16 %v8250
      %v8775 = vunpack.c.l.b16 %v8251
      %v8776 = vunpack.c.l.b16 %v8252
      %v8777 = vunpack.c.h.b16 %v8252
      %v8778 = vunpack.c.l.b16 %v8253
      %v8779 = vunpack.c.h.b16 %v8253
      %v8780 = vunpack.c.l.b16 %v8254
      %v8781 = vunpack.c.h.b16 %v8254
      %v8782 = vunpack.c.l.b16 %v8255
      %v8783 = vunpack.c.h.b16 %v8255
      %v8784 = vunpack.c.l.b16 %v8256
      %v8785 = vunpack.c.l.b16 %v8257
      %v8786 = vunpack.c.h.b16 %v8257
      %v8787 = vunpack.c.l.b16 %v8258
      %v8788 = vunpack.c.h.b16 %v8258
      %v8789 = vunpack.c.l.b16 %v8259
      %v8790 = vunpack.c.h.b16 %v8259
      %v8791 = vunpack.c.l.b16 %v8260
      %v8792 = vunpack.c.h.b16 %v8260
      %v8793 = vunpack.c.l.b16 %v8261
      %v8794 = vunpack.c.l.b16 %v8262
      %v8795 = vunpack.c.h.b16 %v8262
      %v8796 = vunpack.c.l.b16 %v8263
      %v8797 = vunpack.c.h.b16 %v8263
      %v8798 = vunpack.c.l.b16 %v8264
      %v8799 = vunpack.c.h.b16 %v8264
      %v8800 = vunpack.c.l.b16 %v8265
      %v8801 = vunpack.c.h.b16 %v8265
      %v8802 = vunpack.c.l.b16 %v8266
      %v8803 = vunpack.c.l.b16 %v8267
      %v8804 = vunpack.c.h.b16 %v8267
      %v8805 = vunpack.c.l.b16 %v8268
      %v8806 = vunpack.c.h.b16 %v8268
      %v8807 = vunpack.c.l.b16 %v8269
      %v8808 = vunpack.c.h.b16 %v8269
      %v8809 = vunpack.c.l.b16 %v8270
      %v8810 = vunpack.c.h.b16 %v8270
      %v8811 = vunpack.c.l.b16 %v8271
      %v8812 = vunpack.c.l.b16 %v8272
      %v8813 = vunpack.c.h.b16 %v8272
      %v8814 = vunpack.c.l.b16 %v8273
      %v8815 = vunpack.c.h.b16 %v8273
      %v8816 = vunpack.c.l.b16 %v8274
      %v8817 = vunpack.c.h.b16 %v8274
      %v8818 = vunpack.c.l.b16 %v8275
      %v8819 = vunpack.c.h.b16 %v8275
      %v8820 = vunpack.c.l.b16 %v8276
      %v8821 = vunpack.c.l.b16 %v8277
      %v8822 = vunpack.c.h.b16 %v8277
      %v8823 = vunpack.c.l.b16 %v8278
      %v8824 = vunpack.c.h.b16 %v8278
      %v8825 = vunpack.c.l.b16 %v8279
      %v8826 = vunpack.c.h.b16 %v8279
      %v8827 = vunpack.c.l.b16 %v8280
      %v8828 = vunpack.c.h.b16 %v8280
      %v8829 = vunpack.c.l.b16 %v8281
      %v8830 = vunpack.c.l.b16 %v8282
      %v8831 = vunpack.c.h.b16 %v8282
      %v8832 = vunpack.c.l.b16 %v8283
      %v8833 = vunpack.c.h.b16 %v8283
      %v8834 = vunpack.c.l.b16 %v8284
      %v8835 = vunpack.c.h.b16 %v8284
      %v8836 = vunpack.c.l.b16 %v8285
      %v8837 = vunpack.c.h.b16 %v8285
      %v8838 = vunpack.c.l.b16 %v8286
      %v8839 = vunpack.c.l.b16 %v8287
      %v8840 = vunpack.c.h.b16 %v8287
      %v8841 = vunpack.c.l.b16 %v8288
      %v8842 = vunpack.c.h.b16 %v8288
      %v8843 = vunpack.c.l.b16 %v8289
      %v8844 = vunpack.c.h.b16 %v8289
      %v8845 = vunpack.c.l.b16 %v8290
      %v8846 = vunpack.c.h.b16 %v8290
      %v8847 = vunpack.c.l.b16 %v8291
      %v8848 = vunpack.c.l.b16 %v8292
      %v8849 = vunpack.c.h.b16 %v8292
      %v8850 = vunpack.c.l.b16 %v8293
      %v8851 = vunpack.c.h.b16 %v8293
      %v8852 = vunpack.c.l.b16 %v8294
      %v8853 = vunpack.c.h.b16 %v8294
      %v8854 = vunpack.c.l.b16 %v8295
      %v8855 = vunpack.c.h.b16 %v8295
      %v8856 = vunpack.c.l.b16 %v8296
      %v8857 = vunpack.c.l.b16 %v8297
      %v8858 = vunpack.c.h.b16 %v8297
      %v8859 = vunpack.c.l.b16 %v8298
      %v8860 = vunpack.c.h.b16 %v8298
      %v8861 = vunpack.c.l.b16 %v8299
      %v8862 = vunpack.c.h.b16 %v8299
      %v8863 = vunpack.c.l.b16 %v8300
      %v8864 = vunpack.c.h.b16 %v8300
      %v8865 = vunpack.c.l.b16 %v8301
      %v8866 = vunpack.c.l.b16 %v8302
      %v8867 = vunpack.c.h.b16 %v8302
      %v8868 = vunpack.c.l.b16 %v8303
      %v8869 = vunpack.c.h.b16 %v8303
      %v8870 = vunpack.c.l.b16 %v8304
      %v8871 = vunpack.c.h.b16 %v8304
      %v8872 = vunpack.c.l.b16 %v8305
      %v8873 = vunpack.c.h.b16 %v8305
      %v8874 = vunpack.c.l.b16 %v8306
      %v8875 = vunpack.c.l.b16 %v8307
      %v8876 = vunpack.c.h.b16 %v8307
      %v8877 = vunpack.c.l.b16 %v8308
      %v8878 = vunpack.c.h.b16 %v8308
      %v8879 = vunpack.c.l.b16 %v8309
      %v8880 = vunpack.c.h.b16 %v8309
      %v8881 = vunpack.c.l.b16 %v8310
      %v8882 = vunpack.c.h.b16 %v8310
      %v8883 = vunpack.c.l.b16 %v8311
      %v8884 = vunpack.c.l.b16 %v8312
      %v8885 = vunpack.c.h.b16 %v8312
      %v8886 = vunpack.c.l.b16 %v8313
      %v8887 = vunpack.c.h.b16 %v8313
      %v8888 = vunpack.c.l.b16 %v8314
      %v8889 = vunpack.c.h.b16 %v8314
      %v8890 = vunpack.c.l.b16 %v8315
      %v8891 = vunpack.c.h.b16 %v8315
      %v8892 = vunpack.c.l.b16 %v8316
      %v8893 = vunpack.c.l.b16 %v8317
      %v8894 = vunpack.c.h.b16 %v8317
      %v8895 = vunpack.c.l.b16 %v8318
      %v8896 = vunpack.c.h.b16 %v8318
      %v8897 = vunpack.c.l.b16 %v8319
      %v8898 = vunpack.c.h.b16 %v8319
      %v8899 = vunpack.c.l.b16 %v8320
      %v8900 = vunpack.c.h.b16 %v8320
      %v8901 = vunpack.c.l.b16 %v8321
      %v8902 = vunpack.c.l.b16 %v8322
      %v8903 = vunpack.c.h.b16 %v8322
      %v8904 = vunpack.c.l.b16 %v8323
      %v8905 = vunpack.c.h.b16 %v8323
      %v8906 = vunpack.c.l.b16 %v8324
      %v8907 = vunpack.c.h.b16 %v8324
      %v8908 = vunpack.c.l.b16 %v8325
      %v8909 = vunpack.c.h.b16 %v8325
      %v8910 = vunpack.c.l.b16 %v8326
      %v8911 = vunpack.c.l.b16 %v8327
      %v8912 = vunpack.c.h.b16 %v8327
      %v8913 = vunpack.c.l.b16 %v8328
      %v8914 = vunpack.c.h.b16 %v8328
      %v8915 = vunpack.c.l.b16 %v8329
      %v8916 = vunpack.c.h.b16 %v8329
      %v8917 = vunpack.c.l.b16 %v8330
      %v8918 = vunpack.c.h.b16 %v8330
      %v8919 = vunpack.c.l.b16 %v8331
      %v8920 = vunpack.c.l.b16 %v8332
      %v8921 = vunpack.c.h.b16 %v8332
      %v8922 = vunpack.c.l.b16 %v8333
      %v8923 = vunpack.c.h.b16 %v8333
      %v8924 = vunpack.c.l.b16 %v8334
      %v8925 = vunpack.c.h.b16 %v8334
      %v8926 = vunpack.c.l.b16 %v8335
      %v8927 = vunpack.c.h.b16 %v8335
      %v8928 = vunpack.c.l.b16 %v8336
      %v8929 = vpack.c.b16 %v8650, %v8641
      %v8930 = vpack.c.b16 %v8651, %v8642
      %v8931 = vpack.c.b16 %v8652, %v8643
      %v8932 = vpack.c.b16 %v8653, %v8644
      %v8933 = vpack.c.b16 %v8654, %v8645
      %v8934 = vpack.c.b16 %v8655, %v8646
      %v8935 = vpack.c.b16 %v8656, %v8647
      %v8936 = vpack.c.b16 %v8657, %v8648
      %v8937 = vpack.c.b16 %v8658, %v8649
      %v8938 = vpack.c.b16 %v8668, %v8659
      %v8939 = vpack.c.b16 %v8669, %v8660
      %v8940 = vpack.c.b16 %v8670, %v8661
      %v8941 = vpack.c.b16 %v8671, %v8662
      %v8942 = vpack.c.b16 %v8672, %v8663
      %v8943 = vpack.c.b16 %v8673, %v8664
      %v8944 = vpack.c.b16 %v8674, %v8665
      %v8945 = vpack.c.b16 %v8675, %v8666
      %v8946 = vpack.c.b16 %v8676, %v8667
      %v8947 = vpack.c.b16 %v8686, %v8677
      %v8948 = vpack.c.b16 %v8687, %v8678
      %v8949 = vpack.c.b16 %v8688, %v8679
      %v8950 = vpack.c.b16 %v8689, %v8680
      %v8951 = vpack.c.b16 %v8690, %v8681
      %v8952 = vpack.c.b16 %v8691, %v8682
      %v8953 = vpack.c.b16 %v8692, %v8683
      %v8954 = vpack.c.b16 %v8693, %v8684
      %v8955 = vpack.c.b16 %v8694, %v8685
      %v8956 = vpack.c.b16 %v8704, %v8695
      %v8957 = vpack.c.b16 %v8705, %v8696
      %v8958 = vpack.c.b16 %v8706, %v8697
      %v8959 = vpack.c.b16 %v8707, %v8698
      %v8960 = vpack.c.b16 %v8708, %v8699
      %v8961 = vpack.c.b16 %v8709, %v8700
      %v8962 = vpack.c.b16 %v8710, %v8701
      %v8963 = vpack.c.b16 %v8711, %v8702
      %v8964 = vpack.c.b16 %v8712, %v8703
      %v8965 = vpack.c.b16 %v8722, %v8713
      %v8966 = vpack.c.b16 %v8723, %v8714
      %v8967 = vpack.c.b16 %v8724, %v8715
      %v8968 = vpack.c.b16 %v8725, %v8716
      %v8969 = vpack.c.b16 %v8726, %v8717
      %v8970 = vpack.c.b16 %v8727, %v8718
      %v8971 = vpack.c.b16 %v8728, %v8719
      %v8972 = vpack.c.b16 %v8729, %v8720
      %v8973 = vpack.c.b16 %v8730, %v8721
      %v8974 = vpack.c.b16 %v8740, %v8731
      %v8975 = vpack.c.b16 %v8741, %v8732
      %v8976 = vpack.c.b16 %v8742, %v8733
      %v8977 = vpack.c.b16 %v8743, %v8734
      %v8978 = vpack.c.b16 %v8744, %v8735
      %v8979 = vpack.c.b16 %v8745, %v8736
      %v8980 = vpack.c.b16 %v8746, %v8737
      %v8981 = vpack.c.b16 %v8747, %v8738
      %v8982 = vpack.c.b16 %v8748, %v8739
      %v8983 = vpack.c.b16 %v8758, %v8749
      %v8984 = vpack.c.b16 %v8759, %v8750
      %v8985 = vpack.c.b16 %v8760, %v8751
      %v8986 = vpack.c.b16 %v8761, %v8752
      %v8987 = vpack.c.b16 %v8762, %v8753
      %v8988 = vpack.c.b16 %v8763, %v8754
      %v8989 = vpack.c.b16 %v8764, %v8755
      %v8990 = vpack.c.b16 %v8765, %v8756
      %v8991 = vpack.c.b16 %v8766, %v8757
      %v8992 = vpack.c.b16 %v8776, %v8767
      %v8993 = vpack.c.b16 %v8777, %v8768
      %v8994 = vpack.c.b16 %v8778, %v8769
      %v8995 = vpack.c.b16 %v8779, %v8770
      %v8996 = vpack.c.b16 %v8780, %v8771
      %v8997 = vpack.c.b16 %v8781, %v8772
      %v8998 = vpack.c.b16 %v8782, %v8773
      %v8999 = vpack.c.b16 %v8783, %v8774
      %v9000 = vpack.c.b16 %v8784, %v8775
      %v9001 = vpack.c.b16 %v8794, %v8785
      %v9002 = vpack.c.b16 %v8795, %v8786
      %v9003 = vpack.c.b16 %v8796, %v8787
      %v9004 = vpack.c.b16 %v8797, %v8788
      %v9005 = vpack.c.b16 %v8798, %v8789
      %v9006 = vpack.c.b16 %v8799, %v8790
      %v9007 = vpack.c.b16 %v8800, %v8791
      %v9008 = vpack.c.b16 %v8801, %v8792
      %v9009 = vpack.c.b16 %v8802, %v8793
      %v9010 = vpack.c.b16 %v8812, %v8803
      %v9011 = vpack.c.b16 %v8813, %v8804
      %v9012 = vpack.c.b16 %v8814, %v8805
      %v9013 = vpack.c.b16 %v8815, %v8806
      %v9014 = vpack.c.b16 %v8816, %v8807
      %v9015 = vpack.c.b16 %v8817, %v8808
      %v9016 = vpack.c.b16 %v8818, %v8809
      %v9017 = vpack.c.b16 %v8819, %v8810
      %v9018 = vpack.c.b16 %v8820, %v8811
      %v9019 = vpack.c.b16 %v8830, %v8821
      %v9020 = vpack.c.b16 %v8831, %v8822
      %v9021 = vpack.c.b16 %v8832, %v8823
      %v9022 = vpack.c.b16 %v8833, %v8824
      %v9023 = vpack.c.b16 %v8834, %v8825
      %v9024 = vpack.c.b16 %v8835, %v8826
      %v9025 = vpack.c.b16 %v8836, %v8827
      %v9026 = vpack.c.b16 %v8837, %v8828
      %v9027 = vpack.c.b16 %v8838, %v8829
      %v9028 = vpack.c.b16 %v8848, %v8839
      %v9029 = vpack.c.b16 %v8849, %v8840
      %v9030 = vpack.c.b16 %v8850, %v8841
      %v9031 = vpack.c.b16 %v8851, %v8842
      %v9032 = vpack.c.b16 %v8852, %v8843
      %v9033 = vpack.c.b16 %v8853, %v8844
      %v9034 = vpack.c.b16 %v8854, %v8845
      %v9035 = vpack.c.b16 %v8855, %v8846
      %v9036 = vpack.c.b16 %v8856, %v8847
      %v9037 = vpack.c.b16 %v8866, %v8857
      %v9038 = vpack.c.b16 %v8867, %v8858
      %v9039 = vpack.c.b16 %v8868, %v8859
      %v9040 = vpack.c.b16 %v8869, %v8860
      %v9041 = vpack.c.b16 %v8870, %v8861
      %v9042 = vpack.c.b16 %v8871, %v8862
      %v9043 = vpack.c.b16 %v8872, %v8863
      %v9044 = vpack.c.b16 %v8873, %v8864
      %v9045 = vpack.c.b16 %v8874, %v8865
      %v9046 = vpack.c.b16 %v8884, %v8875
      %v9047 = vpack.c.b16 %v8885, %v8876
      %v9048 = vpack.c.b16 %v8886, %v8877
      %v9049 = vpack.c.b16 %v8887, %v8878
      %v9050 = vpack.c.b16 %v8888, %v8879
      %v9051 = vpack.c.b16 %v8889, %v8880
      %v9052 = vpack.c.b16 %v8890, %v8881
      %v9053 = vpack.c.b16 %v8891, %v8882
      %v9054 = vpack.c.b16 %v8892, %v8883
      %v9055 = vpack.c.b16 %v8902, %v8893
      %v9056 = vpack.c.b16 %v8903, %v8894
      %v9057 = vpack.c.b16 %v8904, %v8895
      %v9058 = vpack.c.b16 %v8905, %v8896
      %v9059 = vpack.c.b16 %v8906, %v8897
      %v9060 = vpack.c.b16 %v8907, %v8898
      %v9061 = vpack.c.b16 %v8908, %v8899
      %v9062 = vpack.c.b16 %v8909, %v8900
      %v9063 = vpack.c.b16 %v8910, %v8901
      %v9064 = vpack.c.b16 %v8920, %v8911
      %v9065 = vpack.c.b16 %v8921, %v8912
      %v9066 = vpack.c.b16 %v8922, %v8913
      %v9067 = vpack.c.b16 %v8923, %v8914
      %v9068 = vpack.c.b16 %v8924, %v8915
      %v9069 = vpack.c.b16 %v8925, %v8916
      %v9070 = vpack.c.b16 %v8926, %v8917
      %v9071 = vpack.c.b16 %v8927, %v8918
      %v9072 = vpack.c.b16 %v8928, %v8919
      %v9361 = vunpack.c.l.b16 %v8337
      %v9362 = vunpack.c.l.b16 %v8338
      %v9363 = vunpack.c.l.b16 %v8339
      %v9364 = vunpack.c.l.b16 %v8340
      %v9365 = vunpack.c.l.b16 %v8341
      %v9366 = vunpack.c.l.b16 %v8342
      %v9367 = vunpack.c.l.b16 %v8343
      %v9368 = vunpack.c.l.b16 %v8344
      %v9369 = vunpack.c.l.b16 %v8345
      %v9370 = vunpack.c.l.b16 %v8346
      %v9371 = vunpack.c.l.b16 %v8347
      %v9372 = vunpack.c.l.b16 %v8348
      %v9373 = vunpack.c.l.b16 %v8349
      %v9374 = vunpack.c.l.b16 %v8350
      %v9375 = vunpack.c.l.b16 %v8351
      %v9376 = vunpack.c.l.b16 %v8352
      %v9377 = vunpack.c.l.b16 %v8353
      %v9378 = vunpack.c.l.b16 %v8354
      %v9379 = vunpack.c.l.b16 %v8355
      %v9380 = vunpack.c.l.b16 %v8356
      %v9381 = vunpack.c.l.b16 %v8357
      %v9382 = vunpack.c.l.b16 %v8358
      %v9383 = vunpack.c.l.b16 %v8359
      %v9384 = vunpack.c.l.b16 %v8360
      %v9385 = vunpack.c.l.b16 %v8361
      %v9386 = vunpack.c.l.b16 %v8362
      %v9387 = vunpack.c.l.b16 %v8363
      %v9388 = vunpack.c.l.b16 %v8364
      %v9389 = vunpack.c.l.b16 %v8365
      %v9390 = vunpack.c.l.b16 %v8366
      %v9391 = vunpack.c.l.b16 %v8367
      %v9392 = vunpack.c.l.b16 %v8368
      %v9393 = vunpack.c.l.b16 %v8369
      %v9394 = vunpack.c.l.b16 %v8370
      %v9395 = vunpack.c.l.b16 %v8371
      %v9396 = vunpack.c.l.b16 %v8372
      %v9397 = vunpack.c.l.b16 %v8373
      %v9398 = vunpack.c.l.b16 %v8374
      %v9399 = vunpack.c.l.b16 %v8375
      %v9400 = vunpack.c.l.b16 %v8376
      %v9401 = vunpack.c.l.b16 %v8377
      %v9402 = vunpack.c.l.b16 %v8378
      %v9403 = vunpack.c.l.b16 %v8379
      %v9404 = vunpack.c.l.b16 %v8380
      %v9405 = vunpack.c.l.b16 %v8381
      %v9406 = vunpack.c.l.b16 %v8382
      %v9407 = vunpack.c.l.b16 %v8383
      %v9408 = vunpack.c.l.b16 %v8384
      %v9409 = vunpack.c.l.b16 %v8385
      %v9410 = vunpack.c.l.b16 %v8386
      %v9411 = vunpack.c.l.b16 %v8387
      %v9412 = vunpack.c.l.b16 %v8388
      %v9413 = vunpack.c.l.b16 %v8389
      %v9414 = vunpack.c.l.b16 %v8390
      %v9415 = vunpack.c.l.b16 %v8391
      %v9416 = vunpack.c.l.b16 %v8392
      %v9417 = vunpack.c.l.b16 %v8393
      %v9418 = vunpack.c.l.b16 %v8394
      %v9419 = vunpack.c.l.b16 %v8395
      %v9420 = vunpack.c.l.b16 %v8396
      %v9421 = vunpack.c.l.b16 %v8397
      %v9422 = vunpack.c.l.b16 %v8398
      %v9423 = vunpack.c.l.b16 %v8399
      %v9424 = vunpack.c.l.b16 %v8400
      %v9425 = vunpack.c.l.b16 %v8401
      %v9426 = vunpack.c.l.b16 %v8402
      %v9427 = vunpack.c.l.b16 %v8403
      %v9428 = vunpack.c.l.b16 %v8404
      %v9429 = vunpack.c.l.b16 %v8405
      %v9430 = vunpack.c.l.b16 %v8406
      %v9431 = vunpack.c.l.b16 %v8407
      %v9432 = vunpack.c.l.b16 %v8408
      %v9433 = vunpack.c.l.b16 %v8409
      %v9434 = vunpack.c.l.b16 %v8410
      %v9435 = vunpack.c.l.b16 %v8411
      %v9436 = vunpack.c.l.b16 %v8412
      %v9437 = vunpack.c.l.b16 %v8413
      %v9438 = vunpack.c.l.b16 %v8414
      %v9439 = vunpack.c.l.b16 %v8415
      %v9440 = vunpack.c.l.b16 %v8416
      %v9441 = vunpack.c.l.b16 %v8417
      %v9442 = vunpack.c.l.b16 %v8418
      %v9443 = vunpack.c.l.b16 %v8419
      %v9444 = vunpack.c.l.b16 %v8420
      %v9445 = vunpack.c.l.b16 %v8421
      %v9446 = vunpack.c.l.b16 %v8422
      %v9447 = vunpack.c.l.b16 %v8423
      %v9448 = vunpack.c.l.b16 %v8424
      %v9449 = vunpack.c.l.b16 %v8425
      %v9450 = vunpack.c.l.b16 %v8426
      %v9451 = vunpack.c.l.b16 %v8427
      %v9452 = vunpack.c.l.b16 %v8428
      %v9453 = vunpack.c.l.b16 %v8429
      %v9454 = vunpack.c.l.b16 %v8430
      %v9455 = vunpack.c.l.b16 %v8431
      %v9456 = vunpack.c.l.b16 %v8432
      %v9457 = vunpack.c.l.b16 %v8433
      %v9458 = vunpack.c.l.b16 %v8434
      %v9459 = vunpack.c.l.b16 %v8435
      %v9460 = vunpack.c.l.b16 %v8436
      %v9461 = vunpack.c.l.b16 %v8437
      %v9462 = vunpack.c.l.b16 %v8438
      %v9463 = vunpack.c.l.b16 %v8439
      %v9464 = vunpack.c.l.b16 %v8440
      %v9465 = vunpack.c.l.b16 %v8441
      %v9466 = vunpack.c.l.b16 %v8442
      %v9467 = vunpack.c.l.b16 %v8443
      %v9468 = vunpack.c.l.b16 %v8444
      %v9469 = vunpack.c.l.b16 %v8445
      %v9470 = vunpack.c.l.b16 %v8446
      %v9471 = vunpack.c.l.b16 %v8447
      %v9472 = vunpack.c.l.b16 %v8448
      %v9473 = vunpack.c.l.b16 %v8449
      %v9474 = vunpack.c.l.b16 %v8450
      %v9475 = vunpack.c.l.b16 %v8451
      %v9476 = vunpack.c.l.b16 %v8452
      %v9477 = vunpack.c.l.b16 %v8453
      %v9478 = vunpack.c.l.b16 %v8454
      %v9479 = vunpack.c.l.b16 %v8455
      %v9480 = vunpack.c.l.b16 %v8456
      %v9481 = vunpack.c.l.b16 %v8457
      %v9482 = vunpack.c.l.b16 %v8458
      %v9483 = vunpack.c.l.b16 %v8459
      %v9484 = vunpack.c.l.b16 %v8460
      %v9485 = vunpack.c.l.b16 %v8461
      %v9486 = vunpack.c.l.b16 %v8462
      %v9487 = vunpack.c.l.b16 %v8463
      %v9488 = vunpack.c.l.b16 %v8464
      %v9489 = vunpack.c.l.b16 %v8465
      %v9490 = vunpack.c.l.b16 %v8466
      %v9491 = vunpack.c.l.b16 %v8467
      %v9492 = vunpack.c.l.b16 %v8468
      %v9493 = vunpack.c.l.b16 %v8469
      %v9494 = vunpack.c.l.b16 %v8470
      %v9495 = vunpack.c.l.b16 %v8471
      %v9496 = vunpack.c.l.b16 %v8472
      %v9497 = vunpack.c.l.b16 %v8473
      %v9498 = vunpack.c.l.b16 %v8474
      %v9499 = vunpack.c.l.b16 %v8475
      %v9500 = vunpack.c.l.b16 %v8476
      %v9501 = vunpack.c.l.b16 %v8477
      %v9502 = vunpack.c.l.b16 %v8478
      %v9503 = vunpack.c.l.b16 %v8479
      %v9504 = vunpack.c.l.b16 %v8480
      %v9505 = vpack.c.b16 %v9362, %v9361
      %v9506 = vpack.c.b16 %v9364, %v9363
      %v9507 = vpack.c.b16 %v9366, %v9365
      %v9508 = vpack.c.b16 %v9368, %v9367
      %v9509 = vpack.c.b16 %v9370, %v9369
      %v9510 = vpack.c.b16 %v9372, %v9371
      %v9511 = vpack.c.b16 %v9374, %v9373
      %v9512 = vpack.c.b16 %v9376, %v9375
      %v9513 = vpack.c.b16 %v9378, %v9377
      %v9514 = vpack.c.b16 %v9380, %v9379
      %v9515 = vpack.c.b16 %v9382, %v9381
      %v9516 = vpack.c.b16 %v9384, %v9383
      %v9517 = vpack.c.b16 %v9386, %v9385
      %v9518 = vpack.c.b16 %v9388, %v9387
      %v9519 = vpack.c.b16 %v9390, %v9389
      %v9520 = vpack.c.b16 %v9392, %v9391
      %v9521 = vpack.c.b16 %v9394, %v9393
      %v9522 = vpack.c.b16 %v9396, %v9395
      %v9523 = vpack.c.b16 %v9398, %v9397
      %v9524 = vpack.c.b16 %v9400, %v9399
      %v9525 = vpack.c.b16 %v9402, %v9401
      %v9526 = vpack.c.b16 %v9404, %v9403
      %v9527 = vpack.c.b16 %v9406, %v9405
      %v9528 = vpack.c.b16 %v9408, %v9407
      %v9529 = vpack.c.b16 %v9410, %v9409
      %v9530 = vpack.c.b16 %v9412, %v9411
      %v9531 = vpack.c.b16 %v9414, %v9413
      %v9532 = vpack.c.b16 %v9416, %v9415
      %v9533 = vpack.c.b16 %v9418, %v9417
      %v9534 = vpack.c.b16 %v9420, %v9419
      %v9535 = vpack.c.b16 %v9422, %v9421
      %v9536 = vpack.c.b16 %v9424, %v9423
      %v9537 = vpack.c.b16 %v9426, %v9425
      %v9538 = vpack.c.b16 %v9428, %v9427
      %v9539 = vpack.c.b16 %v9430, %v9429
      %v9540 = vpack.c.b16 %v9432, %v9431
      %v9541 = vpack.c.b16 %v9434, %v9433
      %v9542 = vpack.c.b16 %v9436, %v9435
      %v9543 = vpack.c.b16 %v9438, %v9437
      %v9544 = vpack.c.b16 %v9440, %v9439
      %v9545 = vpack.c.b16 %v9442, %v9441
      %v9546 = vpack.c.b16 %v9444, %v9443
      %v9547 = vpack.c.b16 %v9446, %v9445
      %v9548 = vpack.c.b16 %v9448, %v9447
      %v9549 = vpack.c.b16 %v9450, %v9449
      %v9550 = vpack.c.b16 %v9452, %v9451
      %v9551 = vpack.c.b16 %v9454, %v9453
      %v9552 = vpack.c.b16 %v9456, %v9455
      %v9553 = vpack.c.b16 %v9458, %v9457
      %v9554 = vpack.c.b16 %v9460, %v9459
      %v9555 = vpack.c.b16 %v9462, %v9461
      %v9556 = vpack.c.b16 %v9464, %v9463
      %v9557 = vpack.c.b16 %v9466, %v9465
      %v9558 = vpack.c.b16 %v9468, %v9467
      %v9559 = vpack.c.b16 %v9470, %v9469
      %v9560 = vpack.c.b16 %v9472, %v9471
      %v9561 = vpack.c.b16 %v9474, %v9473
      %v9562 = vpack.c.b16 %v9476, %v9475
      %v9563 = vpack.c.b16 %v9478, %v9477
      %v9564 = vpack.c.b16 %v9480, %v9479
      %v9565 = vpack.c.b16 %v9482, %v9481
      %v9566 = vpack.c.b16 %v9484, %v9483
      %v9567 = vpack.c.b16 %v9486, %v9485
      %v9568 = vpack.c.b16 %v9488, %v9487
      %v9569 = vpack.c.b16 %v9490, %v9489
      %v9570 = vpack.c.b16 %v9492, %v9491
      %v9571 = vpack.c.b16 %v9494, %v9493
      %v9572 = vpack.c.b16 %v9496, %v9495
      %v9573 = vpack.c.b16 %v9498, %v9497
      %v9574 = vpack.c.b16 %v9500, %v9499
      %v9575 = vpack.c.b16 %v9502, %v9501
      %v9576 = vpack.c.b16 %v9504, %v9503
      %9649 = vmatpush.bf16.msra.mxu0 %v9512
      %9650 = vmatpush.bf16.msra.mxu0 %v9511
      %9651 = vmatpush.bf16.msra.mxu0 %v9510
      %9652 = vmatpush.bf16.msra.mxu0 %v9509
      %9653 = vmatpush.bf16.msra.mxu0 %v9508
      %9654 = vmatpush.bf16.msra.mxu0 %v9507
      %9655 = vmatpush.bf16.msra.mxu0 %v9506
      %9656 = vmatpush.bf16.msra.mxu0 %v9505
      %9657 = vmatmul.bf16.gmra.mxu0 %v8929
      %v9658 = vpop.f32.mrf.mxu0
      %v9659 = vadd.f32 0.0, %v9658
      %v9660 = vpop.f32.mrf.mxu0
      %v9661 = vadd.f32 0.0, %v9660
      %9662 = vmatmul.bf16.gmra.mxu0 %v8938
      %v9663 = vpop.f32.mrf.mxu0
      %v9664 = vadd.f32 0.0, %v9663
      %v9665 = vpop.f32.mrf.mxu0
      %v9666 = vadd.f32 0.0, %v9665
      %9667 = vmatmul.bf16.gmra.mxu0 %v8947
      %v9668 = vpop.f32.mrf.mxu0
      %v9669 = vadd.f32 0.0, %v9668
      %v9670 = vpop.f32.mrf.mxu0
      %v9671 = vadd.f32 0.0, %v9670
      %9672 = vmatmul.bf16.gmra.mxu0 %v8956
      %v9673 = vpop.f32.mrf.mxu0
      %v9674 = vadd.f32 0.0, %v9673
      %v9675 = vpop.f32.mrf.mxu0
      %v9676 = vadd.f32 0.0, %v9675
      %9677 = vmatmul.bf16.gmra.mxu0 %v8965
      %v9678 = vpop.f32.mrf.mxu0
      %v9679 = vadd.f32 0.0, %v9678
      %v9680 = vpop.f32.mrf.mxu0
      %v9681 = vadd.f32 0.0, %v9680
      %9682 = vmatmul.bf16.gmra.mxu0 %v8974
      %v9683 = vpop.f32.mrf.mxu0
      %v9684 = vadd.f32 0.0, %v9683
      %v9685 = vpop.f32.mrf.mxu0
      %v9686 = vadd.f32 0.0, %v9685
      %9687 = vmatmul.bf16.gmra.mxu0 %v8983
      %v9688 = vpop.f32.mrf.mxu0
      %v9689 = vadd.f32 0.0, %v9688
      %v9690 = vpop.f32.mrf.mxu0
      %v9691 = vadd.f32 0.0, %v9690
      %9692 = vmatmul.bf16.gmra.mxu0 %v8992
      %v9693 = vpop.f32.mrf.mxu0
      %v9694 = vadd.f32 0.0, %v9693
      %v9695 = vpop.f32.mrf.mxu0
      %v9696 = vadd.f32 0.0, %v9695
      %9697 = vmatmul.bf16.gmra.mxu0 %v9001
      %v9698 = vpop.f32.mrf.mxu0
      %v9699 = vadd.f32 0.0, %v9698
      %v9700 = vpop.f32.mrf.mxu0
      %v9701 = vadd.f32 0.0, %v9700
      %9702 = vmatmul.bf16.gmra.mxu0 %v9010
      %v9703 = vpop.f32.mrf.mxu0
      %v9704 = vadd.f32 0.0, %v9703
      %v9705 = vpop.f32.mrf.mxu0
      %v9706 = vadd.f32 0.0, %v9705
      %9707 = vmatmul.bf16.gmra.mxu0 %v9019
      %v9708 = vpop.f32.mrf.mxu0
      %v9709 = vadd.f32 0.0, %v9708
      %v9710 = vpop.f32.mrf.mxu0
      %v9711 = vadd.f32 0.0, %v9710
      %9712 = vmatmul.bf16.gmra.mxu0 %v9028
      %v9713 = vpop.f32.mrf.mxu0
      %v9714 = vadd.f32 0.0, %v9713
      %v9715 = vpop.f32.mrf.mxu0
      %v9716 = vadd.f32 0.0, %v9715
      %9717 = vmatmul.bf16.gmra.mxu0 %v9037
      %v9718 = vpop.f32.mrf.mxu0
      %v9719 = vadd.f32 0.0, %v9718
      %v9720 = vpop.f32.mrf.mxu0
      %v9721 = vadd.f32 0.0, %v9720
      %9722 = vmatmul.bf16.gmra.mxu0 %v9046
      %v9723 = vpop.f32.mrf.mxu0
      %v9724 = vadd.f32 0.0, %v9723
      %v9725 = vpop.f32.mrf.mxu0
      %v9726 = vadd.f32 0.0, %v9725
      %9727 = vmatmul.bf16.gmra.mxu0 %v9055
      %v9728 = vpop.f32.mrf.mxu0
      %v9729 = vadd.f32 0.0, %v9728
      %v9730 = vpop.f32.mrf.mxu0
      %v9731 = vadd.f32 0.0, %v9730
      %9732 = vmatmul.bf16.gmra.mxu0 %v9064
      %v9733 = vpop.f32.mrf.mxu0
      %v9734 = vadd.f32 0.0, %v9733
      %v9735 = vpop.f32.mrf.mxu0
      %v9736 = vadd.f32 0.0, %v9735
      %9737 = vdwg.mxu0
      %9738 = vmatpush.bf16.msra.mxu0 %v9520
      %9739 = vmatpush.bf16.msra.mxu0 %v9519
      %9740 = vmatpush.bf16.msra.mxu0 %v9518
      %9741 = vmatpush.bf16.msra.mxu0 %v9517
      %9742 = vmatpush.bf16.msra.mxu0 %v9516
      %9743 = vmatpush.bf16.msra.mxu0 %v9515
      %9744 = vmatpush.bf16.msra.mxu0 %v9514
      %9745 = vmatpush.bf16.msra.mxu0 %v9513
      %9746 = vmatmul.bf16.gmra.mxu0 %v8930
      %v9747 = vpop.f32.mrf.mxu0
      %v9748 = vadd.f32 %v9659, %v9747
      %v9749 = vpop.f32.mrf.mxu0
      %v9750 = vadd.f32 %v9661, %v9749
      %9751 = vmatmul.bf16.gmra.mxu0 %v8939
      %v9752 = vpop.f32.mrf.mxu0
      %v9753 = vadd.f32 %v9664, %v9752
      %v9754 = vpop.f32.mrf.mxu0
      %v9755 = vadd.f32 %v9666, %v9754
      %9756 = vmatmul.bf16.gmra.mxu0 %v8948
      %v9757 = vpop.f32.mrf.mxu0
      %v9758 = vadd.f32 %v9669, %v9757
      %v9759 = vpop.f32.mrf.mxu0
      %v9760 = vadd.f32 %v9671, %v9759
      %9761 = vmatmul.bf16.gmra.mxu0 %v8957
      %v9762 = vpop.f32.mrf.mxu0
      %v9763 = vadd.f32 %v9674, %v9762
      %v9764 = vpop.f32.mrf.mxu0
      %v9765 = vadd.f32 %v9676, %v9764
      %9766 = vmatmul.bf16.gmra.mxu0 %v8966
      %v9767 = vpop.f32.mrf.mxu0
      %v9768 = vadd.f32 %v9679, %v9767
      %v9769 = vpop.f32.mrf.mxu0
      %v9770 = vadd.f32 %v9681, %v9769
      %9771 = vmatmul.bf16.gmra.mxu0 %v8975
      %v9772 = vpop.f32.mrf.mxu0
      %v9773 = vadd.f32 %v9684, %v9772
      %v9774 = vpop.f32.mrf.mxu0
      %v9775 = vadd.f32 %v9686, %v9774
      %9776 = vmatmul.bf16.gmra.mxu0 %v8984
      %v9777 = vpop.f32.mrf.mxu0
      %v9778 = vadd.f32 %v9689, %v9777
      %v9779 = vpop.f32.mrf.mxu0
      %v9780 = vadd.f32 %v9691, %v9779
      %9781 = vmatmul.bf16.gmra.mxu0 %v8993
      %v9782 = vpop.f32.mrf.mxu0
      %v9783 = vadd.f32 %v9694, %v9782
      %v9784 = vpop.f32.mrf.mxu0
      %v9785 = vadd.f32 %v9696, %v9784
      %9786 = vmatmul.bf16.gmra.mxu0 %v9002
      %v9787 = vpop.f32.mrf.mxu0
      %v9788 = vadd.f32 %v9699, %v9787
      %v9789 = vpop.f32.mrf.mxu0
      %v9790 = vadd.f32 %v9701, %v9789
      %9791 = vmatmul.bf16.gmra.mxu0 %v9011
      %v9792 = vpop.f32.mrf.mxu0
      %v9793 = vadd.f32 %v9704, %v9792
      %v9794 = vpop.f32.mrf.mxu0
      %v9795 = vadd.f32 %v9706, %v9794
      %9796 = vmatmul.bf16.gmra.mxu0 %v9020
      %v9797 = vpop.f32.mrf.mxu0
      %v9798 = vadd.f32 %v9709, %v9797
      %v9799 = vpop.f32.mrf.mxu0
      %v9800 = vadd.f32 %v9711, %v9799
      %9801 = vmatmul.bf16.gmra.mxu0 %v9029
      %v9802 = vpop.f32.mrf.mxu0
      %v9803 = vadd.f32 %v9714, %v9802
      %v9804 = vpop.f32.mrf.mxu0
      %v9805 = vadd.f32 %v9716, %v9804
      %9806 = vmatmul.bf16.gmra.mxu0 %v9038
      %v9807 = vpop.f32.mrf.mxu0
      %v9808 = vadd.f32 %v9719, %v9807
      %v9809 = vpop.f32.mrf.mxu0
      %v9810 = vadd.f32 %v9721, %v9809
      %9811 = vmatmul.bf16.gmra.mxu0 %v9047
      %v9812 = vpop.f32.mrf.mxu0
      %v9813 = vadd.f32 %v9724, %v9812
      %v9814 = vpop.f32.mrf.mxu0
      %v9815 = vadd.f32 %v9726, %v9814
      %9816 = vmatmul.bf16.gmra.mxu0 %v9056
      %v9817 = vpop.f32.mrf.mxu0
      %v9818 = vadd.f32 %v9729, %v9817
      %v9819 = vpop.f32.mrf.mxu0
      %v9820 = vadd.f32 %v9731, %v9819
      %9821 = vmatmul.bf16.gmra.mxu0 %v9065
      %v9822 = vpop.f32.mrf.mxu0
      %v9823 = vadd.f32 %v9734, %v9822
      %v9824 = vpop.f32.mrf.mxu0
      %v9825 = vadd.f32 %v9736, %v9824
      %9826 = vdwg.mxu0
      %9827 = vmatpush.bf16.msra.mxu0 %v9528
      %9828 = vmatpush.bf16.msra.mxu0 %v9527
      %9829 = vmatpush.bf16.msra.mxu0 %v9526
      %9830 = vmatpush.bf16.msra.mxu0 %v9525
      %9831 = vmatpush.bf16.msra.mxu0 %v9524
      %9832 = vmatpush.bf16.msra.mxu0 %v9523
      %9833 = vmatpush.bf16.msra.mxu0 %v9522
      %9834 = vmatpush.bf16.msra.mxu0 %v9521
      %9835 = vmatmul.bf16.gmra.mxu0 %v8931
      %v9836 = vpop.f32.mrf.mxu0
      %v9837 = vadd.f32 %v9748, %v9836
      %v9838 = vpop.f32.mrf.mxu0
      %v9839 = vadd.f32 %v9750, %v9838
      %9840 = vmatmul.bf16.gmra.mxu0 %v8940
      %v9841 = vpop.f32.mrf.mxu0
      %v9842 = vadd.f32 %v9753, %v9841
      %v9843 = vpop.f32.mrf.mxu0
      %v9844 = vadd.f32 %v9755, %v9843
      %9845 = vmatmul.bf16.gmra.mxu0 %v8949
      %v9846 = vpop.f32.mrf.mxu0
      %v9847 = vadd.f32 %v9758, %v9846
      %v9848 = vpop.f32.mrf.mxu0
      %v9849 = vadd.f32 %v9760, %v9848
      %9850 = vmatmul.bf16.gmra.mxu0 %v8958
      %v9851 = vpop.f32.mrf.mxu0
      %v9852 = vadd.f32 %v9763, %v9851
      %v9853 = vpop.f32.mrf.mxu0
      %v9854 = vadd.f32 %v9765, %v9853
      %9855 = vmatmul.bf16.gmra.mxu0 %v8967
      %v9856 = vpop.f32.mrf.mxu0
      %v9857 = vadd.f32 %v9768, %v9856
      %v9858 = vpop.f32.mrf.mxu0
      %v9859 = vadd.f32 %v9770, %v9858
      %9860 = vmatmul.bf16.gmra.mxu0 %v8976
      %v9861 = vpop.f32.mrf.mxu0
      %v9862 = vadd.f32 %v9773, %v9861
      %v9863 = vpop.f32.mrf.mxu0
      %v9864 = vadd.f32 %v9775, %v9863
      %9865 = vmatmul.bf16.gmra.mxu0 %v8985
      %v9866 = vpop.f32.mrf.mxu0
      %v9867 = vadd.f32 %v9778, %v9866
      %v9868 = vpop.f32.mrf.mxu0
      %v9869 = vadd.f32 %v9780, %v9868
      %9870 = vmatmul.bf16.gmra.mxu0 %v8994
      %v9871 = vpop.f32.mrf.mxu0
      %v9872 = vadd.f32 %v9783, %v9871
      %v9873 = vpop.f32.mrf.mxu0
      %v9874 = vadd.f32 %v9785, %v9873
      %9875 = vmatmul.bf16.gmra.mxu0 %v9003
      %v9876 = vpop.f32.mrf.mxu0
      %v9877 = vadd.f32 %v9788, %v9876
      %v9878 = vpop.f32.mrf.mxu0
      %v9879 = vadd.f32 %v9790, %v9878
      %9880 = vmatmul.bf16.gmra.mxu0 %v9012
      %v9881 = vpop.f32.mrf.mxu0
      %v9882 = vadd.f32 %v9793, %v9881
      %v9883 = vpop.f32.mrf.mxu0
      %v9884 = vadd.f32 %v9795, %v9883
      %9885 = vmatmul.bf16.gmra.mxu0 %v9021
      %v9886 = vpop.f32.mrf.mxu0
      %v9887 = vadd.f32 %v9798, %v9886
      %v9888 = vpop.f32.mrf.mxu0
      %v9889 = vadd.f32 %v9800, %v9888
      %9890 = vmatmul.bf16.gmra.mxu0 %v9030
      %v9891 = vpop.f32.mrf.mxu0
      %v9892 = vadd.f32 %v9803, %v9891
      %v9893 = vpop.f32.mrf.mxu0
      %v9894 = vadd.f32 %v9805, %v9893
      %9895 = vmatmul.bf16.gmra.mxu0 %v9039
      %v9896 = vpop.f32.mrf.mxu0
      %v9897 = vadd.f32 %v9808, %v9896
      %v9898 = vpop.f32.mrf.mxu0
      %v9899 = vadd.f32 %v9810, %v9898
      %9900 = vmatmul.bf16.gmra.mxu0 %v9048
      %v9901 = vpop.f32.mrf.mxu0
      %v9902 = vadd.f32 %v9813, %v9901
      %v9903 = vpop.f32.mrf.mxu0
      %v9904 = vadd.f32 %v9815, %v9903
      %9905 = vmatmul.bf16.gmra.mxu0 %v9057
      %v9906 = vpop.f32.mrf.mxu0
      %v9907 = vadd.f32 %v9818, %v9906
      %v9908 = vpop.f32.mrf.mxu0
      %v9909 = vadd.f32 %v9820, %v9908
      %9910 = vmatmul.bf16.gmra.mxu0 %v9066
      %v9911 = vpop.f32.mrf.mxu0
      %v9912 = vadd.f32 %v9823, %v9911
      %v9913 = vpop.f32.mrf.mxu0
      %v9914 = vadd.f32 %v9825, %v9913
      %9915 = vdwg.mxu0
      %9916 = vmatpush.bf16.msra.mxu0 %v9536
      %9917 = vmatpush.bf16.msra.mxu0 %v9535
      %9918 = vmatpush.bf16.msra.mxu0 %v9534
      %9919 = vmatpush.bf16.msra.mxu0 %v9533
      %9920 = vmatpush.bf16.msra.mxu0 %v9532
      %9921 = vmatpush.bf16.msra.mxu0 %v9531
      %9922 = vmatpush.bf16.msra.mxu0 %v9530
      %9923 = vmatpush.bf16.msra.mxu0 %v9529
      %9924 = vmatmul.bf16.gmra.mxu0 %v8932
      %v9925 = vpop.f32.mrf.mxu0
      %v9926 = vadd.f32 %v9837, %v9925
      %v9927 = vpop.f32.mrf.mxu0
      %v9928 = vadd.f32 %v9839, %v9927
      %9929 = vmatmul.bf16.gmra.mxu0 %v8941
      %v9930 = vpop.f32.mrf.mxu0
      %v9931 = vadd.f32 %v9842, %v9930
      %v9932 = vpop.f32.mrf.mxu0
      %v9933 = vadd.f32 %v9844, %v9932
      %9934 = vmatmul.bf16.gmra.mxu0 %v8950
      %v9935 = vpop.f32.mrf.mxu0
      %v9936 = vadd.f32 %v9847, %v9935
      %v9937 = vpop.f32.mrf.mxu0
      %v9938 = vadd.f32 %v9849, %v9937
      %9939 = vmatmul.bf16.gmra.mxu0 %v8959
      %v9940 = vpop.f32.mrf.mxu0
      %v9941 = vadd.f32 %v9852, %v9940
      %v9942 = vpop.f32.mrf.mxu0
      %v9943 = vadd.f32 %v9854, %v9942
      %9944 = vmatmul.bf16.gmra.mxu0 %v8968
      %v9945 = vpop.f32.mrf.mxu0
      %v9946 = vadd.f32 %v9857, %v9945
      %v9947 = vpop.f32.mrf.mxu0
      %v9948 = vadd.f32 %v9859, %v9947
      %9949 = vmatmul.bf16.gmra.mxu0 %v8977
      %v9950 = vpop.f32.mrf.mxu0
      %v9951 = vadd.f32 %v9862, %v9950
      %v9952 = vpop.f32.mrf.mxu0
      %v9953 = vadd.f32 %v9864, %v9952
      %9954 = vmatmul.bf16.gmra.mxu0 %v8986
      %v9955 = vpop.f32.mrf.mxu0
      %v9956 = vadd.f32 %v9867, %v9955
      %v9957 = vpop.f32.mrf.mxu0
      %v9958 = vadd.f32 %v9869, %v9957
      %9959 = vmatmul.bf16.gmra.mxu0 %v8995
      %v9960 = vpop.f32.mrf.mxu0
      %v9961 = vadd.f32 %v9872, %v9960
      %v9962 = vpop.f32.mrf.mxu0
      %v9963 = vadd.f32 %v9874, %v9962
      %9964 = vmatmul.bf16.gmra.mxu0 %v9004
      %v9965 = vpop.f32.mrf.mxu0
      %v9966 = vadd.f32 %v9877, %v9965
      %v9967 = vpop.f32.mrf.mxu0
      %v9968 = vadd.f32 %v9879, %v9967
      %9969 = vmatmul.bf16.gmra.mxu0 %v9013
      %v9970 = vpop.f32.mrf.mxu0
      %v9971 = vadd.f32 %v9882, %v9970
      %v9972 = vpop.f32.mrf.mxu0
      %v9973 = vadd.f32 %v9884, %v9972
      %9974 = vmatmul.bf16.gmra.mxu0 %v9022
      %v9975 = vpop.f32.mrf.mxu0
      %v9976 = vadd.f32 %v9887, %v9975
      %v9977 = vpop.f32.mrf.mxu0
      %v9978 = vadd.f32 %v9889, %v9977
      %9979 = vmatmul.bf16.gmra.mxu0 %v9031
      %v9980 = vpop.f32.mrf.mxu0
      %v9981 = vadd.f32 %v9892, %v9980
      %v9982 = vpop.f32.mrf.mxu0
      %v9983 = vadd.f32 %v9894, %v9982
      %9984 = vmatmul.bf16.gmra.mxu0 %v9040
      %v9985 = vpop.f32.mrf.mxu0
      %v9986 = vadd.f32 %v9897, %v9985
      %v9987 = vpop.f32.mrf.mxu0
      %v9988 = vadd.f32 %v9899, %v9987
      %9989 = vmatmul.bf16.gmra.mxu0 %v9049
      %v9990 = vpop.f32.mrf.mxu0
      %v9991 = vadd.f32 %v9902, %v9990
      %v9992 = vpop.f32.mrf.mxu0
      %v9993 = vadd.f32 %v9904, %v9992
      %9994 = vmatmul.bf16.gmra.mxu0 %v9058
      %v9995 = vpop.f32.mrf.mxu0
      %v9996 = vadd.f32 %v9907, %v9995
      %v9997 = vpop.f32.mrf.mxu0
      %v9998 = vadd.f32 %v9909, %v9997
      %9999 = vmatmul.bf16.gmra.mxu0 %v9067
      %v10000 = vpop.f32.mrf.mxu0
      %v10001 = vadd.f32 %v9912, %v10000
      %v10002 = vpop.f32.mrf.mxu0
      %v10003 = vadd.f32 %v9914, %v10002
      %10004 = vdwg.mxu0
      %10005 = vmatpush.bf16.msra.mxu0 %v9544
      %10006 = vmatpush.bf16.msra.mxu0 %v9543
      %10007 = vmatpush.bf16.msra.mxu0 %v9542
      %10008 = vmatpush.bf16.msra.mxu0 %v9541
      %10009 = vmatpush.bf16.msra.mxu0 %v9540
      %10010 = vmatpush.bf16.msra.mxu0 %v9539
      %10011 = vmatpush.bf16.msra.mxu0 %v9538
      %10012 = vmatpush.bf16.msra.mxu0 %v9537
      %10013 = vmatmul.bf16.gmra.mxu0 %v8933
      %v10014 = vpop.f32.mrf.mxu0
      %v10015 = vadd.f32 %v9926, %v10014
      %v10016 = vpop.f32.mrf.mxu0
      %v10017 = vadd.f32 %v9928, %v10016
      %10018 = vmatmul.bf16.gmra.mxu0 %v8942
      %v10019 = vpop.f32.mrf.mxu0
      %v10020 = vadd.f32 %v9931, %v10019
      %v10021 = vpop.f32.mrf.mxu0
      %v10022 = vadd.f32 %v9933, %v10021
      %10023 = vmatmul.bf16.gmra.mxu0 %v8951
      %v10024 = vpop.f32.mrf.mxu0
      %v10025 = vadd.f32 %v9936, %v10024
      %v10026 = vpop.f32.mrf.mxu0
      %v10027 = vadd.f32 %v9938, %v10026
      %10028 = vmatmul.bf16.gmra.mxu0 %v8960
      %v10029 = vpop.f32.mrf.mxu0
      %v10030 = vadd.f32 %v9941, %v10029
      %v10031 = vpop.f32.mrf.mxu0
      %v10032 = vadd.f32 %v9943, %v10031
      %10033 = vmatmul.bf16.gmra.mxu0 %v8969
      %v10034 = vpop.f32.mrf.mxu0
      %v10035 = vadd.f32 %v9946, %v10034
      %v10036 = vpop.f32.mrf.mxu0
      %v10037 = vadd.f32 %v9948, %v10036
      %10038 = vmatmul.bf16.gmra.mxu0 %v8978
      %v10039 = vpop.f32.mrf.mxu0
      %v10040 = vadd.f32 %v9951, %v10039
      %v10041 = vpop.f32.mrf.mxu0
      %v10042 = vadd.f32 %v9953, %v10041
      %10043 = vmatmul.bf16.gmra.mxu0 %v8987
      %v10044 = vpop.f32.mrf.mxu0
      %v10045 = vadd.f32 %v9956, %v10044
      %v10046 = vpop.f32.mrf.mxu0
      %v10047 = vadd.f32 %v9958, %v10046
      %10048 = vmatmul.bf16.gmra.mxu0 %v8996
      %v10049 = vpop.f32.mrf.mxu0
      %v10050 = vadd.f32 %v9961, %v10049
      %v10051 = vpop.f32.mrf.mxu0
      %v10052 = vadd.f32 %v9963, %v10051
      %10053 = vmatmul.bf16.gmra.mxu0 %v9005
      %v10054 = vpop.f32.mrf.mxu0
      %v10055 = vadd.f32 %v9966, %v10054
      %v10056 = vpop.f32.mrf.mxu0
      %v10057 = vadd.f32 %v9968, %v10056
      %10058 = vmatmul.bf16.gmra.mxu0 %v9014
      %v10059 = vpop.f32.mrf.mxu0
      %v10060 = vadd.f32 %v9971, %v10059
      %v10061 = vpop.f32.mrf.mxu0
      %v10062 = vadd.f32 %v9973, %v10061
      %10063 = vmatmul.bf16.gmra.mxu0 %v9023
      %v10064 = vpop.f32.mrf.mxu0
      %v10065 = vadd.f32 %v9976, %v10064
      %v10066 = vpop.f32.mrf.mxu0
      %v10067 = vadd.f32 %v9978, %v10066
      %10068 = vmatmul.bf16.gmra.mxu0 %v9032
      %v10069 = vpop.f32.mrf.mxu0
      %v10070 = vadd.f32 %v9981, %v10069
      %v10071 = vpop.f32.mrf.mxu0
      %v10072 = vadd.f32 %v9983, %v10071
      %10073 = vmatmul.bf16.gmra.mxu0 %v9041
      %v10074 = vpop.f32.mrf.mxu0
      %v10075 = vadd.f32 %v9986, %v10074
      %v10076 = vpop.f32.mrf.mxu0
      %v10077 = vadd.f32 %v9988, %v10076
      %10078 = vmatmul.bf16.gmra.mxu0 %v9050
      %v10079 = vpop.f32.mrf.mxu0
      %v10080 = vadd.f32 %v9991, %v10079
      %v10081 = vpop.f32.mrf.mxu0
      %v10082 = vadd.f32 %v9993, %v10081
      %10083 = vmatmul.bf16.gmra.mxu0 %v9059
      %v10084 = vpop.f32.mrf.mxu0
      %v10085 = vadd.f32 %v9996, %v10084
      %v10086 = vpop.f32.mrf.mxu0
      %v10087 = vadd.f32 %v9998, %v10086
      %10088 = vmatmul.bf16.gmra.mxu0 %v9068
      %v10089 = vpop.f32.mrf.mxu0
      %v10090 = vadd.f32 %v10001, %v10089
      %v10091 = vpop.f32.mrf.mxu0
      %v10092 = vadd.f32 %v10003, %v10091
      %10093 = vdwg.mxu0
      %10094 = vmatpush.bf16.msra.mxu0 %v9552
      %10095 = vmatpush.bf16.msra.mxu0 %v9551
      %10096 = vmatpush.bf16.msra.mxu0 %v9550
      %10097 = vmatpush.bf16.msra.mxu0 %v9549
      %10098 = vmatpush.bf16.msra.mxu0 %v9548
      %10099 = vmatpush.bf16.msra.mxu0 %v9547
      %10100 = vmatpush.bf16.msra.mxu0 %v9546
      %10101 = vmatpush.bf16.msra.mxu0 %v9545
      %10102 = vmatmul.bf16.gmra.mxu0 %v8934
      %v10103 = vpop.f32.mrf.mxu0
      %v10104 = vadd.f32 %v10015, %v10103
      %v10105 = vpop.f32.mrf.mxu0
      %v10106 = vadd.f32 %v10017, %v10105
      %10107 = vmatmul.bf16.gmra.mxu0 %v8943
      %v10108 = vpop.f32.mrf.mxu0
      %v10109 = vadd.f32 %v10020, %v10108
      %v10110 = vpop.f32.mrf.mxu0
      %v10111 = vadd.f32 %v10022, %v10110
      %10112 = vmatmul.bf16.gmra.mxu0 %v8952
      %v10113 = vpop.f32.mrf.mxu0
      %v10114 = vadd.f32 %v10025, %v10113
      %v10115 = vpop.f32.mrf.mxu0
      %v10116 = vadd.f32 %v10027, %v10115
      %10117 = vmatmul.bf16.gmra.mxu0 %v8961
      %v10118 = vpop.f32.mrf.mxu0
      %v10119 = vadd.f32 %v10030, %v10118
      %v10120 = vpop.f32.mrf.mxu0
      %v10121 = vadd.f32 %v10032, %v10120
      %10122 = vmatmul.bf16.gmra.mxu0 %v8970
      %v10123 = vpop.f32.mrf.mxu0
      %v10124 = vadd.f32 %v10035, %v10123
      %v10125 = vpop.f32.mrf.mxu0
      %v10126 = vadd.f32 %v10037, %v10125
      %10127 = vmatmul.bf16.gmra.mxu0 %v8979
      %v10128 = vpop.f32.mrf.mxu0
      %v10129 = vadd.f32 %v10040, %v10128
      %v10130 = vpop.f32.mrf.mxu0
      %v10131 = vadd.f32 %v10042, %v10130
      %10132 = vmatmul.bf16.gmra.mxu0 %v8988
      %v10133 = vpop.f32.mrf.mxu0
      %v10134 = vadd.f32 %v10045, %v10133
      %v10135 = vpop.f32.mrf.mxu0
      %v10136 = vadd.f32 %v10047, %v10135
      %10137 = vmatmul.bf16.gmra.mxu0 %v8997
      %v10138 = vpop.f32.mrf.mxu0
      %v10139 = vadd.f32 %v10050, %v10138
      %v10140 = vpop.f32.mrf.mxu0
      %v10141 = vadd.f32 %v10052, %v10140
      %10142 = vmatmul.bf16.gmra.mxu0 %v9006
      %v10143 = vpop.f32.mrf.mxu0
      %v10144 = vadd.f32 %v10055, %v10143
      %v10145 = vpop.f32.mrf.mxu0
      %v10146 = vadd.f32 %v10057, %v10145
      %10147 = vmatmul.bf16.gmra.mxu0 %v9015
      %v10148 = vpop.f32.mrf.mxu0
      %v10149 = vadd.f32 %v10060, %v10148
      %v10150 = vpop.f32.mrf.mxu0
      %v10151 = vadd.f32 %v10062, %v10150
      %10152 = vmatmul.bf16.gmra.mxu0 %v9024
      %v10153 = vpop.f32.mrf.mxu0
      %v10154 = vadd.f32 %v10065, %v10153
      %v10155 = vpop.f32.mrf.mxu0
      %v10156 = vadd.f32 %v10067, %v10155
      %10157 = vmatmul.bf16.gmra.mxu0 %v9033
      %v10158 = vpop.f32.mrf.mxu0
      %v10159 = vadd.f32 %v10070, %v10158
      %v10160 = vpop.f32.mrf.mxu0
      %v10161 = vadd.f32 %v10072, %v10160
      %10162 = vmatmul.bf16.gmra.mxu0 %v9042
      %v10163 = vpop.f32.mrf.mxu0
      %v10164 = vadd.f32 %v10075, %v10163
      %v10165 = vpop.f32.mrf.mxu0
      %v10166 = vadd.f32 %v10077, %v10165
      %10167 = vmatmul.bf16.gmra.mxu0 %v9051
      %v10168 = vpop.f32.mrf.mxu0
      %v10169 = vadd.f32 %v10080, %v10168
      %v10170 = vpop.f32.mrf.mxu0
      %v10171 = vadd.f32 %v10082, %v10170
      %10172 = vmatmul.bf16.gmra.mxu0 %v9060
      %v10173 = vpop.f32.mrf.mxu0
      %v10174 = vadd.f32 %v10085, %v10173
      %v10175 = vpop.f32.mrf.mxu0
      %v10176 = vadd.f32 %v10087, %v10175
      %10177 = vmatmul.bf16.gmra.mxu0 %v9069
      %v10178 = vpop.f32.mrf.mxu0
      %v10179 = vadd.f32 %v10090, %v10178
      %v10180 = vpop.f32.mrf.mxu0
      %v10181 = vadd.f32 %v10092, %v10180
      %10182 = vdwg.mxu0
      %10183 = vmatpush.bf16.msra.mxu0 %v9560
      %10184 = vmatpush.bf16.msra.mxu0 %v9559
      %10185 = vmatpush.bf16.msra.mxu0 %v9558
      %10186 = vmatpush.bf16.msra.mxu0 %v9557
      %10187 = vmatpush.bf16.msra.mxu0 %v9556
      %10188 = vmatpush.bf16.msra.mxu0 %v9555
      %10189 = vmatpush.bf16.msra.mxu0 %v9554
      %10190 = vmatpush.bf16.msra.mxu0 %v9553
      %10191 = vmatmul.bf16.gmra.mxu0 %v8935
      %v10192 = vpop.f32.mrf.mxu0
      %v10193 = vadd.f32 %v10104, %v10192
      %v10194 = vpop.f32.mrf.mxu0
      %v10195 = vadd.f32 %v10106, %v10194
      %10196 = vmatmul.bf16.gmra.mxu0 %v8944
      %v10197 = vpop.f32.mrf.mxu0
      %v10198 = vadd.f32 %v10109, %v10197
      %v10199 = vpop.f32.mrf.mxu0
      %v10200 = vadd.f32 %v10111, %v10199
      %10201 = vmatmul.bf16.gmra.mxu0 %v8953
      %v10202 = vpop.f32.mrf.mxu0
      %v10203 = vadd.f32 %v10114, %v10202
      %v10204 = vpop.f32.mrf.mxu0
      %v10205 = vadd.f32 %v10116, %v10204
      %10206 = vmatmul.bf16.gmra.mxu0 %v8962
      %v10207 = vpop.f32.mrf.mxu0
      %v10208 = vadd.f32 %v10119, %v10207
      %v10209 = vpop.f32.mrf.mxu0
      %v10210 = vadd.f32 %v10121, %v10209
      %10211 = vmatmul.bf16.gmra.mxu0 %v8971
      %v10212 = vpop.f32.mrf.mxu0
      %v10213 = vadd.f32 %v10124, %v10212
      %v10214 = vpop.f32.mrf.mxu0
      %v10215 = vadd.f32 %v10126, %v10214
      %10216 = vmatmul.bf16.gmra.mxu0 %v8980
      %v10217 = vpop.f32.mrf.mxu0
      %v10218 = vadd.f32 %v10129, %v10217
      %v10219 = vpop.f32.mrf.mxu0
      %v10220 = vadd.f32 %v10131, %v10219
      %10221 = vmatmul.bf16.gmra.mxu0 %v8989
      %v10222 = vpop.f32.mrf.mxu0
      %v10223 = vadd.f32 %v10134, %v10222
      %v10224 = vpop.f32.mrf.mxu0
      %v10225 = vadd.f32 %v10136, %v10224
      %10226 = vmatmul.bf16.gmra.mxu0 %v8998
      %v10227 = vpop.f32.mrf.mxu0
      %v10228 = vadd.f32 %v10139, %v10227
      %v10229 = vpop.f32.mrf.mxu0
      %v10230 = vadd.f32 %v10141, %v10229
      %10231 = vmatmul.bf16.gmra.mxu0 %v9007
      %v10232 = vpop.f32.mrf.mxu0
      %v10233 = vadd.f32 %v10144, %v10232
      %v10234 = vpop.f32.mrf.mxu0
      %v10235 = vadd.f32 %v10146, %v10234
      %10236 = vmatmul.bf16.gmra.mxu0 %v9016
      %v10237 = vpop.f32.mrf.mxu0
      %v10238 = vadd.f32 %v10149, %v10237
      %v10239 = vpop.f32.mrf.mxu0
      %v10240 = vadd.f32 %v10151, %v10239
      %10241 = vmatmul.bf16.gmra.mxu0 %v9025
      %v10242 = vpop.f32.mrf.mxu0
      %v10243 = vadd.f32 %v10154, %v10242
      %v10244 = vpop.f32.mrf.mxu0
      %v10245 = vadd.f32 %v10156, %v10244
      %10246 = vmatmul.bf16.gmra.mxu0 %v9034
      %v10247 = vpop.f32.mrf.mxu0
      %v10248 = vadd.f32 %v10159, %v10247
      %v10249 = vpop.f32.mrf.mxu0
      %v10250 = vadd.f32 %v10161, %v10249
      %10251 = vmatmul.bf16.gmra.mxu0 %v9043
      %v10252 = vpop.f32.mrf.mxu0
      %v10253 = vadd.f32 %v10164, %v10252
      %v10254 = vpop.f32.mrf.mxu0
      %v10255 = vadd.f32 %v10166, %v10254
      %10256 = vmatmul.bf16.gmra.mxu0 %v9052
      %v10257 = vpop.f32.mrf.mxu0
      %v10258 = vadd.f32 %v10169, %v10257
      %v10259 = vpop.f32.mrf.mxu0
      %v10260 = vadd.f32 %v10171, %v10259
      %10261 = vmatmul.bf16.gmra.mxu0 %v9061
      %v10262 = vpop.f32.mrf.mxu0
      %v10263 = vadd.f32 %v10174, %v10262
      %v10264 = vpop.f32.mrf.mxu0
      %v10265 = vadd.f32 %v10176, %v10264
      %10266 = vmatmul.bf16.gmra.mxu0 %v9070
      %v10267 = vpop.f32.mrf.mxu0
      %v10268 = vadd.f32 %v10179, %v10267
      %v10269 = vpop.f32.mrf.mxu0
      %v10270 = vadd.f32 %v10181, %v10269
      %10271 = vdwg.mxu0
      %10272 = vmatpush.bf16.msra.mxu0 %v9568
      %10273 = vmatpush.bf16.msra.mxu0 %v9567
      %10274 = vmatpush.bf16.msra.mxu0 %v9566
      %10275 = vmatpush.bf16.msra.mxu0 %v9565
      %10276 = vmatpush.bf16.msra.mxu0 %v9564
      %10277 = vmatpush.bf16.msra.mxu0 %v9563
      %10278 = vmatpush.bf16.msra.mxu0 %v9562
      %10279 = vmatpush.bf16.msra.mxu0 %v9561
      %10280 = vmatmul.bf16.gmra.mxu0 %v8936
      %v10281 = vpop.f32.mrf.mxu0
      %v10282 = vadd.f32 %v10193, %v10281
      %v10283 = vpop.f32.mrf.mxu0
      %v10284 = vadd.f32 %v10195, %v10283
      %10285 = vmatmul.bf16.gmra.mxu0 %v8945
      %v10286 = vpop.f32.mrf.mxu0
      %v10287 = vadd.f32 %v10198, %v10286
      %v10288 = vpop.f32.mrf.mxu0
      %v10289 = vadd.f32 %v10200, %v10288
      %10290 = vmatmul.bf16.gmra.mxu0 %v8954
      %v10291 = vpop.f32.mrf.mxu0
      %v10292 = vadd.f32 %v10203, %v10291
      %v10293 = vpop.f32.mrf.mxu0
      %v10294 = vadd.f32 %v10205, %v10293
      %10295 = vmatmul.bf16.gmra.mxu0 %v8963
      %v10296 = vpop.f32.mrf.mxu0
      %v10297 = vadd.f32 %v10208, %v10296
      %v10298 = vpop.f32.mrf.mxu0
      %v10299 = vadd.f32 %v10210, %v10298
      %10300 = vmatmul.bf16.gmra.mxu0 %v8972
      %v10301 = vpop.f32.mrf.mxu0
      %v10302 = vadd.f32 %v10213, %v10301
      %v10303 = vpop.f32.mrf.mxu0
      %v10304 = vadd.f32 %v10215, %v10303
      %10305 = vmatmul.bf16.gmra.mxu0 %v8981
      %v10306 = vpop.f32.mrf.mxu0
      %v10307 = vadd.f32 %v10218, %v10306
      %v10308 = vpop.f32.mrf.mxu0
      %v10309 = vadd.f32 %v10220, %v10308
      %10310 = vmatmul.bf16.gmra.mxu0 %v8990
      %v10311 = vpop.f32.mrf.mxu0
      %v10312 = vadd.f32 %v10223, %v10311
      %v10313 = vpop.f32.mrf.mxu0
      %v10314 = vadd.f32 %v10225, %v10313
      %10315 = vmatmul.bf16.gmra.mxu0 %v8999
      %v10316 = vpop.f32.mrf.mxu0
      %v10317 = vadd.f32 %v10228, %v10316
      %v10318 = vpop.f32.mrf.mxu0
      %v10319 = vadd.f32 %v10230, %v10318
      %10320 = vmatmul.bf16.gmra.mxu0 %v9008
      %v10321 = vpop.f32.mrf.mxu0
      %v10322 = vadd.f32 %v10233, %v10321
      %v10323 = vpop.f32.mrf.mxu0
      %v10324 = vadd.f32 %v10235, %v10323
      %10325 = vmatmul.bf16.gmra.mxu0 %v9017
      %v10326 = vpop.f32.mrf.mxu0
      %v10327 = vadd.f32 %v10238, %v10326
      %v10328 = vpop.f32.mrf.mxu0
      %v10329 = vadd.f32 %v10240, %v10328
      %10330 = vmatmul.bf16.gmra.mxu0 %v9026
      %v10331 = vpop.f32.mrf.mxu0
      %v10332 = vadd.f32 %v10243, %v10331
      %v10333 = vpop.f32.mrf.mxu0
      %v10334 = vadd.f32 %v10245, %v10333
      %10335 = vmatmul.bf16.gmra.mxu0 %v9035
      %v10336 = vpop.f32.mrf.mxu0
      %v10337 = vadd.f32 %v10248, %v10336
      %v10338 = vpop.f32.mrf.mxu0
      %v10339 = vadd.f32 %v10250, %v10338
      %10340 = vmatmul.bf16.gmra.mxu0 %v9044
      %v10341 = vpop.f32.mrf.mxu0
      %v10342 = vadd.f32 %v10253, %v10341
      %v10343 = vpop.f32.mrf.mxu0
      %v10344 = vadd.f32 %v10255, %v10343
      %10345 = vmatmul.bf16.gmra.mxu0 %v9053
      %v10346 = vpop.f32.mrf.mxu0
      %v10347 = vadd.f32 %v10258, %v10346
      %v10348 = vpop.f32.mrf.mxu0
      %v10349 = vadd.f32 %v10260, %v10348
      %10350 = vmatmul.bf16.gmra.mxu0 %v9062
      %v10351 = vpop.f32.mrf.mxu0
      %v10352 = vadd.f32 %v10263, %v10351
      %v10353 = vpop.f32.mrf.mxu0
      %v10354 = vadd.f32 %v10265, %v10353
      %10355 = vmatmul.bf16.gmra.mxu0 %v9071
      %v10356 = vpop.f32.mrf.mxu0
      %v10357 = vadd.f32 %v10268, %v10356
      %v10358 = vpop.f32.mrf.mxu0
      %v10359 = vadd.f32 %v10270, %v10358
      %10360 = vdwg.mxu0
      %10361 = vmatpush.bf16.msra.mxu0 %v9576
      %10362 = vmatpush.bf16.msra.mxu0 %v9575
      %10363 = vmatpush.bf16.msra.mxu0 %v9574
      %10364 = vmatpush.bf16.msra.mxu0 %v9573
      %10365 = vmatpush.bf16.msra.mxu0 %v9572
      %10366 = vmatpush.bf16.msra.mxu0 %v9571
      %10367 = vmatpush.bf16.msra.mxu0 %v9570
      %10368 = vmatpush.bf16.msra.mxu0 %v9569
      %10369 = vmatmul.bf16.gmra.mxu0 %v8937
      %v10370 = vpop.f32.mrf.mxu0
      %v10371 = vadd.f32 %v10282, %v10370
      %v10372 = vpop.f32.mrf.mxu0
      %v10373 = vadd.f32 %v10284, %v10372
      %10374 = vmatmul.bf16.gmra.mxu0 %v8946
      %v10375 = vpop.f32.mrf.mxu0
      %v10376 = vadd.f32 %v10287, %v10375
      %v10377 = vpop.f32.mrf.mxu0
      %v10378 = vadd.f32 %v10289, %v10377
      %10379 = vmatmul.bf16.gmra.mxu0 %v8955
      %v10380 = vpop.f32.mrf.mxu0
      %v10381 = vadd.f32 %v10292, %v10380
      %v10382 = vpop.f32.mrf.mxu0
      %v10383 = vadd.f32 %v10294, %v10382
      %10384 = vmatmul.bf16.gmra.mxu0 %v8964
      %v10385 = vpop.f32.mrf.mxu0
      %v10386 = vadd.f32 %v10297, %v10385
      %v10387 = vpop.f32.mrf.mxu0
      %v10388 = vadd.f32 %v10299, %v10387
      %10389 = vmatmul.bf16.gmra.mxu0 %v8973
      %v10390 = vpop.f32.mrf.mxu0
      %v10391 = vadd.f32 %v10302, %v10390
      %v10392 = vpop.f32.mrf.mxu0
      %v10393 = vadd.f32 %v10304, %v10392
      %10394 = vmatmul.bf16.gmra.mxu0 %v8982
      %v10395 = vpop.f32.mrf.mxu0
      %v10396 = vadd.f32 %v10307, %v10395
      %v10397 = vpop.f32.mrf.mxu0
      %v10398 = vadd.f32 %v10309, %v10397
      %10399 = vmatmul.bf16.gmra.mxu0 %v8991
      %v10400 = vpop.f32.mrf.mxu0
      %v10401 = vadd.f32 %v10312, %v10400
      %v10402 = vpop.f32.mrf.mxu0
      %v10403 = vadd.f32 %v10314, %v10402
      %10404 = vmatmul.bf16.gmra.mxu0 %v9000
      %v10405 = vpop.f32.mrf.mxu0
      %v10406 = vadd.f32 %v10317, %v10405
      %v10407 = vpop.f32.mrf.mxu0
      %v10408 = vadd.f32 %v10319, %v10407
      %10409 = vmatmul.bf16.gmra.mxu0 %v9009
      %v10410 = vpop.f32.mrf.mxu0
      %v10411 = vadd.f32 %v10322, %v10410
      %v10412 = vpop.f32.mrf.mxu0
      %v10413 = vadd.f32 %v10324, %v10412
      %10414 = vmatmul.bf16.gmra.mxu0 %v9018
      %v10415 = vpop.f32.mrf.mxu0
      %v10416 = vadd.f32 %v10327, %v10415
      %v10417 = vpop.f32.mrf.mxu0
      %v10418 = vadd.f32 %v10329, %v10417
      %10419 = vmatmul.bf16.gmra.mxu0 %v9027
      %v10420 = vpop.f32.mrf.mxu0
      %v10421 = vadd.f32 %v10332, %v10420
      %v10422 = vpop.f32.mrf.mxu0
      %v10423 = vadd.f32 %v10334, %v10422
      %10424 = vmatmul.bf16.gmra.mxu0 %v9036
      %v10425 = vpop.f32.mrf.mxu0
      %v10426 = vadd.f32 %v10337, %v10425
      %v10427 = vpop.f32.mrf.mxu0
      %v10428 = vadd.f32 %v10339, %v10427
      %10429 = vmatmul.bf16.gmra.mxu0 %v9045
      %v10430 = vpop.f32.mrf.mxu0
      %v10431 = vadd.f32 %v10342, %v10430
      %v10432 = vpop.f32.mrf.mxu0
      %v10433 = vadd.f32 %v10344, %v10432
      %10434 = vmatmul.bf16.gmra.mxu0 %v9054
      %v10435 = vpop.f32.mrf.mxu0
      %v10436 = vadd.f32 %v10347, %v10435
      %v10437 = vpop.f32.mrf.mxu0
      %v10438 = vadd.f32 %v10349, %v10437
      %10439 = vmatmul.bf16.gmra.mxu0 %v9063
      %v10440 = vpop.f32.mrf.mxu0
      %v10441 = vadd.f32 %v10352, %v10440
      %v10442 = vpop.f32.mrf.mxu0
      %v10443 = vadd.f32 %v10354, %v10442
      %10444 = vmatmul.bf16.gmra.mxu0 %v9072
      %v10445 = vpop.f32.mrf.mxu0
      %v10446 = vadd.f32 %v10357, %v10445
      %v10447 = vpop.f32.mrf.mxu0
      %v10448 = vadd.f32 %v10359, %v10447
      %10449 = vdwg.mxu0
      %v10450 = vld [vmem:[%s3 + $0x2] sm:$0x1]
      %v10451 = vperm.slane %v10450, 0
      %v10452 = vmul.f32 %v10371, %v10451
      %v10453 = vmul.f32 %v10373, %v10451
      %v10454 = vmul.f32 %v10376, %v10451
      %v10455 = vmul.f32 %v10378, %v10451
      %v10456 = vmul.f32 %v10381, %v10451
      %v10457 = vmul.f32 %v10383, %v10451
      %v10458 = vmul.f32 %v10386, %v10451
      %v10459 = vmul.f32 %v10388, %v10451
      %v10460 = vmul.f32 %v10391, %v10451
      %v10461 = vmul.f32 %v10393, %v10451
      %v10462 = vmul.f32 %v10396, %v10451
      %v10463 = vmul.f32 %v10398, %v10451
      %v10464 = vmul.f32 %v10401, %v10451
      %v10465 = vmul.f32 %v10403, %v10451
      %v10466 = vmul.f32 %v10406, %v10451
      %v10467 = vmul.f32 %v10408, %v10451
      %v10468 = vmul.f32 %v10411, %v10451
      %v10469 = vmul.f32 %v10413, %v10451
      %v10470 = vmul.f32 %v10416, %v10451
      %v10471 = vmul.f32 %v10418, %v10451
      %v10472 = vmul.f32 %v10421, %v10451
      %v10473 = vmul.f32 %v10423, %v10451
      %v10474 = vmul.f32 %v10426, %v10451
      %v10475 = vmul.f32 %v10428, %v10451
      %v10476 = vmul.f32 %v10431, %v10451
      %v10477 = vmul.f32 %v10433, %v10451
      %v10478 = vmul.f32 %v10436, %v10451
      %v10479 = vmul.f32 %v10438, %v10451
      %v10480 = vmul.f32 %v10441, %v10451
      %v10481 = vmul.f32 %v10443, %v10451
      %v10482 = vmul.f32 %v10446, %v10451
      %v10483 = vmul.f32 %v10448, %v10451
      %v10484 = vld [vmem:[%s3 + $0x3] sm:$0x1]
      %v10485 = vperm.slane %v10484, 0
      %v10486 = vadd.f32 %v10452, %v10485
      %v10487 = vadd.f32 %v10453, %v10485
      %v10488 = vadd.f32 %v10454, %v10485
      %v10489 = vadd.f32 %v10455, %v10485
      %v10490 = vadd.f32 %v10456, %v10485
      %v10491 = vadd.f32 %v10457, %v10485
      %v10492 = vadd.f32 %v10458, %v10485
      %v10493 = vadd.f32 %v10459, %v10485
      %v10494 = vadd.f32 %v10460, %v10485
      %v10495 = vadd.f32 %v10461, %v10485
      %v10496 = vadd.f32 %v10462, %v10485
      %v10497 = vadd.f32 %v10463, %v10485
      %v10498 = vadd.f32 %v10464, %v10485
      %v10499 = vadd.f32 %v10465, %v10485
      %v10500 = vadd.f32 %v10466, %v10485
      %v10501 = vadd.f32 %v10467, %v10485
      %v10502 = vadd.f32 %v10468, %v10485
      %v10503 = vadd.f32 %v10469, %v10485
      %v10504 = vadd.f32 %v10470, %v10485
      %v10505 = vadd.f32 %v10471, %v10485
      %v10506 = vadd.f32 %v10472, %v10485
      %v10507 = vadd.f32 %v10473, %v10485
      %v10508 = vadd.f32 %v10474, %v10485
      %v10509 = vadd.f32 %v10475, %v10485
      %v10510 = vadd.f32 %v10476, %v10485
      %v10511 = vadd.f32 %v10477, %v10485
      %v10512 = vadd.f32 %v10478, %v10485
      %v10513 = vadd.f32 %v10479, %v10485
      %v10514 = vadd.f32 %v10480, %v10485
      %v10515 = vadd.f32 %v10481, %v10485
      %v10516 = vadd.f32 %v10482, %v10485
      %v10517 = vadd.f32 %v10483, %v10485
      %v10518 = vmax.f32 %v10486, 0.0
      %v10519 = vmax.f32 %v10487, 0.0
      %v10520 = vmax.f32 %v10488, 0.0
      %v10521 = vmax.f32 %v10489, 0.0
      %v10522 = vmax.f32 %v10490, 0.0
      %v10523 = vmax.f32 %v10491, 0.0
      %v10524 = vmax.f32 %v10492, 0.0
      %v10525 = vmax.f32 %v10493, 0.0
      %v10526 = vmax.f32 %v10494, 0.0
      %v10527 = vmax.f32 %v10495, 0.0
      %v10528 = vmax.f32 %v10496, 0.0
      %v10529 = vmax.f32 %v10497, 0.0
      %v10530 = vmax.f32 %v10498, 0.0
      %v10531 = vmax.f32 %v10499, 0.0
      %v10532 = vmax.f32 %v10500, 0.0
      %v10533 = vmax.f32 %v10501, 0.0
      %v10534 = vmax.f32 %v10502, 0.0
      %v10535 = vmax.f32 %v10503, 0.0
      %v10536 = vmax.f32 %v10504, 0.0
      %v10537 = vmax.f32 %v10505, 0.0
      %v10538 = vmax.f32 %v10506, 0.0
      %v10539 = vmax.f32 %v10507, 0.0
      %v10540 = vmax.f32 %v10508, 0.0
      %v10541 = vmax.f32 %v10509, 0.0
      %v10542 = vmax.f32 %v10510, 0.0
      %v10543 = vmax.f32 %v10511, 0.0
      %v10544 = vmax.f32 %v10512, 0.0
      %v10545 = vmax.f32 %v10513, 0.0
      %v10546 = vmax.f32 %v10514, 0.0
      %v10547 = vmax.f32 %v10515, 0.0
      %v10548 = vmax.f32 %v10516, 0.0
      %v10549 = vmax.f32 %v10517, 0.0
      %v10550 = vld [vmem:[%s1173] sm:$0xf]
      %v10551 = vld [vmem:[%s1173 + $0x4] sm:$0xf]
      %v10552 = vld [vmem:[%s1173 + $0x8] sm:$0x1]
      %v10553 = vld [vmem:[%s1173 + $0xc] sm:$0xf]
      %v10554 = vld [vmem:[%s1173 + $0x10] sm:$0xf]
      %v10555 = vld [vmem:[%s1173 + $0x14] sm:$0x1]
      %v10556 = vld [vmem:[%s1173 + $0x18] sm:$0xf]
      %v10557 = vld [vmem:[%s1173 + $0x1c] sm:$0xf]
      %v10558 = vld [vmem:[%s1173 + $0x20] sm:$0x1]
      %v10559 = vld [vmem:[%s1173 + $0x24] sm:$0xf]
      %v10560 = vld [vmem:[%s1173 + $0x28] sm:$0xf]
      %v10561 = vld [vmem:[%s1173 + $0x2c] sm:$0x1]
      %v10562 = vld [vmem:[%s1173 + $0x30] sm:$0xf]
      %v10563 = vld [vmem:[%s1173 + $0x34] sm:$0xf]
      %v10564 = vld [vmem:[%s1173 + $0x38] sm:$0x1]
      %v10565 = vld [vmem:[%s1173 + $0x3c] sm:$0xf]
      %v10566 = vld [vmem:[%s1173 + $0x40] sm:$0xf]
      %v10567 = vld [vmem:[%s1173 + $0x44] sm:$0x1]
      %v10568 = vld [vmem:[%s1173 + $0x48] sm:$0xf]
      %v10569 = vld [vmem:[%s1173 + $0x4c] sm:$0xf]
      %v10570 = vld [vmem:[%s1173 + $0x50] sm:$0x1]
      %v10571 = vld [vmem:[%s1173 + $0x54] sm:$0xf]
      %v10572 = vld [vmem:[%s1173 + $0x58] sm:$0xf]
      %v10573 = vld [vmem:[%s1173 + $0x5c] sm:$0x1]
      %v10574 = vld [vmem:[%s1173 + $0x60] sm:$0xf]
      %v10575 = vld [vmem:[%s1173 + $0x64] sm:$0xf]
      %v10576 = vld [vmem:[%s1173 + $0x68] sm:$0x1]
      %v10577 = vld [vmem:[%s1173 + $0x6c] sm:$0xf]
      %v10578 = vld [vmem:[%s1173 + $0x70] sm:$0xf]
      %v10579 = vld [vmem:[%s1173 + $0x74] sm:$0x1]
      %v10580 = vld [vmem:[%s1173 + $0x78] sm:$0xf]
      %v10581 = vld [vmem:[%s1173 + $0x7c] sm:$0xf]
      %v10582 = vld [vmem:[%s1173 + $0x80] sm:$0x1]
      %v10583 = vld [vmem:[%s1173 + $0x84] sm:$0xf]
      %v10584 = vld [vmem:[%s1173 + $0x88] sm:$0xf]
      %v10585 = vld [vmem:[%s1173 + $0x8c] sm:$0x1]
      %v10586 = vld [vmem:[%s1173 + $0x90] sm:$0xf]
      %v10587 = vld [vmem:[%s1173 + $0x94] sm:$0xf]
      %v10588 = vld [vmem:[%s1173 + $0x98] sm:$0x1]
      %v10589 = vld [vmem:[%s1173 + $0x9c] sm:$0xf]
      %v10590 = vld [vmem:[%s1173 + $0xa0] sm:$0xf]
      %v10591 = vld [vmem:[%s1173 + $0xa4] sm:$0x1]
      %v10592 = vld [vmem:[%s1173 + $0xa8] sm:$0xf]
      %v10593 = vld [vmem:[%s1173 + $0xac] sm:$0xf]
      %v10594 = vld [vmem:[%s1173 + $0xb0] sm:$0x1]
      %v10595 = vld [vmem:[%s1173 + $0xb4] sm:$0xf]
      %v10596 = vld [vmem:[%s1173 + $0xb8] sm:$0xf]
      %v10597 = vld [vmem:[%s1173 + $0xbc] sm:$0x1]
      %v10599 = vshrl.u32 %v10550, 16
      %v10601 = vrot.slane %v10599, 4
      %v10602 = vshll.u32 %v10550, 16
      %v10604 = vrot.slane %v10602, 5
      %v10605 = vor.u32 %v10601, %v10604
      %v10606 = vrot.slane %v10605, 4
      %v10608 = vshll.u32 %v10551, 16
      %v10610 = vrot.slane %v10608, 5
      %v10611 = vsel %vm449, %v10606, %v10610
      %v10612 = vshrl.u32 %v10551, 16
      %v10614 = vrot.slane %v10612, 4
      %v10615 = vor.u32 %v10614, %v10610
      %v10616 = vrot.slane %v10615, 4
      %v10618 = vshll.u32 %v10552, 16
      %v10620 = vrot.slane %v10618, 5
      %v10621 = vsel %vm449, %v10616, %v10620
      %v10623 = vshrl.u32 %v10553, 16
      %v10625 = vrot.slane %v10623, 4
      %v10626 = vshll.u32 %v10553, 16
      %v10628 = vrot.slane %v10626, 5
      %v10629 = vor.u32 %v10625, %v10628
      %v10630 = vrot.slane %v10629, 4
      %v10632 = vshll.u32 %v10554, 16
      %v10634 = vrot.slane %v10632, 5
      %v10635 = vsel %vm449, %v10630, %v10634
      %v10636 = vshrl.u32 %v10554, 16
      %v10638 = vrot.slane %v10636, 4
      %v10639 = vor.u32 %v10638, %v10634
      %v10640 = vrot.slane %v10639, 4
      %v10642 = vshll.u32 %v10555, 16
      %v10644 = vrot.slane %v10642, 5
      %v10645 = vsel %vm449, %v10640, %v10644
      %v10647 = vshrl.u32 %v10556, 16
      %v10649 = vrot.slane %v10647, 4
      %v10650 = vshll.u32 %v10556, 16
      %v10652 = vrot.slane %v10650, 5
      %v10653 = vor.u32 %v10649, %v10652
      %v10654 = vrot.slane %v10653, 4
      %v10656 = vshll.u32 %v10557, 16
      %v10658 = vrot.slane %v10656, 5
      %v10659 = vsel %vm449, %v10654, %v10658
      %v10660 = vshrl.u32 %v10557, 16
      %v10662 = vrot.slane %v10660, 4
      %v10663 = vor.u32 %v10662, %v10658
      %v10664 = vrot.slane %v10663, 4
      %v10666 = vshll.u32 %v10558, 16
      %v10668 = vrot.slane %v10666, 5
      %v10669 = vsel %vm449, %v10664, %v10668
      %v10671 = vshrl.u32 %v10559, 16
      %v10673 = vrot.slane %v10671, 4
      %v10674 = vshll.u32 %v10559, 16
      %v10676 = vrot.slane %v10674, 5
      %v10677 = vor.u32 %v10673, %v10676
      %v10678 = vrot.slane %v10677, 4
      %v10680 = vshll.u32 %v10560, 16
      %v10682 = vrot.slane %v10680, 5
      %v10683 = vsel %vm449, %v10678, %v10682
      %v10684 = vshrl.u32 %v10560, 16
      %v10686 = vrot.slane %v10684, 4
      %v10687 = vor.u32 %v10686, %v10682
      %v10688 = vrot.slane %v10687, 4
      %v10690 = vshll.u32 %v10561, 16
      %v10692 = vrot.slane %v10690, 5
      %v10693 = vsel %vm449, %v10688, %v10692
      %v10695 = vshrl.u32 %v10562, 16
      %v10697 = vrot.slane %v10695, 4
      %v10698 = vshll.u32 %v10562, 16
      %v10700 = vrot.slane %v10698, 5
      %v10701 = vor.u32 %v10697, %v10700
      %v10702 = vrot.slane %v10701, 4
      %v10704 = vshll.u32 %v10563, 16
      %v10706 = vrot.slane %v10704, 5
      %v10707 = vsel %vm449, %v10702, %v10706
      %v10708 = vshrl.u32 %v10563, 16
      %v10710 = vrot.slane %v10708, 4
      %v10711 = vor.u32 %v10710, %v10706
      %v10712 = vrot.slane %v10711, 4
      %v10714 = vshll.u32 %v10564, 16
      %v10716 = vrot.slane %v10714, 5
      %v10717 = vsel %vm449, %v10712, %v10716
      %v10719 = vshrl.u32 %v10565, 16
      %v10721 = vrot.slane %v10719, 4
      %v10722 = vshll.u32 %v10565, 16
      %v10724 = vrot.slane %v10722, 5
      %v10725 = vor.u32 %v10721, %v10724
      %v10726 = vrot.slane %v10725, 4
      %v10728 = vshll.u32 %v10566, 16
      %v10730 = vrot.slane %v10728, 5
      %v10731 = vsel %vm449, %v10726, %v10730
      %v10732 = vshrl.u32 %v10566, 16
      %v10734 = vrot.slane %v10732, 4
      %v10735 = vor.u32 %v10734, %v10730
      %v10736 = vrot.slane %v10735, 4
      %v10738 = vshll.u32 %v10567, 16
      %v10740 = vrot.slane %v10738, 5
      %v10741 = vsel %vm449, %v10736, %v10740
      %v10743 = vshrl.u32 %v10568, 16
      %v10745 = vrot.slane %v10743, 4
      %v10746 = vshll.u32 %v10568, 16
      %v10748 = vrot.slane %v10746, 5
      %v10749 = vor.u32 %v10745, %v10748
      %v10750 = vrot.slane %v10749, 4
      %v10752 = vshll.u32 %v10569, 16
      %v10754 = vrot.slane %v10752, 5
      %v10755 = vsel %vm449, %v10750, %v10754
      %v10756 = vshrl.u32 %v10569, 16
      %v10758 = vrot.slane %v10756, 4
      %v10759 = vor.u32 %v10758, %v10754
      %v10760 = vrot.slane %v10759, 4
      %v10762 = vshll.u32 %v10570, 16
      %v10764 = vrot.slane %v10762, 5
      %v10765 = vsel %vm449, %v10760, %v10764
      %v10767 = vshrl.u32 %v10571, 16
      %v10769 = vrot.slane %v10767, 4
      %v10770 = vshll.u32 %v10571, 16
      %v10772 = vrot.slane %v10770, 5
      %v10773 = vor.u32 %v10769, %v10772
      %v10774 = vrot.slane %v10773, 4
      %v10776 = vshll.u32 %v10572, 16
      %v10778 = vrot.slane %v10776, 5
      %v10779 = vsel %vm449, %v10774, %v10778
      %v10780 = vshrl.u32 %v10572, 16
      %v10782 = vrot.slane %v10780, 4
      %v10783 = vor.u32 %v10782, %v10778
      %v10784 = vrot.slane %v10783, 4
      %v10786 = vshll.u32 %v10573, 16
      %v10788 = vrot.slane %v10786, 5
      %v10789 = vsel %vm449, %v10784, %v10788
      %v10791 = vshrl.u32 %v10574, 16
      %v10793 = vrot.slane %v10791, 4
      %v10794 = vshll.u32 %v10574, 16
      %v10796 = vrot.slane %v10794, 5
      %v10797 = vor.u32 %v10793, %v10796
      %v10798 = vrot.slane %v10797, 4
      %v10800 = vshll.u32 %v10575, 16
      %v10802 = vrot.slane %v10800, 5
      %v10803 = vsel %vm449, %v10798, %v10802
      %v10804 = vshrl.u32 %v10575, 16
      %v10806 = vrot.slane %v10804, 4
      %v10807 = vor.u32 %v10806, %v10802
      %v10808 = vrot.slane %v10807, 4
      %v10810 = vshll.u32 %v10576, 16
      %v10812 = vrot.slane %v10810, 5
      %v10813 = vsel %vm449, %v10808, %v10812
      %v10815 = vshrl.u32 %v10577, 16
      %v10817 = vrot.slane %v10815, 4
      %v10818 = vshll.u32 %v10577, 16
      %v10820 = vrot.slane %v10818, 5
      %v10821 = vor.u32 %v10817, %v10820
      %v10822 = vrot.slane %v10821, 4
      %v10824 = vshll.u32 %v10578, 16
      %v10826 = vrot.slane %v10824, 5
      %v10827 = vsel %vm449, %v10822, %v10826
      %v10828 = vshrl.u32 %v10578, 16
      %v10830 = vrot.slane %v10828, 4
      %v10831 = vor.u32 %v10830, %v10826
      %v10832 = vrot.slane %v10831, 4
      %v10834 = vshll.u32 %v10579, 16
      %v10836 = vrot.slane %v10834, 5
      %v10837 = vsel %vm449, %v10832, %v10836
      %v10839 = vshrl.u32 %v10580, 16
      %v10841 = vrot.slane %v10839, 4
      %v10842 = vshll.u32 %v10580, 16
      %v10844 = vrot.slane %v10842, 5
      %v10845 = vor.u32 %v10841, %v10844
      %v10846 = vrot.slane %v10845, 4
      %v10848 = vshll.u32 %v10581, 16
      %v10850 = vrot.slane %v10848, 5
      %v10851 = vsel %vm449, %v10846, %v10850
      %v10852 = vshrl.u32 %v10581, 16
      %v10854 = vrot.slane %v10852, 4
      %v10855 = vor.u32 %v10854, %v10850
      %v10856 = vrot.slane %v10855, 4
      %v10858 = vshll.u32 %v10582, 16
      %v10860 = vrot.slane %v10858, 5
      %v10861 = vsel %vm449, %v10856, %v10860
      %v10863 = vshrl.u32 %v10583, 16
      %v10865 = vrot.slane %v10863, 4
      %v10866 = vshll.u32 %v10583, 16
      %v10868 = vrot.slane %v10866, 5
      %v10869 = vor.u32 %v10865, %v10868
      %v10870 = vrot.slane %v10869, 4
      %v10872 = vshll.u32 %v10584, 16
      %v10874 = vrot.slane %v10872, 5
      %v10875 = vsel %vm449, %v10870, %v10874
      %v10876 = vshrl.u32 %v10584, 16
      %v10878 = vrot.slane %v10876, 4
      %v10879 = vor.u32 %v10878, %v10874
      %v10880 = vrot.slane %v10879, 4
      %v10882 = vshll.u32 %v10585, 16
      %v10884 = vrot.slane %v10882, 5
      %v10885 = vsel %vm449, %v10880, %v10884
      %v10887 = vshrl.u32 %v10586, 16
      %v10889 = vrot.slane %v10887, 4
      %v10890 = vshll.u32 %v10586, 16
      %v10892 = vrot.slane %v10890, 5
      %v10893 = vor.u32 %v10889, %v10892
      %v10894 = vrot.slane %v10893, 4
      %v10896 = vshll.u32 %v10587, 16
      %v10898 = vrot.slane %v10896, 5
      %v10899 = vsel %vm449, %v10894, %v10898
      %v10900 = vshrl.u32 %v10587, 16
      %v10902 = vrot.slane %v10900, 4
      %v10903 = vor.u32 %v10902, %v10898
      %v10904 = vrot.slane %v10903, 4
      %v10906 = vshll.u32 %v10588, 16
      %v10908 = vrot.slane %v10906, 5
      %v10909 = vsel %vm449, %v10904, %v10908
      %v10911 = vshrl.u32 %v10589, 16
      %v10913 = vrot.slane %v10911, 4
      %v10914 = vshll.u32 %v10589, 16
      %v10916 = vrot.slane %v10914, 5
      %v10917 = vor.u32 %v10913, %v10916
      %v10918 = vrot.slane %v10917, 4
      %v10920 = vshll.u32 %v10590, 16
      %v10922 = vrot.slane %v10920, 5
      %v10923 = vsel %vm449, %v10918, %v10922
      %v10924 = vshrl.u32 %v10590, 16
      %v10926 = vrot.slane %v10924, 4
      %v10927 = vor.u32 %v10926, %v10922
      %v10928 = vrot.slane %v10927, 4
      %v10930 = vshll.u32 %v10591, 16
      %v10932 = vrot.slane %v10930, 5
      %v10933 = vsel %vm449, %v10928, %v10932
      %v10935 = vshrl.u32 %v10592, 16
      %v10937 = vrot.slane %v10935, 4
      %v10938 = vshll.u32 %v10592, 16
      %v10940 = vrot.slane %v10938, 5
      %v10941 = vor.u32 %v10937, %v10940
      %v10942 = vrot.slane %v10941, 4
      %v10944 = vshll.u32 %v10593, 16
      %v10946 = vrot.slane %v10944, 5
      %v10947 = vsel %vm449, %v10942, %v10946
      %v10948 = vshrl.u32 %v10593, 16
      %v10950 = vrot.slane %v10948, 4
      %v10951 = vor.u32 %v10950, %v10946
      %v10952 = vrot.slane %v10951, 4
      %v10954 = vshll.u32 %v10594, 16
      %v10956 = vrot.slane %v10954, 5
      %v10957 = vsel %vm449, %v10952, %v10956
      %v10959 = vshrl.u32 %v10595, 16
      %v10961 = vrot.slane %v10959, 4
      %v10962 = vshll.u32 %v10595, 16
      %v10964 = vrot.slane %v10962, 5
      %v10965 = vor.u32 %v10961, %v10964
      %v10966 = vrot.slane %v10965, 4
      %v10968 = vshll.u32 %v10596, 16
      %v10970 = vrot.slane %v10968, 5
      %v10971 = vsel %vm449, %v10966, %v10970
      %v10972 = vshrl.u32 %v10596, 16
      %v10974 = vrot.slane %v10972, 4
      %v10975 = vor.u32 %v10974, %v10970
      %v10976 = vrot.slane %v10975, 4
      %v10978 = vshll.u32 %v10597, 16
      %v10980 = vrot.slane %v10978, 5
      %v10981 = vsel %vm449, %v10976, %v10980
      %v10982 = vld [vmem:[%s4] sm:$0xf]
      %v10983 = vld [vmem:[%s4 + $0x4] sm:$0xf]
      %v10984 = vld [vmem:[%s4 + $0x8] sm:$0xf]
      %v10985 = vld [vmem:[%s4 + $0xc] sm:$0xf]
      %v10986 = vld [vmem:[%s4 + $0x10] sm:$0xf]
      %v10987 = vld [vmem:[%s4 + $0x14] sm:$0xf]
      %v10988 = vld [vmem:[%s4 + $0x18] sm:$0xf]
      %v10989 = vld [vmem:[%s4 + $0x1c] sm:$0xf]
      %v10990 = vld [vmem:[%s4 + $0x20] sm:$0xf]
      %v10991 = vld [vmem:[%s4 + $0x24] sm:$0xf]
      %v10992 = vld [vmem:[%s4 + $0x28] sm:$0xf]
      %v10993 = vld [vmem:[%s4 + $0x2c] sm:$0xf]
      %v10994 = vld [vmem:[%s4 + $0x30] sm:$0xf]
      %v10995 = vld [vmem:[%s4 + $0x34] sm:$0xf]
      %v10996 = vld [vmem:[%s4 + $0x38] sm:$0xf]
      %v10997 = vld [vmem:[%s4 + $0x3c] sm:$0xf]
      %v10998 = vunpack.c.l.b16 %v10611
      %v10999 = vunpack.c.l.b16 %v10621
      %v11000 = vunpack.c.l.b16 %v10635
      %v11001 = vunpack.c.l.b16 %v10645
      %v11002 = vunpack.c.l.b16 %v10659
      %v11003 = vunpack.c.l.b16 %v10669
      %v11004 = vunpack.c.l.b16 %v10683
      %v11005 = vunpack.c.l.b16 %v10693
      %v11006 = vunpack.c.l.b16 %v10707
      %v11007 = vunpack.c.l.b16 %v10717
      %v11008 = vunpack.c.l.b16 %v10731
      %v11009 = vunpack.c.l.b16 %v10741
      %v11010 = vunpack.c.l.b16 %v10755
      %v11011 = vunpack.c.l.b16 %v10765
      %v11012 = vunpack.c.l.b16 %v10779
      %v11013 = vunpack.c.l.b16 %v10789
      %v11014 = vunpack.c.l.b16 %v10803
      %v11015 = vunpack.c.l.b16 %v10813
      %v11016 = vunpack.c.l.b16 %v10827
      %v11017 = vunpack.c.l.b16 %v10837
      %v11018 = vunpack.c.l.b16 %v10851
      %v11019 = vunpack.c.l.b16 %v10861
      %v11020 = vunpack.c.l.b16 %v10875
      %v11021 = vunpack.c.l.b16 %v10885
      %v11022 = vunpack.c.l.b16 %v10899
      %v11023 = vunpack.c.l.b16 %v10909
      %v11024 = vunpack.c.l.b16 %v10923
      %v11025 = vunpack.c.l.b16 %v10933
      %v11026 = vunpack.c.l.b16 %v10947
      %v11027 = vunpack.c.l.b16 %v10957
      %v11028 = vunpack.c.l.b16 %v10971
      %v11029 = vunpack.c.l.b16 %v10981
      %v11030 = vpack.c.b16 %v10999, %v10998
      %v11031 = vpack.c.b16 %v11001, %v11000
      %v11032 = vpack.c.b16 %v11003, %v11002
      %v11033 = vpack.c.b16 %v11005, %v11004
      %v11034 = vpack.c.b16 %v11007, %v11006
      %v11035 = vpack.c.b16 %v11009, %v11008
      %v11036 = vpack.c.b16 %v11011, %v11010
      %v11037 = vpack.c.b16 %v11013, %v11012
      %v11038 = vpack.c.b16 %v11015, %v11014
      %v11039 = vpack.c.b16 %v11017, %v11016
      %v11040 = vpack.c.b16 %v11019, %v11018
      %v11041 = vpack.c.b16 %v11021, %v11020
      %v11042 = vpack.c.b16 %v11023, %v11022
      %v11043 = vpack.c.b16 %v11025, %v11024
      %v11044 = vpack.c.b16 %v11027, %v11026
      %v11045 = vpack.c.b16 %v11029, %v11028
      %v11078 = vunpack.c.l.b16 %v10982
      %v11079 = vunpack.c.l.b16 %v10983
      %v11080 = vunpack.c.l.b16 %v10984
      %v11081 = vunpack.c.l.b16 %v10985
      %v11082 = vunpack.c.l.b16 %v10986
      %v11083 = vunpack.c.l.b16 %v10987
      %v11084 = vunpack.c.l.b16 %v10988
      %v11085 = vunpack.c.l.b16 %v10989
      %v11086 = vunpack.c.l.b16 %v10990
      %v11087 = vunpack.c.l.b16 %v10991
      %v11088 = vunpack.c.l.b16 %v10992
      %v11089 = vunpack.c.l.b16 %v10993
      %v11090 = vunpack.c.l.b16 %v10994
      %v11091 = vunpack.c.l.b16 %v10995
      %v11092 = vunpack.c.l.b16 %v10996
      %v11093 = vunpack.c.l.b16 %v10997
      %v11094 = vpack.c.b16 %v11079, %v11078
      %v11095 = vpack.c.b16 %v11081, %v11080
      %v11096 = vpack.c.b16 %v11083, %v11082
      %v11097 = vpack.c.b16 %v11085, %v11084
      %v11098 = vpack.c.b16 %v11087, %v11086
      %v11099 = vpack.c.b16 %v11089, %v11088
      %v11100 = vpack.c.b16 %v11091, %v11090
      %v11101 = vpack.c.b16 %v11093, %v11092
      %11110 = vmatpush.bf16.msra.mxu0 %v11101
      %11111 = vmatpush.bf16.msra.mxu0 %v11100
      %11112 = vmatpush.bf16.msra.mxu0 %v11099
      %11113 = vmatpush.bf16.msra.mxu0 %v11098
      %11114 = vmatpush.bf16.msra.mxu0 %v11097
      %11115 = vmatpush.bf16.msra.mxu0 %v11096
      %11116 = vmatpush.bf16.msra.mxu0 %v11095
      %11117 = vmatpush.bf16.msra.mxu0 %v11094
      %11118 = vmatmul.bf16.gmra.mxu0 %v11030
      %v11119 = vpop.f32.mrf.mxu0
      %v11120 = vadd.f32 0.0, %v11119
      %v11121 = vpop.f32.mrf.mxu0
      %v11122 = vadd.f32 0.0, %v11121
      %11123 = vmatmul.bf16.gmra.mxu0 %v11031
      %v11124 = vpop.f32.mrf.mxu0
      %v11125 = vadd.f32 0.0, %v11124
      %v11126 = vpop.f32.mrf.mxu0
      %v11127 = vadd.f32 0.0, %v11126
      %11128 = vmatmul.bf16.gmra.mxu0 %v11032
      %v11129 = vpop.f32.mrf.mxu0
      %v11130 = vadd.f32 0.0, %v11129
      %v11131 = vpop.f32.mrf.mxu0
      %v11132 = vadd.f32 0.0, %v11131
      %11133 = vmatmul.bf16.gmra.mxu0 %v11033
      %v11134 = vpop.f32.mrf.mxu0
      %v11135 = vadd.f32 0.0, %v11134
      %v11136 = vpop.f32.mrf.mxu0
      %v11137 = vadd.f32 0.0, %v11136
      %11138 = vmatmul.bf16.gmra.mxu0 %v11034
      %v11139 = vpop.f32.mrf.mxu0
      %v11140 = vadd.f32 0.0, %v11139
      %v11141 = vpop.f32.mrf.mxu0
      %v11142 = vadd.f32 0.0, %v11141
      %11143 = vmatmul.bf16.gmra.mxu0 %v11035
      %v11144 = vpop.f32.mrf.mxu0
      %v11145 = vadd.f32 0.0, %v11144
      %v11146 = vpop.f32.mrf.mxu0
      %v11147 = vadd.f32 0.0, %v11146
      %11148 = vmatmul.bf16.gmra.mxu0 %v11036
      %v11149 = vpop.f32.mrf.mxu0
      %v11150 = vadd.f32 0.0, %v11149
      %v11151 = vpop.f32.mrf.mxu0
      %v11152 = vadd.f32 0.0, %v11151
      %11153 = vmatmul.bf16.gmra.mxu0 %v11037
      %v11154 = vpop.f32.mrf.mxu0
      %v11155 = vadd.f32 0.0, %v11154
      %v11156 = vpop.f32.mrf.mxu0
      %v11157 = vadd.f32 0.0, %v11156
      %11158 = vmatmul.bf16.gmra.mxu0 %v11038
      %v11159 = vpop.f32.mrf.mxu0
      %v11160 = vadd.f32 0.0, %v11159
      %v11161 = vpop.f32.mrf.mxu0
      %v11162 = vadd.f32 0.0, %v11161
      %11163 = vmatmul.bf16.gmra.mxu0 %v11039
      %v11164 = vpop.f32.mrf.mxu0
      %v11165 = vadd.f32 0.0, %v11164
      %v11166 = vpop.f32.mrf.mxu0
      %v11167 = vadd.f32 0.0, %v11166
      %11168 = vmatmul.bf16.gmra.mxu0 %v11040
      %v11169 = vpop.f32.mrf.mxu0
      %v11170 = vadd.f32 0.0, %v11169
      %v11171 = vpop.f32.mrf.mxu0
      %v11172 = vadd.f32 0.0, %v11171
      %11173 = vmatmul.bf16.gmra.mxu0 %v11041
      %v11174 = vpop.f32.mrf.mxu0
      %v11175 = vadd.f32 0.0, %v11174
      %v11176 = vpop.f32.mrf.mxu0
      %v11177 = vadd.f32 0.0, %v11176
      %11178 = vmatmul.bf16.gmra.mxu0 %v11042
      %v11179 = vpop.f32.mrf.mxu0
      %v11180 = vadd.f32 0.0, %v11179
      %v11181 = vpop.f32.mrf.mxu0
      %v11182 = vadd.f32 0.0, %v11181
      %11183 = vmatmul.bf16.gmra.mxu0 %v11043
      %v11184 = vpop.f32.mrf.mxu0
      %v11185 = vadd.f32 0.0, %v11184
      %v11186 = vpop.f32.mrf.mxu0
      %v11187 = vadd.f32 0.0, %v11186
      %11188 = vmatmul.bf16.gmra.mxu0 %v11044
      %v11189 = vpop.f32.mrf.mxu0
      %v11190 = vadd.f32 0.0, %v11189
      %v11191 = vpop.f32.mrf.mxu0
      %v11192 = vadd.f32 0.0, %v11191
      %11193 = vmatmul.bf16.gmra.mxu0 %v11045
      %v11194 = vpop.f32.mrf.mxu0
      %v11195 = vadd.f32 0.0, %v11194
      %v11196 = vpop.f32.mrf.mxu0
      %v11197 = vadd.f32 0.0, %v11196
      %11198 = vdwg.mxu0
      %v11199 = vld [vmem:[%s3 + $0x4] sm:$0x1]
      %v11200 = vperm.slane %v11199, 0
      %v11201 = vmul.f32 %v11120, %v11200
      %v11202 = vmul.f32 %v11122, %v11200
      %v11203 = vmul.f32 %v11125, %v11200
      %v11204 = vmul.f32 %v11127, %v11200
      %v11205 = vmul.f32 %v11130, %v11200
      %v11206 = vmul.f32 %v11132, %v11200
      %v11207 = vmul.f32 %v11135, %v11200
      %v11208 = vmul.f32 %v11137, %v11200
      %v11209 = vmul.f32 %v11140, %v11200
      %v11210 = vmul.f32 %v11142, %v11200
      %v11211 = vmul.f32 %v11145, %v11200
      %v11212 = vmul.f32 %v11147, %v11200
      %v11213 = vmul.f32 %v11150, %v11200
      %v11214 = vmul.f32 %v11152, %v11200
      %v11215 = vmul.f32 %v11155, %v11200
      %v11216 = vmul.f32 %v11157, %v11200
      %v11217 = vmul.f32 %v11160, %v11200
      %v11218 = vmul.f32 %v11162, %v11200
      %v11219 = vmul.f32 %v11165, %v11200
      %v11220 = vmul.f32 %v11167, %v11200
      %v11221 = vmul.f32 %v11170, %v11200
      %v11222 = vmul.f32 %v11172, %v11200
      %v11223 = vmul.f32 %v11175, %v11200
      %v11224 = vmul.f32 %v11177, %v11200
      %v11225 = vmul.f32 %v11180, %v11200
      %v11226 = vmul.f32 %v11182, %v11200
      %v11227 = vmul.f32 %v11185, %v11200
      %v11228 = vmul.f32 %v11187, %v11200
      %v11229 = vmul.f32 %v11190, %v11200
      %v11230 = vmul.f32 %v11192, %v11200
      %v11231 = vmul.f32 %v11195, %v11200
      %v11232 = vmul.f32 %v11197, %v11200
      %v11233 = vld [vmem:[%s3 + $0x5] sm:$0x1]
      %v11234 = vperm.slane %v11233, 0
      %v11235 = vadd.f32 %v11201, %v11234
      %v11236 = vadd.f32 %v11202, %v11234
      %v11237 = vadd.f32 %v11203, %v11234
      %v11238 = vadd.f32 %v11204, %v11234
      %v11239 = vadd.f32 %v11205, %v11234
      %v11240 = vadd.f32 %v11206, %v11234
      %v11241 = vadd.f32 %v11207, %v11234
      %v11242 = vadd.f32 %v11208, %v11234
      %v11243 = vadd.f32 %v11209, %v11234
      %v11244 = vadd.f32 %v11210, %v11234
      %v11245 = vadd.f32 %v11211, %v11234
      %v11246 = vadd.f32 %v11212, %v11234
      %v11247 = vadd.f32 %v11213, %v11234
      %v11248 = vadd.f32 %v11214, %v11234
      %v11249 = vadd.f32 %v11215, %v11234
      %v11250 = vadd.f32 %v11216, %v11234
      %v11251 = vadd.f32 %v11217, %v11234
      %v11252 = vadd.f32 %v11218, %v11234
      %v11253 = vadd.f32 %v11219, %v11234
      %v11254 = vadd.f32 %v11220, %v11234
      %v11255 = vadd.f32 %v11221, %v11234
      %v11256 = vadd.f32 %v11222, %v11234
      %v11257 = vadd.f32 %v11223, %v11234
      %v11258 = vadd.f32 %v11224, %v11234
      %v11259 = vadd.f32 %v11225, %v11234
      %v11260 = vadd.f32 %v11226, %v11234
      %v11261 = vadd.f32 %v11227, %v11234
      %v11262 = vadd.f32 %v11228, %v11234
      %v11263 = vadd.f32 %v11229, %v11234
      %v11264 = vadd.f32 %v11230, %v11234
      %v11265 = vadd.f32 %v11231, %v11234
      %v11266 = vadd.f32 %v11232, %v11234
      %v11267 = vadd.f32 %v10518, %v11235
      %v11268 = vadd.f32 %v10519, %v11236
      %v11269 = vadd.f32 %v10520, %v11237
      %v11270 = vadd.f32 %v10521, %v11238
      %v11271 = vadd.f32 %v10522, %v11239
      %v11272 = vadd.f32 %v10523, %v11240
      %v11273 = vadd.f32 %v10524, %v11241
      %v11274 = vadd.f32 %v10525, %v11242
      %v11275 = vadd.f32 %v10526, %v11243
      %v11276 = vadd.f32 %v10527, %v11244
      %v11277 = vadd.f32 %v10528, %v11245
      %v11278 = vadd.f32 %v10529, %v11246
      %v11279 = vadd.f32 %v10530, %v11247
      %v11280 = vadd.f32 %v10531, %v11248
      %v11281 = vadd.f32 %v10532, %v11249
      %v11282 = vadd.f32 %v10533, %v11250
      %v11283 = vadd.f32 %v10534, %v11251
      %v11284 = vadd.f32 %v10535, %v11252
      %v11285 = vadd.f32 %v10536, %v11253
      %v11286 = vadd.f32 %v10537, %v11254
      %v11287 = vadd.f32 %v10538, %v11255
      %v11288 = vadd.f32 %v10539, %v11256
      %v11289 = vadd.f32 %v10540, %v11257
      %v11290 = vadd.f32 %v10541, %v11258
      %v11291 = vadd.f32 %v10542, %v11259
      %v11292 = vadd.f32 %v10543, %v11260
      %v11293 = vadd.f32 %v10544, %v11261
      %v11294 = vadd.f32 %v10545, %v11262
      %v11295 = vadd.f32 %v10546, %v11263
      %v11296 = vadd.f32 %v10547, %v11264
      %v11297 = vadd.f32 %v10548, %v11265
      %v11298 = vadd.f32 %v10549, %v11266
      %11299 = vst [vmem:[%s224] sm:$0xff] %v11267
      %11300 = vst [vmem:[%s224 + $0x8] sm:$0xff] %v11268
      %11301 = vst [vmem:[%s224 + $0x10] sm:$0xff] %v11269
      %11302 = vst [vmem:[%s224 + $0x18] sm:$0xff] %v11270
      %11303 = vst [vmem:[%s224 + $0x20] sm:$0xff] %v11271
      %11304 = vst [vmem:[%s224 + $0x28] sm:$0xff] %v11272
      %11305 = vst [vmem:[%s224 + $0x30] sm:$0xff] %v11273
      %11306 = vst [vmem:[%s224 + $0x38] sm:$0xff] %v11274
      %11307 = vst [vmem:[%s224 + $0x40] sm:$0xff] %v11275
      %11308 = vst [vmem:[%s224 + $0x48] sm:$0xff] %v11276
      %11309 = vst [vmem:[%s224 + $0x50] sm:$0xff] %v11277
      %11310 = vst [vmem:[%s224 + $0x58] sm:$0xff] %v11278
      %11311 = vst [vmem:[%s224 + $0x60] sm:$0xff] %v11279
      %11312 = vst [vmem:[%s224 + $0x68] sm:$0xff] %v11280
      %11313 = vst [vmem:[%s224 + $0x70] sm:$0xff] %v11281
      %11314 = vst [vmem:[%s224 + $0x78] sm:$0xff] %v11282
      %11315 = vst [vmem:[%s224 + $0x80] sm:$0xff] %v11283
      %11316 = vst [vmem:[%s224 + $0x88] sm:$0xff] %v11284
      %11317 = vst [vmem:[%s224 + $0x90] sm:$0xff] %v11285
      %11318 = vst [vmem:[%s224 + $0x98] sm:$0xff] %v11286
      %11319 = vst [vmem:[%s224 + $0xa0] sm:$0xff] %v11287
      %11320 = vst [vmem:[%s224 + $0xa8] sm:$0xff] %v11288
      %11321 = vst [vmem:[%s224 + $0xb0] sm:$0xff] %v11289
      %11322 = vst [vmem:[%s224 + $0xb8] sm:$0xff] %v11290
      %11323 = vst [vmem:[%s224 + $0xc0] sm:$0xff] %v11291
      %11324 = vst [vmem:[%s224 + $0xc8] sm:$0xff] %v11292
      %11325 = vst [vmem:[%s224 + $0xd0] sm:$0xff] %v11293
      %11326 = vst [vmem:[%s224 + $0xd8] sm:$0xff] %v11294
      %11327 = vst [vmem:[%s224 + $0xe0] sm:$0xff] %v11295
      %11328 = vst [vmem:[%s224 + $0xe8] sm:$0xff] %v11296
      %11329 = vst [vmem:[%s224 + $0xf0] sm:$0xff] %v11297
      %11330 = vst [vmem:[%s224 + $0xf8] sm:$0xff] %v11298
      %p11331 = scmp.lt.s32.totalorder %s16, 1
      %s11332 = scalar_select %p11331, %s16, 1
      %s11333 = smul.addr %s11332, 32
      %s11334 = smul.addr %s11333, 8
      %s11335 = scalar_lea.vmem %s5, %s11334
      // Predicated region
      $region41: #{wide_basic_apply.1} parent=39 // pred_check
        %p11336 = pneg %p144
      $region42: #{wide_basic_apply.1} parent=39 // pred_check_branch
        %11338 = sbr.rel (%p11336) target = $region44
      $region43: #{wide_basic_apply.1} parent=39 // pred_region
        _
      $region44: #{wide_basic_apply.1} parent=39 // pred_fallthru
        _
    $region40: #{wide_basic_apply.1} parent=5 // pred_fallthru
      _
    %p11339 = scmp.le.s32.totalorder 2, %s11
    // Predicated region
    $region45: #{wide_basic_apply.1} parent=5 // pred_check
      %p11340 = pneg %p11339
    $region46: #{wide_basic_apply.1} parent=5 // pred_check_branch
      %11342 = sbr.rel (%p11340) target = $region48
    $region47: #{wide_basic_apply.1} parent=5 // pred_region
      %s11343 = ssub.s32 %s11, 2
      // Predicated region
      $region49: #{wide_basic_apply.1} parent=47 // pred_check
        %p11344 = pneg %p150
      $region50: #{wide_basic_apply.1} parent=47 // pred_check_branch
        %11346 = sbr.rel (%p11344) target = $region52
      $region51: #{wide_basic_apply.1} parent=47 // pred_region
        %p11347 = scmp.lt.s32.totalorder %s17, 1
        %s11348 = scalar_select %p11347, %s17, 1
        %s11349 = smul.addr %s11348, 32
        %s11350 = smul.addr %s11349, 8
        %s11351 = scalar_lea.vmem %s5, %s11350
      $region52: #{wide_basic_apply.1} parent=47 // pred_fallthru
        _
    $region48: #{wide_basic_apply.1} parent=5 // pred_fallthru
      _
  $region6: #{wide_basic_apply.1} parent=0 // loop_footer
    %s15 = sadd.s32 1, %s11
  $region7: #{wide_basic_apply.1} parent=0 // loop_footer_branch
    %10 = sbr.rel target = $region3
  $region8: #{wide_basic_apply.1} parent=0 // loop_exit
    _

</llo_original>
